<compile_context>
chip_gen: v7x
topology: tpu7x:2x2x1
jax: 0.10.0
libtpu: 0.0.40
codegen_flags: <defaults>
</compile_context>

<pallas_src>
import math
import functools

import jax
import jax.numpy as jnp
from jax import lax
from jax.experimental import pallas as pl
from jax.experimental.pallas import tpu as pltpu

# ---------------- small synthetic config (mirrors GPTConfig fields) ----------
VOCAB = 256
N_LAYER = 2
N_HEAD = 4
N_KV_HEAD = 2            # GQA: n_rep = 2
N_EMBD = 128
HEAD_DIM = N_EMBD // N_HEAD
WINDOW = 16              # window_size
BLOCK_SIZE = 64          # block_size
EPS = 1e-6               # RMSNorm eps

VMEM_LIMIT = 32 * 1024 * 1024   # explicit scoped-VMEM budget (safe on v5e/v6e/v7x)


def _compiler_params(semantics):
    return pltpu.CompilerParams(dimension_semantics=semantics,
                                vmem_limit_bytes=VMEM_LIMIT)


def _rms(x_f32, gamma_f32):
    var = jnp.mean(x_f32 * x_f32, axis=-1, keepdims=True)
    return x_f32 * lax.rsqrt(var + EPS) * gamma_f32


# ============================ Pallas kernels ================================

# --- fused RMSNorm + matmul + bias (QKV projection) --------------------------
def _rms_matmul_bias_kernel(x_ref, g_ref, w_ref, b_ref, o_ref):
    h = _rms(x_ref[...].astype(jnp.float32),
             g_ref[...].astype(jnp.float32)).astype(jnp.bfloat16)
    acc = jnp.dot(h, w_ref[...], preferred_element_type=jnp.float32)
    o_ref[...] = (acc + b_ref[...].astype(jnp.float32)).astype(o_ref.dtype)


def rms_matmul_bias(x, gamma, w, b, *, tm=128, tn=256, out_dtype=jnp.float32):
    """out = rmsnorm(x, gamma) @ w + b.   x:[M,K] f32, w:[K,N] bf16, b:[N] f32."""
    M, K = x.shape
    N = w.shape[1]
    tm = min(tm, M)
    tn = min(tn, N)
    assert M % tm == 0 and N % tn == 0
    return pl.pallas_call(
        _rms_matmul_bias_kernel,
        out_shape=jax.ShapeDtypeStruct((M, N), out_dtype),
        grid=(M // tm, N // tn),
        in_specs=[
            pl.BlockSpec((tm, K), lambda i, j: (i, 0)),
            pl.BlockSpec((1, K), lambda i, j: (0, 0)),
            pl.BlockSpec((K, tn), lambda i, j: (0, j)),
            pl.BlockSpec((1, tn), lambda i, j: (0, j)),
        ],
        out_specs=pl.BlockSpec((tm, tn), lambda i, j: (i, j)),
        compiler_params=_compiler_params(("parallel", "parallel")),
    )(x, gamma.reshape(1, K), w, b.reshape(1, N))


# --- matmul + bias + residual (attention output projection) ------------------
def _matmul_bias_resid_kernel(x_ref, w_ref, b_ref, r_ref, o_ref):
    acc = jnp.dot(x_ref[...].astype(jnp.bfloat16), w_ref[...],
                  preferred_element_type=jnp.float32)
    o_ref[...] = (acc + b_ref[...].astype(jnp.float32)
                  + r_ref[...].astype(jnp.float32)).astype(o_ref.dtype)


def matmul_bias_residual(x, w, b, resid, *, tm=128, tn=256):
    """out = x @ w + b + resid.   x:[M,K] (bf16/f32), w:[K,N] bf16, resid:[M,N] f32."""
    M, K = x.shape
    N = w.shape[1]
    tm = min(tm, M)
    tn = min(tn, N)
    assert M % tm == 0 and N % tn == 0
    return pl.pallas_call(
        _matmul_bias_resid_kernel,
        out_shape=jax.ShapeDtypeStruct((M, N), jnp.float32),
        grid=(M // tm, N // tn),
        in_specs=[
            pl.BlockSpec((tm, K), lambda i, j: (i, 0)),
            pl.BlockSpec((K, tn), lambda i, j: (0, j)),
            pl.BlockSpec((1, tn), lambda i, j: (0, j)),
            pl.BlockSpec((tm, tn), lambda i, j: (i, j)),
        ],
        out_specs=pl.BlockSpec((tm, tn), lambda i, j: (i, j)),
        compiler_params=_compiler_params(("parallel", "parallel")),
    )(x, w, b.reshape(1, N), resid)


# --- fused RMSNorm + SwiGLU MLP + residual, hidden dim blocked ----------------
def _rms_swiglu_resid_kernel(x_ref, g_ref, w1_ref, b1_ref, w2_ref, b2_ref,
                             wp_ref, bp_ref, o_ref, hnorm_ref, acc_ref):
    jh = pl.program_id(1)

    @pl.when(jh == 0)
    def _():
        h = _rms(x_ref[...].astype(jnp.float32), g_ref[...].astype(jnp.float32))
        hnorm_ref[...] = h.astype(jnp.bfloat16)
        acc_ref[...] = jnp.zeros_like(acc_ref)

    h = hnorm_ref[...]
    g = (jnp.dot(h, w1_ref[...], preferred_element_type=jnp.float32)
         + b1_ref[...].astype(jnp.float32))
    lin = (jnp.dot(h, w2_ref[...], preferred_element_type=jnp.float32)
           + b2_ref[...].astype(jnp.float32))
    m = (g * jax.nn.sigmoid(g)) * lin                  # SiLU(gate) * linear
    acc_ref[...] += jnp.dot(m.astype(jnp.bfloat16), wp_ref[...],
                            preferred_element_type=jnp.float32)

    @pl.when(jh == pl.num_programs(1) - 1)
    def _():
        o_ref[...] = (acc_ref[...] + bp_ref[...].astype(jnp.float32)
                      + x_ref[...].astype(jnp.float32)).astype(o_ref.dtype)


def rms_swiglu_residual(x, gamma, w1, b1, w2, b2, wp, bp, *, tm=128, th=256):
    """out = x + c_proj(silu(c_fc1(rmsnorm(x))) * c_fc2(rmsnorm(x)))."""
    M, D = x.shape
    H = w1.shape[1]
    tm = min(tm, M)
    th = min(th, H)
    assert M % tm == 0 and H % th == 0
    return pl.pallas_call(
        _rms_swiglu_resid_kernel,
        out_shape=jax.ShapeDtypeStruct((M, D), jnp.float32),
        grid=(M // tm, H // th),
        in_specs=[
            pl.BlockSpec((tm, D), lambda i, j: (i, 0)),   # x (norm input + residual)
            pl.BlockSpec((1, D), lambda i, j: (0, 0)),    # gamma
            pl.BlockSpec((D, th), lambda i, j: (0, j)),   # w_fc1
            pl.BlockSpec((1, th), lambda i, j: (0, j)),   # b_fc1
            pl.BlockSpec((D, th), lambda i, j: (0, j)),   # w_fc2
            pl.BlockSpec((1, th), lambda i, j: (0, j)),   # b_fc2
            pl.BlockSpec((th, D), lambda i, j: (j, 0)),   # w_proj
            pl.BlockSpec((1, D), lambda i, j: (0, 0)),    # b_proj
        ],
        out_specs=pl.BlockSpec((tm, D), lambda i, j: (i, 0)),
        scratch_shapes=[pltpu.VMEM((tm, D), jnp.bfloat16),   # normalized x, reused per H-chunk
                        pltpu.VMEM((tm, D), jnp.float32)],   # f32 accumulator
        compiler_params=_compiler_params(("parallel", "arbitrary")),
    )(x, gamma.reshape(1, D), w1, b1.reshape(1, H), w2, b2.reshape(1, H),
      wp, bp.reshape(1, D))


# --- attention: RoPE + GQA + sliding-window softmax, fused per (batch, q-block)
def _attention_kernel(q_ref, k_ref, v_ref, cq_ref, sq_ref, ck_ref, sk_ref,
                      o_ref, *, scale, window, n_head, n_kv_head, head_dim, tq):
    n_rep = n_head // n_kv_head
    half = head_dim // 2
    qblk = pl.program_id(1)
    T = k_ref.shape[1]

    q = q_ref[0].astype(jnp.float32)      # (tq, H*Dh)   half-split per head
    k = k_ref[0].astype(jnp.float32)      # (T,  KV*Dh)  half-split per head
    v = v_ref[0]                          # (T,  KV*Dh)  bf16

    cq = cq_ref[...]                      # (tq, Dh/2) f32
    sq = sq_ref[...]
    ck = ck_ref[...]                      # (T,  Dh/2) f32
    sk = sk_ref[...]

    def rope(xh, c, s):
        # half-split RoPE: xh = [x_even | x_odd], equivalent (up to the fixed
        # per-head column permutation baked into c_attn) to interleaved RoPE.
        x1 = xh[:, :half]
        x2 = xh[:, half:]
        return jnp.concatenate([x1 * c - x2 * s, x1 * s + x2 * c], axis=-1)

    # sliding-window causal mask built in-kernel (no T*T HBM mask traffic)
    q_pos = qblk * tq + lax.broadcasted_iota(jnp.int32, (tq, T), 0)
    k_pos = lax.broadcasted_iota(jnp.int32, (tq, T), 1)
    allowed = (k_pos <= q_pos) & (k_pos > q_pos - window)

    outs = [None] * n_head
    for g in range(n_kv_head):
        # rotate / slice each KV head once, shared by its n_rep query heads
        kh = rope(k[:, g * head_dim:(g + 1) * head_dim], ck, sk).astype(jnp.bfloat16)
        vh = v[:, g * head_dim:(g + 1) * head_dim]
        for r in range(n_rep):
            h = g * n_rep + r
            qh = rope(q[:, h * head_dim:(h + 1) * head_dim], cq, sq
                      ).astype(jnp.bfloat16)
            s = lax.dot_general(qh, kh, (((1,), (1,)), ((), ())),
                                preferred_element_type=jnp.float32) * scale
            s = jnp.where(allowed, s, jnp.float32(-1e30))      # finite mask (NaN-safe)
            m = jnp.max(s, axis=-1, keepdims=True)
            p = jnp.exp(s - m)
            l = jnp.sum(p, axis=-1, keepdims=True)
            p = p * pl.reciprocal(l, approx=True)               # EUP reciprocal
            outs[h] = jnp.dot(p.astype(jnp.bfloat16), vh,
                              preferred_element_type=jnp.float32)
    # one lane-dense (tq, H*Dh = 128) store per grid step
    o_ref[0] = jnp.concatenate(outs, axis=-1).astype(o_ref.dtype)


def attention(q, k, v, cos, sin, *, window, n_head=N_HEAD, n_kv_head=N_KV_HEAD,
              head_dim=HEAD_DIM, tq=None):
    """q:[B,T,H*Dh], k/v:[B,T,KV*Dh] (bf16, half-split q/k layout),
    cos/sin:[T,Dh/2] f32.  Returns [B,T,H*Dh] bf16."""
    B, T, QD = q.shape
    KD = k.shape[-1]
    half = head_dim // 2
    if tq is None:
        tq = min(T, 128)
    assert T % tq == 0
    scale = 1.0 / math.sqrt(head_dim)
    kern = functools.partial(_attention_kernel, scale=scale, window=window,
                             n_head=n_head, n_kv_head=n_kv_head,
                             head_dim=head_dim, tq=tq)
    # TODO(synk): for large T, block the KV axis too (flash m/l/acc scratch) and
    #             skip KV blocks entirely outside the sliding window.
    return pl.pallas_call(
        kern,
        out_shape=jax.ShapeDtypeStruct((B, T, QD), jnp.bfloat16),
        grid=(B, T // tq),
        in_specs=[
            pl.BlockSpec((1, tq, QD), lambda b, t: (b, t, 0)),
            pl.BlockSpec((1, T, KD), lambda b, t: (b, 0, 0)),
            pl.BlockSpec((1, T, KD), lambda b, t: (b, 0, 0)),
            pl.BlockSpec((tq, half), lambda b, t: (t, 0)),   # cos for this q block
            pl.BlockSpec((tq, half), lambda b, t: (t, 0)),   # sin for this q block
            pl.BlockSpec((T, half), lambda b, t: (0, 0)),    # cos for all k rows
            pl.BlockSpec((T, half), lambda b, t: (0, 0)),    # sin for all k rows
        ],
        out_specs=pl.BlockSpec((1, tq, QD), lambda b, t: (b, t, 0)),
        compiler_params=_compiler_params(("parallel", "parallel")),
    )(q, k, v, cos, sin, cos, sin)


# --- fused final RMSNorm + tied lm_head (x @ wte^T, no transpose in HBM) ------
def _rms_lmhead_kernel(x_ref, g_ref, w_ref, o_ref):
    h = _rms(x_ref[...].astype(jnp.float32),
             g_ref[...].astype(jnp.float32)).astype(jnp.bfloat16)
    o_ref[...] = lax.dot_general(h, w_ref[...], (((1,), (1,)), ((), ())),
                                 preferred_element_type=jnp.float32
                                 ).astype(o_ref.dtype)


def rms_lm_head(x, gamma, wte, *, tm=128, tv=256):
    """logits = rmsnorm(x, gamma) @ wte.T (tied weights, no bias)."""
    M, D = x.shape
    V = wte.shape[0]
    tm = min(tm, M)
    tv = min(tv, V)
    assert M % tm == 0 and V % tv == 0
    return pl.pallas_call(
        _rms_lmhead_kernel,
        out_shape=jax.ShapeDtypeStruct((M, V), jnp.float32),
        grid=(M // tm, V // tv),
        in_specs=[
            pl.BlockSpec((tm, D), lambda i, j: (i, 0)),
            pl.BlockSpec((1, D), lambda i, j: (0, 0)),
            pl.BlockSpec((tv, D), lambda i, j: (j, 0)),
        ],
        out_specs=pl.BlockSpec((tm, tv), lambda i, j: (i, j)),
        compiler_params=_compiler_params(("parallel", "parallel")),
    )(x, gamma.reshape(1, D), wte)


# =============================== glue (plain JAX) ===========================

def precompute_freqs_cis(dim, end, theta=10000.0):
    # (cos, sin) each [end, dim//2]  (real form of the complex freqs)
    freqs = 1.0 / (theta ** (jnp.arange(0, dim, 2, dtype=jnp.float32) / dim))
    t = jnp.arange(end, dtype=jnp.float32)
    ang = jnp.outer(t, freqs)
    return jnp.cos(ang), jnp.sin(ang)


def _halfsplit_qkv_col_perm():
    """Column permutation for c_attn so q/k per-head dims are stored as
    [even pairs | odd pairs].  Attention is invariant to this common per-head
    permutation of q and k; it lets the kernel apply RoPE with two lane slices
    instead of an interleaved (..., Dh/2, 2) layout."""
    head_perm = jnp.concatenate([jnp.arange(0, HEAD_DIM, 2, dtype=jnp.int32),
                                 jnp.arange(1, HEAD_DIM, 2, dtype=jnp.int32)])
    qd = N_HEAD * HEAD_DIM
    kd = N_KV_HEAD * HEAD_DIM
    q_perm = jnp.concatenate([h * HEAD_DIM + head_perm for h in range(N_HEAD)])
    k_perm = qd + jnp.concatenate([g * HEAD_DIM + head_perm
                                   for g in range(N_KV_HEAD)])
    v_perm = qd + kd + jnp.arange(kd, dtype=jnp.int32)
    return jnp.concatenate([q_perm, k_perm, v_perm])


def init_params(key):
    std = 0.02
    proj_std = 0.02 * (2 * N_LAYER) ** (-0.5)   # NANOGPT_SCALE_INIT
    keys = jax.random.split(key, 2 + 6 * N_LAYER)
    ki = iter(keys)
    qkv_out = (2 * N_KV_HEAD + N_HEAD) * HEAD_DIM
    col_perm = _halfsplit_qkv_col_perm()

    def w(k, shape, s):
        # weights stored bf16 (halves HBM/VMEM traffic, MXU runs bf16 natively)
        return (jax.random.normal(k, shape, jnp.float32) * s).astype(jnp.bfloat16)

    params = {
        'wte': w(next(ki), (VOCAB, N_EMBD), std),       # tied embedding / lm_head
        'ln_f': jnp.ones((N_EMBD,), jnp.float32),
        'layers': [],
    }
    for _ in range(N_LAYER):
        w_attn = jnp.take(w(next(ki), (N_EMBD, qkv_out), std), col_perm, axis=1)
        b_attn = jnp.take(jnp.zeros((qkv_out,), jnp.float32), col_perm, axis=0)
        params['layers'].append({
            'ln1': jnp.ones((N_EMBD,), jnp.float32),
            'ln2': jnp.ones((N_EMBD,), jnp.float32),
            'w_attn': w_attn,            # q/k columns pre-permuted (half-split)
            'b_attn': b_attn,
            'w_aproj': w(next(ki), (N_EMBD, N_EMBD), proj_std),
            'b_aproj': jnp.zeros((N_EMBD,), jnp.float32),
            'w_fc1': w(next(ki), (N_EMBD, 4 * N_EMBD), std),
            'b_fc1': jnp.zeros((4 * N_EMBD,), jnp.float32),
            'w_fc2': w(next(ki), (N_EMBD, 4 * N_EMBD), std),
            'b_fc2': jnp.zeros((4 * N_EMBD,), jnp.float32),
            'w_mproj': w(next(ki), (4 * N_EMBD, N_EMBD), proj_std),
            'b_mproj': jnp.zeros((N_EMBD,), jnp.float32),
        })
    return params


def gpt_forward(params, idx, cos_full, sin_full):
    B, T = idx.shape
    D = N_EMBD
    M = B * T
    qd = N_HEAD * HEAD_DIM
    kd = N_KV_HEAD * HEAD_DIM

    x = params['wte'][idx].astype(jnp.float32)          # token embedding gather (glue)
    cos, sin = cos_full[:T], sin_full[:T]

    for lp in params['layers']:
        # ----- attention block: fused rmsnorm+QKV (bf16 out), fused RoPE+attn,
        #       fused proj + residual --------------------------------------
        qkv = rms_matmul_bias(x.reshape(M, D), lp['ln1'],
                              lp['w_attn'], lp['b_attn'],
                              out_dtype=jnp.bfloat16).reshape(B, T, -1)
        q = qkv[..., :qd]
        k = qkv[..., qd:qd + kd]
        v = qkv[..., qd + kd:]
        y = attention(q, k, v, cos, sin, window=WINDOW)  # (B, T, H*Dh) bf16
        x = matmul_bias_residual(y.reshape(M, D), lp['w_aproj'], lp['b_aproj'],
                                 x.reshape(M, D)).reshape(B, T, D)

        # ----- MLP block: fused rmsnorm + SwiGLU + residual ------------------
        x = rms_swiglu_residual(x.reshape(M, D), lp['ln2'],
                                lp['w_fc1'], lp['b_fc1'],
                                lp['w_fc2'], lp['b_fc2'],
                                lp['w_mproj'], lp['b_mproj']).reshape(B, T, D)

    # fused final RMSNorm + tied lm_head (no bias, no weight transpose in HBM)
    logits = rms_lm_head(x.reshape(M, D), params['ln_f'], params['wte'])
    # TODO(synk): cross-entropy loss path (targets is None in this forward).
    return logits.reshape(B, T, VOCAB)


if __name__ == "__main__":
    key = jax.random.PRNGKey(0)
    k_params, k_idx = jax.random.split(key)
    params = init_params(k_params)
    cos_full, sin_full = precompute_freqs_cis(HEAD_DIM, BLOCK_SIZE * 2)

    B, T = 2, 64
    idx = jax.random.randint(k_idx, (B, T), 0, VOCAB, dtype=jnp.int32)

    fwd = jax.jit(functools.partial(gpt_forward,
                                    cos_full=cos_full, sin_full=sin_full))
    logits = fwd(params, idx)
    jax.block_until_ready(logits)
    assert logits.shape == (B, T, VOCAB)
    assert bool(jnp.all(jnp.isfinite(logits)))
    print("KERNEL_OK")
</pallas_src>

<mosaic_0001>
module attributes {stable_mosaic.version = 11 : i64} {
  func.func @_rms_matmul_bias_kernel(%arg0: i32, %arg1: i32, %arg2: memref<128x128xf32, #tpu.memory_space<vmem>>, %arg3: memref<1x128xf32, #tpu.memory_space<vmem>>, %arg4: memref<128x256xbf16, #tpu.memory_space<vmem>>, %arg5: memref<1x256xf32, #tpu.memory_space<vmem>>, %arg6: memref<128x256xbf16, #tpu.memory_space<vmem>>) attributes {dimension_semantics = [#tpu.dimension_semantics<parallel>, #tpu.dimension_semantics<parallel>], iteration_bounds = array<i64: 1, 1>, scalar_prefetch = 0 : i64, scratch_operands = 0 : i64, tpu.core_type = #tpu.core_type<tc>, window_params = [{transform_indices = @transform_0, window_bounds = array<i64: 128, 128>}, {pipeline_mode = #tpu.pipeline_mode<synchronous>, transform_indices = @transform_1, window_bounds = array<i64: 1, 128>}, {transform_indices = @transform_2, window_bounds = array<i64: 128, 256>}, {transform_indices = @transform_3, window_bounds = array<i64: 1, 256>}, {transform_indices = @transform_4, window_bounds = array<i64: 128, 256>}]} {
    %c0 = arith.constant 0 : index
    %c0_0 = arith.constant 0 : index
    %0 = vector.load %arg2[%c0, %c0_0] : memref<128x128xf32, #tpu.memory_space<vmem>>, vector<128x128xf32>
    %c0_1 = arith.constant 0 : index
    %c0_2 = arith.constant 0 : index
    %1 = vector.load %arg3[%c0_1, %c0_2] : memref<1x128xf32, #tpu.memory_space<vmem>>, vector<1x128xf32>
    %2 = arith.mulf %0, %0 : vector<128x128xf32>
    %cst = arith.constant dense<0.000000e+00> : vector<128xf32>
    %3 = vector.multi_reduction <add>, %2, %cst [1] : vector<128x128xf32> to vector<128xf32>
    %4 = vector.shape_cast %3 : vector<128xf32> to vector<128x1xf32>
    %cst_3 = arith.constant 1.280000e+02 : f32
    %5 = vector.broadcast %cst_3 : f32 to vector<128x1xf32>
    %6 = arith.divf %4, %5 : vector<128x1xf32>
    %cst_4 = arith.constant 9.99999997E-7 : f32
    %7 = vector.broadcast %cst_4 : f32 to vector<128x1xf32>
    %8 = arith.addf %6, %7 : vector<128x1xf32>
    %9 = math.rsqrt %8 : vector<128x1xf32>
    %10 = vector.broadcast %9 : vector<128x1xf32> to vector<128x128xf32>
    %11 = arith.mulf %0, %10 : vector<128x128xf32>
    %12 = vector.broadcast %1 : vector<1x128xf32> to vector<128x128xf32>
    %13 = arith.mulf %11, %12 : vector<128x128xf32>
    %14 = arith.truncf %13 : vector<128x128xf32> to vector<128x128xbf16>
    %c0_5 = arith.constant 0 : index
    %c0_6 = arith.constant 0 : index
    %15 = vector.load %arg4[%c0_5, %c0_6] : memref<128x256xbf16, #tpu.memory_space<vmem>>, vector<128x256xbf16>
    %cst_7 = arith.constant dense<0.000000e+00> : vector<128x256xf32>
    %16 = tpu.matmul %14, %15, %cst_7 {dimension_numbers = #tpu.dot_dimension_numbers<[1], [0], [0], [1], [0, 0, 1, 1], [], []>} : vector<128x128xbf16>, vector<128x256xbf16>, vector<128x256xf32> -> vector<128x256xf32>
    %c0_8 = arith.constant 0 : index
    %c0_9 = arith.constant 0 : index
    %17 = vector.load %arg5[%c0_8, %c0_9] : memref<1x256xf32, #tpu.memory_space<vmem>>, vector<1x256xf32>
    %18 = vector.broadcast %17 : vector<1x256xf32> to vector<128x256xf32>
    %19 = arith.addf %16, %18 : vector<128x256xf32>
    %20 = arith.truncf %19 : vector<128x256xf32> to vector<128x256xbf16>
    %c0_10 = arith.constant 0 : index
    %c0_11 = arith.constant 0 : index
    %21 = vector.load %arg6[%c0_10, %c0_11] : memref<128x256xbf16, #tpu.memory_space<vmem>>, vector<128x256xbf16>
    tpu.vector_store %arg6[%c0_10, %c0_11], %20 {strides = array<i32>} : memref<128x256xbf16, #tpu.memory_space<vmem>>, vector<128x256xbf16>,
    return
  }
  func.func @transform_0(%arg0: i32, %arg1: i32) -> (i32, i32) {
    %c0_i32 = arith.constant 0 : i32
    %c0_i32_0 = arith.constant 0 : i32
    return %arg0, %c0_i32 : i32, i32
  }
  func.func @transform_1(%arg0: i32, %arg1: i32) -> (i32, i32) {
    %c0_i32 = arith.constant 0 : i32
    %c0_i32_0 = arith.constant 0 : i32
    %c0_i32_1 = arith.constant 0 : i32
    return %c0_i32, %c0_i32_0 : i32, i32
  }
  func.func @transform_2(%arg0: i32, %arg1: i32) -> (i32, i32) {
    %c0_i32 = arith.constant 0 : i32
    %c0_i32_0 = arith.constant 0 : i32
    return %c0_i32, %arg1 : i32, i32
  }
  func.func @transform_3(%arg0: i32, %arg1: i32) -> (i32, i32) {
    %c0_i32 = arith.constant 0 : i32
    %c0_i32_0 = arith.constant 0 : i32
    return %c0_i32, %arg1 : i32, i32
  }
  func.func @transform_4(%arg0: i32, %arg1: i32) -> (i32, i32) {
    %c0_i32 = arith.constant 0 : i32
    return %arg0, %arg1 : i32, i32
  }
}

module attributes {stable_mosaic.version = 11 : i64} {
  func.func @_matmul_bias_resid_kernel(%arg0: i32, %arg1: i32, %arg2: memref<128x128xbf16, #tpu.memory_space<vmem>>, %arg3: memref<128x128xbf16, #tpu.memory_space<vmem>>, %arg4: memref<1x128xf32, #tpu.memory_space<vmem>>, %arg5: memref<128x128xf32, #tpu.memory_space<vmem>>, %arg6: memref<128x128xf32, #tpu.memory_space<vmem>>) attributes {dimension_semantics = [#tpu.dimension_semantics<parallel>, #tpu.dimension_semantics<parallel>], iteration_bounds = array<i64: 1, 1>, scalar_prefetch = 0 : i64, scratch_operands = 0 : i64, tpu.core_type = #tpu.core_type<tc>, window_params = [{transform_indices = @transform_0, window_bounds = array<i64: 128, 128>}, {transform_indices = @transform_1, window_bounds = array<i64: 128, 128>}, {transform_indices = @transform_2, window_bounds = array<i64: 1, 128>}, {transform_indices = @transform_3, window_bounds = array<i64: 128, 128>}, {transform_indices = @transform_4, window_bounds = array<i64: 128, 128>}]} {
    %c0 = arith.constant 0 : index
    %c0_0 = arith.constant 0 : index
    %0 = vector.load %arg2[%c0, %c0_0] : memref<128x128xbf16, #tpu.memory_space<vmem>>, vector<128x128xbf16>
    %c0_1 = arith.constant 0 : index
    %c0_2 = arith.constant 0 : index
    %1 = vector.load %arg3[%c0_1, %c0_2] : memref<128x128xbf16, #tpu.memory_space<vmem>>, vector<128x128xbf16>
    %cst = arith.constant dense<0.000000e+00> : vector<128x128xf32>
    %2 = tpu.matmul %0, %1, %cst {dimension_numbers = #tpu.dot_dimension_numbers<[1], [0], [0], [1], [0, 0, 1, 1], [], []>} : vector<128x128xbf16>, vector<128x128xbf16>, vector<128x128xf32> -> vector<128x128xf32>
    %c0_3 = arith.constant 0 : index
    %c0_4 = arith.constant 0 : index
    %3 = vector.load %arg4[%c0_3, %c0_4] : memref<1x128xf32, #tpu.memory_space<vmem>>, vector<1x128xf32>
    %4 = vector.broadcast %3 : vector<1x128xf32> to vector<128x128xf32>
    %5 = arith.addf %2, %4 : vector<128x128xf32>
    %c0_5 = arith.constant 0 : index
    %c0_6 = arith.constant 0 : index
    %6 = vector.load %arg5[%c0_5, %c0_6] : memref<128x128xf32, #tpu.memory_space<vmem>>, vector<128x128xf32>
    %7 = arith.addf %5, %6 : vector<128x128xf32>
    %c0_7 = arith.constant 0 : index
    %c0_8 = arith.constant 0 : index
    %8 = vector.load %arg6[%c0_7, %c0_8] : memref<128x128xf32, #tpu.memory_space<vmem>>, vector<128x128xf32>
    tpu.vector_store %arg6[%c0_7, %c0_8], %7 {strides = array<i32>} : memref<128x128xf32, #tpu.memory_space<vmem>>, vector<128x128xf32>,
    return
  }
  func.func @transform_0(%arg0: i32, %arg1: i32) -> (i32, i32) {
    %c0_i32 = arith.constant 0 : i32
    %c0_i32_0 = arith.constant 0 : i32
    return %arg0, %c0_i32 : i32, i32
  }
  func.func @transform_1(%arg0: i32, %arg1: i32) -> (i32, i32) {
    %c0_i32 = arith.constant 0 : i32
    %c0_i32_0 = arith.constant 0 : i32
    return %c0_i32, %arg1 : i32, i32
  }
  func.func @transform_2(%arg0: i32, %arg1: i32) -> (i32, i32) {
    %c0_i32 = arith.constant 0 : i32
    %c0_i32_0 = arith.constant 0 : i32
    return %c0_i32, %arg1 : i32, i32
  }
  func.func @transform_3(%arg0: i32, %arg1: i32) -> (i32, i32) {
    %c0_i32 = arith.constant 0 : i32
    return %arg0, %arg1 : i32, i32
  }
  func.func @transform_4(%arg0: i32, %arg1: i32) -> (i32, i32) {
    %c0_i32 = arith.constant 0 : i32
    return %arg0, %arg1 : i32, i32
  }
}

module attributes {stable_mosaic.version = 11 : i64} {
  func.func @_rms_swiglu_resid_kernel(%arg0: i32, %arg1: i32, %arg2: memref<128x128xf32, #tpu.memory_space<vmem>>, %arg3: memref<1x128xf32, #tpu.memory_space<vmem>>, %arg4: memref<128x256xbf16, #tpu.memory_space<vmem>>, %arg5: memref<1x256xf32, #tpu.memory_space<vmem>>, %arg6: memref<128x256xbf16, #tpu.memory_space<vmem>>, %arg7: memref<1x256xf32, #tpu.memory_space<vmem>>, %arg8: memref<256x128xbf16, #tpu.memory_space<vmem>>, %arg9: memref<1x128xf32, #tpu.memory_space<vmem>>, %arg10: memref<128x128xf32, #tpu.memory_space<vmem>>, %arg11: memref<128x128xbf16, #tpu.memory_space<vmem>>, %arg12: memref<128x128xf32, #tpu.memory_space<vmem>>) attributes {dimension_semantics = [#tpu.dimension_semantics<parallel>, #tpu.dimension_semantics<arbitrary>], iteration_bounds = array<i64: 1, 2>, scalar_prefetch = 0 : i64, scratch_operands = 2 : i64, tpu.core_type = #tpu.core_type<tc>, window_params = [{transform_indices = @transform_0, window_bounds = array<i64: 128, 128>}, {pipeline_mode = #tpu.pipeline_mode<synchronous>, transform_indices = @transform_1, window_bounds = array<i64: 1, 128>}, {transform_indices = @transform_2, window_bounds = array<i64: 128, 256>}, {transform_indices = @transform_3, window_bounds = array<i64: 1, 256>}, {transform_indices = @transform_4, window_bounds = array<i64: 128, 256>}, {transform_indices = @transform_5, window_bounds = array<i64: 1, 256>}, {transform_indices = @transform_6, window_bounds = array<i64: 256, 128>}, {pipeline_mode = #tpu.pipeline_mode<synchronous>, transform_indices = @transform_7, window_bounds = array<i64: 1, 128>}, {transform_indices = @transform_8, window_bounds = array<i64: 128, 128>}]} {
    %c0_i32 = arith.constant 0 : i32
    %0 = arith.cmpi eq, %arg1, %c0_i32 : i32
    %1 = arith.extui %0 : i1 to i32
    %c0_i32_0 = arith.constant 0 : i32
    %2 = arith.cmpi ne, %1, %c0_i32_0 : i32
    scf.if %2 {
      %c0_20 = arith.constant 0 : index
      %c0_21 = arith.constant 0 : index
      %30 = vector.load %arg2[%c0_20, %c0_21] : memref<128x128xf32, #tpu.memory_space<vmem>>, vector<128x128xf32>
      %c0_22 = arith.constant 0 : index
      %c0_23 = arith.constant 0 : index
      %31 = vector.load %arg3[%c0_22, %c0_23] : memref<1x128xf32, #tpu.memory_space<vmem>>, vector<1x128xf32>
      %32 = arith.mulf %30, %30 : vector<128x128xf32>
      %cst_24 = arith.constant dense<0.000000e+00> : vector<128xf32>
      %33 = vector.multi_reduction <add>, %32, %cst_24 [1] : vector<128x128xf32> to vector<128xf32>
      %34 = vector.shape_cast %33 : vector<128xf32> to vector<128x1xf32>
      %cst_25 = arith.constant 1.280000e+02 : f32
      %35 = vector.broadcast %cst_25 : f32 to vector<128x1xf32>
      %36 = arith.divf %34, %35 : vector<128x1xf32>
      %cst_26 = arith.constant 9.99999997E-7 : f32
      %37 = vector.broadcast %cst_26 : f32 to vector<128x1xf32>
      %38 = arith.addf %36, %37 : vector<128x1xf32>
      %39 = math.rsqrt %38 : vector<128x1xf32>
      %40 = vector.broadcast %39 : vector<128x1xf32> to vector<128x128xf32>
      %41 = arith.mulf %30, %40 : vector<128x128xf32>
      %42 = vector.broadcast %31 : vector<1x128xf32> to vector<128x128xf32>
      %43 = arith.mulf %41, %42 : vector<128x128xf32>
      %44 = arith.truncf %43 : vector<128x128xf32> to vector<128x128xbf16>
      %c0_27 = arith.constant 0 : index
      %c0_28 = arith.constant 0 : index
      %45 = vector.load %arg11[%c0_27, %c0_28] : memref<128x128xbf16, #tpu.memory_space<vmem>>, vector<128x128xbf16>
      tpu.vector_store %arg11[%c0_27, %c0_28], %44 {strides = array<i32>} : memref<128x128xbf16, #tpu.memory_space<vmem>>, vector<128x128xbf16>,
      %cst_29 = arith.constant 0.000000e+00 : f32
      %46 = vector.broadcast %cst_29 : f32 to vector<128x128xf32>
      %c0_30 = arith.constant 0 : index
      %c0_31 = arith.constant 0 : index
      %47 = vector.load %arg12[%c0_30, %c0_31] : memref<128x128xf32, #tpu.memory_space<vmem>>, vector<128x128xf32>
      tpu.vector_store %arg12[%c0_30, %c0_31], %46 {strides = array<i32>} : memref<128x128xf32, #tpu.memory_space<vmem>>, vector<128x128xf32>,
    } else {
    }
    %c0 = arith.constant 0 : index
    %c0_1 = arith.constant 0 : index
    %3 = vector.load %arg11[%c0, %c0_1] : memref<128x128xbf16, #tpu.memory_space<vmem>>, vector<128x128xbf16>
    %c0_2 = arith.constant 0 : index
    %c0_3 = arith.constant 0 : index
    %4 = vector.load %arg4[%c0_2, %c0_3] : memref<128x256xbf16, #tpu.memory_space<vmem>>, vector<128x256xbf16>
    %cst = arith.constant dense<0.000000e+00> : vector<128x256xf32>
    %5 = tpu.matmul %3, %4, %cst {dimension_numbers = #tpu.dot_dimension_numbers<[1], [0], [0], [1], [0, 0, 1, 1], [], []>} : vector<128x128xbf16>, vector<128x256xbf16>, vector<128x256xf32> -> vector<128x256xf32>
    %c0_4 = arith.constant 0 : index
    %c0_5 = arith.constant 0 : index
    %6 = vector.load %arg5[%c0_4, %c0_5] : memref<1x256xf32, #tpu.memory_space<vmem>>, vector<1x256xf32>
    %7 = vector.broadcast %6 : vector<1x256xf32> to vector<128x256xf32>
    %8 = arith.addf %5, %7 : vector<128x256xf32>
    %c0_6 = arith.constant 0 : index
    %c0_7 = arith.constant 0 : index
    %9 = vector.load %arg6[%c0_6, %c0_7] : memref<128x256xbf16, #tpu.memory_space<vmem>>, vector<128x256xbf16>
    %cst_8 = arith.constant dense<0.000000e+00> : vector<128x256xf32>
    %10 = tpu.matmul %3, %9, %cst_8 {dimension_numbers = #tpu.dot_dimension_numbers<[1], [0], [0], [1], [0, 0, 1, 1], [], []>} : vector<128x128xbf16>, vector<128x256xbf16>, vector<128x256xf32> -> vector<128x256xf32>
    %c0_9 = arith.constant 0 : index
    %c0_10 = arith.constant 0 : index
    %11 = vector.load %arg7[%c0_9, %c0_10] : memref<1x256xf32, #tpu.memory_space<vmem>>, vector<1x256xf32>
    %12 = vector.broadcast %11 : vector<1x256xf32> to vector<128x256xf32>
    %13 = arith.addf %10, %12 : vector<128x256xf32>
    %14 = arith.negf %8 : vector<128x256xf32>
    %15 = math.exp %14 : vector<128x256xf32>
    %cst_11 = arith.constant 1.000000e+00 : f32
    %16 = vector.broadcast %cst_11 : f32 to vector<128x256xf32>
    %17 = arith.addf %16, %15 : vector<128x256xf32>
    %18 = arith.divf %16, %17 : vector<128x256xf32>
    %19 = arith.mulf %8, %18 : vector<128x256xf32>
    %20 = arith.mulf %19, %13 : vector<128x256xf32>
    %c0_12 = arith.constant 0 : index
    %c0_13 = arith.constant 0 : index
    %21 = vector.load %arg12[%c0_12, %c0_13] : memref<128x128xf32, #tpu.memory_space<vmem>>, vector<128x128xf32>
    %22 = arith.truncf %20 : vector<128x256xf32> to vector<128x256xbf16>
    %c0_14 = arith.constant 0 : index
    %c0_15 = arith.constant 0 : index
    %23 = vector.load %arg8[%c0_14, %c0_15] : memref<256x128xbf16, #tpu.memory_space<vmem>>, vector<256x128xbf16>
    %cst_16 = arith.constant dense<0.000000e+00> : vector<128x128xf32>
    %24 = tpu.matmul %22, %23, %cst_16 {dimension_numbers = #tpu.dot_dimension_numbers<[1], [0], [0], [1], [0, 0, 1, 1], [], []>} : vector<128x256xbf16>, vector<256x128xbf16>, vector<128x128xf32> -> vector<128x128xf32>
    %25 = arith.addf %21, %24 : vector<128x128xf32>
    %c0_17 = arith.constant 0 : index
    %c0_18 = arith.constant 0 : index
    %26 = vector.load %arg12[%c0_17, %c0_18] : memref<128x128xf32, #tpu.memory_space<vmem>>, vector<128x128xf32>
    tpu.vector_store %arg12[%c0_17, %c0_18], %25 {strides = array<i32>} : memref<128x128xf32, #tpu.memory_space<vmem>>, vector<128x128xf32>,
    %c1_i32 = arith.constant 1 : i32
    %27 = arith.cmpi eq, %arg1, %c1_i32 : i32
    %28 = arith.extui %27 : i1 to i32
    %c0_i32_19 = arith.constant 0 : i32
    %29 = arith.cmpi ne, %28, %c0_i32_19 : i32
    scf.if %29 {
      %c0_20 = arith.constant 0 : index
      %c0_21 = arith.constant 0 : index
      %30 = vector.load %arg12[%c0_20, %c0_21] : memref<128x128xf32, #tpu.memory_space<vmem>>, vector<128x128xf32>
      %c0_22 = arith.constant 0 : index
      %c0_23 = arith.constant 0 : index
      %31 = vector.load %arg9[%c0_22, %c0_23] : memref<1x128xf32, #tpu.memory_space<vmem>>, vector<1x128xf32>
      %32 = vector.broadcast %31 : vector<1x128xf32> to vector<128x128xf32>
      %33 = arith.addf %30, %32 : vector<128x128xf32>
      %c0_24 = arith.constant 0 : index
      %c0_25 = arith.constant 0 : index
      %34 = vector.load %arg2[%c0_24, %c0_25] : memref<128x128xf32, #tpu.memory_space<vmem>>, vector<128x128xf32>
      %35 = arith.addf %33, %34 : vector<128x128xf32>
      %c0_26 = arith.constant 0 : index
      %c0_27 = arith.constant 0 : index
      %36 = vector.load %arg10[%c0_26, %c0_27] : memref<128x128xf32, #tpu.memory_space<vmem>>, vector<128x128xf32>
      tpu.vector_store %arg10[%c0_26, %c0_27], %35 {strides = array<i32>} : memref<128x128xf32, #tpu.memory_space<vmem>>, vector<128x128xf32>,
    } else {
    }
    return
  }
  func.func @transform_0(%arg0: i32, %arg1: i32) -> (i32, i32) {
    %c0_i32 = arith.constant 0 : i32
    %c0_i32_0 = arith.constant 0 : i32
    return %arg0, %c0_i32 : i32, i32
  }
  func.func @transform_1(%arg0: i32, %arg1: i32) -> (i32, i32) {
    %c0_i32 = arith.constant 0 : i32
    %c0_i32_0 = arith.constant 0 : i32
    %c0_i32_1 = arith.constant 0 : i32
    return %c0_i32, %c0_i32_0 : i32, i32
  }
  func.func @transform_2(%arg0: i32, %arg1: i32) -> (i32, i32) {
    %c0_i32 = arith.constant 0 : i32
    %c0_i32_0 = arith.constant 0 : i32
    return %c0_i32, %arg1 : i32, i32
  }
  func.func @transform_3(%arg0: i32, %arg1: i32) -> (i32, i32) {
    %c0_i32 = arith.constant 0 : i32
    %c0_i32_0 = arith.constant 0 : i32
    return %c0_i32, %arg1 : i32, i32
  }
  func.func @transform_4(%arg0: i32, %arg1: i32) -> (i32, i32) {
    %c0_i32 = arith.constant 0 : i32
    %c0_i32_0 = arith.constant 0 : i32
    return %c0_i32, %arg1 : i32, i32
  }
  func.func @transform_5(%arg0: i32, %arg1: i32) -> (i32, i32) {
    %c0_i32 = arith.constant 0 : i32
    %c0_i32_0 = arith.constant 0 : i32
    return %c0_i32, %arg1 : i32, i32
  }
  func.func @transform_6(%arg0: i32, %arg1: i32) -> (i32, i32) {
    %c0_i32 = arith.constant 0 : i32
    %c0_i32_0 = arith.constant 0 : i32
    return %arg1, %c0_i32 : i32, i32
  }
  func.func @transform_7(%arg0: i32, %arg1: i32) -> (i32, i32) {
    %c0_i32 = arith.constant 0 : i32
    %c0_i32_0 = arith.constant 0 : i32
    %c0_i32_1 = arith.constant 0 : i32
    return %c0_i32, %c0_i32_0 : i32, i32
  }
  func.func @transform_8(%arg0: i32, %arg1: i32) -> (i32, i32) {
    %c0_i32 = arith.constant 0 : i32
    %c0_i32_0 = arith.constant 0 : i32
    return %arg0, %c0_i32 : i32, i32
  }
}

module attributes {stable_mosaic.version = 11 : i64} {
  func.func @_attention_kernel(%arg0: i32, %arg1: i32, %arg2: memref<1x64x128xbf16, #tpu.memory_space<vmem>>, %arg3: memref<1x64x64xbf16, #tpu.memory_space<vmem>>, %arg4: memref<1x64x64xbf16, #tpu.memory_space<vmem>>, %arg5: memref<64x16xf32, #tpu.memory_space<vmem>>, %arg6: memref<64x16xf32, #tpu.memory_space<vmem>>, %arg7: memref<64x16xf32, #tpu.memory_space<vmem>>, %arg8: memref<64x16xf32, #tpu.memory_space<vmem>>, %arg9: memref<1x64x128xbf16, #tpu.memory_space<vmem>>) attributes {dimension_semantics = [#tpu.dimension_semantics<parallel>, #tpu.dimension_semantics<parallel>], iteration_bounds = array<i64: 2, 1>, scalar_prefetch = 0 : i64, scratch_operands = 0 : i64, tpu.core_type = #tpu.core_type<tc>, window_params = [{transform_indices = @transform_0, window_bounds = array<i64: 1, 64, 128>}, {transform_indices = @transform_1, window_bounds = array<i64: 1, 64, 64>}, {transform_indices = @transform_2, window_bounds = array<i64: 1, 64, 64>}, {transform_indices = @transform_3, window_bounds = array<i64: 64, 16>}, {transform_indices = @transform_4, window_bounds = array<i64: 64, 16>}, {pipeline_mode = #tpu.pipeline_mode<synchronous>, transform_indices = @transform_5, window_bounds = array<i64: 64, 16>}, {pipeline_mode = #tpu.pipeline_mode<synchronous>, transform_indices = @transform_6, window_bounds = array<i64: 64, 16>}, {transform_indices = @transform_7, window_bounds = array<i64: 1, 64, 128>}]} {
    %c0 = arith.constant 0 : index
    %c0_0 = arith.constant 0 : index
    %c0_1 = arith.constant 0 : index
    %0 = vector.load %arg2[%c0, %c0_0, %c0_1] : memref<1x64x128xbf16, #tpu.memory_space<vmem>>, vector<1x64x128xbf16>
    %1 = vector.shape_cast %0 : vector<1x64x128xbf16> to vector<64x128xbf16>
    %2 = arith.extf %1 : vector<64x128xbf16> to vector<64x128xf32>
    %c0_2 = arith.constant 0 : index
    %c0_3 = arith.constant 0 : index
    %c0_4 = arith.constant 0 : index
    %3 = vector.load %arg3[%c0_2, %c0_3, %c0_4] : memref<1x64x64xbf16, #tpu.memory_space<vmem>>, vector<1x64x64xbf16>
    %4 = vector.shape_cast %3 : vector<1x64x64xbf16> to vector<64x64xbf16>
    %5 = arith.extf %4 : vector<64x64xbf16> to vector<64x64xf32>
    %c0_5 = arith.constant 0 : index
    %c0_6 = arith.constant 0 : index
    %c0_7 = arith.constant 0 : index
    %6 = vector.load %arg4[%c0_5, %c0_6, %c0_7] : memref<1x64x64xbf16, #tpu.memory_space<vmem>>, vector<1x64x64xbf16>
    %7 = vector.shape_cast %6 : vector<1x64x64xbf16> to vector<64x64xbf16>
    %c0_8 = arith.constant 0 : index
    %c0_9 = arith.constant 0 : index
    %8 = vector.load %arg5[%c0_8, %c0_9] : memref<64x16xf32, #tpu.memory_space<vmem>>, vector<64x16xf32>
    %c0_10 = arith.constant 0 : index
    %c0_11 = arith.constant 0 : index
    %9 = vector.load %arg6[%c0_10, %c0_11] : memref<64x16xf32, #tpu.memory_space<vmem>>, vector<64x16xf32>
    %c0_12 = arith.constant 0 : index
    %c0_13 = arith.constant 0 : index
    %10 = vector.load %arg7[%c0_12, %c0_13] : memref<64x16xf32, #tpu.memory_space<vmem>>, vector<64x16xf32>
    %c0_14 = arith.constant 0 : index
    %c0_15 = arith.constant 0 : index
    %11 = vector.load %arg8[%c0_14, %c0_15] : memref<64x16xf32, #tpu.memory_space<vmem>>, vector<64x16xf32>
    %c64_i32 = arith.constant 64 : i32
    %12 = arith.muli %arg1, %c64_i32 : i32
    %13 = tpu.iota {dimensions = array<i32: 0>} : vector<64x64xi32>
    %14 = vector.broadcast %12 : i32 to vector<64x64xi32>
    %15 = arith.addi %14, %13 : vector<64x64xi32>
    %16 = tpu.iota {dimensions = array<i32: 1>} : vector<64x64xi32>
    %17 = arith.cmpi sle, %16, %15 : vector<64x64xi32>
    %c16_i32 = arith.constant 16 : i32
    %18 = vector.broadcast %c16_i32 : i32 to vector<64x64xi32>
    %19 = arith.subi %15, %18 : vector<64x64xi32>
    %20 = arith.cmpi sgt, %16, %19 : vector<64x64xi32>
    %21 = arith.andi %17, %20 : vector<64x64xi1>
    %22 = vector.extract_strided_slice %5 {offsets = [0, 0], sizes = [64, 32], strides = [1, 1]} : vector<64x64xf32> to vector<64x32xf32>
    %23 = vector.extract_strided_slice %22 {offsets = [0, 0], sizes = [64, 16], strides = [1, 1]} : vector<64x32xf32> to vector<64x16xf32>
    %24 = vector.extract_strided_slice %22 {offsets = [0, 16], sizes = [64, 16], strides = [1, 1]} : vector<64x32xf32> to vector<64x16xf32>
    %25 = arith.mulf %23, %10 : vector<64x16xf32>
    %26 = arith.mulf %24, %11 : vector<64x16xf32>
    %27 = arith.subf %25, %26 : vector<64x16xf32>
    %28 = arith.mulf %23, %11 : vector<64x16xf32>
    %29 = arith.mulf %24, %10 : vector<64x16xf32>
    %30 = arith.addf %28, %29 : vector<64x16xf32>
    %31 = tpu.concatenate %27, %30 in 1 : vector<64x16xf32>, vector<64x16xf32> -> vector<64x32xf32>
    %32 = arith.truncf %31 : vector<64x32xf32> to vector<64x32xbf16>
    %33 = vector.extract_strided_slice %7 {offsets = [0, 0], sizes = [64, 32], strides = [1, 1]} : vector<64x64xbf16> to vector<64x32xbf16>
    %34 = vector.extract_strided_slice %2 {offsets = [0, 0], sizes = [64, 32], strides = [1, 1]} : vector<64x128xf32> to vector<64x32xf32>
    %35 = vector.extract_strided_slice %34 {offsets = [0, 0], sizes = [64, 16], strides = [1, 1]} : vector<64x32xf32> to vector<64x16xf32>
    %36 = vector.extract_strided_slice %34 {offsets = [0, 16], sizes = [64, 16], strides = [1, 1]} : vector<64x32xf32> to vector<64x16xf32>
    %37 = arith.mulf %35, %8 : vector<64x16xf32>
    %38 = arith.mulf %36, %9 : vector<64x16xf32>
    %39 = arith.subf %37, %38 : vector<64x16xf32>
    %40 = arith.mulf %35, %9 : vector<64x16xf32>
    %41 = arith.mulf %36, %8 : vector<64x16xf32>
    %42 = arith.addf %40, %41 : vector<64x16xf32>
    %43 = tpu.concatenate %39, %42 in 1 : vector<64x16xf32>, vector<64x16xf32> -> vector<64x32xf32>
    %44 = arith.truncf %43 : vector<64x32xf32> to vector<64x32xbf16>
    %cst = arith.constant dense<0.000000e+00> : vector<64x64xf32>
    %45 = tpu.matmul %44, %32, %cst {dimension_numbers = #tpu.dot_dimension_numbers<[1], [1], [0], [0], [0, 0, 1, 0], [], []>} : vector<64x32xbf16>, vector<64x32xbf16>, vector<64x64xf32> -> vector<64x64xf32>
    %cst_16 = arith.constant 0.176776692 : f32
    %46 = vector.broadcast %cst_16 : f32 to vector<64x64xf32>
    %47 = arith.mulf %45, %46 : vector<64x64xf32>
    %cst_17 = arith.constant -1.000000e+30 : f32
    %48 = vector.broadcast %cst_17 : f32 to vector<64x64xf32>
    %49 = arith.select %21, %47, %48 : vector<64x64xi1>, vector<64x64xf32>
    %cst_18 = arith.constant dense<0xFF800000> : vector<64xf32>
    %50 = vector.multi_reduction <maximumf>, %49, %cst_18 [1] : vector<64x64xf32> to vector<64xf32>
    %51 = vector.shape_cast %50 : vector<64xf32> to vector<64x1xf32>
    %52 = vector.broadcast %51 : vector<64x1xf32> to vector<64x64xf32>
    %53 = arith.subf %49, %52 : vector<64x64xf32>
    %54 = math.exp %53 : vector<64x64xf32>
    %cst_19 = arith.constant dense<0.000000e+00> : vector<64xf32>
    %55 = vector.multi_reduction <add>, %54, %cst_19 [1] : vector<64x64xf32> to vector<64xf32>
    %56 = vector.shape_cast %55 : vector<64xf32> to vector<64x1xf32>
    %57 = tpu.reciprocal %56 {approx = true} : vector<64x1xf32> -> vector<64x1xf32>
    %58 = vector.broadcast %57 : vector<64x1xf32> to vector<64x64xf32>
    %59 = arith.mulf %54, %58 : vector<64x64xf32>
    %60 = arith.truncf %59 : vector<64x64xf32> to vector<64x64xbf16>
    %cst_20 = arith.constant dense<0.000000e+00> : vector<64x32xf32>
    %61 = tpu.matmul %60, %33, %cst_20 {dimension_numbers = #tpu.dot_dimension_numbers<[1], [0], [0], [1], [0, 0, 1, 1], [], []>} : vector<64x64xbf16>, vector<64x32xbf16>, vector<64x32xf32> -> vector<64x32xf32>
    %62 = vector.extract_strided_slice %2 {offsets = [0, 32], sizes = [64, 32], strides = [1, 1]} : vector<64x128xf32> to vector<64x32xf32>
    %63 = vector.extract_strided_slice %62 {offsets = [0, 0], sizes = [64, 16], strides = [1, 1]} : vector<64x32xf32> to vector<64x16xf32>
    %64 = vector.extract_strided_slice %62 {offsets = [0, 16], sizes = [64, 16], strides = [1, 1]} : vector<64x32xf32> to vector<64x16xf32>
    %65 = arith.mulf %63, %8 : vector<64x16xf32>
    %66 = arith.mulf %64, %9 : vector<64x16xf32>
    %67 = arith.subf %65, %66 : vector<64x16xf32>
    %68 = arith.mulf %63, %9 : vector<64x16xf32>
    %69 = arith.mulf %64, %8 : vector<64x16xf32>
    %70 = arith.addf %68, %69 : vector<64x16xf32>
    %71 = tpu.concatenate %67, %70 in 1 : vector<64x16xf32>, vector<64x16xf32> -> vector<64x32xf32>
    %72 = arith.truncf %71 : vector<64x32xf32> to vector<64x32xbf16>
    %cst_21 = arith.constant dense<0.000000e+00> : vector<64x64xf32>
    %73 = tpu.matmul %72, %32, %cst_21 {dimension_numbers = #tpu.dot_dimension_numbers<[1], [1], [0], [0], [0, 0, 1, 0], [], []>} : vector<64x32xbf16>, vector<64x32xbf16>, vector<64x64xf32> -> vector<64x64xf32>
    %cst_22 = arith.constant 0.176776692 : f32
    %74 = vector.broadcast %cst_22 : f32 to vector<64x64xf32>
    %75 = arith.mulf %73, %74 : vector<64x64xf32>
    %cst_23 = arith.constant -1.000000e+30 : f32
    %76 = vector.broadcast %cst_23 : f32 to vector<64x64xf32>
    %77 = arith.select %21, %75, %76 : vector<64x64xi1>, vector<64x64xf32>
    %cst_24 = arith.constant dense<0xFF800000> : vector<64xf32>
    %78 = vector.multi_reduction <maximumf>, %77, %cst_24 [1] : vector<64x64xf32> to vector<64xf32>
    %79 = vector.shape_cast %78 : vector<64xf32> to vector<64x1xf32>
    %80 = vector.broadcast %79 : vector<64x1xf32> to vector<64x64xf32>
    %81 = arith.subf %77, %80 : vector<64x64xf32>
    %82 = math.exp %81 : vector<64x64xf32>
    %cst_25 = arith.constant dense<0.000000e+00> : vector<64xf32>
    %83 = vector.multi_reduction <add>, %82, %cst_25 [1] : vector<64x64xf32> to vector<64xf32>
    %84 = vector.shape_cast %83 : vector<64xf32> to vector<64x1xf32>
    %85 = tpu.reciprocal %84 {approx = true} : vector<64x1xf32> -> vector<64x1xf32>
    %86 = vector.broadcast %85 : vector<64x1xf32> to vector<64x64xf32>
    %87 = arith.mulf %82, %86 : vector<64x64xf32>
    %88 = arith.truncf %87 : vector<64x64xf32> to vector<64x64xbf16>
    %cst_26 = arith.constant dense<0.000000e+00> : vector<64x32xf32>
    %89 = tpu.matmul %88, %33, %cst_26 {dimension_numbers = #tpu.dot_dimension_numbers<[1], [0], [0], [1], [0, 0, 1, 1], [], []>} : vector<64x64xbf16>, vector<64x32xbf16>, vector<64x32xf32> -> vector<64x32xf32>
    %90 = vector.extract_strided_slice %5 {offsets = [0, 32], sizes = [64, 32], strides = [1, 1]} : vector<64x64xf32> to vector<64x32xf32>
    %91 = vector.extract_strided_slice %90 {offsets = [0, 0], sizes = [64, 16], strides = [1, 1]} : vector<64x32xf32> to vector<64x16xf32>
    %92 = vector.extract_strided_slice %90 {offsets = [0, 16], sizes = [64, 16], strides = [1, 1]} : vector<64x32xf32> to vector<64x16xf32>
    %93 = arith.mulf %91, %10 : vector<64x16xf32>
    %94 = arith.mulf %92, %11 : vector<64x16xf32>
    %95 = arith.subf %93, %94 : vector<64x16xf32>
    %96 = arith.mulf %91, %11 : vector<64x16xf32>
    %97 = arith.mulf %92, %10 : vector<64x16xf32>
    %98 = arith.addf %96, %97 : vector<64x16xf32>
    %99 = tpu.concatenate %95, %98 in 1 : vector<64x16xf32>, vector<64x16xf32> -> vector<64x32xf32>
    %100 = arith.truncf %99 : vector<64x32xf32> to vector<64x32xbf16>
    %101 = vector.extract_strided_slice %7 {offsets = [0, 32], sizes = [64, 32], strides = [1, 1]} : vector<64x64xbf16> to vector<64x32xbf16>
    %102 = vector.extract_strided_slice %2 {offsets = [0, 64], sizes = [64, 32], strides = [1, 1]} : vector<64x128xf32> to vector<64x32xf32>
    %103 = vector.extract_strided_slice %102 {offsets = [0, 0], sizes = [64, 16], strides = [1, 1]} : vector<64x32xf32> to vector<64x16xf32>
    %104 = vector.extract_strided_slice %102 {offsets = [0, 16], sizes = [64, 16], strides = [1, 1]} : vector<64x32xf32> to vector<64x16xf32>
    %105 = arith.mulf %103, %8 : vector<64x16xf32>
    %106 = arith.mulf %104, %9 : vector<64x16xf32>
    %107 = arith.subf %105, %106 : vector<64x16xf32>
    %108 = arith.mulf %103, %9 : vector<64x16xf32>
    %109 = arith.mulf %104, %8 : vector<64x16xf32>
    %110 = arith.addf %108, %109 : vector<64x16xf32>
    %111 = tpu.concatenate %107, %110 in 1 : vector<64x16xf32>, vector<64x16xf32> -> vector<64x32xf32>
    %112 = arith.truncf %111 : vector<64x32xf32> to vector<64x32xbf16>
    %cst_27 = arith.constant dense<0.000000e+00> : vector<64x64xf32>
    %113 = tpu.matmul %112, %100, %cst_27 {dimension_numbers = #tpu.dot_dimension_numbers<[1], [1], [0], [0], [0, 0, 1, 0], [], []>} : vector<64x32xbf16>, vector<64x32xbf16>, vector<64x64xf32> -> vector<64x64xf32>
    %cst_28 = arith.constant 0.176776692 : f32
    %114 = vector.broadcast %cst_28 : f32 to vector<64x64xf32>
    %115 = arith.mulf %113, %114 : vector<64x64xf32>
    %cst_29 = arith.constant -1.000000e+30 : f32
    %116 = vector.broadcast %cst_29 : f32 to vector<64x64xf32>
    %117 = arith.select %21, %115, %116 : vector<64x64xi1>, vector<64x64xf32>
    %cst_30 = arith.constant dense<0xFF800000> : vector<64xf32>
    %118 = vector.multi_reduction <maximumf>, %117, %cst_30 [1] : vector<64x64xf32> to vector<64xf32>
    %119 = vector.shape_cast %118 : vector<64xf32> to vector<64x1xf32>
    %120 = vector.broadcast %119 : vector<64x1xf32> to vector<64x64xf32>
    %121 = arith.subf %117, %120 : vector<64x64xf32>
    %122 = math.exp %121 : vector<64x64xf32>
    %cst_31 = arith.constant dense<0.000000e+00> : vector<64xf32>
    %123 = vector.multi_reduction <add>, %122, %cst_31 [1] : vector<64x64xf32> to vector<64xf32>
    %124 = vector.shape_cast %123 : vector<64xf32> to vector<64x1xf32>
    %125 = tpu.reciprocal %124 {approx = true} : vector<64x1xf32> -> vector<64x1xf32>
    %126 = vector.broadcast %125 : vector<64x1xf32> to vector<64x64xf32>
    %127 = arith.mulf %122, %126 : vector<64x64xf32>
    %128 = arith.truncf %127 : vector<64x64xf32> to vector<64x64xbf16>
    %cst_32 = arith.constant dense<0.000000e+00> : vector<64x32xf32>
    %129 = tpu.matmul %128, %101, %cst_32 {dimension_numbers = #tpu.dot_dimension_numbers<[1], [0], [0], [1], [0, 0, 1, 1], [], []>} : vector<64x64xbf16>, vector<64x32xbf16>, vector<64x32xf32> -> vector<64x32xf32>
    %130 = vector.extract_strided_slice %2 {offsets = [0, 96], sizes = [64, 32], strides = [1, 1]} : vector<64x128xf32> to vector<64x32xf32>
    %131 = vector.extract_strided_slice %130 {offsets = [0, 0], sizes = [64, 16], strides = [1, 1]} : vector<64x32xf32> to vector<64x16xf32>
    %132 = vector.extract_strided_slice %130 {offsets = [0, 16], sizes = [64, 16], strides = [1, 1]} : vector<64x32xf32> to vector<64x16xf32>
    %133 = arith.mulf %131, %8 : vector<64x16xf32>
    %134 = arith.mulf %132, %9 : vector<64x16xf32>
    %135 = arith.subf %133, %134 : vector<64x16xf32>
    %136 = arith.mulf %131, %9 : vector<64x16xf32>
    %137 = arith.mulf %132, %8 : vector<64x16xf32>
    %138 = arith.addf %136, %137 : vector<64x16xf32>
    %139 = tpu.concatenate %135, %138 in 1 : vector<64x16xf32>, vector<64x16xf32> -> vector<64x32xf32>
    %140 = arith.truncf %139 : vector<64x32xf32> to vector<64x32xbf16>
    %cst_33 = arith.constant dense<0.000000e+00> : vector<64x64xf32>
    %141 = tpu.matmul %140, %100, %cst_33 {dimension_numbers = #tpu.dot_dimension_numbers<[1], [1], [0], [0], [0, 0, 1, 0], [], []>} : vector<64x32xbf16>, vector<64x32xbf16>, vector<64x64xf32> -> vector<64x64xf32>
    %cst_34 = arith.constant 0.176776692 : f32
    %142 = vector.broadcast %cst_34 : f32 to vector<64x64xf32>
    %143 = arith.mulf %141, %142 : vector<64x64xf32>
    %cst_35 = arith.constant -1.000000e+30 : f32
    %144 = vector.broadcast %cst_35 : f32 to vector<64x64xf32>
    %145 = arith.select %21, %143, %144 : vector<64x64xi1>, vector<64x64xf32>
    %cst_36 = arith.constant dense<0xFF800000> : vector<64xf32>
    %146 = vector.multi_reduction <maximumf>, %145, %cst_36 [1] : vector<64x64xf32> to vector<64xf32>
    %147 = vector.shape_cast %146 : vector<64xf32> to vector<64x1xf32>
    %148 = vector.broadcast %147 : vector<64x1xf32> to vector<64x64xf32>
    %149 = arith.subf %145, %148 : vector<64x64xf32>
    %150 = math.exp %149 : vector<64x64xf32>
    %cst_37 = arith.constant dense<0.000000e+00> : vector<64xf32>
    %151 = vector.multi_reduction <add>, %150, %cst_37 [1] : vector<64x64xf32> to vector<64xf32>
    %152 = vector.shape_cast %151 : vector<64xf32> to vector<64x1xf32>
    %153 = tpu.reciprocal %152 {approx = true} : vector<64x1xf32> -> vector<64x1xf32>
    %154 = vector.broadcast %153 : vector<64x1xf32> to vector<64x64xf32>
    %155 = arith.mulf %150, %154 : vector<64x64xf32>
    %156 = arith.truncf %155 : vector<64x64xf32> to vector<64x64xbf16>
    %cst_38 = arith.constant dense<0.000000e+00> : vector<64x32xf32>
    %157 = tpu.matmul %156, %101, %cst_38 {dimension_numbers = #tpu.dot_dimension_numbers<[1], [0], [0], [1], [0, 0, 1, 1], [], []>} : vector<64x64xbf16>, vector<64x32xbf16>, vector<64x32xf32> -> vector<64x32xf32>
    %158 = tpu.concatenate %61, %89, %129, %157 in 1 : vector<64x32xf32>, vector<64x32xf32>, vector<64x32xf32>, vector<64x32xf32> -> vector<64x128xf32>
    %159 = arith.truncf %158 : vector<64x128xf32> to vector<64x128xbf16>
    %c0_39 = arith.constant 0 : index
    %c0_40 = arith.constant 0 : index
    %c0_41 = arith.constant 0 : index
    %160 = vector.load %arg9[%c0_39, %c0_40, %c0_41] : memref<1x64x128xbf16, #tpu.memory_space<vmem>>, vector<1x64x128xbf16>
    %161 = vector.shape_cast %160 : vector<1x64x128xbf16> to vector<64x128xbf16>
    %162 = vector.shape_cast %159 : vector<64x128xbf16> to vector<1x64x128xbf16>
    tpu.vector_store %arg9[%c0_39, %c0_40, %c0_41], %162 {strides = array<i32>} : memref<1x64x128xbf16, #tpu.memory_space<vmem>>, vector<1x64x128xbf16>,
    return
  }
  func.func @transform_0(%arg0: i32, %arg1: i32) -> (i32, i32, i32) {
    %c0_i32 = arith.constant 0 : i32
    %c0_i32_0 = arith.constant 0 : i32
    return %arg0, %arg1, %c0_i32 : i32, i32, i32
  }
  func.func @transform_1(%arg0: i32, %arg1: i32) -> (i32, i32, i32) {
    %c0_i32 = arith.constant 0 : i32
    %c0_i32_0 = arith.constant 0 : i32
    %c0_i32_1 = arith.constant 0 : i32
    return %arg0, %c0_i32, %c0_i32_0 : i32, i32, i32
  }
  func.func @transform_2(%arg0: i32, %arg1: i32) -> (i32, i32, i32) {
    %c0_i32 = arith.constant 0 : i32
    %c0_i32_0 = arith.constant 0 : i32
    %c0_i32_1 = arith.constant 0 : i32
    return %arg0, %c0_i32, %c0_i32_0 : i32, i32, i32
  }
  func.func @transform_3(%arg0: i32, %arg1: i32) -> (i32, i32) {
    %c0_i32 = arith.constant 0 : i32
    %c0_i32_0 = arith.constant 0 : i32
    return %arg1, %c0_i32 : i32, i32
  }
  func.func @transform_4(%arg0: i32, %arg1: i32) -> (i32, i32) {
    %c0_i32 = arith.constant 0 : i32
    %c0_i32_0 = arith.constant 0 : i32
    return %arg1, %c0_i32 : i32, i32
  }
  func.func @transform_5(%arg0: i32, %arg1: i32) -> (i32, i32) {
    %c0_i32 = arith.constant 0 : i32
    %c0_i32_0 = arith.constant 0 : i32
    %c0_i32_1 = arith.constant 0 : i32
    return %c0_i32, %c0_i32_0 : i32, i32
  }
  func.func @transform_6(%arg0: i32, %arg1: i32) -> (i32, i32) {
    %c0_i32 = arith.constant 0 : i32
    %c0_i32_0 = arith.constant 0 : i32
    %c0_i32_1 = arith.constant 0 : i32
    return %c0_i32, %c0_i32_0 : i32, i32
  }
  func.func @transform_7(%arg0: i32, %arg1: i32) -> (i32, i32, i32) {
    %c0_i32 = arith.constant 0 : i32
    %c0_i32_0 = arith.constant 0 : i32
    return %arg0, %arg1, %c0_i32 : i32, i32, i32
  }
}

module attributes {stable_mosaic.version = 11 : i64} {
  func.func @_rms_lmhead_kernel(%arg0: i32, %arg1: i32, %arg2: memref<128x128xf32, #tpu.memory_space<vmem>>, %arg3: memref<1x128xf32, #tpu.memory_space<vmem>>, %arg4: memref<256x128xbf16, #tpu.memory_space<vmem>>, %arg5: memref<128x256xf32, #tpu.memory_space<vmem>>) attributes {dimension_semantics = [#tpu.dimension_semantics<parallel>, #tpu.dimension_semantics<parallel>], iteration_bounds = array<i64: 1, 1>, scalar_prefetch = 0 : i64, scratch_operands = 0 : i64, tpu.core_type = #tpu.core_type<tc>, window_params = [{transform_indices = @transform_0, window_bounds = array<i64: 128, 128>}, {pipeline_mode = #tpu.pipeline_mode<synchronous>, transform_indices = @transform_1, window_bounds = array<i64: 1, 128>}, {transform_indices = @transform_2, window_bounds = array<i64: 256, 128>}, {transform_indices = @transform_3, window_bounds = array<i64: 128, 256>}]} {
    %c0 = arith.constant 0 : index
    %c0_0 = arith.constant 0 : index
    %0 = vector.load %arg2[%c0, %c0_0] : memref<128x128xf32, #tpu.memory_space<vmem>>, vector<128x128xf32>
    %c0_1 = arith.constant 0 : index
    %c0_2 = arith.constant 0 : index
    %1 = vector.load %arg3[%c0_1, %c0_2] : memref<1x128xf32, #tpu.memory_space<vmem>>, vector<1x128xf32>
    %2 = arith.mulf %0, %0 : vector<128x128xf32>
    %cst = arith.constant dense<0.000000e+00> : vector<128xf32>
    %3 = vector.multi_reduction <add>, %2, %cst [1] : vector<128x128xf32> to vector<128xf32>
    %4 = vector.shape_cast %3 : vector<128xf32> to vector<128x1xf32>
    %cst_3 = arith.constant 1.280000e+02 : f32
    %5 = vector.broadcast %cst_3 : f32 to vector<128x1xf32>
    %6 = arith.divf %4, %5 : vector<128x1xf32>
    %cst_4 = arith.constant 9.99999997E-7 : f32
    %7 = vector.broadcast %cst_4 : f32 to vector<128x1xf32>
    %8 = arith.addf %6, %7 : vector<128x1xf32>
    %9 = math.rsqrt %8 : vector<128x1xf32>
    %10 = vector.broadcast %9 : vector<128x1xf32> to vector<128x128xf32>
    %11 = arith.mulf %0, %10 : vector<128x128xf32>
    %12 = vector.broadcast %1 : vector<1x128xf32> to vector<128x128xf32>
    %13 = arith.mulf %11, %12 : vector<128x128xf32>
    %14 = arith.truncf %13 : vector<128x128xf32> to vector<128x128xbf16>
    %c0_5 = arith.constant 0 : index
    %c0_6 = arith.constant 0 : index
    %15 = vector.load %arg4[%c0_5, %c0_6] : memref<256x128xbf16, #tpu.memory_space<vmem>>, vector<256x128xbf16>
    %cst_7 = arith.constant dense<0.000000e+00> : vector<128x256xf32>
    %16 = tpu.matmul %14, %15, %cst_7 {dimension_numbers = #tpu.dot_dimension_numbers<[1], [1], [0], [0], [0, 0, 1, 0], [], []>} : vector<128x128xbf16>, vector<256x128xbf16>, vector<128x256xf32> -> vector<128x256xf32>
    %c0_8 = arith.constant 0 : index
    %c0_9 = arith.constant 0 : index
    %17 = vector.load %arg5[%c0_8, %c0_9] : memref<128x256xf32, #tpu.memory_space<vmem>>, vector<128x256xf32>
    tpu.vector_store %arg5[%c0_8, %c0_9], %16 {strides = array<i32>} : memref<128x256xf32, #tpu.memory_space<vmem>>, vector<128x256xf32>,
    return
  }
  func.func @transform_0(%arg0: i32, %arg1: i32) -> (i32, i32) {
    %c0_i32 = arith.constant 0 : i32
    %c0_i32_0 = arith.constant 0 : i32
    return %arg0, %c0_i32 : i32, i32
  }
  func.func @transform_1(%arg0: i32, %arg1: i32) -> (i32, i32) {
    %c0_i32 = arith.constant 0 : i32
    %c0_i32_0 = arith.constant 0 : i32
    %c0_i32_1 = arith.constant 0 : i32
    return %c0_i32, %c0_i32_0 : i32, i32
  }
  func.func @transform_2(%arg0: i32, %arg1: i32) -> (i32, i32) {
    %c0_i32 = arith.constant 0 : i32
    %c0_i32_0 = arith.constant 0 : i32
    return %arg1, %c0_i32 : i32, i32
  }
  func.func @transform_3(%arg0: i32, %arg1: i32) -> (i32, i32) {
    %c0_i32 = arith.constant 0 : i32
    return %arg0, %arg1 : i32, i32
  }
}

</mosaic_0001>

<llo_original>
// kernel: gpt_forward.11
$region0: #{gpt_forward.11}
  #allocation0 [shape = 'u32[]', space=smem, size = 0x4, offset = 0x4, fixed_abs, tag = 'smem constant byte address 0x4 - core index']
  #allocation1 [shape = 'u32[144,128]{1,0:T(1,128)}', space=vmem, size = 0x12000, scoped, tag = 'internal scratch']
  %s0 = inlined_call_operand.vmem [shape: bf16[128,128], index: 0, kind: input, shape index: {}]
  %s1 = inlined_call_operand.vmem [shape: bf16[128,128], index: 1, kind: input, shape index: {}]
  %s2 = inlined_call_operand.vmem [shape: f32[1,128], index: 2, kind: input, shape index: {}]
  %s3 = inlined_call_operand.vmem [shape: f32[128,128], index: 3, kind: input, shape index: {}]
  %s4 = inlined_call_operand.vmem [shape: f32[128,128], index: 4, kind: output, shape index: {}]
  %s5 = sld [smem:[#allocation0]]
  $region26: #{gpt_forward.11} parent=0
    _
  %s7 = ssub.s32 1, %s5
  %s8 = scalar_select 0, %s7, %s5
  // Predicated region
  $region2: #{gpt_forward.11} parent=0 // pred_check
    _
  $region3: #{gpt_forward.11} parent=0 // pred_check_branch
    %10 = sbr.rel (0) target = $region5
  $region4: #{gpt_forward.11} parent=0 // pred_region
    _
  $region5: #{gpt_forward.11} parent=0 // pred_fallthru
    _
  // Predicated region
  $region6: #{gpt_forward.11} parent=0 // pred_check
    _
  $region7: #{gpt_forward.11} parent=0 // pred_check_branch
    %12 = sbr.rel (0) target = $region9
  $region8: #{gpt_forward.11} parent=0 // pred_region
    _
  $region9: #{gpt_forward.11} parent=0 // pred_fallthru
    _
  // Predicated region
  $region10: #{gpt_forward.11} parent=0 // pred_check
    _
  $region11: #{gpt_forward.11} parent=0 // pred_check_branch
    %14 = sbr.rel (0) target = $region13
  $region12: #{gpt_forward.11} parent=0 // pred_region
    _
  $region13: #{gpt_forward.11} parent=0 // pred_fallthru
    _
  // Predicated region
  $region14: #{gpt_forward.11} parent=0 // pred_check
    _
  $region15: #{gpt_forward.11} parent=0 // pred_check_branch
    %16 = sbr.rel (0) target = $region17
  $region16: #{gpt_forward.11} parent=0 // pred_region
    _
  $region17: #{gpt_forward.11} parent=0 // pred_fallthru
    _
  %v18 = vld [vmem:[%s0] sm:$0xf]
  %v19 = vld [vmem:[%s0 + $0x4] sm:$0xf]
  %v20 = vld [vmem:[%s0 + $0x8] sm:$0xf]
  %v21 = vld [vmem:[%s0 + $0xc] sm:$0xf]
  %v22 = vld [vmem:[%s0 + $0x10] sm:$0xf]
  %v23 = vld [vmem:[%s0 + $0x14] sm:$0xf]
  %v24 = vld [vmem:[%s0 + $0x18] sm:$0xf]
  %v25 = vld [vmem:[%s0 + $0x1c] sm:$0xf]
  %v26 = vld [vmem:[%s0 + $0x20] sm:$0xf]
  %v27 = vld [vmem:[%s0 + $0x24] sm:$0xf]
  %v28 = vld [vmem:[%s0 + $0x28] sm:$0xf]
  %v29 = vld [vmem:[%s0 + $0x2c] sm:$0xf]
  %v30 = vld [vmem:[%s0 + $0x30] sm:$0xf]
  %v31 = vld [vmem:[%s0 + $0x34] sm:$0xf]
  %v32 = vld [vmem:[%s0 + $0x38] sm:$0xf]
  %v33 = vld [vmem:[%s0 + $0x3c] sm:$0xf]
  %v34 = vld [vmem:[%s1] sm:$0xf]
  %v35 = vld [vmem:[%s1 + $0x4] sm:$0xf]
  %v36 = vld [vmem:[%s1 + $0x8] sm:$0xf]
  %v37 = vld [vmem:[%s1 + $0xc] sm:$0xf]
  %v38 = vld [vmem:[%s1 + $0x10] sm:$0xf]
  %v39 = vld [vmem:[%s1 + $0x14] sm:$0xf]
  %v40 = vld [vmem:[%s1 + $0x18] sm:$0xf]
  %v41 = vld [vmem:[%s1 + $0x1c] sm:$0xf]
  %v42 = vld [vmem:[%s1 + $0x20] sm:$0xf]
  %v43 = vld [vmem:[%s1 + $0x24] sm:$0xf]
  %v44 = vld [vmem:[%s1 + $0x28] sm:$0xf]
  %v45 = vld [vmem:[%s1 + $0x2c] sm:$0xf]
  %v46 = vld [vmem:[%s1 + $0x30] sm:$0xf]
  %v47 = vld [vmem:[%s1 + $0x34] sm:$0xf]
  %v48 = vld [vmem:[%s1 + $0x38] sm:$0xf]
  %v49 = vld [vmem:[%s1 + $0x3c] sm:$0xf]
  %v50 = vld [vmem:[%s2] sm:$0x1]
  %v52 = vlaneseq
  %v53 = vshrl.u32 %v52, 7
  %v54 = vsub.s32 0, %v53
  %v55 = vrot.slane %v50, %v54
  %v73 = vunpack.c.l.b16 %v18
  %v74 = vunpack.c.l.b16 %v19
  %v75 = vunpack.c.l.b16 %v20
  %v76 = vunpack.c.l.b16 %v21
  %v77 = vunpack.c.l.b16 %v22
  %v78 = vunpack.c.l.b16 %v23
  %v79 = vunpack.c.l.b16 %v24
  %v80 = vunpack.c.l.b16 %v25
  %v81 = vunpack.c.l.b16 %v26
  %v82 = vunpack.c.l.b16 %v27
  %v83 = vunpack.c.l.b16 %v28
  %v84 = vunpack.c.l.b16 %v29
  %v85 = vunpack.c.l.b16 %v30
  %v86 = vunpack.c.l.b16 %v31
  %v87 = vunpack.c.l.b16 %v32
  %v88 = vunpack.c.l.b16 %v33
  %v89 = vpack.c.b16 %v74, %v73
  %v90 = vpack.c.b16 %v76, %v75
  %v91 = vpack.c.b16 %v78, %v77
  %v92 = vpack.c.b16 %v80, %v79
  %v93 = vpack.c.b16 %v82, %v81
  %v94 = vpack.c.b16 %v84, %v83
  %v95 = vpack.c.b16 %v86, %v85
  %v96 = vpack.c.b16 %v88, %v87
  %v121 = vunpack.c.l.b16 %v34
  %v122 = vunpack.c.l.b16 %v35
  %v123 = vunpack.c.l.b16 %v36
  %v124 = vunpack.c.l.b16 %v37
  %v125 = vunpack.c.l.b16 %v38
  %v126 = vunpack.c.l.b16 %v39
  %v127 = vunpack.c.l.b16 %v40
  %v128 = vunpack.c.l.b16 %v41
  %v129 = vunpack.c.l.b16 %v42
  %v130 = vunpack.c.l.b16 %v43
  %v131 = vunpack.c.l.b16 %v44
  %v132 = vunpack.c.l.b16 %v45
  %v133 = vunpack.c.l.b16 %v46
  %v134 = vunpack.c.l.b16 %v47
  %v135 = vunpack.c.l.b16 %v48
  %v136 = vunpack.c.l.b16 %v49
  %v137 = vpack.c.b16 %v122, %v121
  %v138 = vpack.c.b16 %v124, %v123
  %v139 = vpack.c.b16 %v126, %v125
  %v140 = vpack.c.b16 %v128, %v127
  %v141 = vpack.c.b16 %v130, %v129
  %v142 = vpack.c.b16 %v132, %v131
  %v143 = vpack.c.b16 %v134, %v133
  %v144 = vpack.c.b16 %v136, %v135
  %153 = vmatprep.subr.bf16.mxu0 0
  %154 = vmatpush1.bf16.msra.mxu0 %v137
  %155 = vmatprep.subr.bf16.mxu0 0
  %156 = vmatpush1.bf16.msra.mxu0 %v138
  %157 = vmatprep.subr.bf16.mxu0 0
  %158 = vmatpush1.bf16.msra.mxu0 %v139
  %159 = vmatprep.subr.bf16.mxu0 0
  %160 = vmatpush1.bf16.msra.mxu0 %v140
  %161 = vmatprep.subr.bf16.mxu0 0
  %162 = vmatpush1.bf16.msra.mxu0 %v141
  %163 = vmatprep.subr.bf16.mxu0 0
  %164 = vmatpush1.bf16.msra.mxu0 %v142
  %165 = vmatprep.subr.bf16.mxu0 0
  %166 = vmatpush1.bf16.msra.mxu0 %v143
  %167 = vmatprep.subr.bf16.mxu0 0
  %168 = vmatpush1.bf16.msra.mxu0 %v144
  %169 = vmatprep.subr.bf16.mxu0 0
  %170 = vmatpush1.bf16.msra.mxu0 0
  %171 = vmatprep.subr.bf16.mxu0 0
  %172 = vmatpush1.bf16.msra.mxu0 0
  %173 = vmatprep.subr.bf16.mxu0 0
  %174 = vmatpush1.bf16.msra.mxu0 0
  %175 = vmatprep.subr.bf16.mxu0 0
  %176 = vmatpush1.bf16.msra.mxu0 0
  %177 = vmatprep.subr.bf16.mxu0 0
  %178 = vmatpush1.bf16.msra.mxu0 0
  %179 = vmatprep.subr.bf16.mxu0 0
  %180 = vmatpush1.bf16.msra.mxu0 0
  %181 = vmatprep.subr.bf16.mxu0 0
  %182 = vmatpush1.bf16.msra.mxu0 0
  %183 = vmatprep.subr.bf16.mxu0 0
  %184 = vmatpush1.bf16.msra.mxu0 0
  %185 = vmatprep.mubr.bf16.mxu0 0
  %186 = vmatmul.mubr.bf16.gmra.mrb[0].mxu0 %v89
  %v187 = vpop.f32.mrb[0].mxu0
  %v188 = vadd.f32 %v55, %v187
  %v189 = vpop.f32.mrb[0].mxu0
  %v190 = vpop.f32.mrb[0].mxu0
  %v191 = vadd.f32 %v55, %v190
  %v192 = vpop.f32.mrb[0].mxu0
  %193 = vmatprep.mubr.bf16.mxu0 0
  %194 = vmatmul.mubr.bf16.gmra.mrb[0].mxu0 %v90
  %v195 = vpop.f32.mrb[0].mxu0
  %v196 = vadd.f32 %v55, %v195
  %v197 = vpop.f32.mrb[0].mxu0
  %v198 = vpop.f32.mrb[0].mxu0
  %v199 = vadd.f32 %v55, %v198
  %v200 = vpop.f32.mrb[0].mxu0
  %201 = vmatprep.mubr.bf16.mxu0 0
  %202 = vmatmul.mubr.bf16.gmra.mrb[0].mxu0 %v91
  %v203 = vpop.f32.mrb[0].mxu0
  %v204 = vadd.f32 %v55, %v203
  %v205 = vpop.f32.mrb[0].mxu0
  %v206 = vpop.f32.mrb[0].mxu0
  %v207 = vadd.f32 %v55, %v206
  %v208 = vpop.f32.mrb[0].mxu0
  %209 = vmatprep.mubr.bf16.mxu0 0
  %210 = vmatmul.mubr.bf16.gmra.mrb[0].mxu0 %v92
  %v211 = vpop.f32.mrb[0].mxu0
  %v212 = vadd.f32 %v55, %v211
  %v213 = vpop.f32.mrb[0].mxu0
  %v214 = vpop.f32.mrb[0].mxu0
  %v215 = vadd.f32 %v55, %v214
  %v216 = vpop.f32.mrb[0].mxu0
  %217 = vmatprep.mubr.bf16.mxu0 0
  %218 = vmatmul.mubr.bf16.gmra.mrb[0].mxu0 %v93
  %v219 = vpop.f32.mrb[0].mxu0
  %v220 = vadd.f32 %v55, %v219
  %v221 = vpop.f32.mrb[0].mxu0
  %v222 = vpop.f32.mrb[0].mxu0
  %v223 = vadd.f32 %v55, %v222
  %v224 = vpop.f32.mrb[0].mxu0
  %225 = vmatprep.mubr.bf16.mxu0 0
  %226 = vmatmul.mubr.bf16.gmra.mrb[0].mxu0 %v94
  %v227 = vpop.f32.mrb[0].mxu0
  %v228 = vadd.f32 %v55, %v227
  %v229 = vpop.f32.mrb[0].mxu0
  %v230 = vpop.f32.mrb[0].mxu0
  %v231 = vadd.f32 %v55, %v230
  %v232 = vpop.f32.mrb[0].mxu0
  %233 = vmatprep.mubr.bf16.mxu0 0
  %234 = vmatmul.mubr.bf16.gmra.mrb[0].mxu0 %v95
  %v235 = vpop.f32.mrb[0].mxu0
  %v236 = vadd.f32 %v55, %v235
  %v237 = vpop.f32.mrb[0].mxu0
  %v238 = vpop.f32.mrb[0].mxu0
  %v239 = vadd.f32 %v55, %v238
  %v240 = vpop.f32.mrb[0].mxu0
  %241 = vmatprep.mubr.bf16.mxu0 0
  %242 = vmatmul.mubr.bf16.gmra.mrb[0].mxu0 %v96
  %v243 = vpop.f32.mrb[0].mxu0
  %v244 = vadd.f32 %v55, %v243
  %v245 = vpop.f32.mrb[0].mxu0
  %v246 = vpop.f32.mrb[0].mxu0
  %v247 = vadd.f32 %v55, %v246
  %v248 = vpop.f32.mrb[0].mxu0
  %249 = vdwg.mxu0
  %v250 = vld [vmem:[%s3] sm:$0xff]
  %v251 = vld [vmem:[%s3 + $0x8] sm:$0xff]
  %v252 = vld [vmem:[%s3 + $0x10] sm:$0xff]
  %v253 = vld [vmem:[%s3 + $0x18] sm:$0xff]
  %v254 = vld [vmem:[%s3 + $0x20] sm:$0xff]
  %v255 = vld [vmem:[%s3 + $0x28] sm:$0xff]
  %v256 = vld [vmem:[%s3 + $0x30] sm:$0xff]
  %v257 = vld [vmem:[%s3 + $0x38] sm:$0xff]
  %v258 = vld [vmem:[%s3 + $0x40] sm:$0xff]
  %v259 = vld [vmem:[%s3 + $0x48] sm:$0xff]
  %v260 = vld [vmem:[%s3 + $0x50] sm:$0xff]
  %v261 = vld [vmem:[%s3 + $0x58] sm:$0xff]
  %v262 = vld [vmem:[%s3 + $0x60] sm:$0xff]
  %v263 = vld [vmem:[%s3 + $0x68] sm:$0xff]
  %v264 = vld [vmem:[%s3 + $0x70] sm:$0xff]
  %v265 = vld [vmem:[%s3 + $0x78] sm:$0xff]
  %v266 = vadd.f32 %v188, %v250
  %v267 = vadd.f32 %v191, %v251
  %v268 = vadd.f32 %v196, %v252
  %v269 = vadd.f32 %v199, %v253
  %v270 = vadd.f32 %v204, %v254
  %v271 = vadd.f32 %v207, %v255
  %v272 = vadd.f32 %v212, %v256
  %v273 = vadd.f32 %v215, %v257
  %v274 = vadd.f32 %v220, %v258
  %v275 = vadd.f32 %v223, %v259
  %v276 = vadd.f32 %v228, %v260
  %v277 = vadd.f32 %v231, %v261
  %v278 = vadd.f32 %v236, %v262
  %v279 = vadd.f32 %v239, %v263
  %v280 = vadd.f32 %v244, %v264
  %v281 = vadd.f32 %v247, %v265
  %282 = vst [vmem:[%s4] sm:$0xff] %v266
  %283 = vst [vmem:[%s4 + $0x8] sm:$0xff] %v267
  %284 = vst [vmem:[%s4 + $0x10] sm:$0xff] %v268
  %285 = vst [vmem:[%s4 + $0x18] sm:$0xff] %v269
  %286 = vst [vmem:[%s4 + $0x20] sm:$0xff] %v270
  %287 = vst [vmem:[%s4 + $0x28] sm:$0xff] %v271
  %288 = vst [vmem:[%s4 + $0x30] sm:$0xff] %v272
  %289 = vst [vmem:[%s4 + $0x38] sm:$0xff] %v273
  %290 = vst [vmem:[%s4 + $0x40] sm:$0xff] %v274
  %291 = vst [vmem:[%s4 + $0x48] sm:$0xff] %v275
  %292 = vst [vmem:[%s4 + $0x50] sm:$0xff] %v276
  %293 = vst [vmem:[%s4 + $0x58] sm:$0xff] %v277
  %294 = vst [vmem:[%s4 + $0x60] sm:$0xff] %v278
  %295 = vst [vmem:[%s4 + $0x68] sm:$0xff] %v279
  %296 = vst [vmem:[%s4 + $0x70] sm:$0xff] %v280
  %297 = vst [vmem:[%s4 + $0x78] sm:$0xff] %v281
  // Predicated region
  $region18: #{gpt_forward.11} parent=0 // pred_check
    _
  $region19: #{gpt_forward.11} parent=0 // pred_check_branch
    %299 = sbr.rel (0) target = $region21
  $region20: #{gpt_forward.11} parent=0 // pred_region
    _
  $region21: #{gpt_forward.11} parent=0 // pred_fallthru
    _
  // Predicated region
  $region22: #{gpt_forward.11} parent=0 // pred_check
    _
  $region23: #{gpt_forward.11} parent=0 // pred_check_branch
    %301 = sbr.rel (0) target = $region25
  $region24: #{gpt_forward.11} parent=0 // pred_region
    _
  $region25: #{gpt_forward.11} parent=0 // pred_fallthru
    _

// kernel: gpt_forward.9
$region0: #{gpt_forward.9}
  #allocation0 [shape = 'u32[]', space=smem, size = 0x4, offset = 0x4, fixed_abs, tag = 'smem constant byte address 0x4 - core index']
  #allocation1 [shape = 'u32[144,128]{1,0:T(1,128)}', space=vmem, size = 0x12000, scoped, tag = 'internal scratch']
  %s0 = inlined_call_operand.vmem [shape: f32[128,128], index: 0, kind: input, shape index: {}]
  %s1 = inlined_call_operand.vmem [shape: f32[1,128], index: 1, kind: input, shape index: {}]
  %s2 = inlined_call_operand.vmem [shape: bf16[128,256], index: 2, kind: input, shape index: {}]
  %s3 = inlined_call_operand.vmem [shape: f32[1,256], index: 3, kind: input, shape index: {}]
  %s4 = inlined_call_operand.vmem [shape: bf16[128,256], index: 4, kind: output, shape index: {}]
  %s5 = sld [smem:[#allocation0]]
  $region26: #{gpt_forward.9} parent=0
    _
  %s7 = ssub.s32 1, %s5
  %s8 = scalar_select 0, %s7, %s5
  // Predicated region
  $region2: #{gpt_forward.9} parent=0 // pred_check
    _
  $region3: #{gpt_forward.9} parent=0 // pred_check_branch
    %10 = sbr.rel (0) target = $region5
  $region4: #{gpt_forward.9} parent=0 // pred_region
    _
  $region5: #{gpt_forward.9} parent=0 // pred_fallthru
    _
  // Predicated region
  $region6: #{gpt_forward.9} parent=0 // pred_check
    _
  $region7: #{gpt_forward.9} parent=0 // pred_check_branch
    %12 = sbr.rel (0) target = $region9
  $region8: #{gpt_forward.9} parent=0 // pred_region
    _
  $region9: #{gpt_forward.9} parent=0 // pred_fallthru
    _
  // Predicated region
  $region10: #{gpt_forward.9} parent=0 // pred_check
    _
  $region11: #{gpt_forward.9} parent=0 // pred_check_branch
    %14 = sbr.rel (0) target = $region13
  $region12: #{gpt_forward.9} parent=0 // pred_region
    _
  $region13: #{gpt_forward.9} parent=0 // pred_fallthru
    _
  // Predicated region
  $region14: #{gpt_forward.9} parent=0 // pred_check
    _
  $region15: #{gpt_forward.9} parent=0 // pred_check_branch
    %16 = sbr.rel (0) target = $region17
  $region16: #{gpt_forward.9} parent=0 // pred_region
    _
  $region17: #{gpt_forward.9} parent=0 // pred_fallthru
    _
  %v18 = vld [vmem:[%s0] sm:$0xff]
  %v19 = vld [vmem:[%s0 + $0x8] sm:$0xff]
  %v20 = vld [vmem:[%s0 + $0x10] sm:$0xff]
  %v21 = vld [vmem:[%s0 + $0x18] sm:$0xff]
  %v22 = vld [vmem:[%s0 + $0x20] sm:$0xff]
  %v23 = vld [vmem:[%s0 + $0x28] sm:$0xff]
  %v24 = vld [vmem:[%s0 + $0x30] sm:$0xff]
  %v25 = vld [vmem:[%s0 + $0x38] sm:$0xff]
  %v26 = vld [vmem:[%s0 + $0x40] sm:$0xff]
  %v27 = vld [vmem:[%s0 + $0x48] sm:$0xff]
  %v28 = vld [vmem:[%s0 + $0x50] sm:$0xff]
  %v29 = vld [vmem:[%s0 + $0x58] sm:$0xff]
  %v30 = vld [vmem:[%s0 + $0x60] sm:$0xff]
  %v31 = vld [vmem:[%s0 + $0x68] sm:$0xff]
  %v32 = vld [vmem:[%s0 + $0x70] sm:$0xff]
  %v33 = vld [vmem:[%s0 + $0x78] sm:$0xff]
  %v34 = vld [vmem:[%s1] sm:$0x1]
  %v35 = vmul.f32 %v18, %v18
  %v36 = vmul.f32 %v19, %v19
  %v37 = vmul.f32 %v20, %v20
  %v38 = vmul.f32 %v21, %v21
  %v39 = vmul.f32 %v22, %v22
  %v40 = vmul.f32 %v23, %v23
  %v41 = vmul.f32 %v24, %v24
  %v42 = vmul.f32 %v25, %v25
  %v43 = vmul.f32 %v26, %v26
  %v44 = vmul.f32 %v27, %v27
  %v45 = vmul.f32 %v28, %v28
  %v46 = vmul.f32 %v29, %v29
  %v47 = vmul.f32 %v30, %v30
  %v48 = vmul.f32 %v31, %v31
  %v49 = vmul.f32 %v32, %v32
  %v50 = vmul.f32 %v33, %v33
  %51 = vadd.xlane.f32.xlu0 %v35
  %v52 = vpop.xlane.xlu0 %51
  %53 = vadd.xlane.f32.xlu0 %v36
  %v54 = vpop.xlane.xlu0 %53
  %55 = vadd.xlane.f32.xlu0 %v37
  %v56 = vpop.xlane.xlu0 %55
  %57 = vadd.xlane.f32.xlu0 %v38
  %v58 = vpop.xlane.xlu0 %57
  %59 = vadd.xlane.f32.xlu0 %v39
  %v60 = vpop.xlane.xlu0 %59
  %61 = vadd.xlane.f32.xlu0 %v40
  %v62 = vpop.xlane.xlu0 %61
  %63 = vadd.xlane.f32.xlu0 %v41
  %v64 = vpop.xlane.xlu0 %63
  %65 = vadd.xlane.f32.xlu0 %v42
  %v66 = vpop.xlane.xlu0 %65
  %67 = vadd.xlane.f32.xlu0 %v43
  %v68 = vpop.xlane.xlu0 %67
  %69 = vadd.xlane.f32.xlu0 %v44
  %v70 = vpop.xlane.xlu0 %69
  %71 = vadd.xlane.f32.xlu0 %v45
  %v72 = vpop.xlane.xlu0 %71
  %73 = vadd.xlane.f32.xlu0 %v46
  %v74 = vpop.xlane.xlu0 %73
  %75 = vadd.xlane.f32.xlu0 %v47
  %v76 = vpop.xlane.xlu0 %75
  %77 = vadd.xlane.f32.xlu0 %v48
  %v78 = vpop.xlane.xlu0 %77
  %79 = vadd.xlane.f32.xlu0 %v49
  %v80 = vpop.xlane.xlu0 %79
  %81 = vadd.xlane.f32.xlu0 %v50
  %v82 = vpop.xlane.xlu0 %81
  %v83 = vrcp.pop 128.0
  %v84 = vmul.f32 %v52, %v83
  %v85 = vmul.f32 %v54, %v83
  %v86 = vmul.f32 %v56, %v83
  %v87 = vmul.f32 %v58, %v83
  %v88 = vmul.f32 %v60, %v83
  %v89 = vmul.f32 %v62, %v83
  %v90 = vmul.f32 %v64, %v83
  %v91 = vmul.f32 %v66, %v83
  %v92 = vmul.f32 %v68, %v83
  %v93 = vmul.f32 %v70, %v83
  %v94 = vmul.f32 %v72, %v83
  %v95 = vmul.f32 %v74, %v83
  %v96 = vmul.f32 %v76, %v83
  %v97 = vmul.f32 %v78, %v83
  %v98 = vmul.f32 %v80, %v83
  %v99 = vmul.f32 %v82, %v83
  %v100 = vadd.f32 %v84, 1e-06
  %v101 = vadd.f32 %v85, 1e-06
  %v102 = vadd.f32 %v86, 1e-06
  %v103 = vadd.f32 %v87, 1e-06
  %v104 = vadd.f32 %v88, 1e-06
  %v105 = vadd.f32 %v89, 1e-06
  %v106 = vadd.f32 %v90, 1e-06
  %v107 = vadd.f32 %v91, 1e-06
  %v108 = vadd.f32 %v92, 1e-06
  %v109 = vadd.f32 %v93, 1e-06
  %v110 = vadd.f32 %v94, 1e-06
  %v111 = vadd.f32 %v95, 1e-06
  %v112 = vadd.f32 %v96, 1e-06
  %v113 = vadd.f32 %v97, 1e-06
  %v114 = vadd.f32 %v98, 1e-06
  %v115 = vadd.f32 %v99, 1e-06
  %v116 = vrsqrt.pop %v100
  %v117 = vrsqrt.pop %v101
  %v118 = vrsqrt.pop %v102
  %v119 = vrsqrt.pop %v103
  %v120 = vrsqrt.pop %v104
  %v121 = vrsqrt.pop %v105
  %v122 = vrsqrt.pop %v106
  %v123 = vrsqrt.pop %v107
  %v124 = vrsqrt.pop %v108
  %v125 = vrsqrt.pop %v109
  %v126 = vrsqrt.pop %v110
  %v127 = vrsqrt.pop %v111
  %v128 = vrsqrt.pop %v112
  %v129 = vrsqrt.pop %v113
  %v130 = vrsqrt.pop %v114
  %v131 = vrsqrt.pop %v115
  %v132 = vmul.f32 %v18, %v116
  %v133 = vmul.f32 %v19, %v117
  %v134 = vmul.f32 %v20, %v118
  %v135 = vmul.f32 %v21, %v119
  %v136 = vmul.f32 %v22, %v120
  %v137 = vmul.f32 %v23, %v121
  %v138 = vmul.f32 %v24, %v122
  %v139 = vmul.f32 %v25, %v123
  %v140 = vmul.f32 %v26, %v124
  %v141 = vmul.f32 %v27, %v125
  %v142 = vmul.f32 %v28, %v126
  %v143 = vmul.f32 %v29, %v127
  %v144 = vmul.f32 %v30, %v128
  %v145 = vmul.f32 %v31, %v129
  %v146 = vmul.f32 %v32, %v130
  %v147 = vmul.f32 %v33, %v131
  %v149 = vlaneseq
  %v150 = vshrl.u32 %v149, 7
  %v151 = vsub.s32 0, %v150
  %v152 = vrot.slane %v34, %v151
  %v154 = vmul.f32 %v132, %v152
  %v155 = vmul.f32 %v133, %v152
  %v156 = vmul.f32 %v134, %v152
  %v157 = vmul.f32 %v135, %v152
  %v158 = vmul.f32 %v136, %v152
  %v159 = vmul.f32 %v137, %v152
  %v160 = vmul.f32 %v138, %v152
  %v161 = vmul.f32 %v139, %v152
  %v162 = vmul.f32 %v140, %v152
  %v163 = vmul.f32 %v141, %v152
  %v164 = vmul.f32 %v142, %v152
  %v165 = vmul.f32 %v143, %v152
  %v166 = vmul.f32 %v144, %v152
  %v167 = vmul.f32 %v145, %v152
  %v168 = vmul.f32 %v146, %v152
  %v169 = vmul.f32 %v147, %v152
  %v170 = vpack.c.bf16 %v155, %v154
  %v171 = vpack.c.bf16 %v157, %v156
  %v172 = vpack.c.bf16 %v159, %v158
  %v173 = vpack.c.bf16 %v161, %v160
  %v174 = vpack.c.bf16 %v163, %v162
  %v175 = vpack.c.bf16 %v165, %v164
  %v176 = vpack.c.bf16 %v167, %v166
  %v177 = vpack.c.bf16 %v169, %v168
  %v178 = vld [vmem:[%s2] sm:$0xff]
  %v179 = vld [vmem:[%s2 + $0x8] sm:$0xff]
  %v180 = vld [vmem:[%s2 + $0x10] sm:$0xff]
  %v181 = vld [vmem:[%s2 + $0x18] sm:$0xff]
  %v182 = vld [vmem:[%s2 + $0x20] sm:$0xff]
  %v183 = vld [vmem:[%s2 + $0x28] sm:$0xff]
  %v184 = vld [vmem:[%s2 + $0x30] sm:$0xff]
  %v185 = vld [vmem:[%s2 + $0x38] sm:$0xff]
  %v186 = vld [vmem:[%s2 + $0x40] sm:$0xff]
  %v187 = vld [vmem:[%s2 + $0x48] sm:$0xff]
  %v188 = vld [vmem:[%s2 + $0x50] sm:$0xff]
  %v189 = vld [vmem:[%s2 + $0x58] sm:$0xff]
  %v190 = vld [vmem:[%s2 + $0x60] sm:$0xff]
  %v191 = vld [vmem:[%s2 + $0x68] sm:$0xff]
  %v192 = vld [vmem:[%s2 + $0x70] sm:$0xff]
  %v193 = vld [vmem:[%s2 + $0x78] sm:$0xff]
  %v194 = vld [vmem:[%s3] sm:$0x3]
  %v196 = vlaneseq
  %v197 = vshrl.u32 %v196, 7
  %v198 = vsub.s32 0, %v197
  %v199 = vrot.slane %v194, %v198
  %v200 = vlaneseq
  %v201 = vshrl.u32 %v200, 7
  %v202 = vsub.s32 1, %v201
  %v203 = vrot.slane %v194, %v202
  %v222 = vunpack.c.l.b16 %v178
  %v223 = vunpack.c.h.b16 %v178
  %v224 = vunpack.c.l.b16 %v179
  %v225 = vunpack.c.h.b16 %v179
  %v226 = vunpack.c.l.b16 %v180
  %v227 = vunpack.c.h.b16 %v180
  %v228 = vunpack.c.l.b16 %v181
  %v229 = vunpack.c.h.b16 %v181
  %v230 = vunpack.c.l.b16 %v182
  %v231 = vunpack.c.h.b16 %v182
  %v232 = vunpack.c.l.b16 %v183
  %v233 = vunpack.c.h.b16 %v183
  %v234 = vunpack.c.l.b16 %v184
  %v235 = vunpack.c.h.b16 %v184
  %v236 = vunpack.c.l.b16 %v185
  %v237 = vunpack.c.h.b16 %v185
  %v238 = vunpack.c.l.b16 %v186
  %v239 = vunpack.c.h.b16 %v186
  %v240 = vunpack.c.l.b16 %v187
  %v241 = vunpack.c.h.b16 %v187
  %v242 = vunpack.c.l.b16 %v188
  %v243 = vunpack.c.h.b16 %v188
  %v244 = vunpack.c.l.b16 %v189
  %v245 = vunpack.c.h.b16 %v189
  %v246 = vunpack.c.l.b16 %v190
  %v247 = vunpack.c.h.b16 %v190
  %v248 = vunpack.c.l.b16 %v191
  %v249 = vunpack.c.h.b16 %v191
  %v250 = vunpack.c.l.b16 %v192
  %v251 = vunpack.c.h.b16 %v192
  %v252 = vunpack.c.l.b16 %v193
  %v253 = vunpack.c.h.b16 %v193
  %v254 = vpack.c.b16 %v224, %v222
  %v255 = vpack.c.b16 %v225, %v223
  %v256 = vpack.c.b16 %v228, %v226
  %v257 = vpack.c.b16 %v229, %v227
  %v258 = vpack.c.b16 %v232, %v230
  %v259 = vpack.c.b16 %v233, %v231
  %v260 = vpack.c.b16 %v236, %v234
  %v261 = vpack.c.b16 %v237, %v235
  %v262 = vpack.c.b16 %v240, %v238
  %v263 = vpack.c.b16 %v241, %v239
  %v264 = vpack.c.b16 %v244, %v242
  %v265 = vpack.c.b16 %v245, %v243
  %v266 = vpack.c.b16 %v248, %v246
  %v267 = vpack.c.b16 %v249, %v247
  %v268 = vpack.c.b16 %v252, %v250
  %v269 = vpack.c.b16 %v253, %v251
  %286 = vmatprep.subr.bf16.mxu0 %v255
  %287 = vmatpush1.bf16.msra.mxu0 %v254
  %288 = vmatprep.subr.bf16.mxu0 %v257
  %289 = vmatpush1.bf16.msra.mxu0 %v256
  %290 = vmatprep.subr.bf16.mxu0 %v259
  %291 = vmatpush1.bf16.msra.mxu0 %v258
  %292 = vmatprep.subr.bf16.mxu0 %v261
  %293 = vmatpush1.bf16.msra.mxu0 %v260
  %294 = vmatprep.subr.bf16.mxu0 %v263
  %295 = vmatpush1.bf16.msra.mxu0 %v262
  %296 = vmatprep.subr.bf16.mxu0 %v265
  %297 = vmatpush1.bf16.msra.mxu0 %v264
  %298 = vmatprep.subr.bf16.mxu0 %v267
  %299 = vmatpush1.bf16.msra.mxu0 %v266
  %300 = vmatprep.subr.bf16.mxu0 %v269
  %301 = vmatpush1.bf16.msra.mxu0 %v268
  %302 = vmatprep.subr.bf16.mxu0 0
  %303 = vmatpush1.bf16.msra.mxu0 0
  %304 = vmatprep.subr.bf16.mxu0 0
  %305 = vmatpush1.bf16.msra.mxu0 0
  %306 = vmatprep.subr.bf16.mxu0 0
  %307 = vmatpush1.bf16.msra.mxu0 0
  %308 = vmatprep.subr.bf16.mxu0 0
  %309 = vmatpush1.bf16.msra.mxu0 0
  %310 = vmatprep.subr.bf16.mxu0 0
  %311 = vmatpush1.bf16.msra.mxu0 0
  %312 = vmatprep.subr.bf16.mxu0 0
  %313 = vmatpush1.bf16.msra.mxu0 0
  %314 = vmatprep.subr.bf16.mxu0 0
  %315 = vmatpush1.bf16.msra.mxu0 0
  %316 = vmatprep.subr.bf16.mxu0 0
  %317 = vmatpush1.bf16.msra.mxu0 0
  %318 = vmatprep.mubr.bf16.mxu0 0
  %319 = vmatmul.mubr.bf16.gmra.mrb[0].mxu0 %v170
  %v320 = vpop.f32.mrb[0].mxu0
  %v321 = vadd.f32 %v199, %v320
  %v322 = vpop.f32.mrb[0].mxu0
  %v323 = vadd.f32 %v203, %v322
  %v324 = vpop.f32.mrb[0].mxu0
  %v325 = vadd.f32 %v199, %v324
  %v326 = vpop.f32.mrb[0].mxu0
  %v327 = vadd.f32 %v203, %v326
  %328 = vmatprep.mubr.bf16.mxu0 0
  %329 = vmatmul.mubr.bf16.gmra.mrb[0].mxu0 %v171
  %v330 = vpop.f32.mrb[0].mxu0
  %v331 = vadd.f32 %v199, %v330
  %v332 = vpop.f32.mrb[0].mxu0
  %v333 = vadd.f32 %v203, %v332
  %v334 = vpop.f32.mrb[0].mxu0
  %v335 = vadd.f32 %v199, %v334
  %v336 = vpop.f32.mrb[0].mxu0
  %v337 = vadd.f32 %v203, %v336
  %338 = vmatprep.mubr.bf16.mxu0 0
  %339 = vmatmul.mubr.bf16.gmra.mrb[0].mxu0 %v172
  %v340 = vpop.f32.mrb[0].mxu0
  %v341 = vadd.f32 %v199, %v340
  %v342 = vpop.f32.mrb[0].mxu0
  %v343 = vadd.f32 %v203, %v342
  %v344 = vpop.f32.mrb[0].mxu0
  %v345 = vadd.f32 %v199, %v344
  %v346 = vpop.f32.mrb[0].mxu0
  %v347 = vadd.f32 %v203, %v346
  %348 = vmatprep.mubr.bf16.mxu0 0
  %349 = vmatmul.mubr.bf16.gmra.mrb[0].mxu0 %v173
  %v350 = vpop.f32.mrb[0].mxu0
  %v351 = vadd.f32 %v199, %v350
  %v352 = vpop.f32.mrb[0].mxu0
  %v353 = vadd.f32 %v203, %v352
  %v354 = vpop.f32.mrb[0].mxu0
  %v355 = vadd.f32 %v199, %v354
  %v356 = vpop.f32.mrb[0].mxu0
  %v357 = vadd.f32 %v203, %v356
  %358 = vmatprep.mubr.bf16.mxu0 0
  %359 = vmatmul.mubr.bf16.gmra.mrb[0].mxu0 %v174
  %v360 = vpop.f32.mrb[0].mxu0
  %v361 = vadd.f32 %v199, %v360
  %v362 = vpop.f32.mrb[0].mxu0
  %v363 = vadd.f32 %v203, %v362
  %v364 = vpop.f32.mrb[0].mxu0
  %v365 = vadd.f32 %v199, %v364
  %v366 = vpop.f32.mrb[0].mxu0
  %v367 = vadd.f32 %v203, %v366
  %368 = vmatprep.mubr.bf16.mxu0 0
  %369 = vmatmul.mubr.bf16.gmra.mrb[0].mxu0 %v175
  %v370 = vpop.f32.mrb[0].mxu0
  %v371 = vadd.f32 %v199, %v370
  %v372 = vpop.f32.mrb[0].mxu0
  %v373 = vadd.f32 %v203, %v372
  %v374 = vpop.f32.mrb[0].mxu0
  %v375 = vadd.f32 %v199, %v374
  %v376 = vpop.f32.mrb[0].mxu0
  %v377 = vadd.f32 %v203, %v376
  %378 = vmatprep.mubr.bf16.mxu0 0
  %379 = vmatmul.mubr.bf16.gmra.mrb[0].mxu0 %v176
  %v380 = vpop.f32.mrb[0].mxu0
  %v381 = vadd.f32 %v199, %v380
  %v382 = vpop.f32.mrb[0].mxu0
  %v383 = vadd.f32 %v203, %v382
  %v384 = vpop.f32.mrb[0].mxu0
  %v385 = vadd.f32 %v199, %v384
  %v386 = vpop.f32.mrb[0].mxu0
  %v387 = vadd.f32 %v203, %v386
  %388 = vmatprep.mubr.bf16.mxu0 0
  %389 = vmatmul.mubr.bf16.gmra.mrb[0].mxu0 %v177
  %v390 = vpop.f32.mrb[0].mxu0
  %v391 = vadd.f32 %v199, %v390
  %v392 = vpop.f32.mrb[0].mxu0
  %v393 = vadd.f32 %v203, %v392
  %v394 = vpop.f32.mrb[0].mxu0
  %v395 = vadd.f32 %v199, %v394
  %v396 = vpop.f32.mrb[0].mxu0
  %v397 = vadd.f32 %v203, %v396
  %398 = vdwg.mxu0
  %v399 = vpack.c.bf16 %v325, %v321
  %v400 = vpack.c.bf16 %v327, %v323
  %v401 = vpack.c.bf16 %v335, %v331
  %v402 = vpack.c.bf16 %v337, %v333
  %v403 = vpack.c.bf16 %v345, %v341
  %v404 = vpack.c.bf16 %v347, %v343
  %v405 = vpack.c.bf16 %v355, %v351
  %v406 = vpack.c.bf16 %v357, %v353
  %v407 = vpack.c.bf16 %v365, %v361
  %v408 = vpack.c.bf16 %v367, %v363
  %v409 = vpack.c.bf16 %v375, %v371
  %v410 = vpack.c.bf16 %v377, %v373
  %v411 = vpack.c.bf16 %v385, %v381
  %v412 = vpack.c.bf16 %v387, %v383
  %v413 = vpack.c.bf16 %v395, %v391
  %v414 = vpack.c.bf16 %v397, %v393
  %v431 = vunpack.c.l.b16 %v399
  %v432 = vunpack.c.l.b16 %v400
  %v433 = vunpack.c.h.b16 %v399
  %v434 = vunpack.c.h.b16 %v400
  %v435 = vunpack.c.l.b16 %v401
  %v436 = vunpack.c.l.b16 %v402
  %v437 = vunpack.c.h.b16 %v401
  %v438 = vunpack.c.h.b16 %v402
  %v439 = vunpack.c.l.b16 %v403
  %v440 = vunpack.c.l.b16 %v404
  %v441 = vunpack.c.h.b16 %v403
  %v442 = vunpack.c.h.b16 %v404
  %v443 = vunpack.c.l.b16 %v405
  %v444 = vunpack.c.l.b16 %v406
  %v445 = vunpack.c.h.b16 %v405
  %v446 = vunpack.c.h.b16 %v406
  %v447 = vunpack.c.l.b16 %v407
  %v448 = vunpack.c.l.b16 %v408
  %v449 = vunpack.c.h.b16 %v407
  %v450 = vunpack.c.h.b16 %v408
  %v451 = vunpack.c.l.b16 %v409
  %v452 = vunpack.c.l.b16 %v410
  %v453 = vunpack.c.h.b16 %v409
  %v454 = vunpack.c.h.b16 %v410
  %v455 = vunpack.c.l.b16 %v411
  %v456 = vunpack.c.l.b16 %v412
  %v457 = vunpack.c.h.b16 %v411
  %v458 = vunpack.c.h.b16 %v412
  %v459 = vunpack.c.l.b16 %v413
  %v460 = vunpack.c.l.b16 %v414
  %v461 = vunpack.c.h.b16 %v413
  %v462 = vunpack.c.h.b16 %v414
  %v463 = vpack.c.b16 %v432, %v431
  %v464 = vpack.c.b16 %v434, %v433
  %v465 = vpack.c.b16 %v436, %v435
  %v466 = vpack.c.b16 %v438, %v437
  %v467 = vpack.c.b16 %v440, %v439
  %v468 = vpack.c.b16 %v442, %v441
  %v469 = vpack.c.b16 %v444, %v443
  %v470 = vpack.c.b16 %v446, %v445
  %v471 = vpack.c.b16 %v448, %v447
  %v472 = vpack.c.b16 %v450, %v449
  %v473 = vpack.c.b16 %v452, %v451
  %v474 = vpack.c.b16 %v454, %v453
  %v475 = vpack.c.b16 %v456, %v455
  %v476 = vpack.c.b16 %v458, %v457
  %v477 = vpack.c.b16 %v460, %v459
  %v478 = vpack.c.b16 %v462, %v461
  %495 = vst [vmem:[%s4] sm:$0xff] %v463
  %496 = vst [vmem:[%s4 + $0x8] sm:$0xff] %v464
  %497 = vst [vmem:[%s4 + $0x10] sm:$0xff] %v465
  %498 = vst [vmem:[%s4 + $0x18] sm:$0xff] %v466
  %499 = vst [vmem:[%s4 + $0x20] sm:$0xff] %v467
  %500 = vst [vmem:[%s4 + $0x28] sm:$0xff] %v468
  %501 = vst [vmem:[%s4 + $0x30] sm:$0xff] %v469
  %502 = vst [vmem:[%s4 + $0x38] sm:$0xff] %v470
  %503 = vst [vmem:[%s4 + $0x40] sm:$0xff] %v471
  %504 = vst [vmem:[%s4 + $0x48] sm:$0xff] %v472
  %505 = vst [vmem:[%s4 + $0x50] sm:$0xff] %v473
  %506 = vst [vmem:[%s4 + $0x58] sm:$0xff] %v474
  %507 = vst [vmem:[%s4 + $0x60] sm:$0xff] %v475
  %508 = vst [vmem:[%s4 + $0x68] sm:$0xff] %v476
  %509 = vst [vmem:[%s4 + $0x70] sm:$0xff] %v477
  %510 = vst [vmem:[%s4 + $0x78] sm:$0xff] %v478
  // Predicated region
  $region18: #{gpt_forward.9} parent=0 // pred_check
    _
  $region19: #{gpt_forward.9} parent=0 // pred_check_branch
    %512 = sbr.rel (0) target = $region21
  $region20: #{gpt_forward.9} parent=0 // pred_region
    _
  $region21: #{gpt_forward.9} parent=0 // pred_fallthru
    _
  // Predicated region
  $region22: #{gpt_forward.9} parent=0 // pred_check
    _
  $region23: #{gpt_forward.9} parent=0 // pred_check_branch
    %514 = sbr.rel (0) target = $region25
  $region24: #{gpt_forward.9} parent=0 // pred_region
    _
  $region25: #{gpt_forward.9} parent=0 // pred_fallthru
    _

// kernel: gpt_forward.12
$region0: #{gpt_forward.12}
  #allocation0 [shape = 'u32[]', space=smem, size = 0x4, offset = 0x4, fixed_abs, tag = 'smem constant byte address 0x4 - core index']
  #allocation1 [shape = 'u32[144,128]{1,0:T(1,128)}', space=vmem, size = 0x12000, scoped, tag = 'internal scratch']
  #allocation2 [shape = 'bf16[128,128]{1,0:T(16,128)(2,1)}', space=vmem, size = 0x8000, scoped, tag = 'scratch operand']
  #allocation3 [shape = 'f32[128,128]{1,0:T(8,128)}', space=vmem, size = 0x10000, scoped, tag = 'scratch operand']
  %s0 = inlined_call_operand.vmem [shape: f32[128,128], index: 0, kind: input, shape index: {}]
  %s1 = inlined_call_operand.vmem [shape: f32[1,128], index: 1, kind: input, shape index: {}]
  %s2 = inlined_call_operand.vmem [shape: bf16[128,512], index: 2, kind: input, shape index: {}]
  %s3 = inlined_call_operand.vmem [shape: f32[1,512], index: 3, kind: input, shape index: {}]
  %s4 = inlined_call_operand.vmem [shape: bf16[128,512], index: 4, kind: input, shape index: {}]
  %s5 = inlined_call_operand.vmem [shape: f32[1,512], index: 5, kind: input, shape index: {}]
  %s6 = inlined_call_operand.vmem [shape: bf16[512,128], index: 6, kind: input, shape index: {}]
  %s7 = inlined_call_operand.vmem [shape: f32[1,128], index: 7, kind: input, shape index: {}]
  %s8 = inlined_call_operand.vmem [shape: f32[128,128], index: 8, kind: output, shape index: {}]
  %s9 = sld [smem:[#allocation0]]
  $region149: #{gpt_forward.12} parent=0
    _
  %s11 = ssub.s32 1, %s9
  %s12 = scalar_select 0, %s11, %s9
  $region1: #{gpt_forward.12} parent=0
    #allocation4 [shape = 'u8[131072]{0}', space=vmem, size = 0x20000, scoped, tag = 'input window, operand 2']
    #allocation5 [shape = 'u8[131072]{0}', space=vmem, size = 0x20000, scoped, tag = 'input window, operand 4']
    loop: start=0, step=1, limit=4
    $region2: #{gpt_forward.12} parent=1 // loop_pre_header
      _
    $region3: #{gpt_forward.12} parent=1 // loop_header
      %s14 = sphi 0, %s18
      %p15 = scmp.ge.s32.totalorder %s14, 4
      %s21 = sphi 0, %s33
      %s22 = sphi 0, %s29
      %s23 = sphi 0, %s21
      %s24 = sphi 0, %s22
      %s25 = sphi 0, %s23
      %s26 = sphi 0, %s24
      %s36 = sphi 0, %s38
      %s39 = sphi 0, %s36
      %s40 = sphi 0, %s39
      %s56 = sphi 0, %s40
      %s60 = sphi 0, %s60
      %s62 = sphi 0, %s60
      %s63 = sphi 0, %s62
      %s77 = sphi 0, %s63
      %s83 = sphi 0, %s85
      %s86 = sphi 0, %s83
      %s87 = sphi 0, %s86
      %s103 = sphi 0, %s87
      %s109 = sphi 0, %s111
      %s112 = sphi 0, %s109
      %s113 = sphi 0, %s112
      %s129 = sphi 0, %s113
      %s135 = sphi 0, %s137
      %s138 = sphi 0, %s135
      %s139 = sphi 0, %s138
      %s155 = sphi 0, %s139
      %s161 = sphi 0, %s163
      %s164 = sphi 0, %s161
      %s165 = sphi 0, %s164
      %s181 = sphi 0, %s165
      %s187 = sphi 0, %s189
      %s190 = sphi 0, %s187
      %s191 = sphi 0, %s190
      %s207 = sphi 0, %s191
      %s211 = sphi 0, %s211
      %s213 = sphi 0, %s211
      %s214 = sphi 0, %s213
      %s228 = sphi 0, %s214
      %s234 = sphi 0, %s236
      %s237 = sphi 0, %s234
      %s238 = sphi 0, %s237
      %s254 = sphi 0, %s238
    $region4: #{gpt_forward.12} parent=1 // loop_header_branch
      %17 = sbr.rel (%p15) target = $region8
    $region5: #{gpt_forward.12} parent=1 // loop_body
      %s19 = ssub.s32 %s14, 1
      %s20 = ssub.s32 %s14, 2
      %s27 = sadd.s32 1, %s22
      %p28 = scmp.ge.s32.totalorder %s27, 2
      %s29 = scalar_select %p28, 0, %s27
      %s30 = sadd.s32 1, %s21
      %s31 = scalar_select %p28, %s30, %s21
      %p32 = scmp.ge.s32.totalorder %s31, 1
      %s33 = scalar_select %p32, 0, %s31
      %s34 = ssub.s32 %s21, %s33
      %p35 = scmp.eq.s32.totalorder %s34, 0
      %s37 = sadd.s32 %s36, 1
      %s38 = scalar_select %p35, %s36, %s37
      %p41 = pneg %p35
      %p42 = scmp.eq.s32.totalorder %s14, 1
      %p43 = por %p41, %p42
      %p44 = scmp.ne.s32.totalorder %s36, %s39
      %p45 = scmp.eq.s32.totalorder %s14, 0
      %p46 = por %p44, %p45
      %p47 = scmp.ne.s32.totalorder %s36, %s39
      %p48 = scmp.eq.s32.totalorder %s19, 1
      %p49 = por %p47, %p48
      %p50 = scmp.ne.s32.totalorder %s39, %s40
      %p51 = scmp.eq.s32.totalorder %s19, 0
      %p52 = por %p50, %p51
      %p53 = scmp.ne.s32.totalorder %s39, %s40
      %p54 = scmp.eq.s32.totalorder %s20, 1
      %p55 = por %p53, %p54
      %p57 = scmp.ne.s32.totalorder %s40, %s56
      %p58 = scmp.eq.s32.totalorder %s20, 0
      %p59 = por %p57, %p58
      %s61 = sadd.s32 %s60, 1
      %p64 = scmp.eq.s32.totalorder %s14, 1
      %p65 = scmp.ne.s32.totalorder %s60, %s62
      %p66 = scmp.eq.s32.totalorder %s14, 0
      %p67 = por %p65, %p66
      %p68 = scmp.ne.s32.totalorder %s60, %s62
      %p69 = scmp.eq.s32.totalorder %s19, 1
      %p70 = por %p68, %p69
      %p71 = scmp.ne.s32.totalorder %s62, %s63
      %p72 = scmp.eq.s32.totalorder %s19, 0
      %p73 = por %p71, %p72
      %p74 = scmp.ne.s32.totalorder %s62, %s63
      %p75 = scmp.eq.s32.totalorder %s20, 1
      %p76 = por %p74, %p75
      %p78 = scmp.ne.s32.totalorder %s63, %s77
      %p79 = scmp.eq.s32.totalorder %s20, 0
      %p80 = por %p78, %p79
      %s81 = ssub.s32 %s22, %s29
      %p82 = scmp.eq.s32.totalorder %s81, 0
      %s84 = sadd.s32 %s83, 1
      %s85 = scalar_select %p82, %s83, %s84
      %p88 = pneg %p82
      %p89 = scmp.eq.s32.totalorder %s14, 1
      %p90 = por %p88, %p89
      %p91 = scmp.ne.s32.totalorder %s83, %s86
      %p92 = scmp.eq.s32.totalorder %s14, 0
      %p93 = por %p91, %p92
      %p94 = scmp.ne.s32.totalorder %s83, %s86
      %p95 = scmp.eq.s32.totalorder %s19, 1
      %p96 = por %p94, %p95
      %p97 = scmp.ne.s32.totalorder %s86, %s87
      %p98 = scmp.eq.s32.totalorder %s19, 0
      %p99 = por %p97, %p98
      %p100 = scmp.ne.s32.totalorder %s86, %s87
      %p101 = scmp.eq.s32.totalorder %s20, 1
      %p102 = por %p100, %p101
      %p104 = scmp.ne.s32.totalorder %s87, %s103
      %p105 = scmp.eq.s32.totalorder %s20, 0
      %p106 = por %p104, %p105
      %s107 = ssub.s32 %s22, %s29
      %p108 = scmp.eq.s32.totalorder %s107, 0
      %s110 = sadd.s32 %s109, 1
      %s111 = scalar_select %p108, %s109, %s110
      %p114 = pneg %p108
      %p115 = scmp.eq.s32.totalorder %s14, 1
      %p116 = por %p114, %p115
      %p117 = scmp.ne.s32.totalorder %s109, %s112
      %p118 = scmp.eq.s32.totalorder %s14, 0
      %p119 = por %p117, %p118
      %p120 = scmp.ne.s32.totalorder %s109, %s112
      %p121 = scmp.eq.s32.totalorder %s19, 1
      %p122 = por %p120, %p121
      %p123 = scmp.ne.s32.totalorder %s112, %s113
      %p124 = scmp.eq.s32.totalorder %s19, 0
      %p125 = por %p123, %p124
      %p126 = scmp.ne.s32.totalorder %s112, %s113
      %p127 = scmp.eq.s32.totalorder %s20, 1
      %p128 = por %p126, %p127
      %p130 = scmp.ne.s32.totalorder %s113, %s129
      %p131 = scmp.eq.s32.totalorder %s20, 0
      %p132 = por %p130, %p131
      %s133 = ssub.s32 %s22, %s29
      %p134 = scmp.eq.s32.totalorder %s133, 0
      %s136 = sadd.s32 %s135, 1
      %s137 = scalar_select %p134, %s135, %s136
      %p140 = pneg %p134
      %p141 = scmp.eq.s32.totalorder %s14, 1
      %p142 = por %p140, %p141
      %p143 = scmp.ne.s32.totalorder %s135, %s138
      %p144 = scmp.eq.s32.totalorder %s14, 0
      %p145 = por %p143, %p144
      %p146 = scmp.ne.s32.totalorder %s135, %s138
      %p147 = scmp.eq.s32.totalorder %s19, 1
      %p148 = por %p146, %p147
      %p149 = scmp.ne.s32.totalorder %s138, %s139
      %p150 = scmp.eq.s32.totalorder %s19, 0
      %p151 = por %p149, %p150
      %p152 = scmp.ne.s32.totalorder %s138, %s139
      %p153 = scmp.eq.s32.totalorder %s20, 1
      %p154 = por %p152, %p153
      %p156 = scmp.ne.s32.totalorder %s139, %s155
      %p157 = scmp.eq.s32.totalorder %s20, 0
      %p158 = por %p156, %p157
      %s159 = ssub.s32 %s22, %s29
      %p160 = scmp.eq.s32.totalorder %s159, 0
      %s162 = sadd.s32 %s161, 1
      %s163 = scalar_select %p160, %s161, %s162
      %p166 = pneg %p160
      %p167 = scmp.eq.s32.totalorder %s14, 1
      %p168 = por %p166, %p167
      %p169 = scmp.ne.s32.totalorder %s161, %s164
      %p170 = scmp.eq.s32.totalorder %s14, 0
      %p171 = por %p169, %p170
      %p172 = scmp.ne.s32.totalorder %s161, %s164
      %p173 = scmp.eq.s32.totalorder %s19, 1
      %p174 = por %p172, %p173
      %p175 = scmp.ne.s32.totalorder %s164, %s165
      %p176 = scmp.eq.s32.totalorder %s19, 0
      %p177 = por %p175, %p176
      %p178 = scmp.ne.s32.totalorder %s164, %s165
      %p179 = scmp.eq.s32.totalorder %s20, 1
      %p180 = por %p178, %p179
      %p182 = scmp.ne.s32.totalorder %s165, %s181
      %p183 = scmp.eq.s32.totalorder %s20, 0
      %p184 = por %p182, %p183
      %s185 = ssub.s32 %s22, %s29
      %p186 = scmp.eq.s32.totalorder %s185, 0
      %s188 = sadd.s32 %s187, 1
      %s189 = scalar_select %p186, %s187, %s188
      %p192 = pneg %p186
      %p193 = scmp.eq.s32.totalorder %s14, 1
      %p194 = por %p192, %p193
      %p195 = scmp.ne.s32.totalorder %s187, %s190
      %p196 = scmp.eq.s32.totalorder %s14, 0
      %p197 = por %p195, %p196
      %p198 = scmp.ne.s32.totalorder %s187, %s190
      %p199 = scmp.eq.s32.totalorder %s19, 1
      %p200 = por %p198, %p199
      %p201 = scmp.ne.s32.totalorder %s190, %s191
      %p202 = scmp.eq.s32.totalorder %s19, 0
      %p203 = por %p201, %p202
      %p204 = scmp.ne.s32.totalorder %s190, %s191
      %p205 = scmp.eq.s32.totalorder %s20, 1
      %p206 = por %p204, %p205
      %p208 = scmp.ne.s32.totalorder %s191, %s207
      %p209 = scmp.eq.s32.totalorder %s20, 0
      %p210 = por %p208, %p209
      %s212 = sadd.s32 %s211, 1
      %p215 = scmp.eq.s32.totalorder %s14, 1
      %p216 = scmp.ne.s32.totalorder %s211, %s213
      %p217 = scmp.eq.s32.totalorder %s14, 0
      %p218 = por %p216, %p217
      %p219 = scmp.ne.s32.totalorder %s211, %s213
      %p220 = scmp.eq.s32.totalorder %s19, 1
      %p221 = por %p219, %p220
      %p222 = scmp.ne.s32.totalorder %s213, %s214
      %p223 = scmp.eq.s32.totalorder %s19, 0
      %p224 = por %p222, %p223
      %p225 = scmp.ne.s32.totalorder %s213, %s214
      %p226 = scmp.eq.s32.totalorder %s20, 1
      %p227 = por %p225, %p226
      %p229 = scmp.ne.s32.totalorder %s214, %s228
      %p230 = scmp.eq.s32.totalorder %s20, 0
      %p231 = por %p229, %p230
      %s232 = ssub.s32 %s21, %s33
      %p233 = scmp.eq.s32.totalorder %s232, 0
      %s235 = sadd.s32 %s234, 1
      %s236 = scalar_select %p233, %s234, %s235
      %p239 = pneg %p233
      %p240 = scmp.eq.s32.totalorder %s14, 1
      %p241 = por %p239, %p240
      %p242 = scmp.ne.s32.totalorder %s234, %s237
      %p243 = scmp.eq.s32.totalorder %s14, 0
      %p244 = por %p242, %p243
      %p245 = scmp.ne.s32.totalorder %s234, %s237
      %p246 = scmp.eq.s32.totalorder %s19, 1
      %p247 = por %p245, %p246
      %p248 = scmp.ne.s32.totalorder %s237, %s238
      %p249 = scmp.eq.s32.totalorder %s19, 0
      %p250 = por %p248, %p249
      %p251 = scmp.ne.s32.totalorder %s237, %s238
      %p252 = scmp.eq.s32.totalorder %s20, 1
      %p253 = por %p251, %p252
      %p255 = scmp.ne.s32.totalorder %s238, %s254
      %p256 = scmp.eq.s32.totalorder %s20, 0
      %p257 = por %p255, %p256
      %p258 = scmp.le.s32.totalorder 1, %s14
      %p259 = scmp.lt.s32.totalorder %s14, 3
      %p260 = pnand %p258, %p259
      %p261 = pneg %p260
      // Predicated region
      $region9: #{gpt_forward.12} parent=5 // pred_check
        _
      $region10: #{gpt_forward.12} parent=5 // pred_check_branch
        %263 = sbr.rel (%p260) target = $region12
      $region11: #{gpt_forward.12} parent=5 // pred_region
        %s264 = ssub.s32 %s14, 1
        // Predicated region
        $region13: #{gpt_forward.12} parent=11 // pred_check
          %p265 = pneg %p52
        $region14: #{gpt_forward.12} parent=11 // pred_check_branch
          %267 = sbr.rel (%p265) target = $region16
        $region15: #{gpt_forward.12} parent=11 // pred_region
          %s268 = smul.u32 16, %s23
          %p269 = scmp.lt.s32.totalorder %s268, 15
          %s270 = scalar_select %p269, %s268, 15
          %s271 = smul.addr %s270, 8
          %s272 = scalar_lea.vmem %s0, %s271
          %s273 = smul.u32 16, %s23
        $region16: #{gpt_forward.12} parent=11 // pred_fallthru
          _
        // Predicated region
        $region17: #{gpt_forward.12} parent=11 // pred_check
          %p274 = pneg %p73
        $region18: #{gpt_forward.12} parent=11 // pred_check_branch
          %276 = sbr.rel (%p274) target = $region20
        $region19: #{gpt_forward.12} parent=11 // pred_region
          _
        $region20: #{gpt_forward.12} parent=11 // pred_fallthru
          _
        // Predicated region
        $region21: #{gpt_forward.12} parent=11 // pred_check
          %p277 = pneg %p224
        $region22: #{gpt_forward.12} parent=11 // pred_check_branch
          %279 = sbr.rel (%p277) target = $region24
        $region23: #{gpt_forward.12} parent=11 // pred_region
          _
        $region24: #{gpt_forward.12} parent=11 // pred_fallthru
          _
      $region12: #{gpt_forward.12} parent=5 // pred_fallthru
        _
      %p280 = scmp.lt.s32.totalorder %s14, 2
      // Predicated region
      $region25: #{gpt_forward.12} parent=5 // pred_check
        %p281 = pneg %p280
      $region26: #{gpt_forward.12} parent=5 // pred_check_branch
        %283 = sbr.rel (%p281) target = $region28
      $region27: #{gpt_forward.12} parent=5 // pred_region
        // Predicated region
        $region29: #{gpt_forward.12} parent=27 // pred_check
          %p284 = pneg %p93
        $region30: #{gpt_forward.12} parent=27 // pred_check_branch
          %286 = sbr.rel (%p284) target = $region32
        $region31: #{gpt_forward.12} parent=27 // pred_region
          %s287 = sand.u32 %s83, 1
          %s288 = sand.u32 %s83, 1
          %s289 = smul.addr %s288, 128
          %s290 = scalar_lea.vmem [#allocation4], %s289
          %s291 = smul.u32 2, %s22
          %s292 = smul.addr %s291, 4
          %s293 = scalar_lea.vmem %s2, %s292
          // Predicated region
          $region33: #{gpt_forward.12} parent=31 // pred_check
            _
          $region34: #{gpt_forward.12} parent=31 // pred_check_branch
            %295 = sbr.rel (0) target = $region36
          $region35: #{gpt_forward.12} parent=31 // pred_region
            // Predicated region
            $region37: #{gpt_forward.12} parent=35 // pred_check
              _
            $region38: #{gpt_forward.12} parent=35 // pred_check_branch
              %297 = sbr.rel (0) target = $region40
            $region39: #{gpt_forward.12} parent=35 // pred_region
              // Predicated region
              $region52: #{gpt_forward.12} parent=39 // pred_check
                _
              $region53: #{gpt_forward.12} parent=39 // pred_check_branch
                %342 = sbr.rel (0) target = $region55
              $region54: #{gpt_forward.12} parent=39 // pred_region
                loop: start=0, step=1, limit=1
                $region56: #{gpt_forward.12} parent=54 // loop_pre_header
                  _
                $region57: #{gpt_forward.12} parent=54 // loop_header
                  %s344 = sphi 0, %s348
                  %p345 = scmp.ge.s32.totalorder %s344, 1
                  %s349 = sphi %s293, %s293
                  %s350 = sphi %s290, %s290
                $region58: #{gpt_forward.12} parent=54 // loop_header_branch
                  %347 = sbr.rel (%p345) target = $region62
                $region59: #{gpt_forward.12} parent=54 // loop_body
                  %v351 = vld [vmem:[%s349] sm:$0xff]
                  %352 = vst [vmem:[%s350] sm:$0xff] %v351
                  %v353 = vld [vmem:[%s349 + $0x10] sm:$0xff]
                  %354 = vst [vmem:[%s350 + $0x8] sm:$0xff] %v353
                  %v355 = vld [vmem:[%s349 + $0x20] sm:$0xff]
                  %356 = vst [vmem:[%s350 + $0x10] sm:$0xff] %v355
                  %v357 = vld [vmem:[%s349 + $0x30] sm:$0xff]
                  %358 = vst [vmem:[%s350 + $0x18] sm:$0xff] %v357
                  %v359 = vld [vmem:[%s349 + $0x40] sm:$0xff]
                  %360 = vst [vmem:[%s350 + $0x20] sm:$0xff] %v359
                  %v361 = vld [vmem:[%s349 + $0x50] sm:$0xff]
                  %362 = vst [vmem:[%s350 + $0x28] sm:$0xff] %v361
                  %v363 = vld [vmem:[%s349 + $0x60] sm:$0xff]
                  %364 = vst [vmem:[%s350 + $0x30] sm:$0xff] %v363
                  %v365 = vld [vmem:[%s349 + $0x70] sm:$0xff]
                  %366 = vst [vmem:[%s350 + $0x38] sm:$0xff] %v365
                  %v367 = vld [vmem:[%s349 + $0x80] sm:$0xff]
                  %368 = vst [vmem:[%s350 + $0x40] sm:$0xff] %v367
                  %v369 = vld [vmem:[%s349 + $0x90] sm:$0xff]
                  %370 = vst [vmem:[%s350 + $0x48] sm:$0xff] %v369
                  %v371 = vld [vmem:[%s349 + $0xa0] sm:$0xff]
                  %372 = vst [vmem:[%s350 + $0x50] sm:$0xff] %v371
                  %v373 = vld [vmem:[%s349 + $0xb0] sm:$0xff]
                  %374 = vst [vmem:[%s350 + $0x58] sm:$0xff] %v373
                  %v375 = vld [vmem:[%s349 + $0xc0] sm:$0xff]
                  %376 = vst [vmem:[%s350 + $0x60] sm:$0xff] %v375
                  %v377 = vld [vmem:[%s349 + $0xd0] sm:$0xff]
                  %378 = vst [vmem:[%s350 + $0x68] sm:$0xff] %v377
                  %v379 = vld [vmem:[%s349 + $0xe0] sm:$0xff]
                  %380 = vst [vmem:[%s350 + $0x70] sm:$0xff] %v379
                  %v381 = vld [vmem:[%s349 + $0xf0] sm:$0xff]
                  %382 = vst [vmem:[%s350 + $0x78] sm:$0xff] %v381
                $region60: #{gpt_forward.12} parent=54 // loop_footer
                  %s348 = sadd.s32 1, %s344
                $region61: #{gpt_forward.12} parent=54 // loop_footer_branch
                  %343 = sbr.rel target = $region57
                $region62: #{gpt_forward.12} parent=54 // loop_exit
                  _
              $region55: #{gpt_forward.12} parent=39 // pred_fallthru
                _
              // Predicated region
              $region63: #{gpt_forward.12} parent=39 // pred_check
                _
              $region64: #{gpt_forward.12} parent=39 // pred_check_branch
                %384 = sbr.rel target = $region66
              $region65: #{gpt_forward.12} parent=39 // pred_region
                _
              $region66: #{gpt_forward.12} parent=39 // pred_fallthru
                _
            $region40: #{gpt_forward.12} parent=35 // pred_fallthru
              _
            // Predicated region
            $region41: #{gpt_forward.12} parent=35 // pred_check
              _
            $region42: #{gpt_forward.12} parent=35 // pred_check_branch
              %299 = sbr.rel target = $region44
            $region43: #{gpt_forward.12} parent=35 // pred_region
              loop: start=0, step=1, limit=1
              $region45: #{gpt_forward.12} parent=43 // loop_pre_header
                _
              $region46: #{gpt_forward.12} parent=43 // loop_header
                %s302 = sphi 0, %s306
                %p303 = scmp.ge.s32.totalorder %s302, 1
                %s307 = sphi %s293, %s293
                %s308 = sphi %s290, %s290
              $region47: #{gpt_forward.12} parent=43 // loop_header_branch
                %305 = sbr.rel (%p303) target = $region51
              $region48: #{gpt_forward.12} parent=43 // loop_body
                %v309 = vld [vmem:[%s307] sm:$0xff]
                %310 = vst [vmem:[%s308] sm:$0xff] %v309
                %v311 = vld [vmem:[%s307 + $0x10] sm:$0xff]
                %312 = vst [vmem:[%s308 + $0x8] sm:$0xff] %v311
                %v313 = vld [vmem:[%s307 + $0x20] sm:$0xff]
                %314 = vst [vmem:[%s308 + $0x10] sm:$0xff] %v313
                %v315 = vld [vmem:[%s307 + $0x30] sm:$0xff]
                %316 = vst [vmem:[%s308 + $0x18] sm:$0xff] %v315
                %v317 = vld [vmem:[%s307 + $0x40] sm:$0xff]
                %318 = vst [vmem:[%s308 + $0x20] sm:$0xff] %v317
                %v319 = vld [vmem:[%s307 + $0x50] sm:$0xff]
                %320 = vst [vmem:[%s308 + $0x28] sm:$0xff] %v319
                %v321 = vld [vmem:[%s307 + $0x60] sm:$0xff]
                %322 = vst [vmem:[%s308 + $0x30] sm:$0xff] %v321
                %v323 = vld [vmem:[%s307 + $0x70] sm:$0xff]
                %324 = vst [vmem:[%s308 + $0x38] sm:$0xff] %v323
                %v325 = vld [vmem:[%s307 + $0x80] sm:$0xff]
                %326 = vst [vmem:[%s308 + $0x40] sm:$0xff] %v325
                %v327 = vld [vmem:[%s307 + $0x90] sm:$0xff]
                %328 = vst [vmem:[%s308 + $0x48] sm:$0xff] %v327
                %v329 = vld [vmem:[%s307 + $0xa0] sm:$0xff]
                %330 = vst [vmem:[%s308 + $0x50] sm:$0xff] %v329
                %v331 = vld [vmem:[%s307 + $0xb0] sm:$0xff]
                %332 = vst [vmem:[%s308 + $0x58] sm:$0xff] %v331
                %v333 = vld [vmem:[%s307 + $0xc0] sm:$0xff]
                %334 = vst [vmem:[%s308 + $0x60] sm:$0xff] %v333
                %v335 = vld [vmem:[%s307 + $0xd0] sm:$0xff]
                %336 = vst [vmem:[%s308 + $0x68] sm:$0xff] %v335
                %v337 = vld [vmem:[%s307 + $0xe0] sm:$0xff]
                %338 = vst [vmem:[%s308 + $0x70] sm:$0xff] %v337
                %v339 = vld [vmem:[%s307 + $0xf0] sm:$0xff]
                %340 = vst [vmem:[%s308 + $0x78] sm:$0xff] %v339
              $region49: #{gpt_forward.12} parent=43 // loop_footer
                %s306 = sadd.s32 1, %s302
              $region50: #{gpt_forward.12} parent=43 // loop_footer_branch
                %301 = sbr.rel target = $region46
              $region51: #{gpt_forward.12} parent=43 // loop_exit
                _
            $region44: #{gpt_forward.12} parent=35 // pred_fallthru
              _
          $region36: #{gpt_forward.12} parent=31 // pred_fallthru
            _
          %385 = vnop
        $region32: #{gpt_forward.12} parent=27 // pred_fallthru
          _
        // Predicated region
        $region67: #{gpt_forward.12} parent=27 // pred_check
          %p386 = pneg %p119
        $region68: #{gpt_forward.12} parent=27 // pred_check_branch
          %388 = sbr.rel (%p386) target = $region70
        $region69: #{gpt_forward.12} parent=27 // pred_region
          %s389 = smul.u32 2, %s22
          %p390 = scmp.lt.s32.totalorder %s389, 3
          %s391 = scalar_select %p390, %s389, 3
          %s392 = scalar_lea.vmem %s3, %s391
          %s393 = smul.u32 2, %s22
        $region70: #{gpt_forward.12} parent=27 // pred_fallthru
          _
        // Predicated region
        $region71: #{gpt_forward.12} parent=27 // pred_check
          %p394 = pneg %p145
        $region72: #{gpt_forward.12} parent=27 // pred_check_branch
          %396 = sbr.rel (%p394) target = $region74
        $region73: #{gpt_forward.12} parent=27 // pred_region
          %s397 = sand.u32 %s135, 1
          %s398 = sand.u32 %s135, 1
          %s399 = smul.addr %s398, 128
          %s400 = scalar_lea.vmem [#allocation5], %s399
          %s401 = smul.u32 2, %s22
          %s402 = smul.addr %s401, 4
          %s403 = scalar_lea.vmem %s4, %s402
          // Predicated region
          $region75: #{gpt_forward.12} parent=73 // pred_check
            _
          $region76: #{gpt_forward.12} parent=73 // pred_check_branch
            %405 = sbr.rel (0) target = $region78
          $region77: #{gpt_forward.12} parent=73 // pred_region
            // Predicated region
            $region79: #{gpt_forward.12} parent=77 // pred_check
              _
            $region80: #{gpt_forward.12} parent=77 // pred_check_branch
              %407 = sbr.rel (0) target = $region82
            $region81: #{gpt_forward.12} parent=77 // pred_region
              // Predicated region
              $region94: #{gpt_forward.12} parent=81 // pred_check
                _
              $region95: #{gpt_forward.12} parent=81 // pred_check_branch
                %452 = sbr.rel (0) target = $region97
              $region96: #{gpt_forward.12} parent=81 // pred_region
                loop: start=0, step=1, limit=1
                $region98: #{gpt_forward.12} parent=96 // loop_pre_header
                  _
                $region99: #{gpt_forward.12} parent=96 // loop_header
                  %s454 = sphi 0, %s458
                  %p455 = scmp.ge.s32.totalorder %s454, 1
                  %s459 = sphi %s403, %s403
                  %s460 = sphi %s400, %s400
                $region100: #{gpt_forward.12} parent=96 // loop_header_branch
                  %457 = sbr.rel (%p455) target = $region104
                $region101: #{gpt_forward.12} parent=96 // loop_body
                  %v461 = vld [vmem:[%s459] sm:$0xff]
                  %462 = vst [vmem:[%s460] sm:$0xff] %v461
                  %v463 = vld [vmem:[%s459 + $0x10] sm:$0xff]
                  %464 = vst [vmem:[%s460 + $0x8] sm:$0xff] %v463
                  %v465 = vld [vmem:[%s459 + $0x20] sm:$0xff]
                  %466 = vst [vmem:[%s460 + $0x10] sm:$0xff] %v465
                  %v467 = vld [vmem:[%s459 + $0x30] sm:$0xff]
                  %468 = vst [vmem:[%s460 + $0x18] sm:$0xff] %v467
                  %v469 = vld [vmem:[%s459 + $0x40] sm:$0xff]
                  %470 = vst [vmem:[%s460 + $0x20] sm:$0xff] %v469
                  %v471 = vld [vmem:[%s459 + $0x50] sm:$0xff]
                  %472 = vst [vmem:[%s460 + $0x28] sm:$0xff] %v471
                  %v473 = vld [vmem:[%s459 + $0x60] sm:$0xff]
                  %474 = vst [vmem:[%s460 + $0x30] sm:$0xff] %v473
                  %v475 = vld [vmem:[%s459 + $0x70] sm:$0xff]
                  %476 = vst [vmem:[%s460 + $0x38] sm:$0xff] %v475
                  %v477 = vld [vmem:[%s459 + $0x80] sm:$0xff]
                  %478 = vst [vmem:[%s460 + $0x40] sm:$0xff] %v477
                  %v479 = vld [vmem:[%s459 + $0x90] sm:$0xff]
                  %480 = vst [vmem:[%s460 + $0x48] sm:$0xff] %v479
                  %v481 = vld [vmem:[%s459 + $0xa0] sm:$0xff]
                  %482 = vst [vmem:[%s460 + $0x50] sm:$0xff] %v481
                  %v483 = vld [vmem:[%s459 + $0xb0] sm:$0xff]
                  %484 = vst [vmem:[%s460 + $0x58] sm:$0xff] %v483
                  %v485 = vld [vmem:[%s459 + $0xc0] sm:$0xff]
                  %486 = vst [vmem:[%s460 + $0x60] sm:$0xff] %v485
                  %v487 = vld [vmem:[%s459 + $0xd0] sm:$0xff]
                  %488 = vst [vmem:[%s460 + $0x68] sm:$0xff] %v487
                  %v489 = vld [vmem:[%s459 + $0xe0] sm:$0xff]
                  %490 = vst [vmem:[%s460 + $0x70] sm:$0xff] %v489
                  %v491 = vld [vmem:[%s459 + $0xf0] sm:$0xff]
                  %492 = vst [vmem:[%s460 + $0x78] sm:$0xff] %v491
                $region102: #{gpt_forward.12} parent=96 // loop_footer
                  %s458 = sadd.s32 1, %s454
                $region103: #{gpt_forward.12} parent=96 // loop_footer_branch
                  %453 = sbr.rel target = $region99
                $region104: #{gpt_forward.12} parent=96 // loop_exit
                  _
              $region97: #{gpt_forward.12} parent=81 // pred_fallthru
                _
              // Predicated region
              $region105: #{gpt_forward.12} parent=81 // pred_check
                _
              $region106: #{gpt_forward.12} parent=81 // pred_check_branch
                %494 = sbr.rel target = $region108
              $region107: #{gpt_forward.12} parent=81 // pred_region
                _
              $region108: #{gpt_forward.12} parent=81 // pred_fallthru
                _
            $region82: #{gpt_forward.12} parent=77 // pred_fallthru
              _
            // Predicated region
            $region83: #{gpt_forward.12} parent=77 // pred_check
              _
            $region84: #{gpt_forward.12} parent=77 // pred_check_branch
              %409 = sbr.rel target = $region86
            $region85: #{gpt_forward.12} parent=77 // pred_region
              loop: start=0, step=1, limit=1
              $region87: #{gpt_forward.12} parent=85 // loop_pre_header
                _
              $region88: #{gpt_forward.12} parent=85 // loop_header
                %s412 = sphi 0, %s416
                %p413 = scmp.ge.s32.totalorder %s412, 1
                %s417 = sphi %s403, %s403
                %s418 = sphi %s400, %s400
              $region89: #{gpt_forward.12} parent=85 // loop_header_branch
                %415 = sbr.rel (%p413) target = $region93
              $region90: #{gpt_forward.12} parent=85 // loop_body
                %v419 = vld [vmem:[%s417] sm:$0xff]
                %420 = vst [vmem:[%s418] sm:$0xff] %v419
                %v421 = vld [vmem:[%s417 + $0x10] sm:$0xff]
                %422 = vst [vmem:[%s418 + $0x8] sm:$0xff] %v421
                %v423 = vld [vmem:[%s417 + $0x20] sm:$0xff]
                %424 = vst [vmem:[%s418 + $0x10] sm:$0xff] %v423
                %v425 = vld [vmem:[%s417 + $0x30] sm:$0xff]
                %426 = vst [vmem:[%s418 + $0x18] sm:$0xff] %v425
                %v427 = vld [vmem:[%s417 + $0x40] sm:$0xff]
                %428 = vst [vmem:[%s418 + $0x20] sm:$0xff] %v427
                %v429 = vld [vmem:[%s417 + $0x50] sm:$0xff]
                %430 = vst [vmem:[%s418 + $0x28] sm:$0xff] %v429
                %v431 = vld [vmem:[%s417 + $0x60] sm:$0xff]
                %432 = vst [vmem:[%s418 + $0x30] sm:$0xff] %v431
                %v433 = vld [vmem:[%s417 + $0x70] sm:$0xff]
                %434 = vst [vmem:[%s418 + $0x38] sm:$0xff] %v433
                %v435 = vld [vmem:[%s417 + $0x80] sm:$0xff]
                %436 = vst [vmem:[%s418 + $0x40] sm:$0xff] %v435
                %v437 = vld [vmem:[%s417 + $0x90] sm:$0xff]
                %438 = vst [vmem:[%s418 + $0x48] sm:$0xff] %v437
                %v439 = vld [vmem:[%s417 + $0xa0] sm:$0xff]
                %440 = vst [vmem:[%s418 + $0x50] sm:$0xff] %v439
                %v441 = vld [vmem:[%s417 + $0xb0] sm:$0xff]
                %442 = vst [vmem:[%s418 + $0x58] sm:$0xff] %v441
                %v443 = vld [vmem:[%s417 + $0xc0] sm:$0xff]
                %444 = vst [vmem:[%s418 + $0x60] sm:$0xff] %v443
                %v445 = vld [vmem:[%s417 + $0xd0] sm:$0xff]
                %446 = vst [vmem:[%s418 + $0x68] sm:$0xff] %v445
                %v447 = vld [vmem:[%s417 + $0xe0] sm:$0xff]
                %448 = vst [vmem:[%s418 + $0x70] sm:$0xff] %v447
                %v449 = vld [vmem:[%s417 + $0xf0] sm:$0xff]
                %450 = vst [vmem:[%s418 + $0x78] sm:$0xff] %v449
              $region91: #{gpt_forward.12} parent=85 // loop_footer
                %s416 = sadd.s32 1, %s412
              $region92: #{gpt_forward.12} parent=85 // loop_footer_branch
                %411 = sbr.rel target = $region88
              $region93: #{gpt_forward.12} parent=85 // loop_exit
                _
            $region86: #{gpt_forward.12} parent=77 // pred_fallthru
              _
          $region78: #{gpt_forward.12} parent=73 // pred_fallthru
            _
          %495 = vnop
        $region74: #{gpt_forward.12} parent=27 // pred_fallthru
          _
        // Predicated region
        $region109: #{gpt_forward.12} parent=27 // pred_check
          %p496 = pneg %p171
        $region110: #{gpt_forward.12} parent=27 // pred_check_branch
          %498 = sbr.rel (%p496) target = $region112
        $region111: #{gpt_forward.12} parent=27 // pred_region
          %s499 = smul.u32 2, %s22
          %p500 = scmp.lt.s32.totalorder %s499, 3
          %s501 = scalar_select %p500, %s499, 3
          %s502 = scalar_lea.vmem %s5, %s501
          %s503 = smul.u32 2, %s22
        $region112: #{gpt_forward.12} parent=27 // pred_fallthru
          _
        // Predicated region
        $region113: #{gpt_forward.12} parent=27 // pred_check
          %p504 = pneg %p197
        $region114: #{gpt_forward.12} parent=27 // pred_check_branch
          %506 = sbr.rel (%p504) target = $region116
        $region115: #{gpt_forward.12} parent=27 // pred_region
          %s507 = smul.u32 32, %s22
          %p508 = scmp.lt.s32.totalorder %s507, 63
          %s509 = scalar_select %p508, %s507, 63
          %s510 = smul.addr %s509, 4
          %s511 = scalar_lea.vmem %s6, %s510
          %s512 = smul.u32 32, %s22
        $region116: #{gpt_forward.12} parent=27 // pred_fallthru
          _
      $region28: #{gpt_forward.12} parent=5 // pred_fallthru
        _
      %p513 = scmp.le.s32.totalorder 1, %s14
      %p514 = scmp.lt.s32.totalorder %s14, 3
      %p515 = pnand %p513, %p514
      %p516 = pneg %p515
      // Predicated region
      $region117: #{gpt_forward.12} parent=5 // pred_check
        _
      $region118: #{gpt_forward.12} parent=5 // pred_check_branch
        %518 = sbr.rel (%p515) target = $region120
      $region119: #{gpt_forward.12} parent=5 // pred_region
        %s519 = ssub.s32 %s14, 1
        %s520 = sand.u32 %s86, 1
        %s521 = sand.u32 %s86, 1
        %s522 = smul.addr %s521, 128
        %s523 = scalar_lea.vmem [#allocation4], %s522
        // Predicated region
        $region121: #{gpt_forward.12} parent=119 // pred_check
          %p524 = pneg %p99
        $region122: #{gpt_forward.12} parent=119 // pred_check_branch
          %526 = sbr.rel (%p524) target = $region124
        $region123: #{gpt_forward.12} parent=119 // pred_region
          _
        $region124: #{gpt_forward.12} parent=119 // pred_fallthru
          _
        %s527 = sand.u32 %s138, 1
        %s528 = sand.u32 %s138, 1
        %s529 = smul.addr %s528, 128
        %s530 = scalar_lea.vmem [#allocation5], %s529
        // Predicated region
        $region125: #{gpt_forward.12} parent=119 // pred_check
          %p531 = pneg %p151
        $region126: #{gpt_forward.12} parent=119 // pred_check_branch
          %533 = sbr.rel (%p531) target = $region128
        $region127: #{gpt_forward.12} parent=119 // pred_region
          _
        $region128: #{gpt_forward.12} parent=119 // pred_fallthru
          _
        %s534 = smul.u32 16, %s23
        %p535 = scmp.lt.s32.totalorder %s534, 15
        %s536 = scalar_select %p535, %s534, 15
        %s537 = smul.addr %s536, 8
        %s538 = scalar_lea.vmem %s0, %s537
        %p539 = pneg %p52
        %p540 = pneg %p49
        %p541 = pneg %p73
        %p542 = pneg %p70
        %s543 = sand.u32 %s86, 1
        %s544 = sand.u32 %s86, 1
        %s545 = smul.addr %s544, 128
        %s546 = scalar_lea.vmem [#allocation4], %s545
        %p547 = pneg %p99
        %p548 = pneg %p96
        %s549 = smul.u32 2, %s24
        %p550 = scmp.lt.s32.totalorder %s549, 3
        %s551 = scalar_select %p550, %s549, 3
        %s552 = scalar_lea.vmem %s3, %s551
        %p553 = pneg %p125
        %p554 = pneg %p122
        %s555 = sand.u32 %s138, 1
        %s556 = sand.u32 %s138, 1
        %s557 = smul.addr %s556, 128
        %s558 = scalar_lea.vmem [#allocation5], %s557
        %p559 = pneg %p151
        %p560 = pneg %p148
        %s561 = smul.u32 2, %s24
        %p562 = scmp.lt.s32.totalorder %s561, 3
        %s563 = scalar_select %p562, %s561, 3
        %s564 = scalar_lea.vmem %s5, %s563
        %p565 = pneg %p177
        %p566 = pneg %p174
        %s567 = smul.u32 32, %s24
        %p568 = scmp.lt.s32.totalorder %s567, 63
        %s569 = scalar_select %p568, %s567, 63
        %s570 = smul.addr %s569, 4
        %s571 = scalar_lea.vmem %s6, %s570
        %p572 = pneg %p203
        %p573 = pneg %p200
        %p574 = pneg %p224
        %p575 = pneg %p221
        %p576 = pneg %p250
        %p577 = pneg %p247
        %s578 = smul.u32 16, %s23
        %p579 = scmp.lt.s32.totalorder %s578, 15
        %s580 = scalar_select %p579, %s578, 15
        %s581 = smul.addr %s580, 8
        %s582 = scalar_lea.vmem %s8, %s581
        %s583 = smul.u32 16, %s23
        %p584 = scmp.lt.s32.totalorder %s583, 15
        %s585 = scalar_select %p584, %s583, 15
        %s586 = smul.addr %s585, 8
        %s587 = scalar_lea.vmem %s0, %s586
        %s588 = smul.u32 16, %s23
        %s589 = smul.u32 2, %s24
        %s590 = smul.u32 2, %s24
        %p591 = scmp.lt.s32.totalorder %s590, 3
        %s592 = scalar_select %p591, %s590, 3
        %s593 = scalar_lea.vmem %s3, %s592
        %s594 = smul.u32 2, %s24
        %s595 = smul.u32 2, %s24
        %s596 = smul.u32 2, %s24
        %p597 = scmp.lt.s32.totalorder %s596, 3
        %s598 = scalar_select %p597, %s596, 3
        %s599 = scalar_lea.vmem %s5, %s598
        %s600 = smul.u32 2, %s24
        %s601 = smul.u32 32, %s24
        %p602 = scmp.lt.s32.totalorder %s601, 63
        %s603 = scalar_select %p602, %s601, 63
        %s604 = smul.addr %s603, 4
        %s605 = scalar_lea.vmem %s6, %s604
        %s606 = smul.u32 32, %s24
        %s607 = smul.u32 16, %s23
        %p608 = scmp.lt.s32.totalorder %s607, 15
        %s609 = scalar_select %p608, %s607, 15
        %s610 = smul.addr %s609, 8
        %s611 = scalar_lea.vmem %s8, %s610
        %s612 = smul.u32 16, %s23
        %p614 = scmp.eq.s32.totalorder %s24, 0
        // Predicated region
        $region129: #{gpt_forward.12} parent=119 // pred_check
          %p615 = pneg %p614
        $region130: #{gpt_forward.12} parent=119 // pred_check_branch
          %617 = sbr.rel (%p615) target = $region132
        $region131: #{gpt_forward.12} parent=119 // pred_region
          %v618 = vld [vmem:[%s587] sm:$0xff]
          %v619 = vld [vmem:[%s587 + $0x8] sm:$0xff]
          %v620 = vld [vmem:[%s587 + $0x10] sm:$0xff]
          %v621 = vld [vmem:[%s587 + $0x18] sm:$0xff]
          %v622 = vld [vmem:[%s587 + $0x20] sm:$0xff]
          %v623 = vld [vmem:[%s587 + $0x28] sm:$0xff]
          %v624 = vld [vmem:[%s587 + $0x30] sm:$0xff]
          %v625 = vld [vmem:[%s587 + $0x38] sm:$0xff]
          %v626 = vld [vmem:[%s587 + $0x40] sm:$0xff]
          %v627 = vld [vmem:[%s587 + $0x48] sm:$0xff]
          %v628 = vld [vmem:[%s587 + $0x50] sm:$0xff]
          %v629 = vld [vmem:[%s587 + $0x58] sm:$0xff]
          %v630 = vld [vmem:[%s587 + $0x60] sm:$0xff]
          %v631 = vld [vmem:[%s587 + $0x68] sm:$0xff]
          %v632 = vld [vmem:[%s587 + $0x70] sm:$0xff]
          %v633 = vld [vmem:[%s587 + $0x78] sm:$0xff]
          %v634 = vld [vmem:[%s1] sm:$0x1]
          %v635 = vmul.f32 %v618, %v618
          %v636 = vmul.f32 %v619, %v619
          %v637 = vmul.f32 %v620, %v620
          %v638 = vmul.f32 %v621, %v621
          %v639 = vmul.f32 %v622, %v622
          %v640 = vmul.f32 %v623, %v623
          %v641 = vmul.f32 %v624, %v624
          %v642 = vmul.f32 %v625, %v625
          %v643 = vmul.f32 %v626, %v626
          %v644 = vmul.f32 %v627, %v627
          %v645 = vmul.f32 %v628, %v628
          %v646 = vmul.f32 %v629, %v629
          %v647 = vmul.f32 %v630, %v630
          %v648 = vmul.f32 %v631, %v631
          %v649 = vmul.f32 %v632, %v632
          %v650 = vmul.f32 %v633, %v633
          %651 = vadd.xlane.f32.xlu0 %v635
          %v652 = vpop.xlane.xlu0 %651
          %653 = vadd.xlane.f32.xlu0 %v636
          %v654 = vpop.xlane.xlu0 %653
          %655 = vadd.xlane.f32.xlu0 %v637
          %v656 = vpop.xlane.xlu0 %655
          %657 = vadd.xlane.f32.xlu0 %v638
          %v658 = vpop.xlane.xlu0 %657
          %659 = vadd.xlane.f32.xlu0 %v639
          %v660 = vpop.xlane.xlu0 %659
          %661 = vadd.xlane.f32.xlu0 %v640
          %v662 = vpop.xlane.xlu0 %661
          %663 = vadd.xlane.f32.xlu0 %v641
          %v664 = vpop.xlane.xlu0 %663
          %665 = vadd.xlane.f32.xlu0 %v642
          %v666 = vpop.xlane.xlu0 %665
          %667 = vadd.xlane.f32.xlu0 %v643
          %v668 = vpop.xlane.xlu0 %667
          %669 = vadd.xlane.f32.xlu0 %v644
          %v670 = vpop.xlane.xlu0 %669
          %671 = vadd.xlane.f32.xlu0 %v645
          %v672 = vpop.xlane.xlu0 %671
          %673 = vadd.xlane.f32.xlu0 %v646
          %v674 = vpop.xlane.xlu0 %673
          %675 = vadd.xlane.f32.xlu0 %v647
          %v676 = vpop.xlane.xlu0 %675
          %677 = vadd.xlane.f32.xlu0 %v648
          %v678 = vpop.xlane.xlu0 %677
          %679 = vadd.xlane.f32.xlu0 %v649
          %v680 = vpop.xlane.xlu0 %679
          %681 = vadd.xlane.f32.xlu0 %v650
          %v682 = vpop.xlane.xlu0 %681
          %v683 = vrcp.pop 128.0
          %v684 = vmul.f32 %v652, %v683
          %v685 = vmul.f32 %v654, %v683
          %v686 = vmul.f32 %v656, %v683
          %v687 = vmul.f32 %v658, %v683
          %v688 = vmul.f32 %v660, %v683
          %v689 = vmul.f32 %v662, %v683
          %v690 = vmul.f32 %v664, %v683
          %v691 = vmul.f32 %v666, %v683
          %v692 = vmul.f32 %v668, %v683
          %v693 = vmul.f32 %v670, %v683
          %v694 = vmul.f32 %v672, %v683
          %v695 = vmul.f32 %v674, %v683
          %v696 = vmul.f32 %v676, %v683
          %v697 = vmul.f32 %v678, %v683
          %v698 = vmul.f32 %v680, %v683
          %v699 = vmul.f32 %v682, %v683
          %v700 = vadd.f32 %v684, 1e-06
          %v701 = vadd.f32 %v685, 1e-06
          %v702 = vadd.f32 %v686, 1e-06
          %v703 = vadd.f32 %v687, 1e-06
          %v704 = vadd.f32 %v688, 1e-06
          %v705 = vadd.f32 %v689, 1e-06
          %v706 = vadd.f32 %v690, 1e-06
          %v707 = vadd.f32 %v691, 1e-06
          %v708 = vadd.f32 %v692, 1e-06
          %v709 = vadd.f32 %v693, 1e-06
          %v710 = vadd.f32 %v694, 1e-06
          %v711 = vadd.f32 %v695, 1e-06
          %v712 = vadd.f32 %v696, 1e-06
          %v713 = vadd.f32 %v697, 1e-06
          %v714 = vadd.f32 %v698, 1e-06
          %v715 = vadd.f32 %v699, 1e-06
          %v716 = vrsqrt.pop %v700
          %v717 = vrsqrt.pop %v701
          %v718 = vrsqrt.pop %v702
          %v719 = vrsqrt.pop %v703
          %v720 = vrsqrt.pop %v704
          %v721 = vrsqrt.pop %v705
          %v722 = vrsqrt.pop %v706
          %v723 = vrsqrt.pop %v707
          %v724 = vrsqrt.pop %v708
          %v725 = vrsqrt.pop %v709
          %v726 = vrsqrt.pop %v710
          %v727 = vrsqrt.pop %v711
          %v728 = vrsqrt.pop %v712
          %v729 = vrsqrt.pop %v713
          %v730 = vrsqrt.pop %v714
          %v731 = vrsqrt.pop %v715
          %v732 = vmul.f32 %v618, %v716
          %v733 = vmul.f32 %v619, %v717
          %v734 = vmul.f32 %v620, %v718
          %v735 = vmul.f32 %v621, %v719
          %v736 = vmul.f32 %v622, %v720
          %v737 = vmul.f32 %v623, %v721
          %v738 = vmul.f32 %v624, %v722
          %v739 = vmul.f32 %v625, %v723
          %v740 = vmul.f32 %v626, %v724
          %v741 = vmul.f32 %v627, %v725
          %v742 = vmul.f32 %v628, %v726
          %v743 = vmul.f32 %v629, %v727
          %v744 = vmul.f32 %v630, %v728
          %v745 = vmul.f32 %v631, %v729
          %v746 = vmul.f32 %v632, %v730
          %v747 = vmul.f32 %v633, %v731
          %v749 = vlaneseq
          %v750 = vshrl.u32 %v749, 7
          %v751 = vsub.s32 0, %v750
          %v752 = vrot.slane %v634, %v751
          %v754 = vmul.f32 %v732, %v752
          %v755 = vmul.f32 %v733, %v752
          %v756 = vmul.f32 %v734, %v752
          %v757 = vmul.f32 %v735, %v752
          %v758 = vmul.f32 %v736, %v752
          %v759 = vmul.f32 %v737, %v752
          %v760 = vmul.f32 %v738, %v752
          %v761 = vmul.f32 %v739, %v752
          %v762 = vmul.f32 %v740, %v752
          %v763 = vmul.f32 %v741, %v752
          %v764 = vmul.f32 %v742, %v752
          %v765 = vmul.f32 %v743, %v752
          %v766 = vmul.f32 %v744, %v752
          %v767 = vmul.f32 %v745, %v752
          %v768 = vmul.f32 %v746, %v752
          %v769 = vmul.f32 %v747, %v752
          %v770 = vpack.c.bf16 %v755, %v754
          %v771 = vpack.c.bf16 %v757, %v756
          %v772 = vpack.c.bf16 %v759, %v758
          %v773 = vpack.c.bf16 %v761, %v760
          %v774 = vpack.c.bf16 %v763, %v762
          %v775 = vpack.c.bf16 %v765, %v764
          %v776 = vpack.c.bf16 %v767, %v766
          %v777 = vpack.c.bf16 %v769, %v768
          %778 = vst [vmem:[#allocation2] sm:$0xff] %v770
          %779 = vst [vmem:[#allocation2 + $0x8] sm:$0xff] %v771
          %780 = vst [vmem:[#allocation2 + $0x10] sm:$0xff] %v772
          %781 = vst [vmem:[#allocation2 + $0x18] sm:$0xff] %v773
          %782 = vst [vmem:[#allocation2 + $0x20] sm:$0xff] %v774
          %783 = vst [vmem:[#allocation2 + $0x28] sm:$0xff] %v775
          %784 = vst [vmem:[#allocation2 + $0x30] sm:$0xff] %v776
          %785 = vst [vmem:[#allocation2 + $0x38] sm:$0xff] %v777
          %786 = vst [vmem:[#allocation3] sm:$0xff] 0.0
          %787 = vst [vmem:[#allocation3 + $0x8] sm:$0xff] 0.0
          %788 = vst [vmem:[#allocation3 + $0x10] sm:$0xff] 0.0
          %789 = vst [vmem:[#allocation3 + $0x18] sm:$0xff] 0.0
          %790 = vst [vmem:[#allocation3 + $0x20] sm:$0xff] 0.0
          %791 = vst [vmem:[#allocation3 + $0x28] sm:$0xff] 0.0
          %792 = vst [vmem:[#allocation3 + $0x30] sm:$0xff] 0.0
          %793 = vst [vmem:[#allocation3 + $0x38] sm:$0xff] 0.0
          %794 = vst [vmem:[#allocation3 + $0x40] sm:$0xff] 0.0
          %795 = vst [vmem:[#allocation3 + $0x48] sm:$0xff] 0.0
          %796 = vst [vmem:[#allocation3 + $0x50] sm:$0xff] 0.0
          %797 = vst [vmem:[#allocation3 + $0x58] sm:$0xff] 0.0
          %798 = vst [vmem:[#allocation3 + $0x60] sm:$0xff] 0.0
          %799 = vst [vmem:[#allocation3 + $0x68] sm:$0xff] 0.0
          %800 = vst [vmem:[#allocation3 + $0x70] sm:$0xff] 0.0
          %801 = vst [vmem:[#allocation3 + $0x78] sm:$0xff] 0.0
        $region132: #{gpt_forward.12} parent=119 // pred_fallthru
          _
        %v802 = vld [vmem:[#allocation2] sm:$0xff]
        %v803 = vld [vmem:[#allocation2 + $0x8] sm:$0xff]
        %v804 = vld [vmem:[#allocation2 + $0x10] sm:$0xff]
        %v805 = vld [vmem:[#allocation2 + $0x18] sm:$0xff]
        %v806 = vld [vmem:[#allocation2 + $0x20] sm:$0xff]
        %v807 = vld [vmem:[#allocation2 + $0x28] sm:$0xff]
        %v808 = vld [vmem:[#allocation2 + $0x30] sm:$0xff]
        %v809 = vld [vmem:[#allocation2 + $0x38] sm:$0xff]
        %v810 = vld [vmem:[%s523] sm:$0xff]
        %v811 = vld [vmem:[%s523 + $0x8] sm:$0xff]
        %v812 = vld [vmem:[%s523 + $0x10] sm:$0xff]
        %v813 = vld [vmem:[%s523 + $0x18] sm:$0xff]
        %v814 = vld [vmem:[%s523 + $0x20] sm:$0xff]
        %v815 = vld [vmem:[%s523 + $0x28] sm:$0xff]
        %v816 = vld [vmem:[%s523 + $0x30] sm:$0xff]
        %v817 = vld [vmem:[%s523 + $0x38] sm:$0xff]
        %v818 = vld [vmem:[%s523 + $0x40] sm:$0xff]
        %v819 = vld [vmem:[%s523 + $0x48] sm:$0xff]
        %v820 = vld [vmem:[%s523 + $0x50] sm:$0xff]
        %v821 = vld [vmem:[%s523 + $0x58] sm:$0xff]
        %v822 = vld [vmem:[%s523 + $0x60] sm:$0xff]
        %v823 = vld [vmem:[%s523 + $0x68] sm:$0xff]
        %v824 = vld [vmem:[%s523 + $0x70] sm:$0xff]
        %v825 = vld [vmem:[%s523 + $0x78] sm:$0xff]
        %v826 = vld [vmem:[%s593] sm:$0x3]
        %v828 = vlaneseq
        %v829 = vshrl.u32 %v828, 7
        %v830 = vsub.s32 0, %v829
        %v831 = vrot.slane %v826, %v830
        %v832 = vlaneseq
        %v833 = vshrl.u32 %v832, 7
        %v834 = vsub.s32 1, %v833
        %v835 = vrot.slane %v826, %v834
        %v854 = vunpack.c.l.b16 %v810
        %v855 = vunpack.c.h.b16 %v810
        %v856 = vunpack.c.l.b16 %v811
        %v857 = vunpack.c.h.b16 %v811
        %v858 = vunpack.c.l.b16 %v812
        %v859 = vunpack.c.h.b16 %v812
        %v860 = vunpack.c.l.b16 %v813
        %v861 = vunpack.c.h.b16 %v813
        %v862 = vunpack.c.l.b16 %v814
        %v863 = vunpack.c.h.b16 %v814
        %v864 = vunpack.c.l.b16 %v815
        %v865 = vunpack.c.h.b16 %v815
        %v866 = vunpack.c.l.b16 %v816
        %v867 = vunpack.c.h.b16 %v816
        %v868 = vunpack.c.l.b16 %v817
        %v869 = vunpack.c.h.b16 %v817
        %v870 = vunpack.c.l.b16 %v818
        %v871 = vunpack.c.h.b16 %v818
        %v872 = vunpack.c.l.b16 %v819
        %v873 = vunpack.c.h.b16 %v819
        %v874 = vunpack.c.l.b16 %v820
        %v875 = vunpack.c.h.b16 %v820
        %v876 = vunpack.c.l.b16 %v821
        %v877 = vunpack.c.h.b16 %v821
        %v878 = vunpack.c.l.b16 %v822
        %v879 = vunpack.c.h.b16 %v822
        %v880 = vunpack.c.l.b16 %v823
        %v881 = vunpack.c.h.b16 %v823
        %v882 = vunpack.c.l.b16 %v824
        %v883 = vunpack.c.h.b16 %v824
        %v884 = vunpack.c.l.b16 %v825
        %v885 = vunpack.c.h.b16 %v825
        %v886 = vpack.c.b16 %v856, %v854
        %v887 = vpack.c.b16 %v857, %v855
        %v888 = vpack.c.b16 %v860, %v858
        %v889 = vpack.c.b16 %v861, %v859
        %v890 = vpack.c.b16 %v864, %v862
        %v891 = vpack.c.b16 %v865, %v863
        %v892 = vpack.c.b16 %v868, %v866
        %v893 = vpack.c.b16 %v869, %v867
        %v894 = vpack.c.b16 %v872, %v870
        %v895 = vpack.c.b16 %v873, %v871
        %v896 = vpack.c.b16 %v876, %v874
        %v897 = vpack.c.b16 %v877, %v875
        %v898 = vpack.c.b16 %v880, %v878
        %v899 = vpack.c.b16 %v881, %v879
        %v900 = vpack.c.b16 %v884, %v882
        %v901 = vpack.c.b16 %v885, %v883
        %918 = vmatprep.subr.bf16.mxu0 %v887
        %919 = vmatpush1.bf16.msra.mxu0 %v886
        %920 = vmatprep.subr.bf16.mxu0 %v889
        %921 = vmatpush1.bf16.msra.mxu0 %v888
        %922 = vmatprep.subr.bf16.mxu0 %v891
        %923 = vmatpush1.bf16.msra.mxu0 %v890
        %924 = vmatprep.subr.bf16.mxu0 %v893
        %925 = vmatpush1.bf16.msra.mxu0 %v892
        %926 = vmatprep.subr.bf16.mxu0 %v895
        %927 = vmatpush1.bf16.msra.mxu0 %v894
        %928 = vmatprep.subr.bf16.mxu0 %v897
        %929 = vmatpush1.bf16.msra.mxu0 %v896
        %930 = vmatprep.subr.bf16.mxu0 %v899
        %931 = vmatpush1.bf16.msra.mxu0 %v898
        %932 = vmatprep.subr.bf16.mxu0 %v901
        %933 = vmatpush1.bf16.msra.mxu0 %v900
        %934 = vmatprep.subr.bf16.mxu0 0
        %935 = vmatpush1.bf16.msra.mxu0 0
        %936 = vmatprep.subr.bf16.mxu0 0
        %937 = vmatpush1.bf16.msra.mxu0 0
        %938 = vmatprep.subr.bf16.mxu0 0
        %939 = vmatpush1.bf16.msra.mxu0 0
        %940 = vmatprep.subr.bf16.mxu0 0
        %941 = vmatpush1.bf16.msra.mxu0 0
        %942 = vmatprep.subr.bf16.mxu0 0
        %943 = vmatpush1.bf16.msra.mxu0 0
        %944 = vmatprep.subr.bf16.mxu0 0
        %945 = vmatpush1.bf16.msra.mxu0 0
        %946 = vmatprep.subr.bf16.mxu0 0
        %947 = vmatpush1.bf16.msra.mxu0 0
        %948 = vmatprep.subr.bf16.mxu0 0
        %949 = vmatpush1.bf16.msra.mxu0 0
        %950 = vmatprep.mubr.bf16.mxu0 0
        %951 = vmatmul.mubr.bf16.gmra.mrb[0].mxu0 %v802
        %v952 = vpop.f32.mrb[0].mxu0
        %v953 = vadd.f32 %v831, %v952
        %v954 = vpop.f32.mrb[0].mxu0
        %v955 = vadd.f32 %v835, %v954
        %v956 = vpop.f32.mrb[0].mxu0
        %v957 = vadd.f32 %v831, %v956
        %v958 = vpop.f32.mrb[0].mxu0
        %v959 = vadd.f32 %v835, %v958
        %960 = vmatprep.mubr.bf16.mxu0 0
        %961 = vmatmul.mubr.bf16.gmra.mrb[0].mxu0 %v803
        %v962 = vpop.f32.mrb[0].mxu0
        %v963 = vadd.f32 %v831, %v962
        %v964 = vpop.f32.mrb[0].mxu0
        %v965 = vadd.f32 %v835, %v964
        %v966 = vpop.f32.mrb[0].mxu0
        %v967 = vadd.f32 %v831, %v966
        %v968 = vpop.f32.mrb[0].mxu0
        %v969 = vadd.f32 %v835, %v968
        %970 = vmatprep.mubr.bf16.mxu0 0
        %971 = vmatmul.mubr.bf16.gmra.mrb[0].mxu0 %v804
        %v972 = vpop.f32.mrb[0].mxu0
        %v973 = vadd.f32 %v831, %v972
        %v974 = vpop.f32.mrb[0].mxu0
        %v975 = vadd.f32 %v835, %v974
        %v976 = vpop.f32.mrb[0].mxu0
        %v977 = vadd.f32 %v831, %v976
        %v978 = vpop.f32.mrb[0].mxu0
        %v979 = vadd.f32 %v835, %v978
        %980 = vmatprep.mubr.bf16.mxu0 0
        %981 = vmatmul.mubr.bf16.gmra.mrb[0].mxu0 %v805
        %v982 = vpop.f32.mrb[0].mxu0
        %v983 = vadd.f32 %v831, %v982
        %v984 = vpop.f32.mrb[0].mxu0
        %v985 = vadd.f32 %v835, %v984
        %v986 = vpop.f32.mrb[0].mxu0
        %v987 = vadd.f32 %v831, %v986
        %v988 = vpop.f32.mrb[0].mxu0
        %v989 = vadd.f32 %v835, %v988
        %990 = vmatprep.mubr.bf16.mxu0 0
        %991 = vmatmul.mubr.bf16.gmra.mrb[0].mxu0 %v806
        %v992 = vpop.f32.mrb[0].mxu0
        %v993 = vadd.f32 %v831, %v992
        %v994 = vpop.f32.mrb[0].mxu0
        %v995 = vadd.f32 %v835, %v994
        %v996 = vpop.f32.mrb[0].mxu0
        %v997 = vadd.f32 %v831, %v996
        %v998 = vpop.f32.mrb[0].mxu0
        %v999 = vadd.f32 %v835, %v998
        %1000 = vmatprep.mubr.bf16.mxu0 0
        %1001 = vmatmul.mubr.bf16.gmra.mrb[0].mxu0 %v807
        %v1002 = vpop.f32.mrb[0].mxu0
        %v1003 = vadd.f32 %v831, %v1002
        %v1004 = vpop.f32.mrb[0].mxu0
        %v1005 = vadd.f32 %v835, %v1004
        %v1006 = vpop.f32.mrb[0].mxu0
        %v1007 = vadd.f32 %v831, %v1006
        %v1008 = vpop.f32.mrb[0].mxu0
        %v1009 = vadd.f32 %v835, %v1008
        %1010 = vmatprep.mubr.bf16.mxu0 0
        %1011 = vmatmul.mubr.bf16.gmra.mrb[0].mxu0 %v808
        %v1012 = vpop.f32.mrb[0].mxu0
        %v1013 = vadd.f32 %v831, %v1012
        %v1014 = vpop.f32.mrb[0].mxu0
        %v1015 = vadd.f32 %v835, %v1014
        %v1016 = vpop.f32.mrb[0].mxu0
        %v1017 = vadd.f32 %v831, %v1016
        %v1018 = vpop.f32.mrb[0].mxu0
        %v1019 = vadd.f32 %v835, %v1018
        %1020 = vmatprep.mubr.bf16.mxu0 0
        %1021 = vmatmul.mubr.bf16.gmra.mrb[0].mxu0 %v809
        %v1022 = vpop.f32.mrb[0].mxu0
        %v1023 = vadd.f32 %v831, %v1022
        %v1024 = vpop.f32.mrb[0].mxu0
        %v1025 = vadd.f32 %v835, %v1024
        %v1026 = vpop.f32.mrb[0].mxu0
        %v1027 = vadd.f32 %v831, %v1026
        %v1028 = vpop.f32.mrb[0].mxu0
        %v1029 = vadd.f32 %v835, %v1028
        %1030 = vdwg.mxu0
        %v1031 = vld [vmem:[%s530] sm:$0xff]
        %v1032 = vld [vmem:[%s530 + $0x8] sm:$0xff]
        %v1033 = vld [vmem:[%s530 + $0x10] sm:$0xff]
        %v1034 = vld [vmem:[%s530 + $0x18] sm:$0xff]
        %v1035 = vld [vmem:[%s530 + $0x20] sm:$0xff]
        %v1036 = vld [vmem:[%s530 + $0x28] sm:$0xff]
        %v1037 = vld [vmem:[%s530 + $0x30] sm:$0xff]
        %v1038 = vld [vmem:[%s530 + $0x38] sm:$0xff]
        %v1039 = vld [vmem:[%s530 + $0x40] sm:$0xff]
        %v1040 = vld [vmem:[%s530 + $0x48] sm:$0xff]
        %v1041 = vld [vmem:[%s530 + $0x50] sm:$0xff]
        %v1042 = vld [vmem:[%s530 + $0x58] sm:$0xff]
        %v1043 = vld [vmem:[%s530 + $0x60] sm:$0xff]
        %v1044 = vld [vmem:[%s530 + $0x68] sm:$0xff]
        %v1045 = vld [vmem:[%s530 + $0x70] sm:$0xff]
        %v1046 = vld [vmem:[%s530 + $0x78] sm:$0xff]
        %v1047 = vld [vmem:[%s599] sm:$0x3]
        %v1049 = vlaneseq
        %v1050 = vshrl.u32 %v1049, 7
        %v1051 = vsub.s32 0, %v1050
        %v1052 = vrot.slane %v1047, %v1051
        %v1053 = vlaneseq
        %v1054 = vshrl.u32 %v1053, 7
        %v1055 = vsub.s32 1, %v1054
        %v1056 = vrot.slane %v1047, %v1055
        %v1075 = vunpack.c.l.b16 %v1031
        %v1076 = vunpack.c.h.b16 %v1031
        %v1077 = vunpack.c.l.b16 %v1032
        %v1078 = vunpack.c.h.b16 %v1032
        %v1079 = vunpack.c.l.b16 %v1033
        %v1080 = vunpack.c.h.b16 %v1033
        %v1081 = vunpack.c.l.b16 %v1034
        %v1082 = vunpack.c.h.b16 %v1034
        %v1083 = vunpack.c.l.b16 %v1035
        %v1084 = vunpack.c.h.b16 %v1035
        %v1085 = vunpack.c.l.b16 %v1036
        %v1086 = vunpack.c.h.b16 %v1036
        %v1087 = vunpack.c.l.b16 %v1037
        %v1088 = vunpack.c.h.b16 %v1037
        %v1089 = vunpack.c.l.b16 %v1038
        %v1090 = vunpack.c.h.b16 %v1038
        %v1091 = vunpack.c.l.b16 %v1039
        %v1092 = vunpack.c.h.b16 %v1039
        %v1093 = vunpack.c.l.b16 %v1040
        %v1094 = vunpack.c.h.b16 %v1040
        %v1095 = vunpack.c.l.b16 %v1041
        %v1096 = vunpack.c.h.b16 %v1041
        %v1097 = vunpack.c.l.b16 %v1042
        %v1098 = vunpack.c.h.b16 %v1042
        %v1099 = vunpack.c.l.b16 %v1043
        %v1100 = vunpack.c.h.b16 %v1043
        %v1101 = vunpack.c.l.b16 %v1044
        %v1102 = vunpack.c.h.b16 %v1044
        %v1103 = vunpack.c.l.b16 %v1045
        %v1104 = vunpack.c.h.b16 %v1045
        %v1105 = vunpack.c.l.b16 %v1046
        %v1106 = vunpack.c.h.b16 %v1046
        %v1107 = vpack.c.b16 %v1077, %v1075
        %v1108 = vpack.c.b16 %v1078, %v1076
        %v1109 = vpack.c.b16 %v1081, %v1079
        %v1110 = vpack.c.b16 %v1082, %v1080
        %v1111 = vpack.c.b16 %v1085, %v1083
        %v1112 = vpack.c.b16 %v1086, %v1084
        %v1113 = vpack.c.b16 %v1089, %v1087
        %v1114 = vpack.c.b16 %v1090, %v1088
        %v1115 = vpack.c.b16 %v1093, %v1091
        %v1116 = vpack.c.b16 %v1094, %v1092
        %v1117 = vpack.c.b16 %v1097, %v1095
        %v1118 = vpack.c.b16 %v1098, %v1096
        %v1119 = vpack.c.b16 %v1101, %v1099
        %v1120 = vpack.c.b16 %v1102, %v1100
        %v1121 = vpack.c.b16 %v1105, %v1103
        %v1122 = vpack.c.b16 %v1106, %v1104
        %1139 = vmatprep.subr.bf16.mxu0 %v1108
        %1140 = vmatpush1.bf16.msra.mxu0 %v1107
        %1141 = vmatprep.subr.bf16.mxu0 %v1110
        %1142 = vmatpush1.bf16.msra.mxu0 %v1109
        %1143 = vmatprep.subr.bf16.mxu0 %v1112
        %1144 = vmatpush1.bf16.msra.mxu0 %v1111
        %1145 = vmatprep.subr.bf16.mxu0 %v1114
        %1146 = vmatpush1.bf16.msra.mxu0 %v1113
        %1147 = vmatprep.subr.bf16.mxu0 %v1116
        %1148 = vmatpush1.bf16.msra.mxu0 %v1115
        %1149 = vmatprep.subr.bf16.mxu0 %v1118
        %1150 = vmatpush1.bf16.msra.mxu0 %v1117
        %1151 = vmatprep.subr.bf16.mxu0 %v1120
        %1152 = vmatpush1.bf16.msra.mxu0 %v1119
        %1153 = vmatprep.subr.bf16.mxu0 %v1122
        %1154 = vmatpush1.bf16.msra.mxu0 %v1121
        %1155 = vmatprep.subr.bf16.mxu0 0
        %1156 = vmatpush1.bf16.msra.mxu0 0
        %1157 = vmatprep.subr.bf16.mxu0 0
        %1158 = vmatpush1.bf16.msra.mxu0 0
        %1159 = vmatprep.subr.bf16.mxu0 0
        %1160 = vmatpush1.bf16.msra.mxu0 0
        %1161 = vmatprep.subr.bf16.mxu0 0
        %1162 = vmatpush1.bf16.msra.mxu0 0
        %1163 = vmatprep.subr.bf16.mxu0 0
        %1164 = vmatpush1.bf16.msra.mxu0 0
        %1165 = vmatprep.subr.bf16.mxu0 0
        %1166 = vmatpush1.bf16.msra.mxu0 0
        %1167 = vmatprep.subr.bf16.mxu0 0
        %1168 = vmatpush1.bf16.msra.mxu0 0
        %1169 = vmatprep.subr.bf16.mxu0 0
        %1170 = vmatpush1.bf16.msra.mxu0 0
        %1171 = vmatprep.mubr.bf16.mxu0 0
        %1172 = vmatmul.mubr.bf16.gmra.mrb[0].mxu0 %v802
        %v1173 = vpop.f32.mrb[0].mxu0
        %v1174 = vadd.f32 %v1052, %v1173
        %v1175 = vpop.f32.mrb[0].mxu0
        %v1176 = vadd.f32 %v1056, %v1175
        %v1177 = vpop.f32.mrb[0].mxu0
        %v1178 = vadd.f32 %v1052, %v1177
        %v1179 = vpop.f32.mrb[0].mxu0
        %v1180 = vadd.f32 %v1056, %v1179
        %1181 = vmatprep.mubr.bf16.mxu0 0
        %1182 = vmatmul.mubr.bf16.gmra.mrb[0].mxu0 %v803
        %v1183 = vpop.f32.mrb[0].mxu0
        %v1184 = vadd.f32 %v1052, %v1183
        %v1185 = vpop.f32.mrb[0].mxu0
        %v1186 = vadd.f32 %v1056, %v1185
        %v1187 = vpop.f32.mrb[0].mxu0
        %v1188 = vadd.f32 %v1052, %v1187
        %v1189 = vpop.f32.mrb[0].mxu0
        %v1190 = vadd.f32 %v1056, %v1189
        %1191 = vmatprep.mubr.bf16.mxu0 0
        %1192 = vmatmul.mubr.bf16.gmra.mrb[0].mxu0 %v804
        %v1193 = vpop.f32.mrb[0].mxu0
        %v1194 = vadd.f32 %v1052, %v1193
        %v1195 = vpop.f32.mrb[0].mxu0
        %v1196 = vadd.f32 %v1056, %v1195
        %v1197 = vpop.f32.mrb[0].mxu0
        %v1198 = vadd.f32 %v1052, %v1197
        %v1199 = vpop.f32.mrb[0].mxu0
        %v1200 = vadd.f32 %v1056, %v1199
        %1201 = vmatprep.mubr.bf16.mxu0 0
        %1202 = vmatmul.mubr.bf16.gmra.mrb[0].mxu0 %v805
        %v1203 = vpop.f32.mrb[0].mxu0
        %v1204 = vadd.f32 %v1052, %v1203
        %v1205 = vpop.f32.mrb[0].mxu0
        %v1206 = vadd.f32 %v1056, %v1205
        %v1207 = vpop.f32.mrb[0].mxu0
        %v1208 = vadd.f32 %v1052, %v1207
        %v1209 = vpop.f32.mrb[0].mxu0
        %v1210 = vadd.f32 %v1056, %v1209
        %1211 = vmatprep.mubr.bf16.mxu0 0
        %1212 = vmatmul.mubr.bf16.gmra.mrb[0].mxu0 %v806
        %v1213 = vpop.f32.mrb[0].mxu0
        %v1214 = vadd.f32 %v1052, %v1213
        %v1215 = vpop.f32.mrb[0].mxu0
        %v1216 = vadd.f32 %v1056, %v1215
        %v1217 = vpop.f32.mrb[0].mxu0
        %v1218 = vadd.f32 %v1052, %v1217
        %v1219 = vpop.f32.mrb[0].mxu0
        %v1220 = vadd.f32 %v1056, %v1219
        %1221 = vmatprep.mubr.bf16.mxu0 0
        %1222 = vmatmul.mubr.bf16.gmra.mrb[0].mxu0 %v807
        %v1223 = vpop.f32.mrb[0].mxu0
        %v1224 = vadd.f32 %v1052, %v1223
        %v1225 = vpop.f32.mrb[0].mxu0
        %v1226 = vadd.f32 %v1056, %v1225
        %v1227 = vpop.f32.mrb[0].mxu0
        %v1228 = vadd.f32 %v1052, %v1227
        %v1229 = vpop.f32.mrb[0].mxu0
        %v1230 = vadd.f32 %v1056, %v1229
        %1231 = vmatprep.mubr.bf16.mxu0 0
        %1232 = vmatmul.mubr.bf16.gmra.mrb[0].mxu0 %v808
        %v1233 = vpop.f32.mrb[0].mxu0
        %v1234 = vadd.f32 %v1052, %v1233
        %v1235 = vpop.f32.mrb[0].mxu0
        %v1236 = vadd.f32 %v1056, %v1235
        %v1237 = vpop.f32.mrb[0].mxu0
        %v1238 = vadd.f32 %v1052, %v1237
        %v1239 = vpop.f32.mrb[0].mxu0
        %v1240 = vadd.f32 %v1056, %v1239
        %1241 = vmatprep.mubr.bf16.mxu0 0
        %1242 = vmatmul.mubr.bf16.gmra.mrb[0].mxu0 %v809
        %v1243 = vpop.f32.mrb[0].mxu0
        %v1244 = vadd.f32 %v1052, %v1243
        %v1245 = vpop.f32.mrb[0].mxu0
        %v1246 = vadd.f32 %v1056, %v1245
        %v1247 = vpop.f32.mrb[0].mxu0
        %v1248 = vadd.f32 %v1052, %v1247
        %v1249 = vpop.f32.mrb[0].mxu0
        %v1250 = vadd.f32 %v1056, %v1249
        %1251 = vdwg.mxu0
        %v1252 = vxor.u32 %v953, 2147483648
        %v1253 = vxor.u32 %v955, 2147483648
        %v1254 = vxor.u32 %v957, 2147483648
        %v1255 = vxor.u32 %v959, 2147483648
        %v1256 = vxor.u32 %v963, 2147483648
        %v1257 = vxor.u32 %v965, 2147483648
        %v1258 = vxor.u32 %v967, 2147483648
        %v1259 = vxor.u32 %v969, 2147483648
        %v1260 = vxor.u32 %v973, 2147483648
        %v1261 = vxor.u32 %v975, 2147483648
        %v1262 = vxor.u32 %v977, 2147483648
        %v1263 = vxor.u32 %v979, 2147483648
        %v1264 = vxor.u32 %v983, 2147483648
        %v1265 = vxor.u32 %v985, 2147483648
        %v1266 = vxor.u32 %v987, 2147483648
        %v1267 = vxor.u32 %v989, 2147483648
        %v1268 = vxor.u32 %v993, 2147483648
        %v1269 = vxor.u32 %v995, 2147483648
        %v1270 = vxor.u32 %v997, 2147483648
        %v1271 = vxor.u32 %v999, 2147483648
        %v1272 = vxor.u32 %v1003, 2147483648
        %v1273 = vxor.u32 %v1005, 2147483648
        %v1274 = vxor.u32 %v1007, 2147483648
        %v1275 = vxor.u32 %v1009, 2147483648
        %v1276 = vxor.u32 %v1013, 2147483648
        %v1277 = vxor.u32 %v1015, 2147483648
        %v1278 = vxor.u32 %v1017, 2147483648
        %v1279 = vxor.u32 %v1019, 2147483648
        %v1280 = vxor.u32 %v1023, 2147483648
        %v1281 = vxor.u32 %v1025, 2147483648
        %v1282 = vxor.u32 %v1027, 2147483648
        %v1283 = vxor.u32 %v1029, 2147483648
        %v1284 = vmul.f32 %v1252, 1.442695
        %v1285 = vpow.pop %v1284
        %v1286 = vmul.f32 %v1253, 1.442695
        %v1287 = vpow.pop %v1286
        %v1288 = vmul.f32 %v1254, 1.442695
        %v1289 = vpow.pop %v1288
        %v1290 = vmul.f32 %v1255, 1.442695
        %v1291 = vpow.pop %v1290
        %v1292 = vmul.f32 %v1256, 1.442695
        %v1293 = vpow.pop %v1292
        %v1294 = vmul.f32 %v1257, 1.442695
        %v1295 = vpow.pop %v1294
        %v1296 = vmul.f32 %v1258, 1.442695
        %v1297 = vpow.pop %v1296
        %v1298 = vmul.f32 %v1259, 1.442695
        %v1299 = vpow.pop %v1298
        %v1300 = vmul.f32 %v1260, 1.442695
        %v1301 = vpow.pop %v1300
        %v1302 = vmul.f32 %v1261, 1.442695
        %v1303 = vpow.pop %v1302
        %v1304 = vmul.f32 %v1262, 1.442695
        %v1305 = vpow.pop %v1304
        %v1306 = vmul.f32 %v1263, 1.442695
        %v1307 = vpow.pop %v1306
        %v1308 = vmul.f32 %v1264, 1.442695
        %v1309 = vpow.pop %v1308
        %v1310 = vmul.f32 %v1265, 1.442695
        %v1311 = vpow.pop %v1310
        %v1312 = vmul.f32 %v1266, 1.442695
        %v1313 = vpow.pop %v1312
        %v1314 = vmul.f32 %v1267, 1.442695
        %v1315 = vpow.pop %v1314
        %v1316 = vmul.f32 %v1268, 1.442695
        %v1317 = vpow.pop %v1316
        %v1318 = vmul.f32 %v1269, 1.442695
        %v1319 = vpow.pop %v1318
        %v1320 = vmul.f32 %v1270, 1.442695
        %v1321 = vpow.pop %v1320
        %v1322 = vmul.f32 %v1271, 1.442695
        %v1323 = vpow.pop %v1322
        %v1324 = vmul.f32 %v1272, 1.442695
        %v1325 = vpow.pop %v1324
        %v1326 = vmul.f32 %v1273, 1.442695
        %v1327 = vpow.pop %v1326
        %v1328 = vmul.f32 %v1274, 1.442695
        %v1329 = vpow.pop %v1328
        %v1330 = vmul.f32 %v1275, 1.442695
        %v1331 = vpow.pop %v1330
        %v1332 = vmul.f32 %v1276, 1.442695
        %v1333 = vpow.pop %v1332
        %v1334 = vmul.f32 %v1277, 1.442695
        %v1335 = vpow.pop %v1334
        %v1336 = vmul.f32 %v1278, 1.442695
        %v1337 = vpow.pop %v1336
        %v1338 = vmul.f32 %v1279, 1.442695
        %v1339 = vpow.pop %v1338
        %v1340 = vmul.f32 %v1280, 1.442695
        %v1341 = vpow.pop %v1340
        %v1342 = vmul.f32 %v1281, 1.442695
        %v1343 = vpow.pop %v1342
        %v1344 = vmul.f32 %v1282, 1.442695
        %v1345 = vpow.pop %v1344
        %v1346 = vmul.f32 %v1283, 1.442695
        %v1347 = vpow.pop %v1346
        %v1348 = vadd.f32 %v1285, 1.0
        %v1349 = vadd.f32 %v1287, 1.0
        %v1350 = vadd.f32 %v1289, 1.0
        %v1351 = vadd.f32 %v1291, 1.0
        %v1352 = vadd.f32 %v1293, 1.0
        %v1353 = vadd.f32 %v1295, 1.0
        %v1354 = vadd.f32 %v1297, 1.0
        %v1355 = vadd.f32 %v1299, 1.0
        %v1356 = vadd.f32 %v1301, 1.0
        %v1357 = vadd.f32 %v1303, 1.0
        %v1358 = vadd.f32 %v1305, 1.0
        %v1359 = vadd.f32 %v1307, 1.0
        %v1360 = vadd.f32 %v1309, 1.0
        %v1361 = vadd.f32 %v1311, 1.0
        %v1362 = vadd.f32 %v1313, 1.0
        %v1363 = vadd.f32 %v1315, 1.0
        %v1364 = vadd.f32 %v1317, 1.0
        %v1365 = vadd.f32 %v1319, 1.0
        %v1366 = vadd.f32 %v1321, 1.0
        %v1367 = vadd.f32 %v1323, 1.0
        %v1368 = vadd.f32 %v1325, 1.0
        %v1369 = vadd.f32 %v1327, 1.0
        %v1370 = vadd.f32 %v1329, 1.0
        %v1371 = vadd.f32 %v1331, 1.0
        %v1372 = vadd.f32 %v1333, 1.0
        %v1373 = vadd.f32 %v1335, 1.0
        %v1374 = vadd.f32 %v1337, 1.0
        %v1375 = vadd.f32 %v1339, 1.0
        %v1376 = vadd.f32 %v1341, 1.0
        %v1377 = vadd.f32 %v1343, 1.0
        %v1378 = vadd.f32 %v1345, 1.0
        %v1379 = vadd.f32 %v1347, 1.0
        %v1380 = vrcp.pop %v1348
        %v1381 = vmul.f32 1.0, %v1380
        %v1382 = vrcp.pop %v1349
        %v1383 = vmul.f32 1.0, %v1382
        %v1384 = vrcp.pop %v1350
        %v1385 = vmul.f32 1.0, %v1384
        %v1386 = vrcp.pop %v1351
        %v1387 = vmul.f32 1.0, %v1386
        %v1388 = vrcp.pop %v1352
        %v1389 = vmul.f32 1.0, %v1388
        %v1390 = vrcp.pop %v1353
        %v1391 = vmul.f32 1.0, %v1390
        %v1392 = vrcp.pop %v1354
        %v1393 = vmul.f32 1.0, %v1392
        %v1394 = vrcp.pop %v1355
        %v1395 = vmul.f32 1.0, %v1394
        %v1396 = vrcp.pop %v1356
        %v1397 = vmul.f32 1.0, %v1396
        %v1398 = vrcp.pop %v1357
        %v1399 = vmul.f32 1.0, %v1398
        %v1400 = vrcp.pop %v1358
        %v1401 = vmul.f32 1.0, %v1400
        %v1402 = vrcp.pop %v1359
        %v1403 = vmul.f32 1.0, %v1402
        %v1404 = vrcp.pop %v1360
        %v1405 = vmul.f32 1.0, %v1404
        %v1406 = vrcp.pop %v1361
        %v1407 = vmul.f32 1.0, %v1406
        %v1408 = vrcp.pop %v1362
        %v1409 = vmul.f32 1.0, %v1408
        %v1410 = vrcp.pop %v1363
        %v1411 = vmul.f32 1.0, %v1410
        %v1412 = vrcp.pop %v1364
        %v1413 = vmul.f32 1.0, %v1412
        %v1414 = vrcp.pop %v1365
        %v1415 = vmul.f32 1.0, %v1414
        %v1416 = vrcp.pop %v1366
        %v1417 = vmul.f32 1.0, %v1416
        %v1418 = vrcp.pop %v1367
        %v1419 = vmul.f32 1.0, %v1418
        %v1420 = vrcp.pop %v1368
        %v1421 = vmul.f32 1.0, %v1420
        %v1422 = vrcp.pop %v1369
        %v1423 = vmul.f32 1.0, %v1422
        %v1424 = vrcp.pop %v1370
        %v1425 = vmul.f32 1.0, %v1424
        %v1426 = vrcp.pop %v1371
        %v1427 = vmul.f32 1.0, %v1426
        %v1428 = vrcp.pop %v1372
        %v1429 = vmul.f32 1.0, %v1428
        %v1430 = vrcp.pop %v1373
        %v1431 = vmul.f32 1.0, %v1430
        %v1432 = vrcp.pop %v1374
        %v1433 = vmul.f32 1.0, %v1432
        %v1434 = vrcp.pop %v1375
        %v1435 = vmul.f32 1.0, %v1434
        %v1436 = vrcp.pop %v1376
        %v1437 = vmul.f32 1.0, %v1436
        %v1438 = vrcp.pop %v1377
        %v1439 = vmul.f32 1.0, %v1438
        %v1440 = vrcp.pop %v1378
        %v1441 = vmul.f32 1.0, %v1440
        %v1442 = vrcp.pop %v1379
        %v1443 = vmul.f32 1.0, %v1442
        %v1444 = vmul.f32 %v953, %v1381
        %v1445 = vmul.f32 %v955, %v1383
        %v1446 = vmul.f32 %v957, %v1385
        %v1447 = vmul.f32 %v959, %v1387
        %v1448 = vmul.f32 %v963, %v1389
        %v1449 = vmul.f32 %v965, %v1391
        %v1450 = vmul.f32 %v967, %v1393
        %v1451 = vmul.f32 %v969, %v1395
        %v1452 = vmul.f32 %v973, %v1397
        %v1453 = vmul.f32 %v975, %v1399
        %v1454 = vmul.f32 %v977, %v1401
        %v1455 = vmul.f32 %v979, %v1403
        %v1456 = vmul.f32 %v983, %v1405
        %v1457 = vmul.f32 %v985, %v1407
        %v1458 = vmul.f32 %v987, %v1409
        %v1459 = vmul.f32 %v989, %v1411
        %v1460 = vmul.f32 %v993, %v1413
        %v1461 = vmul.f32 %v995, %v1415
        %v1462 = vmul.f32 %v997, %v1417
        %v1463 = vmul.f32 %v999, %v1419
        %v1464 = vmul.f32 %v1003, %v1421
        %v1465 = vmul.f32 %v1005, %v1423
        %v1466 = vmul.f32 %v1007, %v1425
        %v1467 = vmul.f32 %v1009, %v1427
        %v1468 = vmul.f32 %v1013, %v1429
        %v1469 = vmul.f32 %v1015, %v1431
        %v1470 = vmul.f32 %v1017, %v1433
        %v1471 = vmul.f32 %v1019, %v1435
        %v1472 = vmul.f32 %v1023, %v1437
        %v1473 = vmul.f32 %v1025, %v1439
        %v1474 = vmul.f32 %v1027, %v1441
        %v1475 = vmul.f32 %v1029, %v1443
        %v1476 = vmul.f32 %v1444, %v1174
        %v1477 = vmul.f32 %v1445, %v1176
        %v1478 = vmul.f32 %v1446, %v1178
        %v1479 = vmul.f32 %v1447, %v1180
        %v1480 = vmul.f32 %v1448, %v1184
        %v1481 = vmul.f32 %v1449, %v1186
        %v1482 = vmul.f32 %v1450, %v1188
        %v1483 = vmul.f32 %v1451, %v1190
        %v1484 = vmul.f32 %v1452, %v1194
        %v1485 = vmul.f32 %v1453, %v1196
        %v1486 = vmul.f32 %v1454, %v1198
        %v1487 = vmul.f32 %v1455, %v1200
        %v1488 = vmul.f32 %v1456, %v1204
        %v1489 = vmul.f32 %v1457, %v1206
        %v1490 = vmul.f32 %v1458, %v1208
        %v1491 = vmul.f32 %v1459, %v1210
        %v1492 = vmul.f32 %v1460, %v1214
        %v1493 = vmul.f32 %v1461, %v1216
        %v1494 = vmul.f32 %v1462, %v1218
        %v1495 = vmul.f32 %v1463, %v1220
        %v1496 = vmul.f32 %v1464, %v1224
        %v1497 = vmul.f32 %v1465, %v1226
        %v1498 = vmul.f32 %v1466, %v1228
        %v1499 = vmul.f32 %v1467, %v1230
        %v1500 = vmul.f32 %v1468, %v1234
        %v1501 = vmul.f32 %v1469, %v1236
        %v1502 = vmul.f32 %v1470, %v1238
        %v1503 = vmul.f32 %v1471, %v1240
        %v1504 = vmul.f32 %v1472, %v1244
        %v1505 = vmul.f32 %v1473, %v1246
        %v1506 = vmul.f32 %v1474, %v1248
        %v1507 = vmul.f32 %v1475, %v1250
        %v1508 = vld [vmem:[#allocation3] sm:$0xff]
        %v1509 = vld [vmem:[#allocation3 + $0x8] sm:$0xff]
        %v1510 = vld [vmem:[#allocation3 + $0x10] sm:$0xff]
        %v1511 = vld [vmem:[#allocation3 + $0x18] sm:$0xff]
        %v1512 = vld [vmem:[#allocation3 + $0x20] sm:$0xff]
        %v1513 = vld [vmem:[#allocation3 + $0x28] sm:$0xff]
        %v1514 = vld [vmem:[#allocation3 + $0x30] sm:$0xff]
        %v1515 = vld [vmem:[#allocation3 + $0x38] sm:$0xff]
        %v1516 = vld [vmem:[#allocation3 + $0x40] sm:$0xff]
        %v1517 = vld [vmem:[#allocation3 + $0x48] sm:$0xff]
        %v1518 = vld [vmem:[#allocation3 + $0x50] sm:$0xff]
        %v1519 = vld [vmem:[#allocation3 + $0x58] sm:$0xff]
        %v1520 = vld [vmem:[#allocation3 + $0x60] sm:$0xff]
        %v1521 = vld [vmem:[#allocation3 + $0x68] sm:$0xff]
        %v1522 = vld [vmem:[#allocation3 + $0x70] sm:$0xff]
        %v1523 = vld [vmem:[#allocation3 + $0x78] sm:$0xff]
        %v1524 = vpack.c.bf16 %v1478, %v1476
        %v1525 = vpack.c.bf16 %v1479, %v1477
        %v1526 = vpack.c.bf16 %v1482, %v1480
        %v1527 = vpack.c.bf16 %v1483, %v1481
        %v1528 = vpack.c.bf16 %v1486, %v1484
        %v1529 = vpack.c.bf16 %v1487, %v1485
        %v1530 = vpack.c.bf16 %v1490, %v1488
        %v1531 = vpack.c.bf16 %v1491, %v1489
        %v1532 = vpack.c.bf16 %v1494, %v1492
        %v1533 = vpack.c.bf16 %v1495, %v1493
        %v1534 = vpack.c.bf16 %v1498, %v1496
        %v1535 = vpack.c.bf16 %v1499, %v1497
        %v1536 = vpack.c.bf16 %v1502, %v1500
        %v1537 = vpack.c.bf16 %v1503, %v1501
        %v1538 = vpack.c.bf16 %v1506, %v1504
        %v1539 = vpack.c.bf16 %v1507, %v1505
        %v1540 = vld [vmem:[%s605] sm:$0xf]
        %v1541 = vld [vmem:[%s605 + $0x4] sm:$0xf]
        %v1542 = vld [vmem:[%s605 + $0x8] sm:$0xf]
        %v1543 = vld [vmem:[%s605 + $0xc] sm:$0xf]
        %v1544 = vld [vmem:[%s605 + $0x10] sm:$0xf]
        %v1545 = vld [vmem:[%s605 + $0x14] sm:$0xf]
        %v1546 = vld [vmem:[%s605 + $0x18] sm:$0xf]
        %v1547 = vld [vmem:[%s605 + $0x1c] sm:$0xf]
        %v1548 = vld [vmem:[%s605 + $0x20] sm:$0xf]
        %v1549 = vld [vmem:[%s605 + $0x24] sm:$0xf]
        %v1550 = vld [vmem:[%s605 + $0x28] sm:$0xf]
        %v1551 = vld [vmem:[%s605 + $0x2c] sm:$0xf]
        %v1552 = vld [vmem:[%s605 + $0x30] sm:$0xf]
        %v1553 = vld [vmem:[%s605 + $0x34] sm:$0xf]
        %v1554 = vld [vmem:[%s605 + $0x38] sm:$0xf]
        %v1555 = vld [vmem:[%s605 + $0x3c] sm:$0xf]
        %v1556 = vld [vmem:[%s605 + $0x40] sm:$0xf]
        %v1557 = vld [vmem:[%s605 + $0x44] sm:$0xf]
        %v1558 = vld [vmem:[%s605 + $0x48] sm:$0xf]
        %v1559 = vld [vmem:[%s605 + $0x4c] sm:$0xf]
        %v1560 = vld [vmem:[%s605 + $0x50] sm:$0xf]
        %v1561 = vld [vmem:[%s605 + $0x54] sm:$0xf]
        %v1562 = vld [vmem:[%s605 + $0x58] sm:$0xf]
        %v1563 = vld [vmem:[%s605 + $0x5c] sm:$0xf]
        %v1564 = vld [vmem:[%s605 + $0x60] sm:$0xf]
        %v1565 = vld [vmem:[%s605 + $0x64] sm:$0xf]
        %v1566 = vld [vmem:[%s605 + $0x68] sm:$0xf]
        %v1567 = vld [vmem:[%s605 + $0x6c] sm:$0xf]
        %v1568 = vld [vmem:[%s605 + $0x70] sm:$0xf]
        %v1569 = vld [vmem:[%s605 + $0x74] sm:$0xf]
        %v1570 = vld [vmem:[%s605 + $0x78] sm:$0xf]
        %v1571 = vld [vmem:[%s605 + $0x7c] sm:$0xf]
        %v1604 = vunpack.c.l.b16 %v1540
        %v1605 = vunpack.c.l.b16 %v1541
        %v1606 = vunpack.c.l.b16 %v1542
        %v1607 = vunpack.c.l.b16 %v1543
        %v1608 = vunpack.c.l.b16 %v1544
        %v1609 = vunpack.c.l.b16 %v1545
        %v1610 = vunpack.c.l.b16 %v1546
        %v1611 = vunpack.c.l.b16 %v1547
        %v1612 = vunpack.c.l.b16 %v1548
        %v1613 = vunpack.c.l.b16 %v1549
        %v1614 = vunpack.c.l.b16 %v1550
        %v1615 = vunpack.c.l.b16 %v1551
        %v1616 = vunpack.c.l.b16 %v1552
        %v1617 = vunpack.c.l.b16 %v1553
        %v1618 = vunpack.c.l.b16 %v1554
        %v1619 = vunpack.c.l.b16 %v1555
        %v1620 = vunpack.c.l.b16 %v1556
        %v1621 = vunpack.c.l.b16 %v1557
        %v1622 = vunpack.c.l.b16 %v1558
        %v1623 = vunpack.c.l.b16 %v1559
        %v1624 = vunpack.c.l.b16 %v1560
        %v1625 = vunpack.c.l.b16 %v1561
        %v1626 = vunpack.c.l.b16 %v1562
        %v1627 = vunpack.c.l.b16 %v1563
        %v1628 = vunpack.c.l.b16 %v1564
        %v1629 = vunpack.c.l.b16 %v1565
        %v1630 = vunpack.c.l.b16 %v1566
        %v1631 = vunpack.c.l.b16 %v1567
        %v1632 = vunpack.c.l.b16 %v1568
        %v1633 = vunpack.c.l.b16 %v1569
        %v1634 = vunpack.c.l.b16 %v1570
        %v1635 = vunpack.c.l.b16 %v1571
        %v1636 = vpack.c.b16 %v1605, %v1604
        %v1637 = vpack.c.b16 %v1607, %v1606
        %v1638 = vpack.c.b16 %v1609, %v1608
        %v1639 = vpack.c.b16 %v1611, %v1610
        %v1640 = vpack.c.b16 %v1613, %v1612
        %v1641 = vpack.c.b16 %v1615, %v1614
        %v1642 = vpack.c.b16 %v1617, %v1616
        %v1643 = vpack.c.b16 %v1619, %v1618
        %v1644 = vpack.c.b16 %v1621, %v1620
        %v1645 = vpack.c.b16 %v1623, %v1622
        %v1646 = vpack.c.b16 %v1625, %v1624
        %v1647 = vpack.c.b16 %v1627, %v1626
        %v1648 = vpack.c.b16 %v1629, %v1628
        %v1649 = vpack.c.b16 %v1631, %v1630
        %v1650 = vpack.c.b16 %v1633, %v1632
        %v1651 = vpack.c.b16 %v1635, %v1634
        %1668 = vmatprep.subr.bf16.mxu0 0
        %1669 = vmatpush1.bf16.msra.mxu0 %v1636
        %1670 = vmatprep.subr.bf16.mxu0 0
        %1671 = vmatpush1.bf16.msra.mxu0 %v1637
        %1672 = vmatprep.subr.bf16.mxu0 0
        %1673 = vmatpush1.bf16.msra.mxu0 %v1638
        %1674 = vmatprep.subr.bf16.mxu0 0
        %1675 = vmatpush1.bf16.msra.mxu0 %v1639
        %1676 = vmatprep.subr.bf16.mxu0 0
        %1677 = vmatpush1.bf16.msra.mxu0 %v1640
        %1678 = vmatprep.subr.bf16.mxu0 0
        %1679 = vmatpush1.bf16.msra.mxu0 %v1641
        %1680 = vmatprep.subr.bf16.mxu0 0
        %1681 = vmatpush1.bf16.msra.mxu0 %v1642
        %1682 = vmatprep.subr.bf16.mxu0 0
        %1683 = vmatpush1.bf16.msra.mxu0 %v1643
        %1684 = vmatprep.subr.bf16.mxu0 0
        %1685 = vmatpush1.bf16.msra.mxu0 %v1644
        %1686 = vmatprep.subr.bf16.mxu0 0
        %1687 = vmatpush1.bf16.msra.mxu0 %v1645
        %1688 = vmatprep.subr.bf16.mxu0 0
        %1689 = vmatpush1.bf16.msra.mxu0 %v1646
        %1690 = vmatprep.subr.bf16.mxu0 0
        %1691 = vmatpush1.bf16.msra.mxu0 %v1647
        %1692 = vmatprep.subr.bf16.mxu0 0
        %1693 = vmatpush1.bf16.msra.mxu0 %v1648
        %1694 = vmatprep.subr.bf16.mxu0 0
        %1695 = vmatpush1.bf16.msra.mxu0 %v1649
        %1696 = vmatprep.subr.bf16.mxu0 0
        %1697 = vmatpush1.bf16.msra.mxu0 %v1650
        %1698 = vmatprep.subr.bf16.mxu0 0
        %1699 = vmatpush1.bf16.msra.mxu0 %v1651
        %1700 = vmatprep.mubr.bf16.mxu0 %v1525
        %1701 = vmatmul.mubr.bf16.gmra.mrb[0].mxu0 %v1524
        %v1702 = vpop.f32.mrb[0].mxu0
        %v1703 = vadd.f32 0.0, %v1702
        %v1704 = vpop.f32.mrb[0].mxu0
        %v1705 = vpop.f32.mrb[0].mxu0
        %v1706 = vadd.f32 0.0, %v1705
        %v1707 = vpop.f32.mrb[0].mxu0
        %1708 = vmatprep.mubr.bf16.mxu0 %v1527
        %1709 = vmatmul.mubr.bf16.gmra.mrb[0].mxu0 %v1526
        %v1710 = vpop.f32.mrb[0].mxu0
        %v1711 = vadd.f32 0.0, %v1710
        %v1712 = vpop.f32.mrb[0].mxu0
        %v1713 = vpop.f32.mrb[0].mxu0
        %v1714 = vadd.f32 0.0, %v1713
        %v1715 = vpop.f32.mrb[0].mxu0
        %1716 = vmatprep.mubr.bf16.mxu0 %v1529
        %1717 = vmatmul.mubr.bf16.gmra.mrb[0].mxu0 %v1528
        %v1718 = vpop.f32.mrb[0].mxu0
        %v1719 = vadd.f32 0.0, %v1718
        %v1720 = vpop.f32.mrb[0].mxu0
        %v1721 = vpop.f32.mrb[0].mxu0
        %v1722 = vadd.f32 0.0, %v1721
        %v1723 = vpop.f32.mrb[0].mxu0
        %1724 = vmatprep.mubr.bf16.mxu0 %v1531
        %1725 = vmatmul.mubr.bf16.gmra.mrb[0].mxu0 %v1530
        %v1726 = vpop.f32.mrb[0].mxu0
        %v1727 = vadd.f32 0.0, %v1726
        %v1728 = vpop.f32.mrb[0].mxu0
        %v1729 = vpop.f32.mrb[0].mxu0
        %v1730 = vadd.f32 0.0, %v1729
        %v1731 = vpop.f32.mrb[0].mxu0
        %1732 = vmatprep.mubr.bf16.mxu0 %v1533
        %1733 = vmatmul.mubr.bf16.gmra.mrb[0].mxu0 %v1532
        %v1734 = vpop.f32.mrb[0].mxu0
        %v1735 = vadd.f32 0.0, %v1734
        %v1736 = vpop.f32.mrb[0].mxu0
        %v1737 = vpop.f32.mrb[0].mxu0
        %v1738 = vadd.f32 0.0, %v1737
        %v1739 = vpop.f32.mrb[0].mxu0
        %1740 = vmatprep.mubr.bf16.mxu0 %v1535
        %1741 = vmatmul.mubr.bf16.gmra.mrb[0].mxu0 %v1534
        %v1742 = vpop.f32.mrb[0].mxu0
        %v1743 = vadd.f32 0.0, %v1742
        %v1744 = vpop.f32.mrb[0].mxu0
        %v1745 = vpop.f32.mrb[0].mxu0
        %v1746 = vadd.f32 0.0, %v1745
        %v1747 = vpop.f32.mrb[0].mxu0
        %1748 = vmatprep.mubr.bf16.mxu0 %v1537
        %1749 = vmatmul.mubr.bf16.gmra.mrb[0].mxu0 %v1536
        %v1750 = vpop.f32.mrb[0].mxu0
        %v1751 = vadd.f32 0.0, %v1750
        %v1752 = vpop.f32.mrb[0].mxu0
        %v1753 = vpop.f32.mrb[0].mxu0
        %v1754 = vadd.f32 0.0, %v1753
        %v1755 = vpop.f32.mrb[0].mxu0
        %1756 = vmatprep.mubr.bf16.mxu0 %v1539
        %1757 = vmatmul.mubr.bf16.gmra.mrb[0].mxu0 %v1538
        %v1758 = vpop.f32.mrb[0].mxu0
        %v1759 = vadd.f32 0.0, %v1758
        %v1760 = vpop.f32.mrb[0].mxu0
        %v1761 = vpop.f32.mrb[0].mxu0
        %v1762 = vadd.f32 0.0, %v1761
        %v1763 = vpop.f32.mrb[0].mxu0
        %1764 = vdwg.mxu0
        %v1765 = vadd.f32 %v1508, %v1703
        %v1766 = vadd.f32 %v1509, %v1706
        %v1767 = vadd.f32 %v1510, %v1711
        %v1768 = vadd.f32 %v1511, %v1714
        %v1769 = vadd.f32 %v1512, %v1719
        %v1770 = vadd.f32 %v1513, %v1722
        %v1771 = vadd.f32 %v1514, %v1727
        %v1772 = vadd.f32 %v1515, %v1730
        %v1773 = vadd.f32 %v1516, %v1735
        %v1774 = vadd.f32 %v1517, %v1738
        %v1775 = vadd.f32 %v1518, %v1743
        %v1776 = vadd.f32 %v1519, %v1746
        %v1777 = vadd.f32 %v1520, %v1751
        %v1778 = vadd.f32 %v1521, %v1754
        %v1779 = vadd.f32 %v1522, %v1759
        %v1780 = vadd.f32 %v1523, %v1762
        %1781 = vst [vmem:[#allocation3] sm:$0xff] %v1765
        %1782 = vst [vmem:[#allocation3 + $0x8] sm:$0xff] %v1766
        %1783 = vst [vmem:[#allocation3 + $0x10] sm:$0xff] %v1767
        %1784 = vst [vmem:[#allocation3 + $0x18] sm:$0xff] %v1768
        %1785 = vst [vmem:[#allocation3 + $0x20] sm:$0xff] %v1769
        %1786 = vst [vmem:[#allocation3 + $0x28] sm:$0xff] %v1770
        %1787 = vst [vmem:[#allocation3 + $0x30] sm:$0xff] %v1771
        %1788 = vst [vmem:[#allocation3 + $0x38] sm:$0xff] %v1772
        %1789 = vst [vmem:[#allocation3 + $0x40] sm:$0xff] %v1773
        %1790 = vst [vmem:[#allocation3 + $0x48] sm:$0xff] %v1774
        %1791 = vst [vmem:[#allocation3 + $0x50] sm:$0xff] %v1775
        %1792 = vst [vmem:[#allocation3 + $0x58] sm:$0xff] %v1776
        %1793 = vst [vmem:[#allocation3 + $0x60] sm:$0xff] %v1777
        %1794 = vst [vmem:[#allocation3 + $0x68] sm:$0xff] %v1778
        %1795 = vst [vmem:[#allocation3 + $0x70] sm:$0xff] %v1779
        %1796 = vst [vmem:[#allocation3 + $0x78] sm:$0xff] %v1780
        %p1797 = scmp.eq.s32.totalorder %s24, 1
        // Predicated region
        $region133: #{gpt_forward.12} parent=119 // pred_check
          %p1798 = pneg %p1797
        $region134: #{gpt_forward.12} parent=119 // pred_check_branch
          %1800 = sbr.rel (%p1798) target = $region136
        $region135: #{gpt_forward.12} parent=119 // pred_region
          %v1801 = vld [vmem:[#allocation3] sm:$0xff]
          %v1802 = vld [vmem:[#allocation3 + $0x8] sm:$0xff]
          %v1803 = vld [vmem:[#allocation3 + $0x10] sm:$0xff]
          %v1804 = vld [vmem:[#allocation3 + $0x18] sm:$0xff]
          %v1805 = vld [vmem:[#allocation3 + $0x20] sm:$0xff]
          %v1806 = vld [vmem:[#allocation3 + $0x28] sm:$0xff]
          %v1807 = vld [vmem:[#allocation3 + $0x30] sm:$0xff]
          %v1808 = vld [vmem:[#allocation3 + $0x38] sm:$0xff]
          %v1809 = vld [vmem:[#allocation3 + $0x40] sm:$0xff]
          %v1810 = vld [vmem:[#allocation3 + $0x48] sm:$0xff]
          %v1811 = vld [vmem:[#allocation3 + $0x50] sm:$0xff]
          %v1812 = vld [vmem:[#allocation3 + $0x58] sm:$0xff]
          %v1813 = vld [vmem:[#allocation3 + $0x60] sm:$0xff]
          %v1814 = vld [vmem:[#allocation3 + $0x68] sm:$0xff]
          %v1815 = vld [vmem:[#allocation3 + $0x70] sm:$0xff]
          %v1816 = vld [vmem:[#allocation3 + $0x78] sm:$0xff]
          %v1817 = vld [vmem:[%s7] sm:$0x1]
          %v1819 = vlaneseq
          %v1820 = vshrl.u32 %v1819, 7
          %v1821 = vsub.s32 0, %v1820
          %v1822 = vrot.slane %v1817, %v1821
          %v1824 = vadd.f32 %v1801, %v1822
          %v1825 = vadd.f32 %v1802, %v1822
          %v1826 = vadd.f32 %v1803, %v1822
          %v1827 = vadd.f32 %v1804, %v1822
          %v1828 = vadd.f32 %v1805, %v1822
          %v1829 = vadd.f32 %v1806, %v1822
          %v1830 = vadd.f32 %v1807, %v1822
          %v1831 = vadd.f32 %v1808, %v1822
          %v1832 = vadd.f32 %v1809, %v1822
          %v1833 = vadd.f32 %v1810, %v1822
          %v1834 = vadd.f32 %v1811, %v1822
          %v1835 = vadd.f32 %v1812, %v1822
          %v1836 = vadd.f32 %v1813, %v1822
          %v1837 = vadd.f32 %v1814, %v1822
          %v1838 = vadd.f32 %v1815, %v1822
          %v1839 = vadd.f32 %v1816, %v1822
          %v1840 = vld [vmem:[%s587] sm:$0xff]
          %v1841 = vld [vmem:[%s587 + $0x8] sm:$0xff]
          %v1842 = vld [vmem:[%s587 + $0x10] sm:$0xff]
          %v1843 = vld [vmem:[%s587 + $0x18] sm:$0xff]
          %v1844 = vld [vmem:[%s587 + $0x20] sm:$0xff]
          %v1845 = vld [vmem:[%s587 + $0x28] sm:$0xff]
          %v1846 = vld [vmem:[%s587 + $0x30] sm:$0xff]
          %v1847 = vld [vmem:[%s587 + $0x38] sm:$0xff]
          %v1848 = vld [vmem:[%s587 + $0x40] sm:$0xff]
          %v1849 = vld [vmem:[%s587 + $0x48] sm:$0xff]
          %v1850 = vld [vmem:[%s587 + $0x50] sm:$0xff]
          %v1851 = vld [vmem:[%s587 + $0x58] sm:$0xff]
          %v1852 = vld [vmem:[%s587 + $0x60] sm:$0xff]
          %v1853 = vld [vmem:[%s587 + $0x68] sm:$0xff]
          %v1854 = vld [vmem:[%s587 + $0x70] sm:$0xff]
          %v1855 = vld [vmem:[%s587 + $0x78] sm:$0xff]
          %v1856 = vadd.f32 %v1824, %v1840
          %v1857 = vadd.f32 %v1825, %v1841
          %v1858 = vadd.f32 %v1826, %v1842
          %v1859 = vadd.f32 %v1827, %v1843
          %v1860 = vadd.f32 %v1828, %v1844
          %v1861 = vadd.f32 %v1829, %v1845
          %v1862 = vadd.f32 %v1830, %v1846
          %v1863 = vadd.f32 %v1831, %v1847
          %v1864 = vadd.f32 %v1832, %v1848
          %v1865 = vadd.f32 %v1833, %v1849
          %v1866 = vadd.f32 %v1834, %v1850
          %v1867 = vadd.f32 %v1835, %v1851
          %v1868 = vadd.f32 %v1836, %v1852
          %v1869 = vadd.f32 %v1837, %v1853
          %v1870 = vadd.f32 %v1838, %v1854
          %v1871 = vadd.f32 %v1839, %v1855
          %1872 = vst [vmem:[%s611] sm:$0xff] %v1856
          %1873 = vst [vmem:[%s611 + $0x8] sm:$0xff] %v1857
          %1874 = vst [vmem:[%s611 + $0x10] sm:$0xff] %v1858
          %1875 = vst [vmem:[%s611 + $0x18] sm:$0xff] %v1859
          %1876 = vst [vmem:[%s611 + $0x20] sm:$0xff] %v1860
          %1877 = vst [vmem:[%s611 + $0x28] sm:$0xff] %v1861
          %1878 = vst [vmem:[%s611 + $0x30] sm:$0xff] %v1862
          %1879 = vst [vmem:[%s611 + $0x38] sm:$0xff] %v1863
          %1880 = vst [vmem:[%s611 + $0x40] sm:$0xff] %v1864
          %1881 = vst [vmem:[%s611 + $0x48] sm:$0xff] %v1865
          %1882 = vst [vmem:[%s611 + $0x50] sm:$0xff] %v1866
          %1883 = vst [vmem:[%s611 + $0x58] sm:$0xff] %v1867
          %1884 = vst [vmem:[%s611 + $0x60] sm:$0xff] %v1868
          %1885 = vst [vmem:[%s611 + $0x68] sm:$0xff] %v1869
          %1886 = vst [vmem:[%s611 + $0x70] sm:$0xff] %v1870
          %1887 = vst [vmem:[%s611 + $0x78] sm:$0xff] %v1871
        $region136: #{gpt_forward.12} parent=119 // pred_fallthru
          _
        %s1888 = smul.u32 16, %s23
        %p1889 = scmp.lt.s32.totalorder %s1888, 15
        %s1890 = scalar_select %p1889, %s1888, 15
        %s1891 = smul.addr %s1890, 8
        %s1892 = scalar_lea.vmem %s8, %s1891
        // Predicated region
        $region137: #{gpt_forward.12} parent=119 // pred_check
          %p1893 = pneg %p247
        $region138: #{gpt_forward.12} parent=119 // pred_check_branch
          %1895 = sbr.rel (%p1893) target = $region140
        $region139: #{gpt_forward.12} parent=119 // pred_region
          %s1896 = smul.u32 16, %s23
        $region140: #{gpt_forward.12} parent=119 // pred_fallthru
          _
        // Predicated region
        $region141: #{gpt_forward.12} parent=119 // pred_check
          %p1897 = pneg %p247
        $region142: #{gpt_forward.12} parent=119 // pred_check_branch
          %1899 = sbr.rel (%p1897) target = $region144
        $region143: #{gpt_forward.12} parent=119 // pred_region
          %s1900 = smul.u32 16, %s23
          %p1901 = scmp.lt.s32.totalorder %s1900, 15
          %s1902 = scalar_select %p1901, %s1900, 15
          %s1903 = smul.addr %s1902, 8
          %s1904 = scalar_lea.vmem %s8, %s1903
        $region144: #{gpt_forward.12} parent=119 // pred_fallthru
          _
      $region120: #{gpt_forward.12} parent=5 // pred_fallthru
        _
      %p1905 = scmp.le.s32.totalorder 2, %s14
      // Predicated region
      $region145: #{gpt_forward.12} parent=5 // pred_check
        %p1906 = pneg %p1905
      $region146: #{gpt_forward.12} parent=5 // pred_check_branch
        %1908 = sbr.rel (%p1906) target = $region148
      $region147: #{gpt_forward.12} parent=5 // pred_region
        %s1909 = ssub.s32 %s14, 2
      $region148: #{gpt_forward.12} parent=5 // pred_fallthru
        _
    $region6: #{gpt_forward.12} parent=1 // loop_footer
      %s18 = sadd.s32 1, %s14
    $region7: #{gpt_forward.12} parent=1 // loop_footer_branch
      %13 = sbr.rel target = $region3
    $region8: #{gpt_forward.12} parent=1 // loop_exit
      _

// kernel: gpt_forward.17
$region0: #{gpt_forward.17}
  #allocation0 [shape = 'u32[]', space=smem, size = 0x4, offset = 0x4, fixed_abs, tag = 'smem constant byte address 0x4 - core index']
  #allocation1 [shape = 'u32[144,128]{1,0:T(1,128)}', space=vmem, size = 0x12000, scoped, tag = 'internal scratch']
  %s0 = inlined_call_operand.vmem [shape: f32[128,128], index: 0, kind: input, shape index: {}]
  %s1 = inlined_call_operand.vmem [shape: f32[1,128], index: 1, kind: input, shape index: {}]
  %s2 = inlined_call_operand.vmem [shape: bf16[256,128], index: 2, kind: input, shape index: {}]
  %s3 = inlined_call_operand.hbm [shape: f32[128,256], index: 3, kind: output, shape index: {}]
  %s4 = sld [smem:[#allocation0]]
  $region22: #{gpt_forward.17} parent=0
    _
  %s6 = ssub.s32 1, %s4
  %s7 = scalar_select 0, %s6, %s4
  $region1: #{gpt_forward.17} parent=0
    #allocation2 [shape = 'u8[131072]{0}', space=vmem, size = 0x20000, scoped, tag = 'output window, operand 0, single buffered']
    #allocation3 [shape = 's32[1]{0}', space=sflag, size = 0x4, scoped, tag = 'scoped memory for gpt_forward.17']
    %8 = vsyncpa [#allocation3], 0
    // Predicated region
    $region2: #{gpt_forward.17} parent=1 // pred_check
      _
    $region3: #{gpt_forward.17} parent=1 // pred_check_branch
      %10 = sbr.rel (0) target = $region5
    $region4: #{gpt_forward.17} parent=1 // pred_region
      _
    $region5: #{gpt_forward.17} parent=1 // pred_fallthru
      _
    // Predicated region
    $region6: #{gpt_forward.17} parent=1 // pred_check
      _
    $region7: #{gpt_forward.17} parent=1 // pred_check_branch
      %12 = sbr.rel (0) target = $region9
    $region8: #{gpt_forward.17} parent=1 // pred_region
      _
    $region9: #{gpt_forward.17} parent=1 // pred_fallthru
      _
    // Predicated region
    $region10: #{gpt_forward.17} parent=1 // pred_check
      _
    $region11: #{gpt_forward.17} parent=1 // pred_check_branch
      %14 = sbr.rel (0) target = $region13
    $region12: #{gpt_forward.17} parent=1 // pred_region
      _
    $region13: #{gpt_forward.17} parent=1 // pred_fallthru
      _
    %v16 = vld [vmem:[%s0] sm:$0xff]
    %v17 = vld [vmem:[%s0 + $0x8] sm:$0xff]
    %v18 = vld [vmem:[%s0 + $0x10] sm:$0xff]
    %v19 = vld [vmem:[%s0 + $0x18] sm:$0xff]
    %v20 = vld [vmem:[%s0 + $0x20] sm:$0xff]
    %v21 = vld [vmem:[%s0 + $0x28] sm:$0xff]
    %v22 = vld [vmem:[%s0 + $0x30] sm:$0xff]
    %v23 = vld [vmem:[%s0 + $0x38] sm:$0xff]
    %v24 = vld [vmem:[%s0 + $0x40] sm:$0xff]
    %v25 = vld [vmem:[%s0 + $0x48] sm:$0xff]
    %v26 = vld [vmem:[%s0 + $0x50] sm:$0xff]
    %v27 = vld [vmem:[%s0 + $0x58] sm:$0xff]
    %v28 = vld [vmem:[%s0 + $0x60] sm:$0xff]
    %v29 = vld [vmem:[%s0 + $0x68] sm:$0xff]
    %v30 = vld [vmem:[%s0 + $0x70] sm:$0xff]
    %v31 = vld [vmem:[%s0 + $0x78] sm:$0xff]
    %v32 = vld [vmem:[%s1] sm:$0x1]
    %v33 = vmul.f32 %v16, %v16
    %v34 = vmul.f32 %v17, %v17
    %v35 = vmul.f32 %v18, %v18
    %v36 = vmul.f32 %v19, %v19
    %v37 = vmul.f32 %v20, %v20
    %v38 = vmul.f32 %v21, %v21
    %v39 = vmul.f32 %v22, %v22
    %v40 = vmul.f32 %v23, %v23
    %v41 = vmul.f32 %v24, %v24
    %v42 = vmul.f32 %v25, %v25
    %v43 = vmul.f32 %v26, %v26
    %v44 = vmul.f32 %v27, %v27
    %v45 = vmul.f32 %v28, %v28
    %v46 = vmul.f32 %v29, %v29
    %v47 = vmul.f32 %v30, %v30
    %v48 = vmul.f32 %v31, %v31
    %49 = vadd.xlane.f32.xlu0 %v33
    %v50 = vpop.xlane.xlu0 %49
    %51 = vadd.xlane.f32.xlu0 %v34
    %v52 = vpop.xlane.xlu0 %51
    %53 = vadd.xlane.f32.xlu0 %v35
    %v54 = vpop.xlane.xlu0 %53
    %55 = vadd.xlane.f32.xlu0 %v36
    %v56 = vpop.xlane.xlu0 %55
    %57 = vadd.xlane.f32.xlu0 %v37
    %v58 = vpop.xlane.xlu0 %57
    %59 = vadd.xlane.f32.xlu0 %v38
    %v60 = vpop.xlane.xlu0 %59
    %61 = vadd.xlane.f32.xlu0 %v39
    %v62 = vpop.xlane.xlu0 %61
    %63 = vadd.xlane.f32.xlu0 %v40
    %v64 = vpop.xlane.xlu0 %63
    %65 = vadd.xlane.f32.xlu0 %v41
    %v66 = vpop.xlane.xlu0 %65
    %67 = vadd.xlane.f32.xlu0 %v42
    %v68 = vpop.xlane.xlu0 %67
    %69 = vadd.xlane.f32.xlu0 %v43
    %v70 = vpop.xlane.xlu0 %69
    %71 = vadd.xlane.f32.xlu0 %v44
    %v72 = vpop.xlane.xlu0 %71
    %73 = vadd.xlane.f32.xlu0 %v45
    %v74 = vpop.xlane.xlu0 %73
    %75 = vadd.xlane.f32.xlu0 %v46
    %v76 = vpop.xlane.xlu0 %75
    %77 = vadd.xlane.f32.xlu0 %v47
    %v78 = vpop.xlane.xlu0 %77
    %79 = vadd.xlane.f32.xlu0 %v48
    %v80 = vpop.xlane.xlu0 %79
    %v81 = vrcp.pop 128.0
    %v82 = vmul.f32 %v50, %v81
    %v83 = vmul.f32 %v52, %v81
    %v84 = vmul.f32 %v54, %v81
    %v85 = vmul.f32 %v56, %v81
    %v86 = vmul.f32 %v58, %v81
    %v87 = vmul.f32 %v60, %v81
    %v88 = vmul.f32 %v62, %v81
    %v89 = vmul.f32 %v64, %v81
    %v90 = vmul.f32 %v66, %v81
    %v91 = vmul.f32 %v68, %v81
    %v92 = vmul.f32 %v70, %v81
    %v93 = vmul.f32 %v72, %v81
    %v94 = vmul.f32 %v74, %v81
    %v95 = vmul.f32 %v76, %v81
    %v96 = vmul.f32 %v78, %v81
    %v97 = vmul.f32 %v80, %v81
    %v98 = vadd.f32 %v82, 1e-06
    %v99 = vadd.f32 %v83, 1e-06
    %v100 = vadd.f32 %v84, 1e-06
    %v101 = vadd.f32 %v85, 1e-06
    %v102 = vadd.f32 %v86, 1e-06
    %v103 = vadd.f32 %v87, 1e-06
    %v104 = vadd.f32 %v88, 1e-06
    %v105 = vadd.f32 %v89, 1e-06
    %v106 = vadd.f32 %v90, 1e-06
    %v107 = vadd.f32 %v91, 1e-06
    %v108 = vadd.f32 %v92, 1e-06
    %v109 = vadd.f32 %v93, 1e-06
    %v110 = vadd.f32 %v94, 1e-06
    %v111 = vadd.f32 %v95, 1e-06
    %v112 = vadd.f32 %v96, 1e-06
    %v113 = vadd.f32 %v97, 1e-06
    %v114 = vrsqrt.pop %v98
    %v115 = vrsqrt.pop %v99
    %v116 = vrsqrt.pop %v100
    %v117 = vrsqrt.pop %v101
    %v118 = vrsqrt.pop %v102
    %v119 = vrsqrt.pop %v103
    %v120 = vrsqrt.pop %v104
    %v121 = vrsqrt.pop %v105
    %v122 = vrsqrt.pop %v106
    %v123 = vrsqrt.pop %v107
    %v124 = vrsqrt.pop %v108
    %v125 = vrsqrt.pop %v109
    %v126 = vrsqrt.pop %v110
    %v127 = vrsqrt.pop %v111
    %v128 = vrsqrt.pop %v112
    %v129 = vrsqrt.pop %v113
    %v130 = vmul.f32 %v16, %v114
    %v131 = vmul.f32 %v17, %v115
    %v132 = vmul.f32 %v18, %v116
    %v133 = vmul.f32 %v19, %v117
    %v134 = vmul.f32 %v20, %v118
    %v135 = vmul.f32 %v21, %v119
    %v136 = vmul.f32 %v22, %v120
    %v137 = vmul.f32 %v23, %v121
    %v138 = vmul.f32 %v24, %v122
    %v139 = vmul.f32 %v25, %v123
    %v140 = vmul.f32 %v26, %v124
    %v141 = vmul.f32 %v27, %v125
    %v142 = vmul.f32 %v28, %v126
    %v143 = vmul.f32 %v29, %v127
    %v144 = vmul.f32 %v30, %v128
    %v145 = vmul.f32 %v31, %v129
    %v147 = vlaneseq
    %v148 = vshrl.u32 %v147, 7
    %v149 = vsub.s32 0, %v148
    %v150 = vrot.slane %v32, %v149
    %v152 = vmul.f32 %v130, %v150
    %v153 = vmul.f32 %v131, %v150
    %v154 = vmul.f32 %v132, %v150
    %v155 = vmul.f32 %v133, %v150
    %v156 = vmul.f32 %v134, %v150
    %v157 = vmul.f32 %v135, %v150
    %v158 = vmul.f32 %v136, %v150
    %v159 = vmul.f32 %v137, %v150
    %v160 = vmul.f32 %v138, %v150
    %v161 = vmul.f32 %v139, %v150
    %v162 = vmul.f32 %v140, %v150
    %v163 = vmul.f32 %v141, %v150
    %v164 = vmul.f32 %v142, %v150
    %v165 = vmul.f32 %v143, %v150
    %v166 = vmul.f32 %v144, %v150
    %v167 = vmul.f32 %v145, %v150
    %v168 = vpack.c.bf16 %v153, %v152
    %v169 = vpack.c.bf16 %v155, %v154
    %v170 = vpack.c.bf16 %v157, %v156
    %v171 = vpack.c.bf16 %v159, %v158
    %v172 = vpack.c.bf16 %v161, %v160
    %v173 = vpack.c.bf16 %v163, %v162
    %v174 = vpack.c.bf16 %v165, %v164
    %v175 = vpack.c.bf16 %v167, %v166
    %v176 = vld [vmem:[%s2] sm:$0xf]
    %v177 = vld [vmem:[%s2 + $0x4] sm:$0xf]
    %v178 = vld [vmem:[%s2 + $0x8] sm:$0xf]
    %v179 = vld [vmem:[%s2 + $0xc] sm:$0xf]
    %v180 = vld [vmem:[%s2 + $0x10] sm:$0xf]
    %v181 = vld [vmem:[%s2 + $0x14] sm:$0xf]
    %v182 = vld [vmem:[%s2 + $0x18] sm:$0xf]
    %v183 = vld [vmem:[%s2 + $0x1c] sm:$0xf]
    %v184 = vld [vmem:[%s2 + $0x20] sm:$0xf]
    %v185 = vld [vmem:[%s2 + $0x24] sm:$0xf]
    %v186 = vld [vmem:[%s2 + $0x28] sm:$0xf]
    %v187 = vld [vmem:[%s2 + $0x2c] sm:$0xf]
    %v188 = vld [vmem:[%s2 + $0x30] sm:$0xf]
    %v189 = vld [vmem:[%s2 + $0x34] sm:$0xf]
    %v190 = vld [vmem:[%s2 + $0x38] sm:$0xf]
    %v191 = vld [vmem:[%s2 + $0x3c] sm:$0xf]
    %v192 = vld [vmem:[%s2 + $0x40] sm:$0xf]
    %v193 = vld [vmem:[%s2 + $0x44] sm:$0xf]
    %v194 = vld [vmem:[%s2 + $0x48] sm:$0xf]
    %v195 = vld [vmem:[%s2 + $0x4c] sm:$0xf]
    %v196 = vld [vmem:[%s2 + $0x50] sm:$0xf]
    %v197 = vld [vmem:[%s2 + $0x54] sm:$0xf]
    %v198 = vld [vmem:[%s2 + $0x58] sm:$0xf]
    %v199 = vld [vmem:[%s2 + $0x5c] sm:$0xf]
    %v200 = vld [vmem:[%s2 + $0x60] sm:$0xf]
    %v201 = vld [vmem:[%s2 + $0x64] sm:$0xf]
    %v202 = vld [vmem:[%s2 + $0x68] sm:$0xf]
    %v203 = vld [vmem:[%s2 + $0x6c] sm:$0xf]
    %v204 = vld [vmem:[%s2 + $0x70] sm:$0xf]
    %v205 = vld [vmem:[%s2 + $0x74] sm:$0xf]
    %v206 = vld [vmem:[%s2 + $0x78] sm:$0xf]
    %v207 = vld [vmem:[%s2 + $0x7c] sm:$0xf]
    %v240 = vunpack.c.l.b16 %v176
    %v241 = vunpack.c.l.b16 %v177
    %v242 = vunpack.c.l.b16 %v178
    %v243 = vunpack.c.l.b16 %v179
    %v244 = vunpack.c.l.b16 %v180
    %v245 = vunpack.c.l.b16 %v181
    %v246 = vunpack.c.l.b16 %v182
    %v247 = vunpack.c.l.b16 %v183
    %v248 = vunpack.c.l.b16 %v184
    %v249 = vunpack.c.l.b16 %v185
    %v250 = vunpack.c.l.b16 %v186
    %v251 = vunpack.c.l.b16 %v187
    %v252 = vunpack.c.l.b16 %v188
    %v253 = vunpack.c.l.b16 %v189
    %v254 = vunpack.c.l.b16 %v190
    %v255 = vunpack.c.l.b16 %v191
    %v256 = vunpack.c.l.b16 %v192
    %v257 = vunpack.c.l.b16 %v193
    %v258 = vunpack.c.l.b16 %v194
    %v259 = vunpack.c.l.b16 %v195
    %v260 = vunpack.c.l.b16 %v196
    %v261 = vunpack.c.l.b16 %v197
    %v262 = vunpack.c.l.b16 %v198
    %v263 = vunpack.c.l.b16 %v199
    %v264 = vunpack.c.l.b16 %v200
    %v265 = vunpack.c.l.b16 %v201
    %v266 = vunpack.c.l.b16 %v202
    %v267 = vunpack.c.l.b16 %v203
    %v268 = vunpack.c.l.b16 %v204
    %v269 = vunpack.c.l.b16 %v205
    %v270 = vunpack.c.l.b16 %v206
    %v271 = vunpack.c.l.b16 %v207
    %v272 = vpack.c.b16 %v241, %v240
    %v273 = vpack.c.b16 %v243, %v242
    %v274 = vpack.c.b16 %v245, %v244
    %v275 = vpack.c.b16 %v247, %v246
    %v276 = vpack.c.b16 %v249, %v248
    %v277 = vpack.c.b16 %v251, %v250
    %v278 = vpack.c.b16 %v253, %v252
    %v279 = vpack.c.b16 %v255, %v254
    %v280 = vpack.c.b16 %v257, %v256
    %v281 = vpack.c.b16 %v259, %v258
    %v282 = vpack.c.b16 %v261, %v260
    %v283 = vpack.c.b16 %v263, %v262
    %v284 = vpack.c.b16 %v265, %v264
    %v285 = vpack.c.b16 %v267, %v266
    %v286 = vpack.c.b16 %v269, %v268
    %v287 = vpack.c.b16 %v271, %v270
    %304 = vmatprep.subr.bf16.mxu0 0
    %305 = vmatpush1.bf16.xpose.msra.mxu0 %v272
    %306 = vmatprep.subr.bf16.mxu0 0
    %307 = vmatpush1.bf16.xpose.msra.mxu0 %v273
    %308 = vmatprep.subr.bf16.mxu0 0
    %309 = vmatpush1.bf16.xpose.msra.mxu0 %v274
    %310 = vmatprep.subr.bf16.mxu0 0
    %311 = vmatpush1.bf16.xpose.msra.mxu0 %v275
    %312 = vmatprep.subr.bf16.mxu0 0
    %313 = vmatpush1.bf16.xpose.msra.mxu0 %v276
    %314 = vmatprep.subr.bf16.mxu0 0
    %315 = vmatpush1.bf16.xpose.msra.mxu0 %v277
    %316 = vmatprep.subr.bf16.mxu0 0
    %317 = vmatpush1.bf16.xpose.msra.mxu0 %v278
    %318 = vmatprep.subr.bf16.mxu0 0
    %319 = vmatpush1.bf16.xpose.msra.mxu0 %v279
    %320 = vmatprep.subr.bf16.mxu0 0
    %321 = vmatpush1.bf16.xpose.msra.mxu0 %v280
    %322 = vmatprep.subr.bf16.mxu0 0
    %323 = vmatpush1.bf16.xpose.msra.mxu0 %v281
    %324 = vmatprep.subr.bf16.mxu0 0
    %325 = vmatpush1.bf16.xpose.msra.mxu0 %v282
    %326 = vmatprep.subr.bf16.mxu0 0
    %327 = vmatpush1.bf16.xpose.msra.mxu0 %v283
    %328 = vmatprep.subr.bf16.mxu0 0
    %329 = vmatpush1.bf16.xpose.msra.mxu0 %v284
    %330 = vmatprep.subr.bf16.mxu0 0
    %331 = vmatpush1.bf16.xpose.msra.mxu0 %v285
    %332 = vmatprep.subr.bf16.mxu0 0
    %333 = vmatpush1.bf16.xpose.msra.mxu0 %v286
    %334 = vmatprep.subr.bf16.mxu0 0
    %335 = vmatpush1.bf16.xpose.msra.mxu0 %v287
    %336 = vmatprep.mubr.bf16.mxu0 0
    %337 = vmatmul.mubr.bf16.gmra.mrb[0].mxu0 %v168
    %v338 = vpop.f32.mrb[0].mxu0
    %v339 = vadd.f32 0.0, %v338
    %v340 = vpop.f32.mrb[0].mxu0
    %v341 = vadd.f32 0.0, %v340
    %v342 = vpop.f32.mrb[0].mxu0
    %v343 = vadd.f32 0.0, %v342
    %v344 = vpop.f32.mrb[0].mxu0
    %v345 = vadd.f32 0.0, %v344
    %346 = vmatprep.mubr.bf16.mxu0 0
    %347 = vmatmul.mubr.bf16.gmra.mrb[0].mxu0 %v169
    %v348 = vpop.f32.mrb[0].mxu0
    %v349 = vadd.f32 0.0, %v348
    %v350 = vpop.f32.mrb[0].mxu0
    %v351 = vadd.f32 0.0, %v350
    %v352 = vpop.f32.mrb[0].mxu0
    %v353 = vadd.f32 0.0, %v352
    %v354 = vpop.f32.mrb[0].mxu0
    %v355 = vadd.f32 0.0, %v354
    %356 = vmatprep.mubr.bf16.mxu0 0
    %357 = vmatmul.mubr.bf16.gmra.mrb[0].mxu0 %v170
    %v358 = vpop.f32.mrb[0].mxu0
    %v359 = vadd.f32 0.0, %v358
    %v360 = vpop.f32.mrb[0].mxu0
    %v361 = vadd.f32 0.0, %v360
    %v362 = vpop.f32.mrb[0].mxu0
    %v363 = vadd.f32 0.0, %v362
    %v364 = vpop.f32.mrb[0].mxu0
    %v365 = vadd.f32 0.0, %v364
    %366 = vmatprep.mubr.bf16.mxu0 0
    %367 = vmatmul.mubr.bf16.gmra.mrb[0].mxu0 %v171
    %v368 = vpop.f32.mrb[0].mxu0
    %v369 = vadd.f32 0.0, %v368
    %v370 = vpop.f32.mrb[0].mxu0
    %v371 = vadd.f32 0.0, %v370
    %v372 = vpop.f32.mrb[0].mxu0
    %v373 = vadd.f32 0.0, %v372
    %v374 = vpop.f32.mrb[0].mxu0
    %v375 = vadd.f32 0.0, %v374
    %376 = vmatprep.mubr.bf16.mxu0 0
    %377 = vmatmul.mubr.bf16.gmra.mrb[0].mxu0 %v172
    %v378 = vpop.f32.mrb[0].mxu0
    %v379 = vadd.f32 0.0, %v378
    %v380 = vpop.f32.mrb[0].mxu0
    %v381 = vadd.f32 0.0, %v380
    %v382 = vpop.f32.mrb[0].mxu0
    %v383 = vadd.f32 0.0, %v382
    %v384 = vpop.f32.mrb[0].mxu0
    %v385 = vadd.f32 0.0, %v384
    %386 = vmatprep.mubr.bf16.mxu0 0
    %387 = vmatmul.mubr.bf16.gmra.mrb[0].mxu0 %v173
    %v388 = vpop.f32.mrb[0].mxu0
    %v389 = vadd.f32 0.0, %v388
    %v390 = vpop.f32.mrb[0].mxu0
    %v391 = vadd.f32 0.0, %v390
    %v392 = vpop.f32.mrb[0].mxu0
    %v393 = vadd.f32 0.0, %v392
    %v394 = vpop.f32.mrb[0].mxu0
    %v395 = vadd.f32 0.0, %v394
    %396 = vmatprep.mubr.bf16.mxu0 0
    %397 = vmatmul.mubr.bf16.gmra.mrb[0].mxu0 %v174
    %v398 = vpop.f32.mrb[0].mxu0
    %v399 = vadd.f32 0.0, %v398
    %v400 = vpop.f32.mrb[0].mxu0
    %v401 = vadd.f32 0.0, %v400
    %v402 = vpop.f32.mrb[0].mxu0
    %v403 = vadd.f32 0.0, %v402
    %v404 = vpop.f32.mrb[0].mxu0
    %v405 = vadd.f32 0.0, %v404
    %406 = vmatprep.mubr.bf16.mxu0 0
    %407 = vmatmul.mubr.bf16.gmra.mrb[0].mxu0 %v175
    %v408 = vpop.f32.mrb[0].mxu0
    %v409 = vadd.f32 0.0, %v408
    %v410 = vpop.f32.mrb[0].mxu0
    %v411 = vadd.f32 0.0, %v410
    %v412 = vpop.f32.mrb[0].mxu0
    %v413 = vadd.f32 0.0, %v412
    %v414 = vpop.f32.mrb[0].mxu0
    %v415 = vadd.f32 0.0, %v414
    %416 = vdwg.mxu0
    %417 = vst [vmem:[#allocation2] sm:$0xff] %v339
    %418 = vst [vmem:[#allocation2 + $0x8] sm:$0xff] %v341
    %419 = vst [vmem:[#allocation2 + $0x10] sm:$0xff] %v343
    %420 = vst [vmem:[#allocation2 + $0x18] sm:$0xff] %v345
    %421 = vst [vmem:[#allocation2 + $0x20] sm:$0xff] %v349
    %422 = vst [vmem:[#allocation2 + $0x28] sm:$0xff] %v351
    %423 = vst [vmem:[#allocation2 + $0x30] sm:$0xff] %v353
    %424 = vst [vmem:[#allocation2 + $0x38] sm:$0xff] %v355
    %425 = vst [vmem:[#allocation2 + $0x40] sm:$0xff] %v359
    %426 = vst [vmem:[#allocation2 + $0x48] sm:$0xff] %v361
    %427 = vst [vmem:[#allocation2 + $0x50] sm:$0xff] %v363
    %428 = vst [vmem:[#allocation2 + $0x58] sm:$0xff] %v365
    %429 = vst [vmem:[#allocation2 + $0x60] sm:$0xff] %v369
    %430 = vst [vmem:[#allocation2 + $0x68] sm:$0xff] %v371
    %431 = vst [vmem:[#allocation2 + $0x70] sm:$0xff] %v373
    %432 = vst [vmem:[#allocation2 + $0x78] sm:$0xff] %v375
    %433 = vst [vmem:[#allocation2 + $0x80] sm:$0xff] %v379
    %434 = vst [vmem:[#allocation2 + $0x88] sm:$0xff] %v381
    %435 = vst [vmem:[#allocation2 + $0x90] sm:$0xff] %v383
    %436 = vst [vmem:[#allocation2 + $0x98] sm:$0xff] %v385
    %437 = vst [vmem:[#allocation2 + $0xa0] sm:$0xff] %v389
    %438 = vst [vmem:[#allocation2 + $0xa8] sm:$0xff] %v391
    %439 = vst [vmem:[#allocation2 + $0xb0] sm:$0xff] %v393
    %440 = vst [vmem:[#allocation2 + $0xb8] sm:$0xff] %v395
    %441 = vst [vmem:[#allocation2 + $0xc0] sm:$0xff] %v399
    %442 = vst [vmem:[#allocation2 + $0xc8] sm:$0xff] %v401
    %443 = vst [vmem:[#allocation2 + $0xd0] sm:$0xff] %v403
    %444 = vst [vmem:[#allocation2 + $0xd8] sm:$0xff] %v405
    %445 = vst [vmem:[#allocation2 + $0xe0] sm:$0xff] %v409
    %446 = vst [vmem:[#allocation2 + $0xe8] sm:$0xff] %v411
    %447 = vst [vmem:[#allocation2 + $0xf0] sm:$0xff] %v413
    %448 = vst [vmem:[#allocation2 + $0xf8] sm:$0xff] %v415
    // Predicated region
    $region14: #{gpt_forward.17} parent=1 // pred_check
      _
    $region15: #{gpt_forward.17} parent=1 // pred_check_branch
      %450 = sbr.rel (0) target = $region17
    $region16: #{gpt_forward.17} parent=1 // pred_region
      %s452 = ssub.s32 4096, 4096
      %453 = vsyncadd [#allocation3], %s452
      %s454 = sshll.u32 [#allocation2], 4
      %s455 = int_to_ptr.vmem [resolvable:$true] %s454
      %460 = dma.vmem_to_hbm [thread:$0]  %s455, 4096, %s3, [#allocation3], 256, 256, 16
    $region17: #{gpt_forward.17} parent=1 // pred_fallthru
      _
    // Predicated region
    $region18: #{gpt_forward.17} parent=1 // pred_check
      _
    $region19: #{gpt_forward.17} parent=1 // pred_check_branch
      %462 = sbr.rel (0) target = $region21
    $region20: #{gpt_forward.17} parent=1 // pred_region
      %463 = dma.done [#allocation3], 4096
    $region21: #{gpt_forward.17} parent=1 // pred_fallthru
      _
    %464 = vsyncpa [#allocation3], 1

// kernel: gpt_forward.10
$region0: #{gpt_forward.10}
  #allocation0 [shape = 'u32[]', space=smem, size = 0x4, offset = 0x4, fixed_abs, tag = 'smem constant byte address 0x4 - core index']
  #allocation1 [shape = 'u32[144,128]{1,0:T(1,128)}', space=vmem, size = 0x12000, scoped, tag = 'internal scratch']
  %s0 = inlined_call_operand.vmem [shape: bf16[2,64,128], index: 0, kind: input, shape index: {}]
  %s1 = inlined_call_operand.vmem [shape: bf16[2,64,64], index: 1, kind: input, shape index: {}]
  %s2 = inlined_call_operand.vmem [shape: bf16[2,64,64], index: 2, kind: input, shape index: {}]
  %s3 = inlined_call_operand.vmem [shape: f32[64,16], index: 3, kind: input, shape index: {}, may-alias: {3,5}]
  %s4 = inlined_call_operand.vmem [shape: f32[64,16], index: 4, kind: input, shape index: {}, may-alias: {4,6}]
  %s5 = inlined_call_operand.vmem [shape: f32[64,16], index: 5, kind: input, shape index: {}, may-alias: {3,5}]
  %s6 = inlined_call_operand.vmem [shape: f32[64,16], index: 6, kind: input, shape index: {}, may-alias: {4,6}]
  %s7 = inlined_call_operand.vmem [shape: bf16[2,64,128], index: 7, kind: output, shape index: {}]
  %s8 = sld [smem:[#allocation0]]
  $region61: #{gpt_forward.10} parent=0
    _
  %s10 = ssub.s32 1, %s8
  %s11 = scalar_select 0, %s10, %s8
  loop: start=0, step=1, limit=4
  $region2: #{gpt_forward.10} parent=0 // loop_pre_header
    _
  $region3: #{gpt_forward.10} parent=0 // loop_header
    %s13 = sphi 0, %s17
    %p14 = scmp.ge.s32.totalorder %s13, 4
    %s20 = sphi 0, %s32
    %s21 = sphi 0, %s28
    %s22 = sphi 0, %s20
    %s23 = sphi 0, %s21
    %s24 = sphi 0, %s22
    %s25 = sphi 0, %s23
    %s37 = sphi 0, %s39
    %s40 = sphi 0, %s37
    %s41 = sphi 0, %s40
    %s57 = sphi 0, %s41
    %s63 = sphi 0, %s65
    %s66 = sphi 0, %s63
    %s67 = sphi 0, %s66
    %s83 = sphi 0, %s67
    %s89 = sphi 0, %s91
    %s92 = sphi 0, %s89
    %s93 = sphi 0, %s92
    %s109 = sphi 0, %s93
    %s115 = sphi 0, %s117
    %s118 = sphi 0, %s115
    %s119 = sphi 0, %s118
    %s135 = sphi 0, %s119
    %s141 = sphi 0, %s143
    %s144 = sphi 0, %s141
    %s145 = sphi 0, %s144
    %s161 = sphi 0, %s145
    %s165 = sphi 0, %s165
    %s167 = sphi 0, %s165
    %s168 = sphi 0, %s167
    %s182 = sphi 0, %s168
    %s186 = sphi 0, %s186
    %s188 = sphi 0, %s186
    %s189 = sphi 0, %s188
    %s203 = sphi 0, %s189
    %s211 = sphi 0, %s213
    %s214 = sphi 0, %s211
    %s215 = sphi 0, %s214
    %s231 = sphi 0, %s215
  $region4: #{gpt_forward.10} parent=0 // loop_header_branch
    %16 = sbr.rel (%p14) target = $region8
  $region5: #{gpt_forward.10} parent=0 // loop_body
    %s18 = ssub.s32 %s13, 1
    %s19 = ssub.s32 %s13, 2
    %s26 = sadd.s32 1, %s21
    %p27 = scmp.ge.s32.totalorder %s26, 1
    %s28 = scalar_select %p27, 0, %s26
    %s29 = sadd.s32 1, %s20
    %s30 = scalar_select %p27, %s29, %s20
    %p31 = scmp.ge.s32.totalorder %s30, 2
    %s32 = scalar_select %p31, 0, %s30
    %s33 = ssub.s32 %s20, %s32
    %s34 = ssub.s32 %s21, %s28
    %s35 = sor.u32 %s33, %s34
    %p36 = scmp.eq.s32.totalorder %s35, 0
    %s38 = sadd.s32 %s37, 1
    %s39 = scalar_select %p36, %s37, %s38
    %p42 = pneg %p36
    %p43 = scmp.eq.s32.totalorder %s13, 1
    %p44 = por %p42, %p43
    %p45 = scmp.ne.s32.totalorder %s37, %s40
    %p46 = scmp.eq.s32.totalorder %s13, 0
    %p47 = por %p45, %p46
    %p48 = scmp.ne.s32.totalorder %s37, %s40
    %p49 = scmp.eq.s32.totalorder %s18, 1
    %p50 = por %p48, %p49
    %p51 = scmp.ne.s32.totalorder %s40, %s41
    %p52 = scmp.eq.s32.totalorder %s18, 0
    %p53 = por %p51, %p52
    %p54 = scmp.ne.s32.totalorder %s40, %s41
    %p55 = scmp.eq.s32.totalorder %s19, 1
    %p56 = por %p54, %p55
    %p58 = scmp.ne.s32.totalorder %s41, %s57
    %p59 = scmp.eq.s32.totalorder %s19, 0
    %p60 = por %p58, %p59
    %s61 = ssub.s32 %s20, %s32
    %p62 = scmp.eq.s32.totalorder %s61, 0
    %s64 = sadd.s32 %s63, 1
    %s65 = scalar_select %p62, %s63, %s64
    %p68 = pneg %p62
    %p69 = scmp.eq.s32.totalorder %s13, 1
    %p70 = por %p68, %p69
    %p71 = scmp.ne.s32.totalorder %s63, %s66
    %p72 = scmp.eq.s32.totalorder %s13, 0
    %p73 = por %p71, %p72
    %p74 = scmp.ne.s32.totalorder %s63, %s66
    %p75 = scmp.eq.s32.totalorder %s18, 1
    %p76 = por %p74, %p75
    %p77 = scmp.ne.s32.totalorder %s66, %s67
    %p78 = scmp.eq.s32.totalorder %s18, 0
    %p79 = por %p77, %p78
    %p80 = scmp.ne.s32.totalorder %s66, %s67
    %p81 = scmp.eq.s32.totalorder %s19, 1
    %p82 = por %p80, %p81
    %p84 = scmp.ne.s32.totalorder %s67, %s83
    %p85 = scmp.eq.s32.totalorder %s19, 0
    %p86 = por %p84, %p85
    %s87 = ssub.s32 %s20, %s32
    %p88 = scmp.eq.s32.totalorder %s87, 0
    %s90 = sadd.s32 %s89, 1
    %s91 = scalar_select %p88, %s89, %s90
    %p94 = pneg %p88
    %p95 = scmp.eq.s32.totalorder %s13, 1
    %p96 = por %p94, %p95
    %p97 = scmp.ne.s32.totalorder %s89, %s92
    %p98 = scmp.eq.s32.totalorder %s13, 0
    %p99 = por %p97, %p98
    %p100 = scmp.ne.s32.totalorder %s89, %s92
    %p101 = scmp.eq.s32.totalorder %s18, 1
    %p102 = por %p100, %p101
    %p103 = scmp.ne.s32.totalorder %s92, %s93
    %p104 = scmp.eq.s32.totalorder %s18, 0
    %p105 = por %p103, %p104
    %p106 = scmp.ne.s32.totalorder %s92, %s93
    %p107 = scmp.eq.s32.totalorder %s19, 1
    %p108 = por %p106, %p107
    %p110 = scmp.ne.s32.totalorder %s93, %s109
    %p111 = scmp.eq.s32.totalorder %s19, 0
    %p112 = por %p110, %p111
    %s113 = ssub.s32 %s21, %s28
    %p114 = scmp.eq.s32.totalorder %s113, 0
    %s116 = sadd.s32 %s115, 1
    %s117 = scalar_select %p114, %s115, %s116
    %p120 = pneg %p114
    %p121 = scmp.eq.s32.totalorder %s13, 1
    %p122 = por %p120, %p121
    %p123 = scmp.ne.s32.totalorder %s115, %s118
    %p124 = scmp.eq.s32.totalorder %s13, 0
    %p125 = por %p123, %p124
    %p126 = scmp.ne.s32.totalorder %s115, %s118
    %p127 = scmp.eq.s32.totalorder %s18, 1
    %p128 = por %p126, %p127
    %p129 = scmp.ne.s32.totalorder %s118, %s119
    %p130 = scmp.eq.s32.totalorder %s18, 0
    %p131 = por %p129, %p130
    %p132 = scmp.ne.s32.totalorder %s118, %s119
    %p133 = scmp.eq.s32.totalorder %s19, 1
    %p134 = por %p132, %p133
    %p136 = scmp.ne.s32.totalorder %s119, %s135
    %p137 = scmp.eq.s32.totalorder %s19, 0
    %p138 = por %p136, %p137
    %s139 = ssub.s32 %s21, %s28
    %p140 = scmp.eq.s32.totalorder %s139, 0
    %s142 = sadd.s32 %s141, 1
    %s143 = scalar_select %p140, %s141, %s142
    %p146 = pneg %p140
    %p147 = scmp.eq.s32.totalorder %s13, 1
    %p148 = por %p146, %p147
    %p149 = scmp.ne.s32.totalorder %s141, %s144
    %p150 = scmp.eq.s32.totalorder %s13, 0
    %p151 = por %p149, %p150
    %p152 = scmp.ne.s32.totalorder %s141, %s144
    %p153 = scmp.eq.s32.totalorder %s18, 1
    %p154 = por %p152, %p153
    %p155 = scmp.ne.s32.totalorder %s144, %s145
    %p156 = scmp.eq.s32.totalorder %s18, 0
    %p157 = por %p155, %p156
    %p158 = scmp.ne.s32.totalorder %s144, %s145
    %p159 = scmp.eq.s32.totalorder %s19, 1
    %p160 = por %p158, %p159
    %p162 = scmp.ne.s32.totalorder %s145, %s161
    %p163 = scmp.eq.s32.totalorder %s19, 0
    %p164 = por %p162, %p163
    %s166 = sadd.s32 %s165, 1
    %p169 = scmp.eq.s32.totalorder %s13, 1
    %p170 = scmp.ne.s32.totalorder %s165, %s167
    %p171 = scmp.eq.s32.totalorder %s13, 0
    %p172 = por %p170, %p171
    %p173 = scmp.ne.s32.totalorder %s165, %s167
    %p174 = scmp.eq.s32.totalorder %s18, 1
    %p175 = por %p173, %p174
    %p176 = scmp.ne.s32.totalorder %s167, %s168
    %p177 = scmp.eq.s32.totalorder %s18, 0
    %p178 = por %p176, %p177
    %p179 = scmp.ne.s32.totalorder %s167, %s168
    %p180 = scmp.eq.s32.totalorder %s19, 1
    %p181 = por %p179, %p180
    %p183 = scmp.ne.s32.totalorder %s168, %s182
    %p184 = scmp.eq.s32.totalorder %s19, 0
    %p185 = por %p183, %p184
    %s187 = sadd.s32 %s186, 1
    %p190 = scmp.eq.s32.totalorder %s13, 1
    %p191 = scmp.ne.s32.totalorder %s186, %s188
    %p192 = scmp.eq.s32.totalorder %s13, 0
    %p193 = por %p191, %p192
    %p194 = scmp.ne.s32.totalorder %s186, %s188
    %p195 = scmp.eq.s32.totalorder %s18, 1
    %p196 = por %p194, %p195
    %p197 = scmp.ne.s32.totalorder %s188, %s189
    %p198 = scmp.eq.s32.totalorder %s18, 0
    %p199 = por %p197, %p198
    %p200 = scmp.ne.s32.totalorder %s188, %s189
    %p201 = scmp.eq.s32.totalorder %s19, 1
    %p202 = por %p200, %p201
    %p204 = scmp.ne.s32.totalorder %s189, %s203
    %p205 = scmp.eq.s32.totalorder %s19, 0
    %p206 = por %p204, %p205
    %s207 = ssub.s32 %s20, %s32
    %s208 = ssub.s32 %s21, %s28
    %s209 = sor.u32 %s207, %s208
    %p210 = scmp.eq.s32.totalorder %s209, 0
    %s212 = sadd.s32 %s211, 1
    %s213 = scalar_select %p210, %s211, %s212
    %p216 = pneg %p210
    %p217 = scmp.eq.s32.totalorder %s13, 1
    %p218 = por %p216, %p217
    %p219 = scmp.ne.s32.totalorder %s211, %s214
    %p220 = scmp.eq.s32.totalorder %s13, 0
    %p221 = por %p219, %p220
    %p222 = scmp.ne.s32.totalorder %s211, %s214
    %p223 = scmp.eq.s32.totalorder %s18, 1
    %p224 = por %p222, %p223
    %p225 = scmp.ne.s32.totalorder %s214, %s215
    %p226 = scmp.eq.s32.totalorder %s18, 0
    %p227 = por %p225, %p226
    %p228 = scmp.ne.s32.totalorder %s214, %s215
    %p229 = scmp.eq.s32.totalorder %s19, 1
    %p230 = por %p228, %p229
    %p232 = scmp.ne.s32.totalorder %s215, %s231
    %p233 = scmp.eq.s32.totalorder %s19, 0
    %p234 = por %p232, %p233
    %p235 = scmp.le.s32.totalorder 1, %s13
    %p236 = scmp.lt.s32.totalorder %s13, 3
    %p237 = pnand %p235, %p236
    %p238 = pneg %p237
    // Predicated region
    $region9: #{gpt_forward.10} parent=5 // pred_check
      _
    $region10: #{gpt_forward.10} parent=5 // pred_check_branch
      %240 = sbr.rel (%p237) target = $region12
    $region11: #{gpt_forward.10} parent=5 // pred_region
      %s241 = ssub.s32 %s13, 1
      // Predicated region
      $region13: #{gpt_forward.10} parent=11 // pred_check
        %p242 = pneg %p131
      $region14: #{gpt_forward.10} parent=11 // pred_check_branch
        %244 = sbr.rel (%p242) target = $region16
      $region15: #{gpt_forward.10} parent=11 // pred_region
        %s245 = smul.u32 8, %s23
        %p246 = scmp.lt.s32.totalorder %s245, 7
        %s247 = scalar_select %p246, %s245, 7
        %s248 = smul.addr %s247, 8
        %s249 = scalar_lea.vmem %s3, %s248
        %s250 = smul.u32 8, %s23
      $region16: #{gpt_forward.10} parent=11 // pred_fallthru
        _
      // Predicated region
      $region17: #{gpt_forward.10} parent=11 // pred_check
        %p251 = pneg %p157
      $region18: #{gpt_forward.10} parent=11 // pred_check_branch
        %253 = sbr.rel (%p251) target = $region20
      $region19: #{gpt_forward.10} parent=11 // pred_region
        %s254 = smul.u32 8, %s23
        %p255 = scmp.lt.s32.totalorder %s254, 7
        %s256 = scalar_select %p255, %s254, 7
        %s257 = smul.addr %s256, 8
        %s258 = scalar_lea.vmem %s4, %s257
        %s259 = smul.u32 8, %s23
      $region20: #{gpt_forward.10} parent=11 // pred_fallthru
        _
      // Predicated region
      $region21: #{gpt_forward.10} parent=11 // pred_check
        %p260 = pneg %p178
      $region22: #{gpt_forward.10} parent=11 // pred_check_branch
        %262 = sbr.rel (%p260) target = $region24
      $region23: #{gpt_forward.10} parent=11 // pred_region
        _
      $region24: #{gpt_forward.10} parent=11 // pred_fallthru
        _
      // Predicated region
      $region25: #{gpt_forward.10} parent=11 // pred_check
        %p263 = pneg %p199
      $region26: #{gpt_forward.10} parent=11 // pred_check_branch
        %265 = sbr.rel (%p263) target = $region28
      $region27: #{gpt_forward.10} parent=11 // pred_region
        _
      $region28: #{gpt_forward.10} parent=11 // pred_fallthru
        _
    $region12: #{gpt_forward.10} parent=5 // pred_fallthru
      _
    %p266 = scmp.lt.s32.totalorder %s13, 2
    // Predicated region
    $region29: #{gpt_forward.10} parent=5 // pred_check
      %p267 = pneg %p266
    $region30: #{gpt_forward.10} parent=5 // pred_check_branch
      %269 = sbr.rel (%p267) target = $region32
    $region31: #{gpt_forward.10} parent=5 // pred_region
      // Predicated region
      $region33: #{gpt_forward.10} parent=31 // pred_check
        %p270 = pneg %p47
      $region34: #{gpt_forward.10} parent=31 // pred_check_branch
        %272 = sbr.rel (%p270) target = $region36
      $region35: #{gpt_forward.10} parent=31 // pred_region
        %s273 = smul.u32 8, %s21
        %p274 = scmp.lt.s32.totalorder %s20, 1
        %s275 = scalar_select %p274, %s20, 1
        %p276 = scmp.lt.s32.totalorder %s273, 7
        %s277 = scalar_select %p276, %s273, 7
        %s278 = smul.addr %s275, 8
        %s279 = sadd.s32 %s277, %s278
        %s280 = smul.addr %s279, 4
        %s281 = scalar_lea.vmem %s0, %s280
        %s282 = smul.u32 8, %s21
      $region36: #{gpt_forward.10} parent=31 // pred_fallthru
        _
      // Predicated region
      $region37: #{gpt_forward.10} parent=31 // pred_check
        %p283 = pneg %p73
      $region38: #{gpt_forward.10} parent=31 // pred_check_branch
        %285 = sbr.rel (%p283) target = $region40
      $region39: #{gpt_forward.10} parent=31 // pred_region
        %p286 = scmp.lt.s32.totalorder %s20, 1
        %s287 = scalar_select %p286, %s20, 1
        %s288 = smul.addr %s287, 8
        %s289 = smul.addr %s288, 4
        %s290 = scalar_lea.vmem %s1, %s289
      $region40: #{gpt_forward.10} parent=31 // pred_fallthru
        _
      // Predicated region
      $region41: #{gpt_forward.10} parent=31 // pred_check
        %p291 = pneg %p99
      $region42: #{gpt_forward.10} parent=31 // pred_check_branch
        %293 = sbr.rel (%p291) target = $region44
      $region43: #{gpt_forward.10} parent=31 // pred_region
        %p294 = scmp.lt.s32.totalorder %s20, 1
        %s295 = scalar_select %p294, %s20, 1
        %s296 = smul.addr %s295, 8
        %s297 = smul.addr %s296, 4
        %s298 = scalar_lea.vmem %s2, %s297
      $region44: #{gpt_forward.10} parent=31 // pred_fallthru
        _
    $region32: #{gpt_forward.10} parent=5 // pred_fallthru
      _
    %p299 = scmp.le.s32.totalorder 1, %s13
    %p300 = scmp.lt.s32.totalorder %s13, 3
    %p301 = pnand %p299, %p300
    %p302 = pneg %p301
    // Predicated region
    $region45: #{gpt_forward.10} parent=5 // pred_check
      _
    $region46: #{gpt_forward.10} parent=5 // pred_check_branch
      %304 = sbr.rel (%p301) target = $region48
    $region47: #{gpt_forward.10} parent=5 // pred_region
      %s305 = ssub.s32 %s13, 1
      %s306 = smul.u32 8, %s23
      %p307 = scmp.lt.s32.totalorder %s22, 1
      %s308 = scalar_select %p307, %s22, 1
      %p309 = scmp.lt.s32.totalorder %s306, 7
      %s310 = scalar_select %p309, %s306, 7
      %s311 = smul.addr %s308, 8
      %s312 = sadd.s32 %s310, %s311
      %s313 = smul.addr %s312, 4
      %s314 = scalar_lea.vmem %s0, %s313
      %p315 = pneg %p53
      %p316 = pneg %p50
      %p317 = scmp.lt.s32.totalorder %s22, 1
      %s318 = scalar_select %p317, %s22, 1
      %s319 = smul.addr %s318, 8
      %s320 = smul.addr %s319, 4
      %s321 = scalar_lea.vmem %s1, %s320
      %p322 = pneg %p79
      %p323 = pneg %p76
      %p324 = scmp.lt.s32.totalorder %s22, 1
      %s325 = scalar_select %p324, %s22, 1
      %s326 = smul.addr %s325, 8
      %s327 = smul.addr %s326, 4
      %s328 = scalar_lea.vmem %s2, %s327
      %p329 = pneg %p105
      %p330 = pneg %p102
      %s331 = smul.u32 8, %s23
      %p332 = scmp.lt.s32.totalorder %s331, 7
      %s333 = scalar_select %p332, %s331, 7
      %s334 = smul.addr %s333, 8
      %s335 = scalar_lea.vmem %s3, %s334
      %p336 = pneg %p131
      %p337 = pneg %p128
      %s338 = smul.u32 8, %s23
      %p339 = scmp.lt.s32.totalorder %s338, 7
      %s340 = scalar_select %p339, %s338, 7
      %s341 = smul.addr %s340, 8
      %s342 = scalar_lea.vmem %s4, %s341
      %p343 = pneg %p157
      %p344 = pneg %p154
      %p345 = pneg %p178
      %p346 = pneg %p175
      %p347 = pneg %p199
      %p348 = pneg %p196
      %p349 = pneg %p227
      %p350 = pneg %p224
      %s351 = smul.u32 8, %s23
      %p352 = scmp.lt.s32.totalorder %s22, 1
      %s353 = scalar_select %p352, %s22, 1
      %p354 = scmp.lt.s32.totalorder %s351, 7
      %s355 = scalar_select %p354, %s351, 7
      %s356 = smul.addr %s353, 8
      %s357 = sadd.s32 %s355, %s356
      %s358 = smul.addr %s357, 4
      %s359 = scalar_lea.vmem %s7, %s358
      %s360 = smul.u32 8, %s23
      %p361 = scmp.lt.s32.totalorder %s22, 1
      %s362 = scalar_select %p361, %s22, 1
      %p363 = scmp.lt.s32.totalorder %s360, 7
      %s364 = scalar_select %p363, %s360, 7
      %s365 = smul.addr %s362, 8
      %s366 = sadd.s32 %s364, %s365
      %s367 = smul.addr %s366, 4
      %s368 = scalar_lea.vmem %s0, %s367
      %s369 = smul.u32 8, %s23
      %p370 = scmp.lt.s32.totalorder %s22, 1
      %s371 = scalar_select %p370, %s22, 1
      %s372 = smul.addr %s371, 8
      %s373 = smul.addr %s372, 4
      %s374 = scalar_lea.vmem %s1, %s373
      %p375 = scmp.lt.s32.totalorder %s22, 1
      %s376 = scalar_select %p375, %s22, 1
      %s377 = smul.addr %s376, 8
      %s378 = smul.addr %s377, 4
      %s379 = scalar_lea.vmem %s2, %s378
      %s380 = smul.u32 8, %s23
      %p381 = scmp.lt.s32.totalorder %s380, 7
      %s382 = scalar_select %p381, %s380, 7
      %s383 = smul.addr %s382, 8
      %s384 = scalar_lea.vmem %s3, %s383
      %s385 = smul.u32 8, %s23
      %s386 = smul.u32 8, %s23
      %p387 = scmp.lt.s32.totalorder %s386, 7
      %s388 = scalar_select %p387, %s386, 7
      %s389 = smul.addr %s388, 8
      %s390 = scalar_lea.vmem %s4, %s389
      %s391 = smul.u32 8, %s23
      %s392 = smul.u32 8, %s23
      %p393 = scmp.lt.s32.totalorder %s22, 1
      %s394 = scalar_select %p393, %s22, 1
      %p395 = scmp.lt.s32.totalorder %s392, 7
      %s396 = scalar_select %p395, %s392, 7
      %s397 = smul.addr %s394, 8
      %s398 = sadd.s32 %s396, %s397
      %s399 = smul.addr %s398, 4
      %s400 = scalar_lea.vmem %s7, %s399
      %s401 = smul.u32 8, %s23
      %v403 = vld [vmem:[%s368] sm:$0xf]
      %v404 = vld [vmem:[%s368 + $0x4] sm:$0xf]
      %v405 = vld [vmem:[%s368 + $0x8] sm:$0xf]
      %v406 = vld [vmem:[%s368 + $0xc] sm:$0xf]
      %v407 = vld [vmem:[%s368 + $0x10] sm:$0xf]
      %v408 = vld [vmem:[%s368 + $0x14] sm:$0xf]
      %v409 = vld [vmem:[%s368 + $0x18] sm:$0xf]
      %v410 = vld [vmem:[%s368 + $0x1c] sm:$0xf]
      %v411 = vunpack.c.l.bf16 %v403
      %v412 = vunpack.c.l.bf16 %v404
      %v413 = vunpack.c.l.bf16 %v405
      %v414 = vunpack.c.l.bf16 %v406
      %v415 = vunpack.c.l.bf16 %v407
      %v416 = vunpack.c.l.bf16 %v408
      %v417 = vunpack.c.l.bf16 %v409
      %v418 = vunpack.c.l.bf16 %v410
      %v419 = vld [vmem:[%s374] sm:$0xf]
      %v420 = vld [vmem:[%s374 + $0x4] sm:$0xf]
      %v421 = vld [vmem:[%s374 + $0x8] sm:$0xf]
      %v422 = vld [vmem:[%s374 + $0xc] sm:$0xf]
      %v423 = vld [vmem:[%s374 + $0x10] sm:$0xf]
      %v424 = vld [vmem:[%s374 + $0x14] sm:$0xf]
      %v425 = vld [vmem:[%s374 + $0x18] sm:$0xf]
      %v426 = vld [vmem:[%s374 + $0x1c] sm:$0xf]
      %v427 = vunpack.c.l.bf16 %v419
      %v428 = vunpack.c.l.bf16 %v420
      %v429 = vunpack.c.l.bf16 %v421
      %v430 = vunpack.c.l.bf16 %v422
      %v431 = vunpack.c.l.bf16 %v423
      %v432 = vunpack.c.l.bf16 %v424
      %v433 = vunpack.c.l.bf16 %v425
      %v434 = vunpack.c.l.bf16 %v426
      %v435 = vld [vmem:[%s379] sm:$0xf]
      %v436 = vld [vmem:[%s379 + $0x4] sm:$0xf]
      %v437 = vld [vmem:[%s379 + $0x8] sm:$0xf]
      %v438 = vld [vmem:[%s379 + $0xc] sm:$0xf]
      %v439 = vld [vmem:[%s379 + $0x10] sm:$0xf]
      %v440 = vld [vmem:[%s379 + $0x14] sm:$0xf]
      %v441 = vld [vmem:[%s379 + $0x18] sm:$0xf]
      %v442 = vld [vmem:[%s379 + $0x1c] sm:$0xf]
      %v443 = vld [vmem:[%s384] sm:$0xff]
      %v444 = vld [vmem:[%s384 + $0x8] sm:$0xff]
      %v445 = vld [vmem:[%s384 + $0x10] sm:$0xff]
      %v446 = vld [vmem:[%s384 + $0x18] sm:$0xff]
      %v447 = vld [vmem:[%s384 + $0x20] sm:$0xff]
      %v448 = vld [vmem:[%s384 + $0x28] sm:$0xff]
      %v449 = vld [vmem:[%s384 + $0x30] sm:$0xff]
      %v450 = vld [vmem:[%s384 + $0x38] sm:$0xff]
      %v451 = vld [vmem:[%s390] sm:$0xff]
      %v452 = vld [vmem:[%s390 + $0x8] sm:$0xff]
      %v453 = vld [vmem:[%s390 + $0x10] sm:$0xff]
      %v454 = vld [vmem:[%s390 + $0x18] sm:$0xff]
      %v455 = vld [vmem:[%s390 + $0x20] sm:$0xff]
      %v456 = vld [vmem:[%s390 + $0x28] sm:$0xff]
      %v457 = vld [vmem:[%s390 + $0x30] sm:$0xff]
      %v458 = vld [vmem:[%s390 + $0x38] sm:$0xff]
      %v459 = vld [vmem:[%s5] sm:$0xff]
      %v460 = vld [vmem:[%s5 + $0x8] sm:$0xff]
      %v461 = vld [vmem:[%s5 + $0x10] sm:$0xff]
      %v462 = vld [vmem:[%s5 + $0x18] sm:$0xff]
      %v463 = vld [vmem:[%s5 + $0x20] sm:$0xff]
      %v464 = vld [vmem:[%s5 + $0x28] sm:$0xff]
      %v465 = vld [vmem:[%s5 + $0x30] sm:$0xff]
      %v466 = vld [vmem:[%s5 + $0x38] sm:$0xff]
      %v467 = vld [vmem:[%s6] sm:$0xff]
      %v468 = vld [vmem:[%s6 + $0x8] sm:$0xff]
      %v469 = vld [vmem:[%s6 + $0x10] sm:$0xff]
      %v470 = vld [vmem:[%s6 + $0x18] sm:$0xff]
      %v471 = vld [vmem:[%s6 + $0x20] sm:$0xff]
      %v472 = vld [vmem:[%s6 + $0x28] sm:$0xff]
      %v473 = vld [vmem:[%s6 + $0x30] sm:$0xff]
      %v474 = vld [vmem:[%s6 + $0x38] sm:$0xff]
      %s475 = smul.u32 %s23, 64
      %v476 = vlaneseq
      %v477 = vshrl.u32 %v476, 7
      %v478 = vadd.s32 %v477, 8
      %v479 = vadd.s32 %v477, 16
      %v480 = vadd.s32 %v477, 24
      %v481 = vadd.s32 %v477, 32
      %v482 = vadd.s32 %v477, 40
      %v483 = vadd.s32 %v477, 48
      %v484 = vadd.s32 %v477, 56
      %v485 = vstv %s475
      %v486 = vadd.s32 %v485, %v477
      %v487 = vadd.s32 %v485, %v478
      %v488 = vadd.s32 %v485, %v479
      %v489 = vadd.s32 %v485, %v480
      %v490 = vadd.s32 %v485, %v481
      %v491 = vadd.s32 %v485, %v482
      %v492 = vadd.s32 %v485, %v483
      %v493 = vadd.s32 %v485, %v484
      %v494 = vlaneseq
      %v495 = vand.u32 %v494, 127
      %vm496 = vcmp.le.s32.totalorder %v495, %v486
      %vm497 = vcmp.le.s32.totalorder %v495, %v487
      %vm498 = vcmp.le.s32.totalorder %v495, %v488
      %vm499 = vcmp.le.s32.totalorder %v495, %v489
      %vm500 = vcmp.le.s32.totalorder %v495, %v490
      %vm501 = vcmp.le.s32.totalorder %v495, %v491
      %vm502 = vcmp.le.s32.totalorder %v495, %v492
      %vm503 = vcmp.le.s32.totalorder %v495, %v493
      %v504 = vsub.s32 %v486, 16
      %v505 = vsub.s32 %v487, 16
      %v506 = vsub.s32 %v488, 16
      %v507 = vsub.s32 %v489, 16
      %v508 = vsub.s32 %v490, 16
      %v509 = vsub.s32 %v491, 16
      %v510 = vsub.s32 %v492, 16
      %v511 = vsub.s32 %v493, 16
      %vm512 = vcmp.gt.s32.totalorder %v495, %v504
      %vm513 = vcmp.gt.s32.totalorder %v495, %v505
      %vm514 = vcmp.gt.s32.totalorder %v495, %v506
      %vm515 = vcmp.gt.s32.totalorder %v495, %v507
      %vm516 = vcmp.gt.s32.totalorder %v495, %v508
      %vm517 = vcmp.gt.s32.totalorder %v495, %v509
      %vm518 = vcmp.gt.s32.totalorder %v495, %v510
      %vm519 = vcmp.gt.s32.totalorder %v495, %v511
      %vm520 = vmand %vm496, %vm512
      %vm521 = vmand %vm497, %vm513
      %vm522 = vmand %vm498, %vm514
      %vm523 = vmand %vm499, %vm515
      %vm524 = vmand %vm500, %vm516
      %vm525 = vmand %vm501, %vm517
      %vm526 = vmand %vm502, %vm518
      %vm527 = vmand %vm503, %vm519
      %v528 = vmul.f32 %v427, %v459
      %v529 = vmul.f32 %v428, %v460
      %v530 = vmul.f32 %v429, %v461
      %v531 = vmul.f32 %v430, %v462
      %v532 = vmul.f32 %v431, %v463
      %v533 = vmul.f32 %v432, %v464
      %v534 = vmul.f32 %v433, %v465
      %v535 = vmul.f32 %v434, %v466
      %544 = vrot.lane.b32.xlu0 %v467, 16
      %v545 = vpop.permute.xlu0 %544
      %546 = vrot.lane.b32.xlu0 %v468, 16
      %v547 = vpop.permute.xlu0 %546
      %548 = vrot.lane.b32.xlu0 %v469, 16
      %v549 = vpop.permute.xlu0 %548
      %550 = vrot.lane.b32.xlu0 %v470, 16
      %v551 = vpop.permute.xlu0 %550
      %552 = vrot.lane.b32.xlu0 %v471, 16
      %v553 = vpop.permute.xlu0 %552
      %554 = vrot.lane.b32.xlu0 %v472, 16
      %v555 = vpop.permute.xlu0 %554
      %556 = vrot.lane.b32.xlu0 %v473, 16
      %v557 = vpop.permute.xlu0 %556
      %558 = vrot.lane.b32.xlu0 %v474, 16
      %v559 = vpop.permute.xlu0 %558
      %v568 = vmul.f32 %v427, %v545
      %v569 = vmul.f32 %v428, %v547
      %v570 = vmul.f32 %v429, %v549
      %v571 = vmul.f32 %v430, %v551
      %v572 = vmul.f32 %v431, %v553
      %v573 = vmul.f32 %v432, %v555
      %v574 = vmul.f32 %v433, %v557
      %v575 = vmul.f32 %v434, %v559
      %584 = vrot.lane.b32.xlu0 %v568, 112
      %v585 = vpop.permute.xlu0 %584
      %586 = vrot.lane.b32.xlu0 %v569, 112
      %v587 = vpop.permute.xlu0 %586
      %588 = vrot.lane.b32.xlu0 %v570, 112
      %v589 = vpop.permute.xlu0 %588
      %590 = vrot.lane.b32.xlu0 %v571, 112
      %v591 = vpop.permute.xlu0 %590
      %592 = vrot.lane.b32.xlu0 %v572, 112
      %v593 = vpop.permute.xlu0 %592
      %594 = vrot.lane.b32.xlu0 %v573, 112
      %v595 = vpop.permute.xlu0 %594
      %596 = vrot.lane.b32.xlu0 %v574, 112
      %v597 = vpop.permute.xlu0 %596
      %598 = vrot.lane.b32.xlu0 %v575, 112
      %v599 = vpop.permute.xlu0 %598
      %v608 = vsub.f32 %v528, %v585
      %v609 = vsub.f32 %v529, %v587
      %v610 = vsub.f32 %v530, %v589
      %v611 = vsub.f32 %v531, %v591
      %v612 = vsub.f32 %v532, %v593
      %v613 = vsub.f32 %v533, %v595
      %v614 = vsub.f32 %v534, %v597
      %v615 = vsub.f32 %v535, %v599
      %v616 = vmul.f32 %v427, %v467
      %v617 = vmul.f32 %v428, %v468
      %v618 = vmul.f32 %v429, %v469
      %v619 = vmul.f32 %v430, %v470
      %v620 = vmul.f32 %v431, %v471
      %v621 = vmul.f32 %v432, %v472
      %v622 = vmul.f32 %v433, %v473
      %v623 = vmul.f32 %v434, %v474
      %632 = vrot.lane.b32.xlu0 %v459, 16
      %v633 = vpop.permute.xlu0 %632
      %634 = vrot.lane.b32.xlu0 %v460, 16
      %v635 = vpop.permute.xlu0 %634
      %636 = vrot.lane.b32.xlu0 %v461, 16
      %v637 = vpop.permute.xlu0 %636
      %638 = vrot.lane.b32.xlu0 %v462, 16
      %v639 = vpop.permute.xlu0 %638
      %640 = vrot.lane.b32.xlu0 %v463, 16
      %v641 = vpop.permute.xlu0 %640
      %642 = vrot.lane.b32.xlu0 %v464, 16
      %v643 = vpop.permute.xlu0 %642
      %644 = vrot.lane.b32.xlu0 %v465, 16
      %v645 = vpop.permute.xlu0 %644
      %646 = vrot.lane.b32.xlu0 %v466, 16
      %v647 = vpop.permute.xlu0 %646
      %v656 = vmul.f32 %v427, %v633
      %v657 = vmul.f32 %v428, %v635
      %v658 = vmul.f32 %v429, %v637
      %v659 = vmul.f32 %v430, %v639
      %v660 = vmul.f32 %v431, %v641
      %v661 = vmul.f32 %v432, %v643
      %v662 = vmul.f32 %v433, %v645
      %v663 = vmul.f32 %v434, %v647
      %672 = vrot.lane.b32.xlu0 %v656, 112
      %v673 = vpop.permute.xlu0 %672
      %674 = vrot.lane.b32.xlu0 %v657, 112
      %v675 = vpop.permute.xlu0 %674
      %676 = vrot.lane.b32.xlu0 %v658, 112
      %v677 = vpop.permute.xlu0 %676
      %678 = vrot.lane.b32.xlu0 %v659, 112
      %v679 = vpop.permute.xlu0 %678
      %680 = vrot.lane.b32.xlu0 %v660, 112
      %v681 = vpop.permute.xlu0 %680
      %682 = vrot.lane.b32.xlu0 %v661, 112
      %v683 = vpop.permute.xlu0 %682
      %684 = vrot.lane.b32.xlu0 %v662, 112
      %v685 = vpop.permute.xlu0 %684
      %686 = vrot.lane.b32.xlu0 %v663, 112
      %v687 = vpop.permute.xlu0 %686
      %v696 = vadd.f32 %v616, %v673
      %v697 = vadd.f32 %v617, %v675
      %v698 = vadd.f32 %v618, %v677
      %v699 = vadd.f32 %v619, %v679
      %v700 = vadd.f32 %v620, %v681
      %v701 = vadd.f32 %v621, %v683
      %v702 = vadd.f32 %v622, %v685
      %v703 = vadd.f32 %v623, %v687
      %712 = vrot.lane.b32.xlu0 %v696, 16
      %v713 = vpop.permute.xlu0 %712
      %714 = vrot.lane.b32.xlu0 %v697, 16
      %v715 = vpop.permute.xlu0 %714
      %716 = vrot.lane.b32.xlu0 %v698, 16
      %v717 = vpop.permute.xlu0 %716
      %718 = vrot.lane.b32.xlu0 %v699, 16
      %v719 = vpop.permute.xlu0 %718
      %720 = vrot.lane.b32.xlu0 %v700, 16
      %v721 = vpop.permute.xlu0 %720
      %722 = vrot.lane.b32.xlu0 %v701, 16
      %v723 = vpop.permute.xlu0 %722
      %724 = vrot.lane.b32.xlu0 %v702, 16
      %v725 = vpop.permute.xlu0 %724
      %726 = vrot.lane.b32.xlu0 %v703, 16
      %v727 = vpop.permute.xlu0 %726
      %vm736 = vcmask 130048
      %v737 = vsel %vm736, %v608, %v713
      %v738 = vsel %vm736, %v609, %v715
      %v739 = vsel %vm736, %v610, %v717
      %v740 = vsel %vm736, %v611, %v719
      %v741 = vsel %vm736, %v612, %v721
      %v742 = vsel %vm736, %v613, %v723
      %v743 = vsel %vm736, %v614, %v725
      %v744 = vsel %vm736, %v615, %v727
      %v745 = vpack.c.bf16 %v738, %v737
      %v746 = vpack.c.bf16 %v740, %v739
      %v747 = vpack.c.bf16 %v742, %v741
      %v748 = vpack.c.bf16 %v744, %v743
      %v749 = vmul.f32 %v411, %v443
      %v750 = vmul.f32 %v412, %v444
      %v751 = vmul.f32 %v413, %v445
      %v752 = vmul.f32 %v414, %v446
      %v753 = vmul.f32 %v415, %v447
      %v754 = vmul.f32 %v416, %v448
      %v755 = vmul.f32 %v417, %v449
      %v756 = vmul.f32 %v418, %v450
      %765 = vrot.lane.b32.xlu0 %v451, 16
      %v766 = vpop.permute.xlu0 %765
      %767 = vrot.lane.b32.xlu0 %v452, 16
      %v768 = vpop.permute.xlu0 %767
      %769 = vrot.lane.b32.xlu0 %v453, 16
      %v770 = vpop.permute.xlu0 %769
      %771 = vrot.lane.b32.xlu0 %v454, 16
      %v772 = vpop.permute.xlu0 %771
      %773 = vrot.lane.b32.xlu0 %v455, 16
      %v774 = vpop.permute.xlu0 %773
      %775 = vrot.lane.b32.xlu0 %v456, 16
      %v776 = vpop.permute.xlu0 %775
      %777 = vrot.lane.b32.xlu0 %v457, 16
      %v778 = vpop.permute.xlu0 %777
      %779 = vrot.lane.b32.xlu0 %v458, 16
      %v780 = vpop.permute.xlu0 %779
      %v789 = vmul.f32 %v411, %v766
      %v790 = vmul.f32 %v412, %v768
      %v791 = vmul.f32 %v413, %v770
      %v792 = vmul.f32 %v414, %v772
      %v793 = vmul.f32 %v415, %v774
      %v794 = vmul.f32 %v416, %v776
      %v795 = vmul.f32 %v417, %v778
      %v796 = vmul.f32 %v418, %v780
      %805 = vrot.lane.b32.xlu0 %v789, 112
      %v806 = vpop.permute.xlu0 %805
      %807 = vrot.lane.b32.xlu0 %v790, 112
      %v808 = vpop.permute.xlu0 %807
      %809 = vrot.lane.b32.xlu0 %v791, 112
      %v810 = vpop.permute.xlu0 %809
      %811 = vrot.lane.b32.xlu0 %v792, 112
      %v812 = vpop.permute.xlu0 %811
      %813 = vrot.lane.b32.xlu0 %v793, 112
      %v814 = vpop.permute.xlu0 %813
      %815 = vrot.lane.b32.xlu0 %v794, 112
      %v816 = vpop.permute.xlu0 %815
      %817 = vrot.lane.b32.xlu0 %v795, 112
      %v818 = vpop.permute.xlu0 %817
      %819 = vrot.lane.b32.xlu0 %v796, 112
      %v820 = vpop.permute.xlu0 %819
      %v829 = vsub.f32 %v749, %v806
      %v830 = vsub.f32 %v750, %v808
      %v831 = vsub.f32 %v751, %v810
      %v832 = vsub.f32 %v752, %v812
      %v833 = vsub.f32 %v753, %v814
      %v834 = vsub.f32 %v754, %v816
      %v835 = vsub.f32 %v755, %v818
      %v836 = vsub.f32 %v756, %v820
      %v837 = vmul.f32 %v411, %v451
      %v838 = vmul.f32 %v412, %v452
      %v839 = vmul.f32 %v413, %v453
      %v840 = vmul.f32 %v414, %v454
      %v841 = vmul.f32 %v415, %v455
      %v842 = vmul.f32 %v416, %v456
      %v843 = vmul.f32 %v417, %v457
      %v844 = vmul.f32 %v418, %v458
      %853 = vrot.lane.b32.xlu0 %v443, 16
      %v854 = vpop.permute.xlu0 %853
      %855 = vrot.lane.b32.xlu0 %v444, 16
      %v856 = vpop.permute.xlu0 %855
      %857 = vrot.lane.b32.xlu0 %v445, 16
      %v858 = vpop.permute.xlu0 %857
      %859 = vrot.lane.b32.xlu0 %v446, 16
      %v860 = vpop.permute.xlu0 %859
      %861 = vrot.lane.b32.xlu0 %v447, 16
      %v862 = vpop.permute.xlu0 %861
      %863 = vrot.lane.b32.xlu0 %v448, 16
      %v864 = vpop.permute.xlu0 %863
      %865 = vrot.lane.b32.xlu0 %v449, 16
      %v866 = vpop.permute.xlu0 %865
      %867 = vrot.lane.b32.xlu0 %v450, 16
      %v868 = vpop.permute.xlu0 %867
      %v877 = vmul.f32 %v411, %v854
      %v878 = vmul.f32 %v412, %v856
      %v879 = vmul.f32 %v413, %v858
      %v880 = vmul.f32 %v414, %v860
      %v881 = vmul.f32 %v415, %v862
      %v882 = vmul.f32 %v416, %v864
      %v883 = vmul.f32 %v417, %v866
      %v884 = vmul.f32 %v418, %v868
      %893 = vrot.lane.b32.xlu0 %v877, 112
      %v894 = vpop.permute.xlu0 %893
      %895 = vrot.lane.b32.xlu0 %v878, 112
      %v896 = vpop.permute.xlu0 %895
      %897 = vrot.lane.b32.xlu0 %v879, 112
      %v898 = vpop.permute.xlu0 %897
      %899 = vrot.lane.b32.xlu0 %v880, 112
      %v900 = vpop.permute.xlu0 %899
      %901 = vrot.lane.b32.xlu0 %v881, 112
      %v902 = vpop.permute.xlu0 %901
      %903 = vrot.lane.b32.xlu0 %v882, 112
      %v904 = vpop.permute.xlu0 %903
      %905 = vrot.lane.b32.xlu0 %v883, 112
      %v906 = vpop.permute.xlu0 %905
      %907 = vrot.lane.b32.xlu0 %v884, 112
      %v908 = vpop.permute.xlu0 %907
      %v917 = vadd.f32 %v837, %v894
      %v918 = vadd.f32 %v838, %v896
      %v919 = vadd.f32 %v839, %v898
      %v920 = vadd.f32 %v840, %v900
      %v921 = vadd.f32 %v841, %v902
      %v922 = vadd.f32 %v842, %v904
      %v923 = vadd.f32 %v843, %v906
      %v924 = vadd.f32 %v844, %v908
      %933 = vrot.lane.b32.xlu0 %v917, 16
      %v934 = vpop.permute.xlu0 %933
      %935 = vrot.lane.b32.xlu0 %v918, 16
      %v936 = vpop.permute.xlu0 %935
      %937 = vrot.lane.b32.xlu0 %v919, 16
      %v938 = vpop.permute.xlu0 %937
      %939 = vrot.lane.b32.xlu0 %v920, 16
      %v940 = vpop.permute.xlu0 %939
      %941 = vrot.lane.b32.xlu0 %v921, 16
      %v942 = vpop.permute.xlu0 %941
      %943 = vrot.lane.b32.xlu0 %v922, 16
      %v944 = vpop.permute.xlu0 %943
      %945 = vrot.lane.b32.xlu0 %v923, 16
      %v946 = vpop.permute.xlu0 %945
      %947 = vrot.lane.b32.xlu0 %v924, 16
      %v948 = vpop.permute.xlu0 %947
      %v957 = vsel %vm736, %v829, %v934
      %v958 = vsel %vm736, %v830, %v936
      %v959 = vsel %vm736, %v831, %v938
      %v960 = vsel %vm736, %v832, %v940
      %v961 = vsel %vm736, %v833, %v942
      %v962 = vsel %vm736, %v834, %v944
      %v963 = vsel %vm736, %v835, %v946
      %v964 = vsel %vm736, %v836, %v948
      %v965 = vpack.c.bf16 %v958, %v957
      %v966 = vpack.c.bf16 %v960, %v959
      %v967 = vpack.c.bf16 %v962, %v961
      %v968 = vpack.c.bf16 %v964, %v963
      %vm969 = vcmask 261120
      %v971 = vsel %vm969, %v965, 0
      %v974 = vsel %vm969, %v966, 0
      %v977 = vsel %vm969, %v967, 0
      %v980 = vsel %vm969, %v968, 0
      %v983 = vsel %vm969, %v745, 0
      %v986 = vsel %vm969, %v746, 0
      %v989 = vsel %vm969, %v747, 0
      %v992 = vsel %vm969, %v748, 0
      %994 = vmatprep.subr.bf16.mxu0 0
      %995 = vmatpush1.bf16.xpose.msra.mxu0 %v983
      %996 = vmatprep.subr.bf16.mxu0 0
      %997 = vmatpush1.bf16.xpose.msra.mxu0 %v986
      %998 = vmatprep.subr.bf16.mxu0 0
      %999 = vmatpush1.bf16.xpose.msra.mxu0 %v989
      %1000 = vmatprep.subr.bf16.mxu0 0
      %1001 = vmatpush1.bf16.xpose.msra.mxu0 %v992
      %1002 = vmatprep.subr.bf16.mxu0 0
      %1003 = vmatpush1.bf16.xpose.msra.mxu0 0
      %1004 = vmatprep.subr.bf16.mxu0 0
      %1005 = vmatpush1.bf16.xpose.msra.mxu0 0
      %1006 = vmatprep.subr.bf16.mxu0 0
      %1007 = vmatpush1.bf16.xpose.msra.mxu0 0
      %1008 = vmatprep.subr.bf16.mxu0 0
      %1009 = vmatpush1.bf16.xpose.msra.mxu0 0
      %1010 = vmatprep.subr.bf16.mxu0 0
      %1011 = vmatpush1.bf16.xpose.msra.mxu0 0
      %1012 = vmatprep.subr.bf16.mxu0 0
      %1013 = vmatpush1.bf16.xpose.msra.mxu0 0
      %1014 = vmatprep.subr.bf16.mxu0 0
      %1015 = vmatpush1.bf16.xpose.msra.mxu0 0
      %1016 = vmatprep.subr.bf16.mxu0 0
      %1017 = vmatpush1.bf16.xpose.msra.mxu0 0
      %1018 = vmatprep.subr.bf16.mxu0 0
      %1019 = vmatpush1.bf16.xpose.msra.mxu0 0
      %1020 = vmatprep.subr.bf16.mxu0 0
      %1021 = vmatpush1.bf16.xpose.msra.mxu0 0
      %1022 = vmatprep.subr.bf16.mxu0 0
      %1023 = vmatpush1.bf16.xpose.msra.mxu0 0
      %1024 = vmatprep.subr.bf16.mxu0 0
      %1025 = vmatpush1.bf16.xpose.msra.mxu0 0
      %1026 = vmatprep.mubr.bf16.mxu0 0
      %1027 = vmatmul.mubr.bf16.gmra.mrb[0].mxu0 %v971
      %v1028 = vpop.f32.mrb[0].mxu0
      %v1029 = vadd.f32 0.0, %v1028
      %v1030 = vpop.f32.mrb[0].mxu0
      %v1031 = vpop.f32.mrb[0].mxu0
      %v1032 = vadd.f32 0.0, %v1031
      %v1033 = vpop.f32.mrb[0].mxu0
      %1034 = vmatprep.mubr.bf16.mxu0 0
      %1035 = vmatmul.mubr.bf16.gmra.mrb[0].mxu0 %v974
      %v1036 = vpop.f32.mrb[0].mxu0
      %v1037 = vadd.f32 0.0, %v1036
      %v1038 = vpop.f32.mrb[0].mxu0
      %v1039 = vpop.f32.mrb[0].mxu0
      %v1040 = vadd.f32 0.0, %v1039
      %v1041 = vpop.f32.mrb[0].mxu0
      %1042 = vmatprep.mubr.bf16.mxu0 0
      %1043 = vmatmul.mubr.bf16.gmra.mrb[0].mxu0 %v977
      %v1044 = vpop.f32.mrb[0].mxu0
      %v1045 = vadd.f32 0.0, %v1044
      %v1046 = vpop.f32.mrb[0].mxu0
      %v1047 = vpop.f32.mrb[0].mxu0
      %v1048 = vadd.f32 0.0, %v1047
      %v1049 = vpop.f32.mrb[0].mxu0
      %1050 = vmatprep.mubr.bf16.mxu0 0
      %1051 = vmatmul.mubr.bf16.gmra.mrb[0].mxu0 %v980
      %v1052 = vpop.f32.mrb[0].mxu0
      %v1053 = vadd.f32 0.0, %v1052
      %v1054 = vpop.f32.mrb[0].mxu0
      %v1055 = vpop.f32.mrb[0].mxu0
      %v1056 = vadd.f32 0.0, %v1055
      %v1057 = vpop.f32.mrb[0].mxu0
      %1058 = vdwg.mxu0
      %v1059 = vmul.f32 %v1029, 0.17677669
      %v1060 = vmul.f32 %v1032, 0.17677669
      %v1061 = vmul.f32 %v1037, 0.17677669
      %v1062 = vmul.f32 %v1040, 0.17677669
      %v1063 = vmul.f32 %v1045, 0.17677669
      %v1064 = vmul.f32 %v1048, 0.17677669
      %v1065 = vmul.f32 %v1053, 0.17677669
      %v1066 = vmul.f32 %v1056, 0.17677669
      %v1067 = vsel %vm520, %v1059, -1e+30
      %v1068 = vsel %vm521, %v1060, -1e+30
      %v1069 = vsel %vm522, %v1061, -1e+30
      %v1070 = vsel %vm523, %v1062, -1e+30
      %v1071 = vsel %vm524, %v1063, -1e+30
      %v1072 = vsel %vm525, %v1064, -1e+30
      %v1073 = vsel %vm526, %v1065, -1e+30
      %v1074 = vsel %vm527, %v1066, -1e+30
      %vm1075 = vcmask 523264
      %v1076 = vsel %vm1075, %v1067, -inf
      %1077 = vmax.xlane.f32.xlu0 %v1076
      %v1078 = vpop.xlane.xlu0 %1077
      %v1079 = vsel %vm1075, %v1068, -inf
      %1080 = vmax.xlane.f32.xlu0 %v1079
      %v1081 = vpop.xlane.xlu0 %1080
      %v1082 = vsel %vm1075, %v1069, -inf
      %1083 = vmax.xlane.f32.xlu0 %v1082
      %v1084 = vpop.xlane.xlu0 %1083
      %v1085 = vsel %vm1075, %v1070, -inf
      %1086 = vmax.xlane.f32.xlu0 %v1085
      %v1087 = vpop.xlane.xlu0 %1086
      %v1088 = vsel %vm1075, %v1071, -inf
      %1089 = vmax.xlane.f32.xlu0 %v1088
      %v1090 = vpop.xlane.xlu0 %1089
      %v1091 = vsel %vm1075, %v1072, -inf
      %1092 = vmax.xlane.f32.xlu0 %v1091
      %v1093 = vpop.xlane.xlu0 %1092
      %v1094 = vsel %vm1075, %v1073, -inf
      %1095 = vmax.xlane.f32.xlu0 %v1094
      %v1096 = vpop.xlane.xlu0 %1095
      %v1097 = vsel %vm1075, %v1074, -inf
      %1098 = vmax.xlane.f32.xlu0 %v1097
      %v1099 = vpop.xlane.xlu0 %1098
      %v1100 = vsub.f32 %v1067, %v1078
      %v1101 = vsub.f32 %v1068, %v1081
      %v1102 = vsub.f32 %v1069, %v1084
      %v1103 = vsub.f32 %v1070, %v1087
      %v1104 = vsub.f32 %v1071, %v1090
      %v1105 = vsub.f32 %v1072, %v1093
      %v1106 = vsub.f32 %v1073, %v1096
      %v1107 = vsub.f32 %v1074, %v1099
      %v1108 = vmul.f32 %v1100, 1.442695
      %v1109 = vpow.pop %v1108
      %v1110 = vmul.f32 %v1101, 1.442695
      %v1111 = vpow.pop %v1110
      %v1112 = vmul.f32 %v1102, 1.442695
      %v1113 = vpow.pop %v1112
      %v1114 = vmul.f32 %v1103, 1.442695
      %v1115 = vpow.pop %v1114
      %v1116 = vmul.f32 %v1104, 1.442695
      %v1117 = vpow.pop %v1116
      %v1118 = vmul.f32 %v1105, 1.442695
      %v1119 = vpow.pop %v1118
      %v1120 = vmul.f32 %v1106, 1.442695
      %v1121 = vpow.pop %v1120
      %v1122 = vmul.f32 %v1107, 1.442695
      %v1123 = vpow.pop %v1122
      %v1124 = vsel %vm1075, %v1109, 0.0
      %1125 = vadd.xlane.f32.xlu0 %v1124
      %v1126 = vpop.xlane.xlu0 %1125
      %v1127 = vsel %vm1075, %v1111, 0.0
      %1128 = vadd.xlane.f32.xlu0 %v1127
      %v1129 = vpop.xlane.xlu0 %1128
      %v1130 = vsel %vm1075, %v1113, 0.0
      %1131 = vadd.xlane.f32.xlu0 %v1130
      %v1132 = vpop.xlane.xlu0 %1131
      %v1133 = vsel %vm1075, %v1115, 0.0
      %1134 = vadd.xlane.f32.xlu0 %v1133
      %v1135 = vpop.xlane.xlu0 %1134
      %v1136 = vsel %vm1075, %v1117, 0.0
      %1137 = vadd.xlane.f32.xlu0 %v1136
      %v1138 = vpop.xlane.xlu0 %1137
      %v1139 = vsel %vm1075, %v1119, 0.0
      %1140 = vadd.xlane.f32.xlu0 %v1139
      %v1141 = vpop.xlane.xlu0 %1140
      %v1142 = vsel %vm1075, %v1121, 0.0
      %1143 = vadd.xlane.f32.xlu0 %v1142
      %v1144 = vpop.xlane.xlu0 %1143
      %v1145 = vsel %vm1075, %v1123, 0.0
      %1146 = vadd.xlane.f32.xlu0 %v1145
      %v1147 = vpop.xlane.xlu0 %1146
      %v1148 = vrcp.pop %v1126
      %v1149 = vrcp.pop %v1129
      %v1150 = vrcp.pop %v1132
      %v1151 = vrcp.pop %v1135
      %v1152 = vrcp.pop %v1138
      %v1153 = vrcp.pop %v1141
      %v1154 = vrcp.pop %v1144
      %v1155 = vrcp.pop %v1147
      %v1156 = vmul.f32 %v1109, %v1148
      %v1157 = vmul.f32 %v1111, %v1149
      %v1158 = vmul.f32 %v1113, %v1150
      %v1159 = vmul.f32 %v1115, %v1151
      %v1160 = vmul.f32 %v1117, %v1152
      %v1161 = vmul.f32 %v1119, %v1153
      %v1162 = vmul.f32 %v1121, %v1154
      %v1163 = vmul.f32 %v1123, %v1155
      %v1164 = vpack.c.bf16 %v1157, %v1156
      %v1165 = vpack.c.bf16 %v1159, %v1158
      %v1166 = vpack.c.bf16 %v1161, %v1160
      %v1167 = vpack.c.bf16 %v1163, %v1162
      %v1176 = vunpack.c.l.b16 %v435
      %v1177 = vunpack.c.l.b16 %v436
      %v1178 = vunpack.c.l.b16 %v437
      %v1179 = vunpack.c.l.b16 %v438
      %v1180 = vunpack.c.l.b16 %v439
      %v1181 = vunpack.c.l.b16 %v440
      %v1182 = vunpack.c.l.b16 %v441
      %v1183 = vunpack.c.l.b16 %v442
      %v1184 = vpack.c.b16 %v1177, %v1176
      %v1185 = vpack.c.b16 %v1179, %v1178
      %v1186 = vpack.c.b16 %v1181, %v1180
      %v1187 = vpack.c.b16 %v1183, %v1182
      %v1193 = vsel %vm1075, %v1164, 0
      %v1196 = vsel %vm1075, %v1165, 0
      %v1199 = vsel %vm1075, %v1166, 0
      %v1202 = vsel %vm1075, %v1167, 0
      %1204 = vmatprep.subr.bf16.mxu0 0
      %1205 = vmatpush1.bf16.msra.mxu0 %v1184
      %1206 = vmatprep.subr.bf16.mxu0 0
      %1207 = vmatpush1.bf16.msra.mxu0 %v1185
      %1208 = vmatprep.subr.bf16.mxu0 0
      %1209 = vmatpush1.bf16.msra.mxu0 %v1186
      %1210 = vmatprep.subr.bf16.mxu0 0
      %1211 = vmatpush1.bf16.msra.mxu0 %v1187
      %1212 = vmatprep.subr.bf16.mxu0 0
      %1213 = vmatpush1.bf16.msra.mxu0 0
      %1214 = vmatprep.subr.bf16.mxu0 0
      %1215 = vmatpush1.bf16.msra.mxu0 0
      %1216 = vmatprep.subr.bf16.mxu0 0
      %1217 = vmatpush1.bf16.msra.mxu0 0
      %1218 = vmatprep.subr.bf16.mxu0 0
      %1219 = vmatpush1.bf16.msra.mxu0 0
      %1220 = vmatprep.subr.bf16.mxu0 0
      %1221 = vmatpush1.bf16.msra.mxu0 0
      %1222 = vmatprep.subr.bf16.mxu0 0
      %1223 = vmatpush1.bf16.msra.mxu0 0
      %1224 = vmatprep.subr.bf16.mxu0 0
      %1225 = vmatpush1.bf16.msra.mxu0 0
      %1226 = vmatprep.subr.bf16.mxu0 0
      %1227 = vmatpush1.bf16.msra.mxu0 0
      %1228 = vmatprep.subr.bf16.mxu0 0
      %1229 = vmatpush1.bf16.msra.mxu0 0
      %1230 = vmatprep.subr.bf16.mxu0 0
      %1231 = vmatpush1.bf16.msra.mxu0 0
      %1232 = vmatprep.subr.bf16.mxu0 0
      %1233 = vmatpush1.bf16.msra.mxu0 0
      %1234 = vmatprep.subr.bf16.mxu0 0
      %1235 = vmatpush1.bf16.msra.mxu0 0
      %1236 = vmatprep.mubr.bf16.mxu0 0
      %1237 = vmatmul.mubr.bf16.gmra.mrb[0].mxu0 %v1193
      %v1238 = vpop.f32.mrb[0].mxu0
      %v1239 = vadd.f32 0.0, %v1238
      %v1240 = vpop.f32.mrb[0].mxu0
      %v1241 = vpop.f32.mrb[0].mxu0
      %v1242 = vadd.f32 0.0, %v1241
      %v1243 = vpop.f32.mrb[0].mxu0
      %1244 = vmatprep.mubr.bf16.mxu0 0
      %1245 = vmatmul.mubr.bf16.gmra.mrb[0].mxu0 %v1196
      %v1246 = vpop.f32.mrb[0].mxu0
      %v1247 = vadd.f32 0.0, %v1246
      %v1248 = vpop.f32.mrb[0].mxu0
      %v1249 = vpop.f32.mrb[0].mxu0
      %v1250 = vadd.f32 0.0, %v1249
      %v1251 = vpop.f32.mrb[0].mxu0
      %1252 = vmatprep.mubr.bf16.mxu0 0
      %1253 = vmatmul.mubr.bf16.gmra.mrb[0].mxu0 %v1199
      %v1254 = vpop.f32.mrb[0].mxu0
      %v1255 = vadd.f32 0.0, %v1254
      %v1256 = vpop.f32.mrb[0].mxu0
      %v1257 = vpop.f32.mrb[0].mxu0
      %v1258 = vadd.f32 0.0, %v1257
      %v1259 = vpop.f32.mrb[0].mxu0
      %1260 = vmatprep.mubr.bf16.mxu0 0
      %1261 = vmatmul.mubr.bf16.gmra.mrb[0].mxu0 %v1202
      %v1262 = vpop.f32.mrb[0].mxu0
      %v1263 = vadd.f32 0.0, %v1262
      %v1264 = vpop.f32.mrb[0].mxu0
      %v1265 = vpop.f32.mrb[0].mxu0
      %v1266 = vadd.f32 0.0, %v1265
      %v1267 = vpop.f32.mrb[0].mxu0
      %1268 = vdwg.mxu0
      %1269 = vrot.lane.b32.xlu0 %v443, 32
      %v1270 = vpop.permute.xlu0 %1269
      %1271 = vrot.lane.b32.xlu0 %v444, 32
      %v1272 = vpop.permute.xlu0 %1271
      %1273 = vrot.lane.b32.xlu0 %v445, 32
      %v1274 = vpop.permute.xlu0 %1273
      %1275 = vrot.lane.b32.xlu0 %v446, 32
      %v1276 = vpop.permute.xlu0 %1275
      %1277 = vrot.lane.b32.xlu0 %v447, 32
      %v1278 = vpop.permute.xlu0 %1277
      %1279 = vrot.lane.b32.xlu0 %v448, 32
      %v1280 = vpop.permute.xlu0 %1279
      %1281 = vrot.lane.b32.xlu0 %v449, 32
      %v1282 = vpop.permute.xlu0 %1281
      %1283 = vrot.lane.b32.xlu0 %v450, 32
      %v1284 = vpop.permute.xlu0 %1283
      %v1293 = vmul.f32 %v411, %v1270
      %v1294 = vmul.f32 %v412, %v1272
      %v1295 = vmul.f32 %v413, %v1274
      %v1296 = vmul.f32 %v414, %v1276
      %v1297 = vmul.f32 %v415, %v1278
      %v1298 = vmul.f32 %v416, %v1280
      %v1299 = vmul.f32 %v417, %v1282
      %v1300 = vmul.f32 %v418, %v1284
      %1301 = vrot.lane.b32.xlu0 %v451, 48
      %v1302 = vpop.permute.xlu0 %1301
      %1303 = vrot.lane.b32.xlu0 %v452, 48
      %v1304 = vpop.permute.xlu0 %1303
      %1305 = vrot.lane.b32.xlu0 %v453, 48
      %v1306 = vpop.permute.xlu0 %1305
      %1307 = vrot.lane.b32.xlu0 %v454, 48
      %v1308 = vpop.permute.xlu0 %1307
      %1309 = vrot.lane.b32.xlu0 %v455, 48
      %v1310 = vpop.permute.xlu0 %1309
      %1311 = vrot.lane.b32.xlu0 %v456, 48
      %v1312 = vpop.permute.xlu0 %1311
      %1313 = vrot.lane.b32.xlu0 %v457, 48
      %v1314 = vpop.permute.xlu0 %1313
      %1315 = vrot.lane.b32.xlu0 %v458, 48
      %v1316 = vpop.permute.xlu0 %1315
      %v1325 = vmul.f32 %v411, %v1302
      %v1326 = vmul.f32 %v412, %v1304
      %v1327 = vmul.f32 %v413, %v1306
      %v1328 = vmul.f32 %v414, %v1308
      %v1329 = vmul.f32 %v415, %v1310
      %v1330 = vmul.f32 %v416, %v1312
      %v1331 = vmul.f32 %v417, %v1314
      %v1332 = vmul.f32 %v418, %v1316
      %1341 = vrot.lane.b32.xlu0 %v1325, 112
      %v1342 = vpop.permute.xlu0 %1341
      %1343 = vrot.lane.b32.xlu0 %v1326, 112
      %v1344 = vpop.permute.xlu0 %1343
      %1345 = vrot.lane.b32.xlu0 %v1327, 112
      %v1346 = vpop.permute.xlu0 %1345
      %1347 = vrot.lane.b32.xlu0 %v1328, 112
      %v1348 = vpop.permute.xlu0 %1347
      %1349 = vrot.lane.b32.xlu0 %v1329, 112
      %v1350 = vpop.permute.xlu0 %1349
      %1351 = vrot.lane.b32.xlu0 %v1330, 112
      %v1352 = vpop.permute.xlu0 %1351
      %1353 = vrot.lane.b32.xlu0 %v1331, 112
      %v1354 = vpop.permute.xlu0 %1353
      %1355 = vrot.lane.b32.xlu0 %v1332, 112
      %v1356 = vpop.permute.xlu0 %1355
      %v1365 = vsub.f32 %v1293, %v1342
      %v1366 = vsub.f32 %v1294, %v1344
      %v1367 = vsub.f32 %v1295, %v1346
      %v1368 = vsub.f32 %v1296, %v1348
      %v1369 = vsub.f32 %v1297, %v1350
      %v1370 = vsub.f32 %v1298, %v1352
      %v1371 = vsub.f32 %v1299, %v1354
      %v1372 = vsub.f32 %v1300, %v1356
      %1373 = vrot.lane.b32.xlu0 %v451, 32
      %v1374 = vpop.permute.xlu0 %1373
      %1375 = vrot.lane.b32.xlu0 %v452, 32
      %v1376 = vpop.permute.xlu0 %1375
      %1377 = vrot.lane.b32.xlu0 %v453, 32
      %v1378 = vpop.permute.xlu0 %1377
      %1379 = vrot.lane.b32.xlu0 %v454, 32
      %v1380 = vpop.permute.xlu0 %1379
      %1381 = vrot.lane.b32.xlu0 %v455, 32
      %v1382 = vpop.permute.xlu0 %1381
      %1383 = vrot.lane.b32.xlu0 %v456, 32
      %v1384 = vpop.permute.xlu0 %1383
      %1385 = vrot.lane.b32.xlu0 %v457, 32
      %v1386 = vpop.permute.xlu0 %1385
      %1387 = vrot.lane.b32.xlu0 %v458, 32
      %v1388 = vpop.permute.xlu0 %1387
      %v1397 = vmul.f32 %v411, %v1374
      %v1398 = vmul.f32 %v412, %v1376
      %v1399 = vmul.f32 %v413, %v1378
      %v1400 = vmul.f32 %v414, %v1380
      %v1401 = vmul.f32 %v415, %v1382
      %v1402 = vmul.f32 %v416, %v1384
      %v1403 = vmul.f32 %v417, %v1386
      %v1404 = vmul.f32 %v418, %v1388
      %1405 = vrot.lane.b32.xlu0 %v443, 48
      %v1406 = vpop.permute.xlu0 %1405
      %1407 = vrot.lane.b32.xlu0 %v444, 48
      %v1408 = vpop.permute.xlu0 %1407
      %1409 = vrot.lane.b32.xlu0 %v445, 48
      %v1410 = vpop.permute.xlu0 %1409
      %1411 = vrot.lane.b32.xlu0 %v446, 48
      %v1412 = vpop.permute.xlu0 %1411
      %1413 = vrot.lane.b32.xlu0 %v447, 48
      %v1414 = vpop.permute.xlu0 %1413
      %1415 = vrot.lane.b32.xlu0 %v448, 48
      %v1416 = vpop.permute.xlu0 %1415
      %1417 = vrot.lane.b32.xlu0 %v449, 48
      %v1418 = vpop.permute.xlu0 %1417
      %1419 = vrot.lane.b32.xlu0 %v450, 48
      %v1420 = vpop.permute.xlu0 %1419
      %v1429 = vmul.f32 %v411, %v1406
      %v1430 = vmul.f32 %v412, %v1408
      %v1431 = vmul.f32 %v413, %v1410
      %v1432 = vmul.f32 %v414, %v1412
      %v1433 = vmul.f32 %v415, %v1414
      %v1434 = vmul.f32 %v416, %v1416
      %v1435 = vmul.f32 %v417, %v1418
      %v1436 = vmul.f32 %v418, %v1420
      %1445 = vrot.lane.b32.xlu0 %v1429, 112
      %v1446 = vpop.permute.xlu0 %1445
      %1447 = vrot.lane.b32.xlu0 %v1430, 112
      %v1448 = vpop.permute.xlu0 %1447
      %1449 = vrot.lane.b32.xlu0 %v1431, 112
      %v1450 = vpop.permute.xlu0 %1449
      %1451 = vrot.lane.b32.xlu0 %v1432, 112
      %v1452 = vpop.permute.xlu0 %1451
      %1453 = vrot.lane.b32.xlu0 %v1433, 112
      %v1454 = vpop.permute.xlu0 %1453
      %1455 = vrot.lane.b32.xlu0 %v1434, 112
      %v1456 = vpop.permute.xlu0 %1455
      %1457 = vrot.lane.b32.xlu0 %v1435, 112
      %v1458 = vpop.permute.xlu0 %1457
      %1459 = vrot.lane.b32.xlu0 %v1436, 112
      %v1460 = vpop.permute.xlu0 %1459
      %v1469 = vadd.f32 %v1397, %v1446
      %v1470 = vadd.f32 %v1398, %v1448
      %v1471 = vadd.f32 %v1399, %v1450
      %v1472 = vadd.f32 %v1400, %v1452
      %v1473 = vadd.f32 %v1401, %v1454
      %v1474 = vadd.f32 %v1402, %v1456
      %v1475 = vadd.f32 %v1403, %v1458
      %v1476 = vadd.f32 %v1404, %v1460
      %1485 = vrot.lane.b32.xlu0 %v1365, 96
      %v1486 = vpop.permute.xlu0 %1485
      %1487 = vrot.lane.b32.xlu0 %v1366, 96
      %v1488 = vpop.permute.xlu0 %1487
      %1489 = vrot.lane.b32.xlu0 %v1367, 96
      %v1490 = vpop.permute.xlu0 %1489
      %1491 = vrot.lane.b32.xlu0 %v1368, 96
      %v1492 = vpop.permute.xlu0 %1491
      %1493 = vrot.lane.b32.xlu0 %v1369, 96
      %v1494 = vpop.permute.xlu0 %1493
      %1495 = vrot.lane.b32.xlu0 %v1370, 96
      %v1496 = vpop.permute.xlu0 %1495
      %1497 = vrot.lane.b32.xlu0 %v1371, 96
      %v1498 = vpop.permute.xlu0 %1497
      %1499 = vrot.lane.b32.xlu0 %v1372, 96
      %v1500 = vpop.permute.xlu0 %1499
      %1517 = vrot.lane.b32.xlu0 %v1469, 112
      %v1518 = vpop.permute.xlu0 %1517
      %1519 = vrot.lane.b32.xlu0 %v1470, 112
      %v1520 = vpop.permute.xlu0 %1519
      %1521 = vrot.lane.b32.xlu0 %v1471, 112
      %v1522 = vpop.permute.xlu0 %1521
      %1523 = vrot.lane.b32.xlu0 %v1472, 112
      %v1524 = vpop.permute.xlu0 %1523
      %1525 = vrot.lane.b32.xlu0 %v1473, 112
      %v1526 = vpop.permute.xlu0 %1525
      %1527 = vrot.lane.b32.xlu0 %v1474, 112
      %v1528 = vpop.permute.xlu0 %1527
      %1529 = vrot.lane.b32.xlu0 %v1475, 112
      %v1530 = vpop.permute.xlu0 %1529
      %1531 = vrot.lane.b32.xlu0 %v1476, 112
      %v1532 = vpop.permute.xlu0 %1531
      %v1541 = vsel %vm736, %v1486, %v1518
      %v1542 = vsel %vm736, %v1488, %v1520
      %v1543 = vsel %vm736, %v1490, %v1522
      %v1544 = vsel %vm736, %v1492, %v1524
      %v1545 = vsel %vm736, %v1494, %v1526
      %v1546 = vsel %vm736, %v1496, %v1528
      %v1547 = vsel %vm736, %v1498, %v1530
      %v1548 = vsel %vm736, %v1500, %v1532
      %v1549 = vpack.c.bf16 %v1542, %v1541
      %v1550 = vpack.c.bf16 %v1544, %v1543
      %v1551 = vpack.c.bf16 %v1546, %v1545
      %v1552 = vpack.c.bf16 %v1548, %v1547
      %v1554 = vsel %vm969, %v1549, 0
      %v1557 = vsel %vm969, %v1550, 0
      %v1560 = vsel %vm969, %v1551, 0
      %v1563 = vsel %vm969, %v1552, 0
      %1565 = vmatprep.subr.bf16.mxu0 0
      %1566 = vmatpush1.bf16.xpose.msra.mxu0 %v983
      %1567 = vmatprep.subr.bf16.mxu0 0
      %1568 = vmatpush1.bf16.xpose.msra.mxu0 %v986
      %1569 = vmatprep.subr.bf16.mxu0 0
      %1570 = vmatpush1.bf16.xpose.msra.mxu0 %v989
      %1571 = vmatprep.subr.bf16.mxu0 0
      %1572 = vmatpush1.bf16.xpose.msra.mxu0 %v992
      %1573 = vmatprep.subr.bf16.mxu0 0
      %1574 = vmatpush1.bf16.xpose.msra.mxu0 0
      %1575 = vmatprep.subr.bf16.mxu0 0
      %1576 = vmatpush1.bf16.xpose.msra.mxu0 0
      %1577 = vmatprep.subr.bf16.mxu0 0
      %1578 = vmatpush1.bf16.xpose.msra.mxu0 0
      %1579 = vmatprep.subr.bf16.mxu0 0
      %1580 = vmatpush1.bf16.xpose.msra.mxu0 0
      %1581 = vmatprep.subr.bf16.mxu0 0
      %1582 = vmatpush1.bf16.xpose.msra.mxu0 0
      %1583 = vmatprep.subr.bf16.mxu0 0
      %1584 = vmatpush1.bf16.xpose.msra.mxu0 0
      %1585 = vmatprep.subr.bf16.mxu0 0
      %1586 = vmatpush1.bf16.xpose.msra.mxu0 0
      %1587 = vmatprep.subr.bf16.mxu0 0
      %1588 = vmatpush1.bf16.xpose.msra.mxu0 0
      %1589 = vmatprep.subr.bf16.mxu0 0
      %1590 = vmatpush1.bf16.xpose.msra.mxu0 0
      %1591 = vmatprep.subr.bf16.mxu0 0
      %1592 = vmatpush1.bf16.xpose.msra.mxu0 0
      %1593 = vmatprep.subr.bf16.mxu0 0
      %1594 = vmatpush1.bf16.xpose.msra.mxu0 0
      %1595 = vmatprep.subr.bf16.mxu0 0
      %1596 = vmatpush1.bf16.xpose.msra.mxu0 0
      %1597 = vmatprep.mubr.bf16.mxu0 0
      %1598 = vmatmul.mubr.bf16.gmra.mrb[0].mxu0 %v1554
      %v1599 = vpop.f32.mrb[0].mxu0
      %v1600 = vadd.f32 0.0, %v1599
      %v1601 = vpop.f32.mrb[0].mxu0
      %v1602 = vpop.f32.mrb[0].mxu0
      %v1603 = vadd.f32 0.0, %v1602
      %v1604 = vpop.f32.mrb[0].mxu0
      %1605 = vmatprep.mubr.bf16.mxu0 0
      %1606 = vmatmul.mubr.bf16.gmra.mrb[0].mxu0 %v1557
      %v1607 = vpop.f32.mrb[0].mxu0
      %v1608 = vadd.f32 0.0, %v1607
      %v1609 = vpop.f32.mrb[0].mxu0
      %v1610 = vpop.f32.mrb[0].mxu0
      %v1611 = vadd.f32 0.0, %v1610
      %v1612 = vpop.f32.mrb[0].mxu0
      %1613 = vmatprep.mubr.bf16.mxu0 0
      %1614 = vmatmul.mubr.bf16.gmra.mrb[0].mxu0 %v1560
      %v1615 = vpop.f32.mrb[0].mxu0
      %v1616 = vadd.f32 0.0, %v1615
      %v1617 = vpop.f32.mrb[0].mxu0
      %v1618 = vpop.f32.mrb[0].mxu0
      %v1619 = vadd.f32 0.0, %v1618
      %v1620 = vpop.f32.mrb[0].mxu0
      %1621 = vmatprep.mubr.bf16.mxu0 0
      %1622 = vmatmul.mubr.bf16.gmra.mrb[0].mxu0 %v1563
      %v1623 = vpop.f32.mrb[0].mxu0
      %v1624 = vadd.f32 0.0, %v1623
      %v1625 = vpop.f32.mrb[0].mxu0
      %v1626 = vpop.f32.mrb[0].mxu0
      %v1627 = vadd.f32 0.0, %v1626
      %v1628 = vpop.f32.mrb[0].mxu0
      %1629 = vdwg.mxu0
      %v1630 = vmul.f32 %v1600, 0.17677669
      %v1631 = vmul.f32 %v1603, 0.17677669
      %v1632 = vmul.f32 %v1608, 0.17677669
      %v1633 = vmul.f32 %v1611, 0.17677669
      %v1634 = vmul.f32 %v1616, 0.17677669
      %v1635 = vmul.f32 %v1619, 0.17677669
      %v1636 = vmul.f32 %v1624, 0.17677669
      %v1637 = vmul.f32 %v1627, 0.17677669
      %v1638 = vsel %vm520, %v1630, -1e+30
      %v1639 = vsel %vm521, %v1631, -1e+30
      %v1640 = vsel %vm522, %v1632, -1e+30
      %v1641 = vsel %vm523, %v1633, -1e+30
      %v1642 = vsel %vm524, %v1634, -1e+30
      %v1643 = vsel %vm525, %v1635, -1e+30
      %v1644 = vsel %vm526, %v1636, -1e+30
      %v1645 = vsel %vm527, %v1637, -1e+30
      %v1646 = vsel %vm1075, %v1638, -inf
      %1647 = vmax.xlane.f32.xlu0 %v1646
      %v1648 = vpop.xlane.xlu0 %1647
      %v1649 = vsel %vm1075, %v1639, -inf
      %1650 = vmax.xlane.f32.xlu0 %v1649
      %v1651 = vpop.xlane.xlu0 %1650
      %v1652 = vsel %vm1075, %v1640, -inf
      %1653 = vmax.xlane.f32.xlu0 %v1652
      %v1654 = vpop.xlane.xlu0 %1653
      %v1655 = vsel %vm1075, %v1641, -inf
      %1656 = vmax.xlane.f32.xlu0 %v1655
      %v1657 = vpop.xlane.xlu0 %1656
      %v1658 = vsel %vm1075, %v1642, -inf
      %1659 = vmax.xlane.f32.xlu0 %v1658
      %v1660 = vpop.xlane.xlu0 %1659
      %v1661 = vsel %vm1075, %v1643, -inf
      %1662 = vmax.xlane.f32.xlu0 %v1661
      %v1663 = vpop.xlane.xlu0 %1662
      %v1664 = vsel %vm1075, %v1644, -inf
      %1665 = vmax.xlane.f32.xlu0 %v1664
      %v1666 = vpop.xlane.xlu0 %1665
      %v1667 = vsel %vm1075, %v1645, -inf
      %1668 = vmax.xlane.f32.xlu0 %v1667
      %v1669 = vpop.xlane.xlu0 %1668
      %v1670 = vsub.f32 %v1638, %v1648
      %v1671 = vsub.f32 %v1639, %v1651
      %v1672 = vsub.f32 %v1640, %v1654
      %v1673 = vsub.f32 %v1641, %v1657
      %v1674 = vsub.f32 %v1642, %v1660
      %v1675 = vsub.f32 %v1643, %v1663
      %v1676 = vsub.f32 %v1644, %v1666
      %v1677 = vsub.f32 %v1645, %v1669
      %v1678 = vmul.f32 %v1670, 1.442695
      %v1679 = vpow.pop %v1678
      %v1680 = vmul.f32 %v1671, 1.442695
      %v1681 = vpow.pop %v1680
      %v1682 = vmul.f32 %v1672, 1.442695
      %v1683 = vpow.pop %v1682
      %v1684 = vmul.f32 %v1673, 1.442695
      %v1685 = vpow.pop %v1684
      %v1686 = vmul.f32 %v1674, 1.442695
      %v1687 = vpow.pop %v1686
      %v1688 = vmul.f32 %v1675, 1.442695
      %v1689 = vpow.pop %v1688
      %v1690 = vmul.f32 %v1676, 1.442695
      %v1691 = vpow.pop %v1690
      %v1692 = vmul.f32 %v1677, 1.442695
      %v1693 = vpow.pop %v1692
      %v1694 = vsel %vm1075, %v1679, 0.0
      %1695 = vadd.xlane.f32.xlu0 %v1694
      %v1696 = vpop.xlane.xlu0 %1695
      %v1697 = vsel %vm1075, %v1681, 0.0
      %1698 = vadd.xlane.f32.xlu0 %v1697
      %v1699 = vpop.xlane.xlu0 %1698
      %v1700 = vsel %vm1075, %v1683, 0.0
      %1701 = vadd.xlane.f32.xlu0 %v1700
      %v1702 = vpop.xlane.xlu0 %1701
      %v1703 = vsel %vm1075, %v1685, 0.0
      %1704 = vadd.xlane.f32.xlu0 %v1703
      %v1705 = vpop.xlane.xlu0 %1704
      %v1706 = vsel %vm1075, %v1687, 0.0
      %1707 = vadd.xlane.f32.xlu0 %v1706
      %v1708 = vpop.xlane.xlu0 %1707
      %v1709 = vsel %vm1075, %v1689, 0.0
      %1710 = vadd.xlane.f32.xlu0 %v1709
      %v1711 = vpop.xlane.xlu0 %1710
      %v1712 = vsel %vm1075, %v1691, 0.0
      %1713 = vadd.xlane.f32.xlu0 %v1712
      %v1714 = vpop.xlane.xlu0 %1713
      %v1715 = vsel %vm1075, %v1693, 0.0
      %1716 = vadd.xlane.f32.xlu0 %v1715
      %v1717 = vpop.xlane.xlu0 %1716
      %v1718 = vrcp.pop %v1696
      %v1719 = vrcp.pop %v1699
      %v1720 = vrcp.pop %v1702
      %v1721 = vrcp.pop %v1705
      %v1722 = vrcp.pop %v1708
      %v1723 = vrcp.pop %v1711
      %v1724 = vrcp.pop %v1714
      %v1725 = vrcp.pop %v1717
      %v1726 = vmul.f32 %v1679, %v1718
      %v1727 = vmul.f32 %v1681, %v1719
      %v1728 = vmul.f32 %v1683, %v1720
      %v1729 = vmul.f32 %v1685, %v1721
      %v1730 = vmul.f32 %v1687, %v1722
      %v1731 = vmul.f32 %v1689, %v1723
      %v1732 = vmul.f32 %v1691, %v1724
      %v1733 = vmul.f32 %v1693, %v1725
      %v1734 = vpack.c.bf16 %v1727, %v1726
      %v1735 = vpack.c.bf16 %v1729, %v1728
      %v1736 = vpack.c.bf16 %v1731, %v1730
      %v1737 = vpack.c.bf16 %v1733, %v1732
      %v1739 = vsel %vm1075, %v1734, 0
      %v1742 = vsel %vm1075, %v1735, 0
      %v1745 = vsel %vm1075, %v1736, 0
      %v1748 = vsel %vm1075, %v1737, 0
      %1750 = vmatprep.subr.bf16.mxu0 0
      %1751 = vmatpush1.bf16.msra.mxu0 %v1184
      %1752 = vmatprep.subr.bf16.mxu0 0
      %1753 = vmatpush1.bf16.msra.mxu0 %v1185
      %1754 = vmatprep.subr.bf16.mxu0 0
      %1755 = vmatpush1.bf16.msra.mxu0 %v1186
      %1756 = vmatprep.subr.bf16.mxu0 0
      %1757 = vmatpush1.bf16.msra.mxu0 %v1187
      %1758 = vmatprep.subr.bf16.mxu0 0
      %1759 = vmatpush1.bf16.msra.mxu0 0
      %1760 = vmatprep.subr.bf16.mxu0 0
      %1761 = vmatpush1.bf16.msra.mxu0 0
      %1762 = vmatprep.subr.bf16.mxu0 0
      %1763 = vmatpush1.bf16.msra.mxu0 0
      %1764 = vmatprep.subr.bf16.mxu0 0
      %1765 = vmatpush1.bf16.msra.mxu0 0
      %1766 = vmatprep.subr.bf16.mxu0 0
      %1767 = vmatpush1.bf16.msra.mxu0 0
      %1768 = vmatprep.subr.bf16.mxu0 0
      %1769 = vmatpush1.bf16.msra.mxu0 0
      %1770 = vmatprep.subr.bf16.mxu0 0
      %1771 = vmatpush1.bf16.msra.mxu0 0
      %1772 = vmatprep.subr.bf16.mxu0 0
      %1773 = vmatpush1.bf16.msra.mxu0 0
      %1774 = vmatprep.subr.bf16.mxu0 0
      %1775 = vmatpush1.bf16.msra.mxu0 0
      %1776 = vmatprep.subr.bf16.mxu0 0
      %1777 = vmatpush1.bf16.msra.mxu0 0
      %1778 = vmatprep.subr.bf16.mxu0 0
      %1779 = vmatpush1.bf16.msra.mxu0 0
      %1780 = vmatprep.subr.bf16.mxu0 0
      %1781 = vmatpush1.bf16.msra.mxu0 0
      %1782 = vmatprep.mubr.bf16.mxu0 0
      %1783 = vmatmul.mubr.bf16.gmra.mrb[0].mxu0 %v1739
      %v1784 = vpop.f32.mrb[0].mxu0
      %v1785 = vadd.f32 0.0, %v1784
      %v1786 = vpop.f32.mrb[0].mxu0
      %v1787 = vpop.f32.mrb[0].mxu0
      %v1788 = vadd.f32 0.0, %v1787
      %v1789 = vpop.f32.mrb[0].mxu0
      %1790 = vmatprep.mubr.bf16.mxu0 0
      %1791 = vmatmul.mubr.bf16.gmra.mrb[0].mxu0 %v1742
      %v1792 = vpop.f32.mrb[0].mxu0
      %v1793 = vadd.f32 0.0, %v1792
      %v1794 = vpop.f32.mrb[0].mxu0
      %v1795 = vpop.f32.mrb[0].mxu0
      %v1796 = vadd.f32 0.0, %v1795
      %v1797 = vpop.f32.mrb[0].mxu0
      %1798 = vmatprep.mubr.bf16.mxu0 0
      %1799 = vmatmul.mubr.bf16.gmra.mrb[0].mxu0 %v1745
      %v1800 = vpop.f32.mrb[0].mxu0
      %v1801 = vadd.f32 0.0, %v1800
      %v1802 = vpop.f32.mrb[0].mxu0
      %v1803 = vpop.f32.mrb[0].mxu0
      %v1804 = vadd.f32 0.0, %v1803
      %v1805 = vpop.f32.mrb[0].mxu0
      %1806 = vmatprep.mubr.bf16.mxu0 0
      %1807 = vmatmul.mubr.bf16.gmra.mrb[0].mxu0 %v1748
      %v1808 = vpop.f32.mrb[0].mxu0
      %v1809 = vadd.f32 0.0, %v1808
      %v1810 = vpop.f32.mrb[0].mxu0
      %v1811 = vpop.f32.mrb[0].mxu0
      %v1812 = vadd.f32 0.0, %v1811
      %v1813 = vpop.f32.mrb[0].mxu0
      %1814 = vdwg.mxu0
      %1815 = vrot.lane.b32.xlu0 %v459, 32
      %v1816 = vpop.permute.xlu0 %1815
      %1817 = vrot.lane.b32.xlu0 %v460, 32
      %v1818 = vpop.permute.xlu0 %1817
      %1819 = vrot.lane.b32.xlu0 %v461, 32
      %v1820 = vpop.permute.xlu0 %1819
      %1821 = vrot.lane.b32.xlu0 %v462, 32
      %v1822 = vpop.permute.xlu0 %1821
      %1823 = vrot.lane.b32.xlu0 %v463, 32
      %v1824 = vpop.permute.xlu0 %1823
      %1825 = vrot.lane.b32.xlu0 %v464, 32
      %v1826 = vpop.permute.xlu0 %1825
      %1827 = vrot.lane.b32.xlu0 %v465, 32
      %v1828 = vpop.permute.xlu0 %1827
      %1829 = vrot.lane.b32.xlu0 %v466, 32
      %v1830 = vpop.permute.xlu0 %1829
      %v1839 = vmul.f32 %v427, %v1816
      %v1840 = vmul.f32 %v428, %v1818
      %v1841 = vmul.f32 %v429, %v1820
      %v1842 = vmul.f32 %v430, %v1822
      %v1843 = vmul.f32 %v431, %v1824
      %v1844 = vmul.f32 %v432, %v1826
      %v1845 = vmul.f32 %v433, %v1828
      %v1846 = vmul.f32 %v434, %v1830
      %1847 = vrot.lane.b32.xlu0 %v467, 48
      %v1848 = vpop.permute.xlu0 %1847
      %1849 = vrot.lane.b32.xlu0 %v468, 48
      %v1850 = vpop.permute.xlu0 %1849
      %1851 = vrot.lane.b32.xlu0 %v469, 48
      %v1852 = vpop.permute.xlu0 %1851
      %1853 = vrot.lane.b32.xlu0 %v470, 48
      %v1854 = vpop.permute.xlu0 %1853
      %1855 = vrot.lane.b32.xlu0 %v471, 48
      %v1856 = vpop.permute.xlu0 %1855
      %1857 = vrot.lane.b32.xlu0 %v472, 48
      %v1858 = vpop.permute.xlu0 %1857
      %1859 = vrot.lane.b32.xlu0 %v473, 48
      %v1860 = vpop.permute.xlu0 %1859
      %1861 = vrot.lane.b32.xlu0 %v474, 48
      %v1862 = vpop.permute.xlu0 %1861
      %v1871 = vmul.f32 %v427, %v1848
      %v1872 = vmul.f32 %v428, %v1850
      %v1873 = vmul.f32 %v429, %v1852
      %v1874 = vmul.f32 %v430, %v1854
      %v1875 = vmul.f32 %v431, %v1856
      %v1876 = vmul.f32 %v432, %v1858
      %v1877 = vmul.f32 %v433, %v1860
      %v1878 = vmul.f32 %v434, %v1862
      %1887 = vrot.lane.b32.xlu0 %v1871, 112
      %v1888 = vpop.permute.xlu0 %1887
      %1889 = vrot.lane.b32.xlu0 %v1872, 112
      %v1890 = vpop.permute.xlu0 %1889
      %1891 = vrot.lane.b32.xlu0 %v1873, 112
      %v1892 = vpop.permute.xlu0 %1891
      %1893 = vrot.lane.b32.xlu0 %v1874, 112
      %v1894 = vpop.permute.xlu0 %1893
      %1895 = vrot.lane.b32.xlu0 %v1875, 112
      %v1896 = vpop.permute.xlu0 %1895
      %1897 = vrot.lane.b32.xlu0 %v1876, 112
      %v1898 = vpop.permute.xlu0 %1897
      %1899 = vrot.lane.b32.xlu0 %v1877, 112
      %v1900 = vpop.permute.xlu0 %1899
      %1901 = vrot.lane.b32.xlu0 %v1878, 112
      %v1902 = vpop.permute.xlu0 %1901
      %v1911 = vsub.f32 %v1839, %v1888
      %v1912 = vsub.f32 %v1840, %v1890
      %v1913 = vsub.f32 %v1841, %v1892
      %v1914 = vsub.f32 %v1842, %v1894
      %v1915 = vsub.f32 %v1843, %v1896
      %v1916 = vsub.f32 %v1844, %v1898
      %v1917 = vsub.f32 %v1845, %v1900
      %v1918 = vsub.f32 %v1846, %v1902
      %1919 = vrot.lane.b32.xlu0 %v467, 32
      %v1920 = vpop.permute.xlu0 %1919
      %1921 = vrot.lane.b32.xlu0 %v468, 32
      %v1922 = vpop.permute.xlu0 %1921
      %1923 = vrot.lane.b32.xlu0 %v469, 32
      %v1924 = vpop.permute.xlu0 %1923
      %1925 = vrot.lane.b32.xlu0 %v470, 32
      %v1926 = vpop.permute.xlu0 %1925
      %1927 = vrot.lane.b32.xlu0 %v471, 32
      %v1928 = vpop.permute.xlu0 %1927
      %1929 = vrot.lane.b32.xlu0 %v472, 32
      %v1930 = vpop.permute.xlu0 %1929
      %1931 = vrot.lane.b32.xlu0 %v473, 32
      %v1932 = vpop.permute.xlu0 %1931
      %1933 = vrot.lane.b32.xlu0 %v474, 32
      %v1934 = vpop.permute.xlu0 %1933
      %v1943 = vmul.f32 %v427, %v1920
      %v1944 = vmul.f32 %v428, %v1922
      %v1945 = vmul.f32 %v429, %v1924
      %v1946 = vmul.f32 %v430, %v1926
      %v1947 = vmul.f32 %v431, %v1928
      %v1948 = vmul.f32 %v432, %v1930
      %v1949 = vmul.f32 %v433, %v1932
      %v1950 = vmul.f32 %v434, %v1934
      %1951 = vrot.lane.b32.xlu0 %v459, 48
      %v1952 = vpop.permute.xlu0 %1951
      %1953 = vrot.lane.b32.xlu0 %v460, 48
      %v1954 = vpop.permute.xlu0 %1953
      %1955 = vrot.lane.b32.xlu0 %v461, 48
      %v1956 = vpop.permute.xlu0 %1955
      %1957 = vrot.lane.b32.xlu0 %v462, 48
      %v1958 = vpop.permute.xlu0 %1957
      %1959 = vrot.lane.b32.xlu0 %v463, 48
      %v1960 = vpop.permute.xlu0 %1959
      %1961 = vrot.lane.b32.xlu0 %v464, 48
      %v1962 = vpop.permute.xlu0 %1961
      %1963 = vrot.lane.b32.xlu0 %v465, 48
      %v1964 = vpop.permute.xlu0 %1963
      %1965 = vrot.lane.b32.xlu0 %v466, 48
      %v1966 = vpop.permute.xlu0 %1965
      %v1975 = vmul.f32 %v427, %v1952
      %v1976 = vmul.f32 %v428, %v1954
      %v1977 = vmul.f32 %v429, %v1956
      %v1978 = vmul.f32 %v430, %v1958
      %v1979 = vmul.f32 %v431, %v1960
      %v1980 = vmul.f32 %v432, %v1962
      %v1981 = vmul.f32 %v433, %v1964
      %v1982 = vmul.f32 %v434, %v1966
      %1991 = vrot.lane.b32.xlu0 %v1975, 112
      %v1992 = vpop.permute.xlu0 %1991
      %1993 = vrot.lane.b32.xlu0 %v1976, 112
      %v1994 = vpop.permute.xlu0 %1993
      %1995 = vrot.lane.b32.xlu0 %v1977, 112
      %v1996 = vpop.permute.xlu0 %1995
      %1997 = vrot.lane.b32.xlu0 %v1978, 112
      %v1998 = vpop.permute.xlu0 %1997
      %1999 = vrot.lane.b32.xlu0 %v1979, 112
      %v2000 = vpop.permute.xlu0 %1999
      %2001 = vrot.lane.b32.xlu0 %v1980, 112
      %v2002 = vpop.permute.xlu0 %2001
      %2003 = vrot.lane.b32.xlu0 %v1981, 112
      %v2004 = vpop.permute.xlu0 %2003
      %2005 = vrot.lane.b32.xlu0 %v1982, 112
      %v2006 = vpop.permute.xlu0 %2005
      %v2015 = vadd.f32 %v1943, %v1992
      %v2016 = vadd.f32 %v1944, %v1994
      %v2017 = vadd.f32 %v1945, %v1996
      %v2018 = vadd.f32 %v1946, %v1998
      %v2019 = vadd.f32 %v1947, %v2000
      %v2020 = vadd.f32 %v1948, %v2002
      %v2021 = vadd.f32 %v1949, %v2004
      %v2022 = vadd.f32 %v1950, %v2006
      %2031 = vrot.lane.b32.xlu0 %v1911, 96
      %v2032 = vpop.permute.xlu0 %2031
      %2033 = vrot.lane.b32.xlu0 %v1912, 96
      %v2034 = vpop.permute.xlu0 %2033
      %2035 = vrot.lane.b32.xlu0 %v1913, 96
      %v2036 = vpop.permute.xlu0 %2035
      %2037 = vrot.lane.b32.xlu0 %v1914, 96
      %v2038 = vpop.permute.xlu0 %2037
      %2039 = vrot.lane.b32.xlu0 %v1915, 96
      %v2040 = vpop.permute.xlu0 %2039
      %2041 = vrot.lane.b32.xlu0 %v1916, 96
      %v2042 = vpop.permute.xlu0 %2041
      %2043 = vrot.lane.b32.xlu0 %v1917, 96
      %v2044 = vpop.permute.xlu0 %2043
      %2045 = vrot.lane.b32.xlu0 %v1918, 96
      %v2046 = vpop.permute.xlu0 %2045
      %2063 = vrot.lane.b32.xlu0 %v2015, 112
      %v2064 = vpop.permute.xlu0 %2063
      %2065 = vrot.lane.b32.xlu0 %v2016, 112
      %v2066 = vpop.permute.xlu0 %2065
      %2067 = vrot.lane.b32.xlu0 %v2017, 112
      %v2068 = vpop.permute.xlu0 %2067
      %2069 = vrot.lane.b32.xlu0 %v2018, 112
      %v2070 = vpop.permute.xlu0 %2069
      %2071 = vrot.lane.b32.xlu0 %v2019, 112
      %v2072 = vpop.permute.xlu0 %2071
      %2073 = vrot.lane.b32.xlu0 %v2020, 112
      %v2074 = vpop.permute.xlu0 %2073
      %2075 = vrot.lane.b32.xlu0 %v2021, 112
      %v2076 = vpop.permute.xlu0 %2075
      %2077 = vrot.lane.b32.xlu0 %v2022, 112
      %v2078 = vpop.permute.xlu0 %2077
      %v2087 = vsel %vm736, %v2032, %v2064
      %v2088 = vsel %vm736, %v2034, %v2066
      %v2089 = vsel %vm736, %v2036, %v2068
      %v2090 = vsel %vm736, %v2038, %v2070
      %v2091 = vsel %vm736, %v2040, %v2072
      %v2092 = vsel %vm736, %v2042, %v2074
      %v2093 = vsel %vm736, %v2044, %v2076
      %v2094 = vsel %vm736, %v2046, %v2078
      %v2095 = vpack.c.bf16 %v2088, %v2087
      %v2096 = vpack.c.bf16 %v2090, %v2089
      %v2097 = vpack.c.bf16 %v2092, %v2091
      %v2098 = vpack.c.bf16 %v2094, %v2093
      %2099 = vrot.lane.b32.xlu0 %v443, 64
      %v2100 = vpop.permute.xlu0 %2099
      %2101 = vrot.lane.b32.xlu0 %v444, 64
      %v2102 = vpop.permute.xlu0 %2101
      %2103 = vrot.lane.b32.xlu0 %v445, 64
      %v2104 = vpop.permute.xlu0 %2103
      %2105 = vrot.lane.b32.xlu0 %v446, 64
      %v2106 = vpop.permute.xlu0 %2105
      %2107 = vrot.lane.b32.xlu0 %v447, 64
      %v2108 = vpop.permute.xlu0 %2107
      %2109 = vrot.lane.b32.xlu0 %v448, 64
      %v2110 = vpop.permute.xlu0 %2109
      %2111 = vrot.lane.b32.xlu0 %v449, 64
      %v2112 = vpop.permute.xlu0 %2111
      %2113 = vrot.lane.b32.xlu0 %v450, 64
      %v2114 = vpop.permute.xlu0 %2113
      %v2123 = vmul.f32 %v411, %v2100
      %v2124 = vmul.f32 %v412, %v2102
      %v2125 = vmul.f32 %v413, %v2104
      %v2126 = vmul.f32 %v414, %v2106
      %v2127 = vmul.f32 %v415, %v2108
      %v2128 = vmul.f32 %v416, %v2110
      %v2129 = vmul.f32 %v417, %v2112
      %v2130 = vmul.f32 %v418, %v2114
      %2131 = vrot.lane.b32.xlu0 %v451, 80
      %v2132 = vpop.permute.xlu0 %2131
      %2133 = vrot.lane.b32.xlu0 %v452, 80
      %v2134 = vpop.permute.xlu0 %2133
      %2135 = vrot.lane.b32.xlu0 %v453, 80
      %v2136 = vpop.permute.xlu0 %2135
      %2137 = vrot.lane.b32.xlu0 %v454, 80
      %v2138 = vpop.permute.xlu0 %2137
      %2139 = vrot.lane.b32.xlu0 %v455, 80
      %v2140 = vpop.permute.xlu0 %2139
      %2141 = vrot.lane.b32.xlu0 %v456, 80
      %v2142 = vpop.permute.xlu0 %2141
      %2143 = vrot.lane.b32.xlu0 %v457, 80
      %v2144 = vpop.permute.xlu0 %2143
      %2145 = vrot.lane.b32.xlu0 %v458, 80
      %v2146 = vpop.permute.xlu0 %2145
      %v2155 = vmul.f32 %v411, %v2132
      %v2156 = vmul.f32 %v412, %v2134
      %v2157 = vmul.f32 %v413, %v2136
      %v2158 = vmul.f32 %v414, %v2138
      %v2159 = vmul.f32 %v415, %v2140
      %v2160 = vmul.f32 %v416, %v2142
      %v2161 = vmul.f32 %v417, %v2144
      %v2162 = vmul.f32 %v418, %v2146
      %2171 = vrot.lane.b32.xlu0 %v2155, 112
      %v2172 = vpop.permute.xlu0 %2171
      %2173 = vrot.lane.b32.xlu0 %v2156, 112
      %v2174 = vpop.permute.xlu0 %2173
      %2175 = vrot.lane.b32.xlu0 %v2157, 112
      %v2176 = vpop.permute.xlu0 %2175
      %2177 = vrot.lane.b32.xlu0 %v2158, 112
      %v2178 = vpop.permute.xlu0 %2177
      %2179 = vrot.lane.b32.xlu0 %v2159, 112
      %v2180 = vpop.permute.xlu0 %2179
      %2181 = vrot.lane.b32.xlu0 %v2160, 112
      %v2182 = vpop.permute.xlu0 %2181
      %2183 = vrot.lane.b32.xlu0 %v2161, 112
      %v2184 = vpop.permute.xlu0 %2183
      %2185 = vrot.lane.b32.xlu0 %v2162, 112
      %v2186 = vpop.permute.xlu0 %2185
      %v2195 = vsub.f32 %v2123, %v2172
      %v2196 = vsub.f32 %v2124, %v2174
      %v2197 = vsub.f32 %v2125, %v2176
      %v2198 = vsub.f32 %v2126, %v2178
      %v2199 = vsub.f32 %v2127, %v2180
      %v2200 = vsub.f32 %v2128, %v2182
      %v2201 = vsub.f32 %v2129, %v2184
      %v2202 = vsub.f32 %v2130, %v2186
      %2203 = vrot.lane.b32.xlu0 %v451, 64
      %v2204 = vpop.permute.xlu0 %2203
      %2205 = vrot.lane.b32.xlu0 %v452, 64
      %v2206 = vpop.permute.xlu0 %2205
      %2207 = vrot.lane.b32.xlu0 %v453, 64
      %v2208 = vpop.permute.xlu0 %2207
      %2209 = vrot.lane.b32.xlu0 %v454, 64
      %v2210 = vpop.permute.xlu0 %2209
      %2211 = vrot.lane.b32.xlu0 %v455, 64
      %v2212 = vpop.permute.xlu0 %2211
      %2213 = vrot.lane.b32.xlu0 %v456, 64
      %v2214 = vpop.permute.xlu0 %2213
      %2215 = vrot.lane.b32.xlu0 %v457, 64
      %v2216 = vpop.permute.xlu0 %2215
      %2217 = vrot.lane.b32.xlu0 %v458, 64
      %v2218 = vpop.permute.xlu0 %2217
      %v2227 = vmul.f32 %v411, %v2204
      %v2228 = vmul.f32 %v412, %v2206
      %v2229 = vmul.f32 %v413, %v2208
      %v2230 = vmul.f32 %v414, %v2210
      %v2231 = vmul.f32 %v415, %v2212
      %v2232 = vmul.f32 %v416, %v2214
      %v2233 = vmul.f32 %v417, %v2216
      %v2234 = vmul.f32 %v418, %v2218
      %2235 = vrot.lane.b32.xlu0 %v443, 80
      %v2236 = vpop.permute.xlu0 %2235
      %2237 = vrot.lane.b32.xlu0 %v444, 80
      %v2238 = vpop.permute.xlu0 %2237
      %2239 = vrot.lane.b32.xlu0 %v445, 80
      %v2240 = vpop.permute.xlu0 %2239
      %2241 = vrot.lane.b32.xlu0 %v446, 80
      %v2242 = vpop.permute.xlu0 %2241
      %2243 = vrot.lane.b32.xlu0 %v447, 80
      %v2244 = vpop.permute.xlu0 %2243
      %2245 = vrot.lane.b32.xlu0 %v448, 80
      %v2246 = vpop.permute.xlu0 %2245
      %2247 = vrot.lane.b32.xlu0 %v449, 80
      %v2248 = vpop.permute.xlu0 %2247
      %2249 = vrot.lane.b32.xlu0 %v450, 80
      %v2250 = vpop.permute.xlu0 %2249
      %v2259 = vmul.f32 %v411, %v2236
      %v2260 = vmul.f32 %v412, %v2238
      %v2261 = vmul.f32 %v413, %v2240
      %v2262 = vmul.f32 %v414, %v2242
      %v2263 = vmul.f32 %v415, %v2244
      %v2264 = vmul.f32 %v416, %v2246
      %v2265 = vmul.f32 %v417, %v2248
      %v2266 = vmul.f32 %v418, %v2250
      %2275 = vrot.lane.b32.xlu0 %v2259, 112
      %v2276 = vpop.permute.xlu0 %2275
      %2277 = vrot.lane.b32.xlu0 %v2260, 112
      %v2278 = vpop.permute.xlu0 %2277
      %2279 = vrot.lane.b32.xlu0 %v2261, 112
      %v2280 = vpop.permute.xlu0 %2279
      %2281 = vrot.lane.b32.xlu0 %v2262, 112
      %v2282 = vpop.permute.xlu0 %2281
      %2283 = vrot.lane.b32.xlu0 %v2263, 112
      %v2284 = vpop.permute.xlu0 %2283
      %2285 = vrot.lane.b32.xlu0 %v2264, 112
      %v2286 = vpop.permute.xlu0 %2285
      %2287 = vrot.lane.b32.xlu0 %v2265, 112
      %v2288 = vpop.permute.xlu0 %2287
      %2289 = vrot.lane.b32.xlu0 %v2266, 112
      %v2290 = vpop.permute.xlu0 %2289
      %v2299 = vadd.f32 %v2227, %v2276
      %v2300 = vadd.f32 %v2228, %v2278
      %v2301 = vadd.f32 %v2229, %v2280
      %v2302 = vadd.f32 %v2230, %v2282
      %v2303 = vadd.f32 %v2231, %v2284
      %v2304 = vadd.f32 %v2232, %v2286
      %v2305 = vadd.f32 %v2233, %v2288
      %v2306 = vadd.f32 %v2234, %v2290
      %2315 = vrot.lane.b32.xlu0 %v2195, 64
      %v2316 = vpop.permute.xlu0 %2315
      %2317 = vrot.lane.b32.xlu0 %v2196, 64
      %v2318 = vpop.permute.xlu0 %2317
      %2319 = vrot.lane.b32.xlu0 %v2197, 64
      %v2320 = vpop.permute.xlu0 %2319
      %2321 = vrot.lane.b32.xlu0 %v2198, 64
      %v2322 = vpop.permute.xlu0 %2321
      %2323 = vrot.lane.b32.xlu0 %v2199, 64
      %v2324 = vpop.permute.xlu0 %2323
      %2325 = vrot.lane.b32.xlu0 %v2200, 64
      %v2326 = vpop.permute.xlu0 %2325
      %2327 = vrot.lane.b32.xlu0 %v2201, 64
      %v2328 = vpop.permute.xlu0 %2327
      %2329 = vrot.lane.b32.xlu0 %v2202, 64
      %v2330 = vpop.permute.xlu0 %2329
      %2347 = vrot.lane.b32.xlu0 %v2299, 80
      %v2348 = vpop.permute.xlu0 %2347
      %2349 = vrot.lane.b32.xlu0 %v2300, 80
      %v2350 = vpop.permute.xlu0 %2349
      %2351 = vrot.lane.b32.xlu0 %v2301, 80
      %v2352 = vpop.permute.xlu0 %2351
      %2353 = vrot.lane.b32.xlu0 %v2302, 80
      %v2354 = vpop.permute.xlu0 %2353
      %2355 = vrot.lane.b32.xlu0 %v2303, 80
      %v2356 = vpop.permute.xlu0 %2355
      %2357 = vrot.lane.b32.xlu0 %v2304, 80
      %v2358 = vpop.permute.xlu0 %2357
      %2359 = vrot.lane.b32.xlu0 %v2305, 80
      %v2360 = vpop.permute.xlu0 %2359
      %2361 = vrot.lane.b32.xlu0 %v2306, 80
      %v2362 = vpop.permute.xlu0 %2361
      %v2371 = vsel %vm736, %v2316, %v2348
      %v2372 = vsel %vm736, %v2318, %v2350
      %v2373 = vsel %vm736, %v2320, %v2352
      %v2374 = vsel %vm736, %v2322, %v2354
      %v2375 = vsel %vm736, %v2324, %v2356
      %v2376 = vsel %vm736, %v2326, %v2358
      %v2377 = vsel %vm736, %v2328, %v2360
      %v2378 = vsel %vm736, %v2330, %v2362
      %v2379 = vpack.c.bf16 %v2372, %v2371
      %v2380 = vpack.c.bf16 %v2374, %v2373
      %v2381 = vpack.c.bf16 %v2376, %v2375
      %v2382 = vpack.c.bf16 %v2378, %v2377
      %v2384 = vsel %vm969, %v2379, 0
      %v2387 = vsel %vm969, %v2380, 0
      %v2390 = vsel %vm969, %v2381, 0
      %v2393 = vsel %vm969, %v2382, 0
      %v2396 = vsel %vm969, %v2095, 0
      %v2399 = vsel %vm969, %v2096, 0
      %v2402 = vsel %vm969, %v2097, 0
      %v2405 = vsel %vm969, %v2098, 0
      %2407 = vmatprep.subr.bf16.mxu0 0
      %2408 = vmatpush1.bf16.xpose.msra.mxu0 %v2396
      %2409 = vmatprep.subr.bf16.mxu0 0
      %2410 = vmatpush1.bf16.xpose.msra.mxu0 %v2399
      %2411 = vmatprep.subr.bf16.mxu0 0
      %2412 = vmatpush1.bf16.xpose.msra.mxu0 %v2402
      %2413 = vmatprep.subr.bf16.mxu0 0
      %2414 = vmatpush1.bf16.xpose.msra.mxu0 %v2405
      %2415 = vmatprep.subr.bf16.mxu0 0
      %2416 = vmatpush1.bf16.xpose.msra.mxu0 0
      %2417 = vmatprep.subr.bf16.mxu0 0
      %2418 = vmatpush1.bf16.xpose.msra.mxu0 0
      %2419 = vmatprep.subr.bf16.mxu0 0
      %2420 = vmatpush1.bf16.xpose.msra.mxu0 0
      %2421 = vmatprep.subr.bf16.mxu0 0
      %2422 = vmatpush1.bf16.xpose.msra.mxu0 0
      %2423 = vmatprep.subr.bf16.mxu0 0
      %2424 = vmatpush1.bf16.xpose.msra.mxu0 0
      %2425 = vmatprep.subr.bf16.mxu0 0
      %2426 = vmatpush1.bf16.xpose.msra.mxu0 0
      %2427 = vmatprep.subr.bf16.mxu0 0
      %2428 = vmatpush1.bf16.xpose.msra.mxu0 0
      %2429 = vmatprep.subr.bf16.mxu0 0
      %2430 = vmatpush1.bf16.xpose.msra.mxu0 0
      %2431 = vmatprep.subr.bf16.mxu0 0
      %2432 = vmatpush1.bf16.xpose.msra.mxu0 0
      %2433 = vmatprep.subr.bf16.mxu0 0
      %2434 = vmatpush1.bf16.xpose.msra.mxu0 0
      %2435 = vmatprep.subr.bf16.mxu0 0
      %2436 = vmatpush1.bf16.xpose.msra.mxu0 0
      %2437 = vmatprep.subr.bf16.mxu0 0
      %2438 = vmatpush1.bf16.xpose.msra.mxu0 0
      %2439 = vmatprep.mubr.bf16.mxu0 0
      %2440 = vmatmul.mubr.bf16.gmra.mrb[0].mxu0 %v2384
      %v2441 = vpop.f32.mrb[0].mxu0
      %v2442 = vadd.f32 0.0, %v2441
      %v2443 = vpop.f32.mrb[0].mxu0
      %v2444 = vpop.f32.mrb[0].mxu0
      %v2445 = vadd.f32 0.0, %v2444
      %v2446 = vpop.f32.mrb[0].mxu0
      %2447 = vmatprep.mubr.bf16.mxu0 0
      %2448 = vmatmul.mubr.bf16.gmra.mrb[0].mxu0 %v2387
      %v2449 = vpop.f32.mrb[0].mxu0
      %v2450 = vadd.f32 0.0, %v2449
      %v2451 = vpop.f32.mrb[0].mxu0
      %v2452 = vpop.f32.mrb[0].mxu0
      %v2453 = vadd.f32 0.0, %v2452
      %v2454 = vpop.f32.mrb[0].mxu0
      %2455 = vmatprep.mubr.bf16.mxu0 0
      %2456 = vmatmul.mubr.bf16.gmra.mrb[0].mxu0 %v2390
      %v2457 = vpop.f32.mrb[0].mxu0
      %v2458 = vadd.f32 0.0, %v2457
      %v2459 = vpop.f32.mrb[0].mxu0
      %v2460 = vpop.f32.mrb[0].mxu0
      %v2461 = vadd.f32 0.0, %v2460
      %v2462 = vpop.f32.mrb[0].mxu0
      %2463 = vmatprep.mubr.bf16.mxu0 0
      %2464 = vmatmul.mubr.bf16.gmra.mrb[0].mxu0 %v2393
      %v2465 = vpop.f32.mrb[0].mxu0
      %v2466 = vadd.f32 0.0, %v2465
      %v2467 = vpop.f32.mrb[0].mxu0
      %v2468 = vpop.f32.mrb[0].mxu0
      %v2469 = vadd.f32 0.0, %v2468
      %v2470 = vpop.f32.mrb[0].mxu0
      %2471 = vdwg.mxu0
      %v2472 = vmul.f32 %v2442, 0.17677669
      %v2473 = vmul.f32 %v2445, 0.17677669
      %v2474 = vmul.f32 %v2450, 0.17677669
      %v2475 = vmul.f32 %v2453, 0.17677669
      %v2476 = vmul.f32 %v2458, 0.17677669
      %v2477 = vmul.f32 %v2461, 0.17677669
      %v2478 = vmul.f32 %v2466, 0.17677669
      %v2479 = vmul.f32 %v2469, 0.17677669
      %v2480 = vsel %vm520, %v2472, -1e+30
      %v2481 = vsel %vm521, %v2473, -1e+30
      %v2482 = vsel %vm522, %v2474, -1e+30
      %v2483 = vsel %vm523, %v2475, -1e+30
      %v2484 = vsel %vm524, %v2476, -1e+30
      %v2485 = vsel %vm525, %v2477, -1e+30
      %v2486 = vsel %vm526, %v2478, -1e+30
      %v2487 = vsel %vm527, %v2479, -1e+30
      %v2488 = vsel %vm1075, %v2480, -inf
      %2489 = vmax.xlane.f32.xlu0 %v2488
      %v2490 = vpop.xlane.xlu0 %2489
      %v2491 = vsel %vm1075, %v2481, -inf
      %2492 = vmax.xlane.f32.xlu0 %v2491
      %v2493 = vpop.xlane.xlu0 %2492
      %v2494 = vsel %vm1075, %v2482, -inf
      %2495 = vmax.xlane.f32.xlu0 %v2494
      %v2496 = vpop.xlane.xlu0 %2495
      %v2497 = vsel %vm1075, %v2483, -inf
      %2498 = vmax.xlane.f32.xlu0 %v2497
      %v2499 = vpop.xlane.xlu0 %2498
      %v2500 = vsel %vm1075, %v2484, -inf
      %2501 = vmax.xlane.f32.xlu0 %v2500
      %v2502 = vpop.xlane.xlu0 %2501
      %v2503 = vsel %vm1075, %v2485, -inf
      %2504 = vmax.xlane.f32.xlu0 %v2503
      %v2505 = vpop.xlane.xlu0 %2504
      %v2506 = vsel %vm1075, %v2486, -inf
      %2507 = vmax.xlane.f32.xlu0 %v2506
      %v2508 = vpop.xlane.xlu0 %2507
      %v2509 = vsel %vm1075, %v2487, -inf
      %2510 = vmax.xlane.f32.xlu0 %v2509
      %v2511 = vpop.xlane.xlu0 %2510
      %v2512 = vsub.f32 %v2480, %v2490
      %v2513 = vsub.f32 %v2481, %v2493
      %v2514 = vsub.f32 %v2482, %v2496
      %v2515 = vsub.f32 %v2483, %v2499
      %v2516 = vsub.f32 %v2484, %v2502
      %v2517 = vsub.f32 %v2485, %v2505
      %v2518 = vsub.f32 %v2486, %v2508
      %v2519 = vsub.f32 %v2487, %v2511
      %v2520 = vmul.f32 %v2512, 1.442695
      %v2521 = vpow.pop %v2520
      %v2522 = vmul.f32 %v2513, 1.442695
      %v2523 = vpow.pop %v2522
      %v2524 = vmul.f32 %v2514, 1.442695
      %v2525 = vpow.pop %v2524
      %v2526 = vmul.f32 %v2515, 1.442695
      %v2527 = vpow.pop %v2526
      %v2528 = vmul.f32 %v2516, 1.442695
      %v2529 = vpow.pop %v2528
      %v2530 = vmul.f32 %v2517, 1.442695
      %v2531 = vpow.pop %v2530
      %v2532 = vmul.f32 %v2518, 1.442695
      %v2533 = vpow.pop %v2532
      %v2534 = vmul.f32 %v2519, 1.442695
      %v2535 = vpow.pop %v2534
      %v2536 = vsel %vm1075, %v2521, 0.0
      %2537 = vadd.xlane.f32.xlu0 %v2536
      %v2538 = vpop.xlane.xlu0 %2537
      %v2539 = vsel %vm1075, %v2523, 0.0
      %2540 = vadd.xlane.f32.xlu0 %v2539
      %v2541 = vpop.xlane.xlu0 %2540
      %v2542 = vsel %vm1075, %v2525, 0.0
      %2543 = vadd.xlane.f32.xlu0 %v2542
      %v2544 = vpop.xlane.xlu0 %2543
      %v2545 = vsel %vm1075, %v2527, 0.0
      %2546 = vadd.xlane.f32.xlu0 %v2545
      %v2547 = vpop.xlane.xlu0 %2546
      %v2548 = vsel %vm1075, %v2529, 0.0
      %2549 = vadd.xlane.f32.xlu0 %v2548
      %v2550 = vpop.xlane.xlu0 %2549
      %v2551 = vsel %vm1075, %v2531, 0.0
      %2552 = vadd.xlane.f32.xlu0 %v2551
      %v2553 = vpop.xlane.xlu0 %2552
      %v2554 = vsel %vm1075, %v2533, 0.0
      %2555 = vadd.xlane.f32.xlu0 %v2554
      %v2556 = vpop.xlane.xlu0 %2555
      %v2557 = vsel %vm1075, %v2535, 0.0
      %2558 = vadd.xlane.f32.xlu0 %v2557
      %v2559 = vpop.xlane.xlu0 %2558
      %v2560 = vrcp.pop %v2538
      %v2561 = vrcp.pop %v2541
      %v2562 = vrcp.pop %v2544
      %v2563 = vrcp.pop %v2547
      %v2564 = vrcp.pop %v2550
      %v2565 = vrcp.pop %v2553
      %v2566 = vrcp.pop %v2556
      %v2567 = vrcp.pop %v2559
      %v2568 = vmul.f32 %v2521, %v2560
      %v2569 = vmul.f32 %v2523, %v2561
      %v2570 = vmul.f32 %v2525, %v2562
      %v2571 = vmul.f32 %v2527, %v2563
      %v2572 = vmul.f32 %v2529, %v2564
      %v2573 = vmul.f32 %v2531, %v2565
      %v2574 = vmul.f32 %v2533, %v2566
      %v2575 = vmul.f32 %v2535, %v2567
      %v2576 = vpack.c.bf16 %v2569, %v2568
      %v2577 = vpack.c.bf16 %v2571, %v2570
      %v2578 = vpack.c.bf16 %v2573, %v2572
      %v2579 = vpack.c.bf16 %v2575, %v2574
      %2580 = vrot.lane.b32.xlu0 %v1184, 96
      %v2581 = vpop.permute.xlu0 %2580
      %2582 = vrot.lane.b32.xlu0 %v1185, 96
      %v2583 = vpop.permute.xlu0 %2582
      %2584 = vrot.lane.b32.xlu0 %v1186, 96
      %v2585 = vpop.permute.xlu0 %2584
      %2586 = vrot.lane.b32.xlu0 %v1187, 96
      %v2587 = vpop.permute.xlu0 %2586
      %v2593 = vsel %vm1075, %v2576, 0
      %v2596 = vsel %vm1075, %v2577, 0
      %v2599 = vsel %vm1075, %v2578, 0
      %v2602 = vsel %vm1075, %v2579, 0
      %2604 = vmatprep.subr.bf16.mxu0 0
      %2605 = vmatpush1.bf16.msra.mxu0 %v2581
      %2606 = vmatprep.subr.bf16.mxu0 0
      %2607 = vmatpush1.bf16.msra.mxu0 %v2583
      %2608 = vmatprep.subr.bf16.mxu0 0
      %2609 = vmatpush1.bf16.msra.mxu0 %v2585
      %2610 = vmatprep.subr.bf16.mxu0 0
      %2611 = vmatpush1.bf16.msra.mxu0 %v2587
      %2612 = vmatprep.subr.bf16.mxu0 0
      %2613 = vmatpush1.bf16.msra.mxu0 0
      %2614 = vmatprep.subr.bf16.mxu0 0
      %2615 = vmatpush1.bf16.msra.mxu0 0
      %2616 = vmatprep.subr.bf16.mxu0 0
      %2617 = vmatpush1.bf16.msra.mxu0 0
      %2618 = vmatprep.subr.bf16.mxu0 0
      %2619 = vmatpush1.bf16.msra.mxu0 0
      %2620 = vmatprep.subr.bf16.mxu0 0
      %2621 = vmatpush1.bf16.msra.mxu0 0
      %2622 = vmatprep.subr.bf16.mxu0 0
      %2623 = vmatpush1.bf16.msra.mxu0 0
      %2624 = vmatprep.subr.bf16.mxu0 0
      %2625 = vmatpush1.bf16.msra.mxu0 0
      %2626 = vmatprep.subr.bf16.mxu0 0
      %2627 = vmatpush1.bf16.msra.mxu0 0
      %2628 = vmatprep.subr.bf16.mxu0 0
      %2629 = vmatpush1.bf16.msra.mxu0 0
      %2630 = vmatprep.subr.bf16.mxu0 0
      %2631 = vmatpush1.bf16.msra.mxu0 0
      %2632 = vmatprep.subr.bf16.mxu0 0
      %2633 = vmatpush1.bf16.msra.mxu0 0
      %2634 = vmatprep.subr.bf16.mxu0 0
      %2635 = vmatpush1.bf16.msra.mxu0 0
      %2636 = vmatprep.mubr.bf16.mxu0 0
      %2637 = vmatmul.mubr.bf16.gmra.mrb[0].mxu0 %v2593
      %v2638 = vpop.f32.mrb[0].mxu0
      %v2639 = vadd.f32 0.0, %v2638
      %v2640 = vpop.f32.mrb[0].mxu0
      %v2641 = vpop.f32.mrb[0].mxu0
      %v2642 = vadd.f32 0.0, %v2641
      %v2643 = vpop.f32.mrb[0].mxu0
      %2644 = vmatprep.mubr.bf16.mxu0 0
      %2645 = vmatmul.mubr.bf16.gmra.mrb[0].mxu0 %v2596
      %v2646 = vpop.f32.mrb[0].mxu0
      %v2647 = vadd.f32 0.0, %v2646
      %v2648 = vpop.f32.mrb[0].mxu0
      %v2649 = vpop.f32.mrb[0].mxu0
      %v2650 = vadd.f32 0.0, %v2649
      %v2651 = vpop.f32.mrb[0].mxu0
      %2652 = vmatprep.mubr.bf16.mxu0 0
      %2653 = vmatmul.mubr.bf16.gmra.mrb[0].mxu0 %v2599
      %v2654 = vpop.f32.mrb[0].mxu0
      %v2655 = vadd.f32 0.0, %v2654
      %v2656 = vpop.f32.mrb[0].mxu0
      %v2657 = vpop.f32.mrb[0].mxu0
      %v2658 = vadd.f32 0.0, %v2657
      %v2659 = vpop.f32.mrb[0].mxu0
      %2660 = vmatprep.mubr.bf16.mxu0 0
      %2661 = vmatmul.mubr.bf16.gmra.mrb[0].mxu0 %v2602
      %v2662 = vpop.f32.mrb[0].mxu0
      %v2663 = vadd.f32 0.0, %v2662
      %v2664 = vpop.f32.mrb[0].mxu0
      %v2665 = vpop.f32.mrb[0].mxu0
      %v2666 = vadd.f32 0.0, %v2665
      %v2667 = vpop.f32.mrb[0].mxu0
      %2668 = vdwg.mxu0
      %2669 = vrot.lane.b32.xlu0 %v443, 96
      %v2670 = vpop.permute.xlu0 %2669
      %2671 = vrot.lane.b32.xlu0 %v444, 96
      %v2672 = vpop.permute.xlu0 %2671
      %2673 = vrot.lane.b32.xlu0 %v445, 96
      %v2674 = vpop.permute.xlu0 %2673
      %2675 = vrot.lane.b32.xlu0 %v446, 96
      %v2676 = vpop.permute.xlu0 %2675
      %2677 = vrot.lane.b32.xlu0 %v447, 96
      %v2678 = vpop.permute.xlu0 %2677
      %2679 = vrot.lane.b32.xlu0 %v448, 96
      %v2680 = vpop.permute.xlu0 %2679
      %2681 = vrot.lane.b32.xlu0 %v449, 96
      %v2682 = vpop.permute.xlu0 %2681
      %2683 = vrot.lane.b32.xlu0 %v450, 96
      %v2684 = vpop.permute.xlu0 %2683
      %v2693 = vmul.f32 %v411, %v2670
      %v2694 = vmul.f32 %v412, %v2672
      %v2695 = vmul.f32 %v413, %v2674
      %v2696 = vmul.f32 %v414, %v2676
      %v2697 = vmul.f32 %v415, %v2678
      %v2698 = vmul.f32 %v416, %v2680
      %v2699 = vmul.f32 %v417, %v2682
      %v2700 = vmul.f32 %v418, %v2684
      %2701 = vrot.lane.b32.xlu0 %v451, 112
      %v2702 = vpop.permute.xlu0 %2701
      %2703 = vrot.lane.b32.xlu0 %v452, 112
      %v2704 = vpop.permute.xlu0 %2703
      %2705 = vrot.lane.b32.xlu0 %v453, 112
      %v2706 = vpop.permute.xlu0 %2705
      %2707 = vrot.lane.b32.xlu0 %v454, 112
      %v2708 = vpop.permute.xlu0 %2707
      %2709 = vrot.lane.b32.xlu0 %v455, 112
      %v2710 = vpop.permute.xlu0 %2709
      %2711 = vrot.lane.b32.xlu0 %v456, 112
      %v2712 = vpop.permute.xlu0 %2711
      %2713 = vrot.lane.b32.xlu0 %v457, 112
      %v2714 = vpop.permute.xlu0 %2713
      %2715 = vrot.lane.b32.xlu0 %v458, 112
      %v2716 = vpop.permute.xlu0 %2715
      %v2725 = vmul.f32 %v411, %v2702
      %v2726 = vmul.f32 %v412, %v2704
      %v2727 = vmul.f32 %v413, %v2706
      %v2728 = vmul.f32 %v414, %v2708
      %v2729 = vmul.f32 %v415, %v2710
      %v2730 = vmul.f32 %v416, %v2712
      %v2731 = vmul.f32 %v417, %v2714
      %v2732 = vmul.f32 %v418, %v2716
      %2741 = vrot.lane.b32.xlu0 %v2725, 112
      %v2742 = vpop.permute.xlu0 %2741
      %2743 = vrot.lane.b32.xlu0 %v2726, 112
      %v2744 = vpop.permute.xlu0 %2743
      %2745 = vrot.lane.b32.xlu0 %v2727, 112
      %v2746 = vpop.permute.xlu0 %2745
      %2747 = vrot.lane.b32.xlu0 %v2728, 112
      %v2748 = vpop.permute.xlu0 %2747
      %2749 = vrot.lane.b32.xlu0 %v2729, 112
      %v2750 = vpop.permute.xlu0 %2749
      %2751 = vrot.lane.b32.xlu0 %v2730, 112
      %v2752 = vpop.permute.xlu0 %2751
      %2753 = vrot.lane.b32.xlu0 %v2731, 112
      %v2754 = vpop.permute.xlu0 %2753
      %2755 = vrot.lane.b32.xlu0 %v2732, 112
      %v2756 = vpop.permute.xlu0 %2755
      %v2765 = vsub.f32 %v2693, %v2742
      %v2766 = vsub.f32 %v2694, %v2744
      %v2767 = vsub.f32 %v2695, %v2746
      %v2768 = vsub.f32 %v2696, %v2748
      %v2769 = vsub.f32 %v2697, %v2750
      %v2770 = vsub.f32 %v2698, %v2752
      %v2771 = vsub.f32 %v2699, %v2754
      %v2772 = vsub.f32 %v2700, %v2756
      %2773 = vrot.lane.b32.xlu0 %v451, 96
      %v2774 = vpop.permute.xlu0 %2773
      %2775 = vrot.lane.b32.xlu0 %v452, 96
      %v2776 = vpop.permute.xlu0 %2775
      %2777 = vrot.lane.b32.xlu0 %v453, 96
      %v2778 = vpop.permute.xlu0 %2777
      %2779 = vrot.lane.b32.xlu0 %v454, 96
      %v2780 = vpop.permute.xlu0 %2779
      %2781 = vrot.lane.b32.xlu0 %v455, 96
      %v2782 = vpop.permute.xlu0 %2781
      %2783 = vrot.lane.b32.xlu0 %v456, 96
      %v2784 = vpop.permute.xlu0 %2783
      %2785 = vrot.lane.b32.xlu0 %v457, 96
      %v2786 = vpop.permute.xlu0 %2785
      %2787 = vrot.lane.b32.xlu0 %v458, 96
      %v2788 = vpop.permute.xlu0 %2787
      %v2797 = vmul.f32 %v411, %v2774
      %v2798 = vmul.f32 %v412, %v2776
      %v2799 = vmul.f32 %v413, %v2778
      %v2800 = vmul.f32 %v414, %v2780
      %v2801 = vmul.f32 %v415, %v2782
      %v2802 = vmul.f32 %v416, %v2784
      %v2803 = vmul.f32 %v417, %v2786
      %v2804 = vmul.f32 %v418, %v2788
      %2805 = vrot.lane.b32.xlu0 %v443, 112
      %v2806 = vpop.permute.xlu0 %2805
      %2807 = vrot.lane.b32.xlu0 %v444, 112
      %v2808 = vpop.permute.xlu0 %2807
      %2809 = vrot.lane.b32.xlu0 %v445, 112
      %v2810 = vpop.permute.xlu0 %2809
      %2811 = vrot.lane.b32.xlu0 %v446, 112
      %v2812 = vpop.permute.xlu0 %2811
      %2813 = vrot.lane.b32.xlu0 %v447, 112
      %v2814 = vpop.permute.xlu0 %2813
      %2815 = vrot.lane.b32.xlu0 %v448, 112
      %v2816 = vpop.permute.xlu0 %2815
      %2817 = vrot.lane.b32.xlu0 %v449, 112
      %v2818 = vpop.permute.xlu0 %2817
      %2819 = vrot.lane.b32.xlu0 %v450, 112
      %v2820 = vpop.permute.xlu0 %2819
      %v2829 = vmul.f32 %v411, %v2806
      %v2830 = vmul.f32 %v412, %v2808
      %v2831 = vmul.f32 %v413, %v2810
      %v2832 = vmul.f32 %v414, %v2812
      %v2833 = vmul.f32 %v415, %v2814
      %v2834 = vmul.f32 %v416, %v2816
      %v2835 = vmul.f32 %v417, %v2818
      %v2836 = vmul.f32 %v418, %v2820
      %2845 = vrot.lane.b32.xlu0 %v2829, 112
      %v2846 = vpop.permute.xlu0 %2845
      %2847 = vrot.lane.b32.xlu0 %v2830, 112
      %v2848 = vpop.permute.xlu0 %2847
      %2849 = vrot.lane.b32.xlu0 %v2831, 112
      %v2850 = vpop.permute.xlu0 %2849
      %2851 = vrot.lane.b32.xlu0 %v2832, 112
      %v2852 = vpop.permute.xlu0 %2851
      %2853 = vrot.lane.b32.xlu0 %v2833, 112
      %v2854 = vpop.permute.xlu0 %2853
      %2855 = vrot.lane.b32.xlu0 %v2834, 112
      %v2856 = vpop.permute.xlu0 %2855
      %2857 = vrot.lane.b32.xlu0 %v2835, 112
      %v2858 = vpop.permute.xlu0 %2857
      %2859 = vrot.lane.b32.xlu0 %v2836, 112
      %v2860 = vpop.permute.xlu0 %2859
      %v2869 = vadd.f32 %v2797, %v2846
      %v2870 = vadd.f32 %v2798, %v2848
      %v2871 = vadd.f32 %v2799, %v2850
      %v2872 = vadd.f32 %v2800, %v2852
      %v2873 = vadd.f32 %v2801, %v2854
      %v2874 = vadd.f32 %v2802, %v2856
      %v2875 = vadd.f32 %v2803, %v2858
      %v2876 = vadd.f32 %v2804, %v2860
      %2885 = vrot.lane.b32.xlu0 %v2765, 32
      %v2886 = vpop.permute.xlu0 %2885
      %2887 = vrot.lane.b32.xlu0 %v2766, 32
      %v2888 = vpop.permute.xlu0 %2887
      %2889 = vrot.lane.b32.xlu0 %v2767, 32
      %v2890 = vpop.permute.xlu0 %2889
      %2891 = vrot.lane.b32.xlu0 %v2768, 32
      %v2892 = vpop.permute.xlu0 %2891
      %2893 = vrot.lane.b32.xlu0 %v2769, 32
      %v2894 = vpop.permute.xlu0 %2893
      %2895 = vrot.lane.b32.xlu0 %v2770, 32
      %v2896 = vpop.permute.xlu0 %2895
      %2897 = vrot.lane.b32.xlu0 %v2771, 32
      %v2898 = vpop.permute.xlu0 %2897
      %2899 = vrot.lane.b32.xlu0 %v2772, 32
      %v2900 = vpop.permute.xlu0 %2899
      %2917 = vrot.lane.b32.xlu0 %v2869, 48
      %v2918 = vpop.permute.xlu0 %2917
      %2919 = vrot.lane.b32.xlu0 %v2870, 48
      %v2920 = vpop.permute.xlu0 %2919
      %2921 = vrot.lane.b32.xlu0 %v2871, 48
      %v2922 = vpop.permute.xlu0 %2921
      %2923 = vrot.lane.b32.xlu0 %v2872, 48
      %v2924 = vpop.permute.xlu0 %2923
      %2925 = vrot.lane.b32.xlu0 %v2873, 48
      %v2926 = vpop.permute.xlu0 %2925
      %2927 = vrot.lane.b32.xlu0 %v2874, 48
      %v2928 = vpop.permute.xlu0 %2927
      %2929 = vrot.lane.b32.xlu0 %v2875, 48
      %v2930 = vpop.permute.xlu0 %2929
      %2931 = vrot.lane.b32.xlu0 %v2876, 48
      %v2932 = vpop.permute.xlu0 %2931
      %v2941 = vsel %vm736, %v2886, %v2918
      %v2942 = vsel %vm736, %v2888, %v2920
      %v2943 = vsel %vm736, %v2890, %v2922
      %v2944 = vsel %vm736, %v2892, %v2924
      %v2945 = vsel %vm736, %v2894, %v2926
      %v2946 = vsel %vm736, %v2896, %v2928
      %v2947 = vsel %vm736, %v2898, %v2930
      %v2948 = vsel %vm736, %v2900, %v2932
      %v2949 = vpack.c.bf16 %v2942, %v2941
      %v2950 = vpack.c.bf16 %v2944, %v2943
      %v2951 = vpack.c.bf16 %v2946, %v2945
      %v2952 = vpack.c.bf16 %v2948, %v2947
      %v2954 = vsel %vm969, %v2949, 0
      %v2957 = vsel %vm969, %v2950, 0
      %v2960 = vsel %vm969, %v2951, 0
      %v2963 = vsel %vm969, %v2952, 0
      %2965 = vmatprep.subr.bf16.mxu0 0
      %2966 = vmatpush1.bf16.xpose.msra.mxu0 %v2396
      %2967 = vmatprep.subr.bf16.mxu0 0
      %2968 = vmatpush1.bf16.xpose.msra.mxu0 %v2399
      %2969 = vmatprep.subr.bf16.mxu0 0
      %2970 = vmatpush1.bf16.xpose.msra.mxu0 %v2402
      %2971 = vmatprep.subr.bf16.mxu0 0
      %2972 = vmatpush1.bf16.xpose.msra.mxu0 %v2405
      %2973 = vmatprep.subr.bf16.mxu0 0
      %2974 = vmatpush1.bf16.xpose.msra.mxu0 0
      %2975 = vmatprep.subr.bf16.mxu0 0
      %2976 = vmatpush1.bf16.xpose.msra.mxu0 0
      %2977 = vmatprep.subr.bf16.mxu0 0
      %2978 = vmatpush1.bf16.xpose.msra.mxu0 0
      %2979 = vmatprep.subr.bf16.mxu0 0
      %2980 = vmatpush1.bf16.xpose.msra.mxu0 0
      %2981 = vmatprep.subr.bf16.mxu0 0
      %2982 = vmatpush1.bf16.xpose.msra.mxu0 0
      %2983 = vmatprep.subr.bf16.mxu0 0
      %2984 = vmatpush1.bf16.xpose.msra.mxu0 0
      %2985 = vmatprep.subr.bf16.mxu0 0
      %2986 = vmatpush1.bf16.xpose.msra.mxu0 0
      %2987 = vmatprep.subr.bf16.mxu0 0
      %2988 = vmatpush1.bf16.xpose.msra.mxu0 0
      %2989 = vmatprep.subr.bf16.mxu0 0
      %2990 = vmatpush1.bf16.xpose.msra.mxu0 0
      %2991 = vmatprep.subr.bf16.mxu0 0
      %2992 = vmatpush1.bf16.xpose.msra.mxu0 0
      %2993 = vmatprep.subr.bf16.mxu0 0
      %2994 = vmatpush1.bf16.xpose.msra.mxu0 0
      %2995 = vmatprep.subr.bf16.mxu0 0
      %2996 = vmatpush1.bf16.xpose.msra.mxu0 0
      %2997 = vmatprep.mubr.bf16.mxu0 0
      %2998 = vmatmul.mubr.bf16.gmra.mrb[0].mxu0 %v2954
      %v2999 = vpop.f32.mrb[0].mxu0
      %v3000 = vadd.f32 0.0, %v2999
      %v3001 = vpop.f32.mrb[0].mxu0
      %v3002 = vpop.f32.mrb[0].mxu0
      %v3003 = vadd.f32 0.0, %v3002
      %v3004 = vpop.f32.mrb[0].mxu0
      %3005 = vmatprep.mubr.bf16.mxu0 0
      %3006 = vmatmul.mubr.bf16.gmra.mrb[0].mxu0 %v2957
      %v3007 = vpop.f32.mrb[0].mxu0
      %v3008 = vadd.f32 0.0, %v3007
      %v3009 = vpop.f32.mrb[0].mxu0
      %v3010 = vpop.f32.mrb[0].mxu0
      %v3011 = vadd.f32 0.0, %v3010
      %v3012 = vpop.f32.mrb[0].mxu0
      %3013 = vmatprep.mubr.bf16.mxu0 0
      %3014 = vmatmul.mubr.bf16.gmra.mrb[0].mxu0 %v2960
      %v3015 = vpop.f32.mrb[0].mxu0
      %v3016 = vadd.f32 0.0, %v3015
      %v3017 = vpop.f32.mrb[0].mxu0
      %v3018 = vpop.f32.mrb[0].mxu0
      %v3019 = vadd.f32 0.0, %v3018
      %v3020 = vpop.f32.mrb[0].mxu0
      %3021 = vmatprep.mubr.bf16.mxu0 0
      %3022 = vmatmul.mubr.bf16.gmra.mrb[0].mxu0 %v2963
      %v3023 = vpop.f32.mrb[0].mxu0
      %v3024 = vadd.f32 0.0, %v3023
      %v3025 = vpop.f32.mrb[0].mxu0
      %v3026 = vpop.f32.mrb[0].mxu0
      %v3027 = vadd.f32 0.0, %v3026
      %v3028 = vpop.f32.mrb[0].mxu0
      %3029 = vdwg.mxu0
      %v3030 = vmul.f32 %v3000, 0.17677669
      %v3031 = vmul.f32 %v3003, 0.17677669
      %v3032 = vmul.f32 %v3008, 0.17677669
      %v3033 = vmul.f32 %v3011, 0.17677669
      %v3034 = vmul.f32 %v3016, 0.17677669
      %v3035 = vmul.f32 %v3019, 0.17677669
      %v3036 = vmul.f32 %v3024, 0.17677669
      %v3037 = vmul.f32 %v3027, 0.17677669
      %v3038 = vsel %vm520, %v3030, -1e+30
      %v3039 = vsel %vm521, %v3031, -1e+30
      %v3040 = vsel %vm522, %v3032, -1e+30
      %v3041 = vsel %vm523, %v3033, -1e+30
      %v3042 = vsel %vm524, %v3034, -1e+30
      %v3043 = vsel %vm525, %v3035, -1e+30
      %v3044 = vsel %vm526, %v3036, -1e+30
      %v3045 = vsel %vm527, %v3037, -1e+30
      %v3046 = vsel %vm1075, %v3038, -inf
      %3047 = vmax.xlane.f32.xlu0 %v3046
      %v3048 = vpop.xlane.xlu0 %3047
      %v3049 = vsel %vm1075, %v3039, -inf
      %3050 = vmax.xlane.f32.xlu0 %v3049
      %v3051 = vpop.xlane.xlu0 %3050
      %v3052 = vsel %vm1075, %v3040, -inf
      %3053 = vmax.xlane.f32.xlu0 %v3052
      %v3054 = vpop.xlane.xlu0 %3053
      %v3055 = vsel %vm1075, %v3041, -inf
      %3056 = vmax.xlane.f32.xlu0 %v3055
      %v3057 = vpop.xlane.xlu0 %3056
      %v3058 = vsel %vm1075, %v3042, -inf
      %3059 = vmax.xlane.f32.xlu0 %v3058
      %v3060 = vpop.xlane.xlu0 %3059
      %v3061 = vsel %vm1075, %v3043, -inf
      %3062 = vmax.xlane.f32.xlu0 %v3061
      %v3063 = vpop.xlane.xlu0 %3062
      %v3064 = vsel %vm1075, %v3044, -inf
      %3065 = vmax.xlane.f32.xlu0 %v3064
      %v3066 = vpop.xlane.xlu0 %3065
      %v3067 = vsel %vm1075, %v3045, -inf
      %3068 = vmax.xlane.f32.xlu0 %v3067
      %v3069 = vpop.xlane.xlu0 %3068
      %v3070 = vsub.f32 %v3038, %v3048
      %v3071 = vsub.f32 %v3039, %v3051
      %v3072 = vsub.f32 %v3040, %v3054
      %v3073 = vsub.f32 %v3041, %v3057
      %v3074 = vsub.f32 %v3042, %v3060
      %v3075 = vsub.f32 %v3043, %v3063
      %v3076 = vsub.f32 %v3044, %v3066
      %v3077 = vsub.f32 %v3045, %v3069
      %v3078 = vmul.f32 %v3070, 1.442695
      %v3079 = vpow.pop %v3078
      %v3080 = vmul.f32 %v3071, 1.442695
      %v3081 = vpow.pop %v3080
      %v3082 = vmul.f32 %v3072, 1.442695
      %v3083 = vpow.pop %v3082
      %v3084 = vmul.f32 %v3073, 1.442695
      %v3085 = vpow.pop %v3084
      %v3086 = vmul.f32 %v3074, 1.442695
      %v3087 = vpow.pop %v3086
      %v3088 = vmul.f32 %v3075, 1.442695
      %v3089 = vpow.pop %v3088
      %v3090 = vmul.f32 %v3076, 1.442695
      %v3091 = vpow.pop %v3090
      %v3092 = vmul.f32 %v3077, 1.442695
      %v3093 = vpow.pop %v3092
      %v3094 = vsel %vm1075, %v3079, 0.0
      %3095 = vadd.xlane.f32.xlu0 %v3094
      %v3096 = vpop.xlane.xlu0 %3095
      %v3097 = vsel %vm1075, %v3081, 0.0
      %3098 = vadd.xlane.f32.xlu0 %v3097
      %v3099 = vpop.xlane.xlu0 %3098
      %v3100 = vsel %vm1075, %v3083, 0.0
      %3101 = vadd.xlane.f32.xlu0 %v3100
      %v3102 = vpop.xlane.xlu0 %3101
      %v3103 = vsel %vm1075, %v3085, 0.0
      %3104 = vadd.xlane.f32.xlu0 %v3103
      %v3105 = vpop.xlane.xlu0 %3104
      %v3106 = vsel %vm1075, %v3087, 0.0
      %3107 = vadd.xlane.f32.xlu0 %v3106
      %v3108 = vpop.xlane.xlu0 %3107
      %v3109 = vsel %vm1075, %v3089, 0.0
      %3110 = vadd.xlane.f32.xlu0 %v3109
      %v3111 = vpop.xlane.xlu0 %3110
      %v3112 = vsel %vm1075, %v3091, 0.0
      %3113 = vadd.xlane.f32.xlu0 %v3112
      %v3114 = vpop.xlane.xlu0 %3113
      %v3115 = vsel %vm1075, %v3093, 0.0
      %3116 = vadd.xlane.f32.xlu0 %v3115
      %v3117 = vpop.xlane.xlu0 %3116
      %v3118 = vrcp.pop %v3096
      %v3119 = vrcp.pop %v3099
      %v3120 = vrcp.pop %v3102
      %v3121 = vrcp.pop %v3105
      %v3122 = vrcp.pop %v3108
      %v3123 = vrcp.pop %v3111
      %v3124 = vrcp.pop %v3114
      %v3125 = vrcp.pop %v3117
      %v3126 = vmul.f32 %v3079, %v3118
      %v3127 = vmul.f32 %v3081, %v3119
      %v3128 = vmul.f32 %v3083, %v3120
      %v3129 = vmul.f32 %v3085, %v3121
      %v3130 = vmul.f32 %v3087, %v3122
      %v3131 = vmul.f32 %v3089, %v3123
      %v3132 = vmul.f32 %v3091, %v3124
      %v3133 = vmul.f32 %v3093, %v3125
      %v3134 = vpack.c.bf16 %v3127, %v3126
      %v3135 = vpack.c.bf16 %v3129, %v3128
      %v3136 = vpack.c.bf16 %v3131, %v3130
      %v3137 = vpack.c.bf16 %v3133, %v3132
      %v3139 = vsel %vm1075, %v3134, 0
      %v3142 = vsel %vm1075, %v3135, 0
      %v3145 = vsel %vm1075, %v3136, 0
      %v3148 = vsel %vm1075, %v3137, 0
      %3150 = vmatprep.subr.bf16.mxu0 0
      %3151 = vmatpush1.bf16.msra.mxu0 %v2581
      %3152 = vmatprep.subr.bf16.mxu0 0
      %3153 = vmatpush1.bf16.msra.mxu0 %v2583
      %3154 = vmatprep.subr.bf16.mxu0 0
      %3155 = vmatpush1.bf16.msra.mxu0 %v2585
      %3156 = vmatprep.subr.bf16.mxu0 0
      %3157 = vmatpush1.bf16.msra.mxu0 %v2587
      %3158 = vmatprep.subr.bf16.mxu0 0
      %3159 = vmatpush1.bf16.msra.mxu0 0
      %3160 = vmatprep.subr.bf16.mxu0 0
      %3161 = vmatpush1.bf16.msra.mxu0 0
      %3162 = vmatprep.subr.bf16.mxu0 0
      %3163 = vmatpush1.bf16.msra.mxu0 0
      %3164 = vmatprep.subr.bf16.mxu0 0
      %3165 = vmatpush1.bf16.msra.mxu0 0
      %3166 = vmatprep.subr.bf16.mxu0 0
      %3167 = vmatpush1.bf16.msra.mxu0 0
      %3168 = vmatprep.subr.bf16.mxu0 0
      %3169 = vmatpush1.bf16.msra.mxu0 0
      %3170 = vmatprep.subr.bf16.mxu0 0
      %3171 = vmatpush1.bf16.msra.mxu0 0
      %3172 = vmatprep.subr.bf16.mxu0 0
      %3173 = vmatpush1.bf16.msra.mxu0 0
      %3174 = vmatprep.subr.bf16.mxu0 0
      %3175 = vmatpush1.bf16.msra.mxu0 0
      %3176 = vmatprep.subr.bf16.mxu0 0
      %3177 = vmatpush1.bf16.msra.mxu0 0
      %3178 = vmatprep.subr.bf16.mxu0 0
      %3179 = vmatpush1.bf16.msra.mxu0 0
      %3180 = vmatprep.subr.bf16.mxu0 0
      %3181 = vmatpush1.bf16.msra.mxu0 0
      %3182 = vmatprep.mubr.bf16.mxu0 0
      %3183 = vmatmul.mubr.bf16.gmra.mrb[0].mxu0 %v3139
      %v3184 = vpop.f32.mrb[0].mxu0
      %v3185 = vadd.f32 0.0, %v3184
      %v3186 = vpop.f32.mrb[0].mxu0
      %v3187 = vpop.f32.mrb[0].mxu0
      %v3188 = vadd.f32 0.0, %v3187
      %v3189 = vpop.f32.mrb[0].mxu0
      %3190 = vmatprep.mubr.bf16.mxu0 0
      %3191 = vmatmul.mubr.bf16.gmra.mrb[0].mxu0 %v3142
      %v3192 = vpop.f32.mrb[0].mxu0
      %v3193 = vadd.f32 0.0, %v3192
      %v3194 = vpop.f32.mrb[0].mxu0
      %v3195 = vpop.f32.mrb[0].mxu0
      %v3196 = vadd.f32 0.0, %v3195
      %v3197 = vpop.f32.mrb[0].mxu0
      %3198 = vmatprep.mubr.bf16.mxu0 0
      %3199 = vmatmul.mubr.bf16.gmra.mrb[0].mxu0 %v3145
      %v3200 = vpop.f32.mrb[0].mxu0
      %v3201 = vadd.f32 0.0, %v3200
      %v3202 = vpop.f32.mrb[0].mxu0
      %v3203 = vpop.f32.mrb[0].mxu0
      %v3204 = vadd.f32 0.0, %v3203
      %v3205 = vpop.f32.mrb[0].mxu0
      %3206 = vmatprep.mubr.bf16.mxu0 0
      %3207 = vmatmul.mubr.bf16.gmra.mrb[0].mxu0 %v3148
      %v3208 = vpop.f32.mrb[0].mxu0
      %v3209 = vadd.f32 0.0, %v3208
      %v3210 = vpop.f32.mrb[0].mxu0
      %v3211 = vpop.f32.mrb[0].mxu0
      %v3212 = vadd.f32 0.0, %v3211
      %v3213 = vpop.f32.mrb[0].mxu0
      %3214 = vdwg.mxu0
      %3223 = vrot.lane.b32.xlu0 %v1785, 32
      %v3224 = vpop.permute.xlu0 %3223
      %3225 = vrot.lane.b32.xlu0 %v1788, 32
      %v3226 = vpop.permute.xlu0 %3225
      %3227 = vrot.lane.b32.xlu0 %v1793, 32
      %v3228 = vpop.permute.xlu0 %3227
      %3229 = vrot.lane.b32.xlu0 %v1796, 32
      %v3230 = vpop.permute.xlu0 %3229
      %3231 = vrot.lane.b32.xlu0 %v1801, 32
      %v3232 = vpop.permute.xlu0 %3231
      %3233 = vrot.lane.b32.xlu0 %v1804, 32
      %v3234 = vpop.permute.xlu0 %3233
      %3235 = vrot.lane.b32.xlu0 %v1809, 32
      %v3236 = vpop.permute.xlu0 %3235
      %3237 = vrot.lane.b32.xlu0 %v1812, 32
      %v3238 = vpop.permute.xlu0 %3237
      %3255 = vrot.lane.b32.xlu0 %v2639, 64
      %v3256 = vpop.permute.xlu0 %3255
      %3257 = vrot.lane.b32.xlu0 %v2642, 64
      %v3258 = vpop.permute.xlu0 %3257
      %3259 = vrot.lane.b32.xlu0 %v2647, 64
      %v3260 = vpop.permute.xlu0 %3259
      %3261 = vrot.lane.b32.xlu0 %v2650, 64
      %v3262 = vpop.permute.xlu0 %3261
      %3263 = vrot.lane.b32.xlu0 %v2655, 64
      %v3264 = vpop.permute.xlu0 %3263
      %3265 = vrot.lane.b32.xlu0 %v2658, 64
      %v3266 = vpop.permute.xlu0 %3265
      %3267 = vrot.lane.b32.xlu0 %v2663, 64
      %v3268 = vpop.permute.xlu0 %3267
      %3269 = vrot.lane.b32.xlu0 %v2666, 64
      %v3270 = vpop.permute.xlu0 %3269
      %3287 = vrot.lane.b32.xlu0 %v3185, 96
      %v3288 = vpop.permute.xlu0 %3287
      %3289 = vrot.lane.b32.xlu0 %v3188, 96
      %v3290 = vpop.permute.xlu0 %3289
      %3291 = vrot.lane.b32.xlu0 %v3193, 96
      %v3292 = vpop.permute.xlu0 %3291
      %3293 = vrot.lane.b32.xlu0 %v3196, 96
      %v3294 = vpop.permute.xlu0 %3293
      %3295 = vrot.lane.b32.xlu0 %v3201, 96
      %v3296 = vpop.permute.xlu0 %3295
      %3297 = vrot.lane.b32.xlu0 %v3204, 96
      %v3298 = vpop.permute.xlu0 %3297
      %3299 = vrot.lane.b32.xlu0 %v3209, 96
      %v3300 = vpop.permute.xlu0 %3299
      %3301 = vrot.lane.b32.xlu0 %v3212, 96
      %v3302 = vpop.permute.xlu0 %3301
      %v3311 = vsel %vm969, %v1239, %v3224
      %v3312 = vsel %vm969, %v1242, %v3226
      %v3313 = vsel %vm969, %v1247, %v3228
      %v3314 = vsel %vm969, %v1250, %v3230
      %v3315 = vsel %vm969, %v1255, %v3232
      %v3316 = vsel %vm969, %v1258, %v3234
      %v3317 = vsel %vm969, %v1263, %v3236
      %v3318 = vsel %vm969, %v1266, %v3238
      %v3319 = vsel %vm1075, %v3311, %v3256
      %v3320 = vsel %vm1075, %v3312, %v3258
      %v3321 = vsel %vm1075, %v3313, %v3260
      %v3322 = vsel %vm1075, %v3314, %v3262
      %v3323 = vsel %vm1075, %v3315, %v3264
      %v3324 = vsel %vm1075, %v3316, %v3266
      %v3325 = vsel %vm1075, %v3317, %v3268
      %v3326 = vsel %vm1075, %v3318, %v3270
      %vm3327 = vcmask 785408
      %v3328 = vsel %vm3327, %v3319, %v3288
      %v3329 = vsel %vm3327, %v3320, %v3290
      %v3330 = vsel %vm3327, %v3321, %v3292
      %v3331 = vsel %vm3327, %v3322, %v3294
      %v3332 = vsel %vm3327, %v3323, %v3296
      %v3333 = vsel %vm3327, %v3324, %v3298
      %v3334 = vsel %vm3327, %v3325, %v3300
      %v3335 = vsel %vm3327, %v3326, %v3302
      %v3336 = vpack.c.bf16 %v3329, %v3328
      %v3337 = vpack.c.bf16 %v3331, %v3330
      %v3338 = vpack.c.bf16 %v3333, %v3332
      %v3339 = vpack.c.bf16 %v3335, %v3334
      %v3344 = vunpack.c.l.b16 %v3336
      %v3345 = vunpack.c.h.b16 %v3336
      %v3346 = vunpack.c.l.b16 %v3337
      %v3347 = vunpack.c.h.b16 %v3337
      %v3348 = vunpack.c.l.b16 %v3338
      %v3349 = vunpack.c.h.b16 %v3338
      %v3350 = vunpack.c.l.b16 %v3339
      %v3351 = vunpack.c.h.b16 %v3339
      %v3352 = vpack.c.b16 %v3344, %v3344
      %v3353 = vpack.c.b16 %v3345, %v3345
      %v3354 = vpack.c.b16 %v3346, %v3346
      %v3355 = vpack.c.b16 %v3347, %v3347
      %v3356 = vpack.c.b16 %v3348, %v3348
      %v3357 = vpack.c.b16 %v3349, %v3349
      %v3358 = vpack.c.b16 %v3350, %v3350
      %v3359 = vpack.c.b16 %v3351, %v3351
      %3368 = vst [vmem:[%s400] sm:$0xf] %v3352
      %3369 = vst [vmem:[%s400 + $0x4] sm:$0xf] %v3353
      %3370 = vst [vmem:[%s400 + $0x8] sm:$0xf] %v3354
      %3371 = vst [vmem:[%s400 + $0xc] sm:$0xf] %v3355
      %3372 = vst [vmem:[%s400 + $0x10] sm:$0xf] %v3356
      %3373 = vst [vmem:[%s400 + $0x14] sm:$0xf] %v3357
      %3374 = vst [vmem:[%s400 + $0x18] sm:$0xf] %v3358
      %3375 = vst [vmem:[%s400 + $0x1c] sm:$0xf] %v3359
      %s3376 = smul.u32 8, %s23
      %p3377 = scmp.lt.s32.totalorder %s22, 1
      %s3378 = scalar_select %p3377, %s22, 1
      %p3379 = scmp.lt.s32.totalorder %s3376, 7
      %s3380 = scalar_select %p3379, %s3376, 7
      %s3381 = smul.addr %s3378, 8
      %s3382 = sadd.s32 %s3380, %s3381
      %s3383 = smul.addr %s3382, 4
      %s3384 = scalar_lea.vmem %s7, %s3383
      // Predicated region
      $region49: #{gpt_forward.10} parent=47 // pred_check
        %p3385 = pneg %p224
      $region50: #{gpt_forward.10} parent=47 // pred_check_branch
        %3387 = sbr.rel (%p3385) target = $region52
      $region51: #{gpt_forward.10} parent=47 // pred_region
        %s3388 = smul.u32 8, %s23
      $region52: #{gpt_forward.10} parent=47 // pred_fallthru
        _
    $region48: #{gpt_forward.10} parent=5 // pred_fallthru
      _
    %p3389 = scmp.le.s32.totalorder 2, %s13
    // Predicated region
    $region53: #{gpt_forward.10} parent=5 // pred_check
      %p3390 = pneg %p3389
    $region54: #{gpt_forward.10} parent=5 // pred_check_branch
      %3392 = sbr.rel (%p3390) target = $region56
    $region55: #{gpt_forward.10} parent=5 // pred_region
      %s3393 = ssub.s32 %s13, 2
      // Predicated region
      $region57: #{gpt_forward.10} parent=55 // pred_check
        %p3394 = pneg %p230
      $region58: #{gpt_forward.10} parent=55 // pred_check_branch
        %3396 = sbr.rel (%p3394) target = $region60
      $region59: #{gpt_forward.10} parent=55 // pred_region
        %s3397 = smul.u32 8, %s25
        %p3398 = scmp.lt.s32.totalorder %s24, 1
        %s3399 = scalar_select %p3398, %s24, 1
        %p3400 = scmp.lt.s32.totalorder %s3397, 7
        %s3401 = scalar_select %p3400, %s3397, 7
        %s3402 = smul.addr %s3399, 8
        %s3403 = sadd.s32 %s3401, %s3402
        %s3404 = smul.addr %s3403, 4
        %s3405 = scalar_lea.vmem %s7, %s3404
      $region60: #{gpt_forward.10} parent=55 // pred_fallthru
        _
    $region56: #{gpt_forward.10} parent=5 // pred_fallthru
      _
  $region6: #{gpt_forward.10} parent=0 // loop_footer
    %s17 = sadd.s32 1, %s13
  $region7: #{gpt_forward.10} parent=0 // loop_footer_branch
    %12 = sbr.rel target = $region3
  $region8: #{gpt_forward.10} parent=0 // loop_exit
    _

</llo_original>
